<compile_context>
chip_gen: v6e
topology: v6e:2x2x1
jax: 0.10.0
libtpu: 0.0.40
codegen_flags: <defaults>
</compile_context>

<pallas_src>
import functools

import jax
import jax.numpy as jnp
from jax import lax
from jax.experimental import pallas as pl
from jax.experimental.pallas import tpu as pltpu


def _round_up(a, b):
    return ((a + b - 1) // b) * b


def gat_layer_kernel(x_src_ref, x_t_ref, x_dst_ref, adj_ref, w_ref,
                     w_asrc_t_ref, w_adst_ref, scale_ref, shift_ref, o_ref,
                     *, heads, head_dim, use_residual, neg_slope):
    """One destination-row tile of the GAT layer.

    x_src_ref   : [N_pad, F_pad]   all source-node features (block idx constant)
    x_t_ref     : [F_pad, N_pad]   x transposed (for alpha_src^T without XLU transpose)
    x_dst_ref   : [TILE,  F_pad]   this tile's dst-node features (residual, alpha_dst)
    adj_ref     : [TILE,  N_pad]   bf16 {0,1}; adj[i, j]=1 iff edge j -> i (incl. self)
    w_ref       : [F_pad, HC_pad]  projection weight (zero-padded)
    w_asrc_t_ref: [H, F_pad]       (W @ att_src_blockdiag)^T  (host-folded)
    w_adst_ref  : [F_pad, H]        W @ att_dst_blockdiag     (host-folded)
    scale_ref   : [1, HC_pad]      folded BN scale
    shift_ref   : [1, HC_pad]      folded BN shift + scale*gat_bias
    o_ref       : [TILE, HC_pad]
    """
    # Projection of *all* source nodes (recomputed per tile: ~F_pad/TILE of the
    # aggregation MXU cost; kept in-kernel so the dst-tile grid axis stays
    # "parallel"-safe — no cross-iteration scratch dependency).
    x_src = x_src_ref[...]
    h_all = jnp.dot(x_src, w_ref[...], preferred_element_type=jnp.float32)   # [N, HCp]

    # Per-node attention scalars (all f32).
    alpha_src_t = jnp.dot(w_asrc_t_ref[...], x_t_ref[...],
                          preferred_element_type=jnp.float32)                # [H, N]
    x_dst = x_dst_ref[...]                                                   # [T, Fp]
    alpha_dst = jnp.dot(x_dst, w_adst_ref[...],
                        preferred_element_type=jnp.float32)                  # [T, H]

    # Edge mask -> additive bias, computed once per tile.
    adj = adj_ref[...].astype(jnp.float32)                                   # [T, N]
    mask_bias = jnp.where(adj > 0.0, jnp.float32(0.0), jnp.float32(-1e30))

    tile_n, n_src = mask_bias.shape
    hc_pad = h_all.shape[1]

    lane_ids_h = lax.broadcasted_iota(jnp.int32, (tile_n, heads), 1)
    sub_ids_h = lax.broadcasted_iota(jnp.int32, (heads, n_src), 0)
    col_ids = lax.broadcasted_iota(jnp.int32, (1, hc_pad), 1)

    def head_body(head, acc):
        # Select this head's scalars without dynamic lane slicing (iota-compare + reduce).
        a_d = jnp.sum(jnp.where(lane_ids_h == head, alpha_dst, 0.0),
                      axis=1, keepdims=True)                                 # [T, 1]
        a_s = jnp.sum(jnp.where(sub_ids_h == head, alpha_src_t, 0.0),
                      axis=0, keepdims=True)                                 # [1, N]
        # e[i, j] = LeakyReLU(alpha_dst_i + alpha_src_j) + mask_bias
        e = a_d + a_s
        e = jnp.where(e >= 0.0, e, neg_slope * e)
        e = e + mask_bias
        # Masked softmax over sources; masked lanes underflow to exact 0 in f32.
        m = jnp.max(e, axis=-1, keepdims=True)
        p = jnp.exp(e - m)
        denom = jnp.sum(p, axis=-1, keepdims=True)
        attn = p * pl.reciprocal(denom, approx=True)                         # [T, N]
        # Zero all columns outside this head, accumulate full HC_pad width
        # (same MXU passes since head_dim << 128 lanes); bf16 operands, f32 acc.
        lo = head * head_dim
        col_mask = (col_ids >= lo) & (col_ids < lo + head_dim)
        h_head = jnp.where(col_mask, h_all, 0.0).astype(jnp.bfloat16)        # [N, HCp]
        return acc + jnp.dot(attn.astype(jnp.bfloat16), h_head,
                             preferred_element_type=jnp.float32)

    acc = lax.fori_loop(0, heads, head_body,
                        jnp.zeros((tile_n, hc_pad), jnp.float32), unroll=True)

    # Folded (bias + eval-mode BatchNorm1d), then residual.
    out = acc * scale_ref[...] + shift_ref[...]
    if use_residual:
        out = out + x_dst
    o_ref[...] = out.astype(o_ref.dtype)


def _vmem_limit_bytes(n_pad, f_pad, hc_pad, tile, heads):
    f32, bf16 = 4, 2
    resident = (2 * n_pad * f_pad + f_pad * hc_pad
                + 2 * heads * f_pad + 2 * hc_pad) * f32
    per_tile = tile * f_pad * f32 + tile * n_pad * bf16 + 2 * tile * hc_pad * f32
    temps = (n_pad * hc_pad * (f32 + bf16) + heads * n_pad * f32
             + 5 * tile * n_pad * f32 + 2 * tile * hc_pad * f32)
    est = 2 * resident + 2 * 2 * per_tile + temps        # double-buffered tiles + slack
    return int(min(max(est, 32 * 1024 * 1024), 64 * 1024 * 1024))  # <= v7x physical


def gat_layer_forward(x, adj, w, att_src, att_dst, bias, bn_scale, bn_shift,
                      *, heads, use_residual=True, edge_weight=None,
                      negative_slope=0.2, tile_dst=128):
    """Pallas wrapper.  `adj[dst, src]` is the dense 0/1 adjacency WITH self-loops
    (matching GATConv add_self_loops=True).  edge_weight is accepted for API parity
    but does not affect the node output (WeightedGATConv semantics)."""
    del edge_weight
    n, f_in = x.shape
    hc = w.shape[1]
    head_dim = hc // heads
    residual = bool(use_residual and (f_in == hc))

    lane = 128
    tile_dst = min(tile_dst, _round_up(n, 8))
    n_pad = _round_up(n, tile_dst)
    f_pad = _round_up(f_in, lane)
    hc_pad = _round_up(hc, lane)     # lane-dense output slab; sliced after the call

    # --- host-side parameter prep (padding + folding; parameter-only matmuls) ---
    x_pad = jnp.zeros((n_pad, f_pad), jnp.float32).at[:n, :f_in].set(x)
    x_t = x_pad.T
    w_pad = jnp.zeros((f_pad, hc_pad), jnp.float32).at[:f_in, :hc].set(w)

    eye_h = jnp.eye(heads, dtype=jnp.float32)
    asrc_bd = (att_src[:, :, None] * eye_h[:, None, :]).reshape(hc, heads)
    adst_bd = (att_dst[:, :, None] * eye_h[:, None, :]).reshape(hc, heads)
    asrc_pad = jnp.zeros((hc_pad, heads), jnp.float32).at[:hc, :].set(asrc_bd)
    adst_pad = jnp.zeros((hc_pad, heads), jnp.float32).at[:hc, :].set(adst_bd)
    w_asrc_t = (w_pad @ asrc_pad).T                       # [H, F_pad]
    w_adst = w_pad @ adst_pad                             # [F_pad, H]

    scale = jnp.zeros((1, hc_pad), jnp.float32).at[0, :hc].set(bn_scale)
    shift = jnp.zeros((1, hc_pad), jnp.float32).at[0, :hc].set(bn_scale * bias + bn_shift)

    adj_pad = jnp.zeros((n_pad, n_pad), jnp.float32).at[:n, :n].set(adj)
    if n_pad > n:                                         # keep padded softmax rows finite
        pad_diag = jnp.concatenate([jnp.zeros((n,), jnp.float32),
                                    jnp.ones((n_pad - n,), jnp.float32)])
        adj_pad = jnp.maximum(adj_pad, jnp.diag(pad_diag))
    adj_bf = adj_pad.astype(jnp.bfloat16)                 # largest tensor: stream as bf16

    kernel = functools.partial(gat_layer_kernel, heads=heads, head_dim=head_dim,
                               use_residual=residual, neg_slope=negative_slope)

    grid = (n_pad // tile_dst,)
    out_pad = pl.pallas_call(
        kernel,
        out_shape=jax.ShapeDtypeStruct((n_pad, hc_pad), jnp.float32),
        grid=grid,
        in_specs=[
            pl.BlockSpec((n_pad, f_pad), lambda i: (0, 0)),        # x (all sources)
            pl.BlockSpec((f_pad, n_pad), lambda i: (0, 0)),        # x^T
            pl.BlockSpec((tile_dst, f_pad), lambda i: (i, 0)),     # x (dst tile)
            pl.BlockSpec((tile_dst, n_pad), lambda i: (i, 0)),     # adj tile (bf16)
            pl.BlockSpec((f_pad, hc_pad), lambda i: (0, 0)),       # W
            pl.BlockSpec((heads, f_pad), lambda i: (0, 0)),        # (W @ att_src)^T
            pl.BlockSpec((f_pad, heads), lambda i: (0, 0)),        # W @ att_dst
            pl.BlockSpec((1, hc_pad), lambda i: (0, 0)),           # BN scale
            pl.BlockSpec((1, hc_pad), lambda i: (0, 0)),           # BN shift (+bias)
        ],
        out_specs=pl.BlockSpec((tile_dst, hc_pad), lambda i: (i, 0)),
        compiler_params=pltpu.CompilerParams(
            dimension_semantics=("parallel",),
            vmem_limit_bytes=_vmem_limit_bytes(n_pad, f_pad, hc_pad, tile_dst, heads)),
    )(x_pad, x_t, x_pad, adj_bf, w_pad, w_asrc_t, w_adst, scale, shift)

    return out_pad[:n, :hc]


def reference_forward(x, adj, w, att_src, att_dst, bias, bn_scale, bn_shift,
                      *, heads, negative_slope=0.2):
    """Pure-JAX f32 reference for the same math (sanity check)."""
    n, f_in = x.shape
    hc = w.shape[1]
    c = hc // heads
    h = x @ w
    hh = h.reshape(n, heads, c)
    a_s = (hh * att_src[None]).sum(-1)                    # [N, H]
    a_d = (hh * att_dst[None]).sum(-1)                    # [N, H]
    e = a_d[:, None, :] + a_s[None, :, :]                 # [dst, src, H]
    e = jnp.where(e >= 0.0, e, negative_slope * e)
    mask = (adj > 0.0)[:, :, None]
    e = jnp.where(mask, e, -1e30)
    p = jax.nn.softmax(e, axis=1)
    p = jnp.where(mask, p, 0.0)
    out = jnp.einsum('ijh,jhc->ihc', p, hh).reshape(n, hc)
    out = out + bias[None, :]
    out = out * bn_scale[None, :] + bn_shift[None, :]
    if f_in == hc:
        out = out + x
    return out


if __name__ == "__main__":
    # Small deterministic config: N=256 nodes (2 dst tiles of 128), in=out=32, heads=8.
    N, F_IN, OUT, HEADS = 256, 32, 32, 8
    C = OUT // HEADS
    HC = HEADS * C

    key = jax.random.PRNGKey(0)
    ks = jax.random.split(key, 8)

    x = jax.random.normal(ks[0], (N, F_IN), dtype=jnp.float32)
    w = jax.random.normal(ks[1], (F_IN, HC), dtype=jnp.float32) * 0.2     # lin weight^T
    att_src = jax.random.normal(ks[2], (HEADS, C), dtype=jnp.float32) * 0.2
    att_dst = jax.random.normal(ks[3], (HEADS, C), dtype=jnp.float32) * 0.2
    bias = jax.random.normal(ks[4], (HC,), dtype=jnp.float32) * 0.05

    # BatchNorm1d in eval mode with non-trivial running stats, folded to scale/shift.
    eps = 1e-5
    gamma = 1.0 + 0.1 * jax.random.normal(ks[5], (HC,), dtype=jnp.float32)
    beta = 0.1 * jax.random.normal(ks[6], (HC,), dtype=jnp.float32)
    run_mean = 0.1 * jax.random.normal(ks[7], (HC,), dtype=jnp.float32)
    run_var = jnp.full((HC,), 0.9, dtype=jnp.float32)
    bn_scale = gamma / jnp.sqrt(run_var + eps)
    bn_shift = beta - run_mean * bn_scale

    # Graph: bidirectional ring + skip-5 edges; dense adj[dst, src] with self-loops.
    idx = jnp.arange(N)
    e_src = jnp.concatenate([idx, (idx + 1) % N, idx, (idx + 5) % N])
    e_dst = jnp.concatenate([(idx + 1) % N, idx, (idx + 5) % N, idx])
    edge_index = jnp.stack([e_src, e_dst])                        # [2, E]
    edge_weight = jnp.ones((edge_index.shape[1],), jnp.float32)   # unused (see note)
    adj = jnp.zeros((N, N), jnp.float32).at[e_dst, e_src].set(1.0)
    adj = jnp.maximum(adj, jnp.eye(N, dtype=jnp.float32))         # add_self_loops=True

    out = gat_layer_forward(x, adj, w, att_src, att_dst, bias, bn_scale, bn_shift,
                            heads=HEADS, edge_weight=edge_weight, tile_dst=128)
    out = jax.block_until_ready(out)

    ref = reference_forward(x, adj, w, att_src, att_dst, bias, bn_scale, bn_shift,
                            heads=HEADS)
    ref = jax.block_until_ready(ref)

    assert out.shape == (N, OUT), out.shape
    # bf16-fed aggregation + approx reciprocal -> slightly relaxed tolerance.
    assert bool(jnp.allclose(out, ref, rtol=2e-2, atol=2e-2)), \
        float(jnp.max(jnp.abs(out - ref)))

    print("KERNEL_OK")
</pallas_src>

<mosaic_0001>
module attributes {stable_mosaic.version = 11 : i64} {
  func.func @gat_layer_kernel(%arg0: i32, %arg1: memref<256x128xf32, #tpu.memory_space<vmem>>, %arg2: memref<128x256xf32, #tpu.memory_space<vmem>>, %arg3: memref<128x128xf32, #tpu.memory_space<vmem>>, %arg4: memref<128x256xbf16, #tpu.memory_space<vmem>>, %arg5: memref<128x128xf32, #tpu.memory_space<vmem>>, %arg6: memref<8x128xf32, #tpu.memory_space<vmem>>, %arg7: memref<128x8xf32, #tpu.memory_space<vmem>>, %arg8: memref<1x128xf32, #tpu.memory_space<vmem>>, %arg9: memref<1x128xf32, #tpu.memory_space<vmem>>, %arg10: memref<128x128xf32, #tpu.memory_space<vmem>>) attributes {dimension_semantics = [#tpu.dimension_semantics<parallel>], iteration_bounds = array<i64: 2>, scalar_prefetch = 0 : i64, scratch_operands = 0 : i64, tpu.core_type = #tpu.core_type<tc>, window_params = [{pipeline_mode = #tpu.pipeline_mode<synchronous>, transform_indices = @transform_0, window_bounds = array<i64: 256, 128>}, {pipeline_mode = #tpu.pipeline_mode<synchronous>, transform_indices = @transform_1, window_bounds = array<i64: 128, 256>}, {transform_indices = @transform_2, window_bounds = array<i64: 128, 128>}, {transform_indices = @transform_3, window_bounds = array<i64: 128, 256>}, {pipeline_mode = #tpu.pipeline_mode<synchronous>, transform_indices = @transform_4, window_bounds = array<i64: 128, 128>}, {pipeline_mode = #tpu.pipeline_mode<synchronous>, transform_indices = @transform_5, window_bounds = array<i64: 8, 128>}, {pipeline_mode = #tpu.pipeline_mode<synchronous>, transform_indices = @transform_6, window_bounds = array<i64: 128, 8>}, {pipeline_mode = #tpu.pipeline_mode<synchronous>, transform_indices = @transform_7, window_bounds = array<i64: 1, 128>}, {pipeline_mode = #tpu.pipeline_mode<synchronous>, transform_indices = @transform_8, window_bounds = array<i64: 1, 128>}, {transform_indices = @transform_9, window_bounds = array<i64: 128, 128>}]} {
    %c0 = arith.constant 0 : index
    %c0_0 = arith.constant 0 : index
    %0 = vector.load %arg1[%c0, %c0_0] : memref<256x128xf32, #tpu.memory_space<vmem>>, vector<256x128xf32>
    %c0_1 = arith.constant 0 : index
    %c0_2 = arith.constant 0 : index
    %1 = vector.load %arg5[%c0_1, %c0_2] : memref<128x128xf32, #tpu.memory_space<vmem>>, vector<128x128xf32>
    %cst = arith.constant dense<0.000000e+00> : vector<256x128xf32>
    %2 = tpu.matmul %0, %1, %cst {dimension_numbers = #tpu.dot_dimension_numbers<[1], [0], [0], [1], [0, 0, 1, 1], [], []>} : vector<256x128xf32>, vector<128x128xf32>, vector<256x128xf32> -> vector<256x128xf32>
    %c0_3 = arith.constant 0 : index
    %c0_4 = arith.constant 0 : index
    %3 = vector.load %arg6[%c0_3, %c0_4] : memref<8x128xf32, #tpu.memory_space<vmem>>, vector<8x128xf32>
    %c0_5 = arith.constant 0 : index
    %c0_6 = arith.constant 0 : index
    %4 = vector.load %arg2[%c0_5, %c0_6] : memref<128x256xf32, #tpu.memory_space<vmem>>, vector<128x256xf32>
    %cst_7 = arith.constant dense<0.000000e+00> : vector<8x256xf32>
    %5 = tpu.matmul %3, %4, %cst_7 {dimension_numbers = #tpu.dot_dimension_numbers<[1], [0], [0], [1], [0, 0, 1, 1], [], []>} : vector<8x128xf32>, vector<128x256xf32>, vector<8x256xf32> -> vector<8x256xf32>
    %c0_8 = arith.constant 0 : index
    %c0_9 = arith.constant 0 : index
    %6 = vector.load %arg3[%c0_8, %c0_9] : memref<128x128xf32, #tpu.memory_space<vmem>>, vector<128x128xf32>
    %c0_10 = arith.constant 0 : index
    %c0_11 = arith.constant 0 : index
    %7 = vector.load %arg7[%c0_10, %c0_11] : memref<128x8xf32, #tpu.memory_space<vmem>>, vector<128x8xf32>
    %cst_12 = arith.constant dense<0.000000e+00> : vector<128x8xf32>
    %8 = tpu.matmul %6, %7, %cst_12 {dimension_numbers = #tpu.dot_dimension_numbers<[1], [0], [0], [1], [0, 0, 1, 1], [], []>} : vector<128x128xf32>, vector<128x8xf32>, vector<128x8xf32> -> vector<128x8xf32>
    %c0_13 = arith.constant 0 : index
    %c0_14 = arith.constant 0 : index
    %9 = vector.load %arg4[%c0_13, %c0_14] : memref<128x256xbf16, #tpu.memory_space<vmem>>, vector<128x256xbf16>
    %10 = arith.extf %9 : vector<128x256xbf16> to vector<128x256xf32>
    %cst_15 = arith.constant 0.000000e+00 : f32
    %11 = vector.broadcast %cst_15 : f32 to vector<128x256xf32>
    %12 = arith.cmpf ogt, %10, %11 : vector<128x256xf32>
    %cst_16 = arith.constant 0.000000e+00 : f32
    %cst_17 = arith.constant -1.000000e+30 : f32
    %13 = vector.broadcast %cst_16 : f32 to vector<128x256xf32>
    %14 = vector.broadcast %cst_17 : f32 to vector<128x256xf32>
    %15 = arith.select %12, %13, %14 : vector<128x256xi1>, vector<128x256xf32>
    %16 = tpu.iota {dimensions = array<i32: 1>} : vector<128x8xi32>
    %17 = tpu.iota {dimensions = array<i32: 0>} : vector<8x256xi32>
    %18 = tpu.iota {dimensions = array<i32: 1>} : vector<1x128xi32>
    %cst_18 = arith.constant 0.000000e+00 : f32
    %19 = vector.broadcast %cst_18 : f32 to vector<128x128xf32>
    %c0_i32 = arith.constant 0 : i32
    %20 = vector.broadcast %c0_i32 : i32 to vector<128x8xi32>
    %21 = arith.cmpi eq, %16, %20 : vector<128x8xi32>
    %cst_19 = arith.constant 0.000000e+00 : f32
    %22 = vector.broadcast %cst_19 : f32 to vector<128x8xf32>
    %23 = arith.select %21, %8, %22 : vector<128x8xi1>, vector<128x8xf32>
    %cst_20 = arith.constant dense<0.000000e+00> : vector<128xf32>
    %24 = vector.multi_reduction <add>, %23, %cst_20 [1] : vector<128x8xf32> to vector<128xf32>
    %25 = vector.shape_cast %24 : vector<128xf32> to vector<128x1xf32>
    %26 = vector.broadcast %c0_i32 : i32 to vector<8x256xi32>
    %27 = arith.cmpi eq, %17, %26 : vector<8x256xi32>
    %cst_21 = arith.constant 0.000000e+00 : f32
    %28 = vector.broadcast %cst_21 : f32 to vector<8x256xf32>
    %29 = arith.select %27, %5, %28 : vector<8x256xi1>, vector<8x256xf32>
    %cst_22 = arith.constant dense<0.000000e+00> : vector<256xf32>
    %30 = vector.multi_reduction <add>, %29, %cst_22 [0] : vector<8x256xf32> to vector<256xf32>
    %31 = vector.shape_cast %30 : vector<256xf32> to vector<1x256xf32>
    %32 = vector.broadcast %25 : vector<128x1xf32> to vector<128x256xf32>
    %33 = vector.broadcast %31 : vector<1x256xf32> to vector<128x256xf32>
    %34 = arith.addf %32, %33 : vector<128x256xf32>
    %cst_23 = arith.constant 0.000000e+00 : f32
    %35 = vector.broadcast %cst_23 : f32 to vector<128x256xf32>
    %36 = arith.cmpf oge, %34, %35 : vector<128x256xf32>
    %cst_24 = arith.constant 2.000000e-01 : f32
    %37 = vector.broadcast %cst_24 : f32 to vector<128x256xf32>
    %38 = arith.mulf %37, %34 : vector<128x256xf32>
    %39 = arith.select %36, %34, %38 : vector<128x256xi1>, vector<128x256xf32>
    %40 = arith.addf %39, %15 : vector<128x256xf32>
    %cst_25 = arith.constant dense<0xFF800000> : vector<128xf32>
    %41 = vector.multi_reduction <maximumf>, %40, %cst_25 [1] : vector<128x256xf32> to vector<128xf32>
    %42 = vector.shape_cast %41 : vector<128xf32> to vector<128x1xf32>
    %43 = vector.broadcast %42 : vector<128x1xf32> to vector<128x256xf32>
    %44 = arith.subf %40, %43 : vector<128x256xf32>
    %45 = math.exp %44 : vector<128x256xf32>
    %cst_26 = arith.constant dense<0.000000e+00> : vector<128xf32>
    %46 = vector.multi_reduction <add>, %45, %cst_26 [1] : vector<128x256xf32> to vector<128xf32>
    %47 = vector.shape_cast %46 : vector<128xf32> to vector<128x1xf32>
    %48 = tpu.reciprocal %47 {approx = true} : vector<128x1xf32> -> vector<128x1xf32>
    %49 = vector.broadcast %48 : vector<128x1xf32> to vector<128x256xf32>
    %50 = arith.mulf %45, %49 : vector<128x256xf32>
    %c4_i32 = arith.constant 4 : i32
    %51 = arith.muli %c0_i32, %c4_i32 : i32
    %52 = vector.broadcast %51 : i32 to vector<1x128xi32>
    %53 = arith.cmpi sge, %18, %52 : vector<1x128xi32>
    %c4_i32_27 = arith.constant 4 : i32
    %54 = arith.addi %51, %c4_i32_27 : i32
    %55 = vector.broadcast %54 : i32 to vector<1x128xi32>
    %56 = arith.cmpi slt, %18, %55 : vector<1x128xi32>
    %57 = arith.andi %53, %56 : vector<1x128xi1>
    %cst_28 = arith.constant 0.000000e+00 : f32
    %58 = vector.shape_cast %57 : vector<1x128xi1> to vector<1x128xi1>
    %59 = vector.broadcast %58 : vector<1x128xi1> to vector<256x128xi1>
    %60 = vector.broadcast %cst_28 : f32 to vector<256x128xf32>
    %61 = arith.select %59, %2, %60 : vector<256x128xi1>, vector<256x128xf32>
    %62 = arith.truncf %61 : vector<256x128xf32> to vector<256x128xbf16>
    %63 = arith.truncf %50 : vector<128x256xf32> to vector<128x256xbf16>
    %cst_29 = arith.constant dense<0.000000e+00> : vector<128x128xf32>
    %64 = tpu.matmul %63, %62, %cst_29 {dimension_numbers = #tpu.dot_dimension_numbers<[1], [0], [0], [1], [0, 0, 1, 1], [], []>} : vector<128x256xbf16>, vector<256x128xbf16>, vector<128x128xf32> -> vector<128x128xf32>
    %65 = arith.addf %19, %64 : vector<128x128xf32>
    %c1_i32 = arith.constant 1 : i32
    %66 = vector.broadcast %c1_i32 : i32 to vector<128x8xi32>
    %67 = arith.cmpi eq, %16, %66 : vector<128x8xi32>
    %cst_30 = arith.constant 0.000000e+00 : f32
    %68 = vector.broadcast %cst_30 : f32 to vector<128x8xf32>
    %69 = arith.select %67, %8, %68 : vector<128x8xi1>, vector<128x8xf32>
    %cst_31 = arith.constant dense<0.000000e+00> : vector<128xf32>
    %70 = vector.multi_reduction <add>, %69, %cst_31 [1] : vector<128x8xf32> to vector<128xf32>
    %71 = vector.shape_cast %70 : vector<128xf32> to vector<128x1xf32>
    %72 = vector.broadcast %c1_i32 : i32 to vector<8x256xi32>
    %73 = arith.cmpi eq, %17, %72 : vector<8x256xi32>
    %cst_32 = arith.constant 0.000000e+00 : f32
    %74 = vector.broadcast %cst_32 : f32 to vector<8x256xf32>
    %75 = arith.select %73, %5, %74 : vector<8x256xi1>, vector<8x256xf32>
    %cst_33 = arith.constant dense<0.000000e+00> : vector<256xf32>
    %76 = vector.multi_reduction <add>, %75, %cst_33 [0] : vector<8x256xf32> to vector<256xf32>
    %77 = vector.shape_cast %76 : vector<256xf32> to vector<1x256xf32>
    %78 = vector.broadcast %71 : vector<128x1xf32> to vector<128x256xf32>
    %79 = vector.broadcast %77 : vector<1x256xf32> to vector<128x256xf32>
    %80 = arith.addf %78, %79 : vector<128x256xf32>
    %cst_34 = arith.constant 0.000000e+00 : f32
    %81 = vector.broadcast %cst_34 : f32 to vector<128x256xf32>
    %82 = arith.cmpf oge, %80, %81 : vector<128x256xf32>
    %cst_35 = arith.constant 2.000000e-01 : f32
    %83 = vector.broadcast %cst_35 : f32 to vector<128x256xf32>
    %84 = arith.mulf %83, %80 : vector<128x256xf32>
    %85 = arith.select %82, %80, %84 : vector<128x256xi1>, vector<128x256xf32>
    %86 = arith.addf %85, %15 : vector<128x256xf32>
    %cst_36 = arith.constant dense<0xFF800000> : vector<128xf32>
    %87 = vector.multi_reduction <maximumf>, %86, %cst_36 [1] : vector<128x256xf32> to vector<128xf32>
    %88 = vector.shape_cast %87 : vector<128xf32> to vector<128x1xf32>
    %89 = vector.broadcast %88 : vector<128x1xf32> to vector<128x256xf32>
    %90 = arith.subf %86, %89 : vector<128x256xf32>
    %91 = math.exp %90 : vector<128x256xf32>
    %cst_37 = arith.constant dense<0.000000e+00> : vector<128xf32>
    %92 = vector.multi_reduction <add>, %91, %cst_37 [1] : vector<128x256xf32> to vector<128xf32>
    %93 = vector.shape_cast %92 : vector<128xf32> to vector<128x1xf32>
    %94 = tpu.reciprocal %93 {approx = true} : vector<128x1xf32> -> vector<128x1xf32>
    %95 = vector.broadcast %94 : vector<128x1xf32> to vector<128x256xf32>
    %96 = arith.mulf %91, %95 : vector<128x256xf32>
    %c4_i32_38 = arith.constant 4 : i32
    %97 = arith.muli %c1_i32, %c4_i32_38 : i32
    %98 = vector.broadcast %97 : i32 to vector<1x128xi32>
    %99 = arith.cmpi sge, %18, %98 : vector<1x128xi32>
    %c4_i32_39 = arith.constant 4 : i32
    %100 = arith.addi %97, %c4_i32_39 : i32
    %101 = vector.broadcast %100 : i32 to vector<1x128xi32>
    %102 = arith.cmpi slt, %18, %101 : vector<1x128xi32>
    %103 = arith.andi %99, %102 : vector<1x128xi1>
    %cst_40 = arith.constant 0.000000e+00 : f32
    %104 = vector.shape_cast %103 : vector<1x128xi1> to vector<1x128xi1>
    %105 = vector.broadcast %104 : vector<1x128xi1> to vector<256x128xi1>
    %106 = vector.broadcast %cst_40 : f32 to vector<256x128xf32>
    %107 = arith.select %105, %2, %106 : vector<256x128xi1>, vector<256x128xf32>
    %108 = arith.truncf %107 : vector<256x128xf32> to vector<256x128xbf16>
    %109 = arith.truncf %96 : vector<128x256xf32> to vector<128x256xbf16>
    %cst_41 = arith.constant dense<0.000000e+00> : vector<128x128xf32>
    %110 = tpu.matmul %109, %108, %cst_41 {dimension_numbers = #tpu.dot_dimension_numbers<[1], [0], [0], [1], [0, 0, 1, 1], [], []>} : vector<128x256xbf16>, vector<256x128xbf16>, vector<128x128xf32> -> vector<128x128xf32>
    %111 = arith.addf %65, %110 : vector<128x128xf32>
    %c2_i32 = arith.constant 2 : i32
    %112 = vector.broadcast %c2_i32 : i32 to vector<128x8xi32>
    %113 = arith.cmpi eq, %16, %112 : vector<128x8xi32>
    %cst_42 = arith.constant 0.000000e+00 : f32
    %114 = vector.broadcast %cst_42 : f32 to vector<128x8xf32>
    %115 = arith.select %113, %8, %114 : vector<128x8xi1>, vector<128x8xf32>
    %cst_43 = arith.constant dense<0.000000e+00> : vector<128xf32>
    %116 = vector.multi_reduction <add>, %115, %cst_43 [1] : vector<128x8xf32> to vector<128xf32>
    %117 = vector.shape_cast %116 : vector<128xf32> to vector<128x1xf32>
    %118 = vector.broadcast %c2_i32 : i32 to vector<8x256xi32>
    %119 = arith.cmpi eq, %17, %118 : vector<8x256xi32>
    %cst_44 = arith.constant 0.000000e+00 : f32
    %120 = vector.broadcast %cst_44 : f32 to vector<8x256xf32>
    %121 = arith.select %119, %5, %120 : vector<8x256xi1>, vector<8x256xf32>
    %cst_45 = arith.constant dense<0.000000e+00> : vector<256xf32>
    %122 = vector.multi_reduction <add>, %121, %cst_45 [0] : vector<8x256xf32> to vector<256xf32>
    %123 = vector.shape_cast %122 : vector<256xf32> to vector<1x256xf32>
    %124 = vector.broadcast %117 : vector<128x1xf32> to vector<128x256xf32>
    %125 = vector.broadcast %123 : vector<1x256xf32> to vector<128x256xf32>
    %126 = arith.addf %124, %125 : vector<128x256xf32>
    %cst_46 = arith.constant 0.000000e+00 : f32
    %127 = vector.broadcast %cst_46 : f32 to vector<128x256xf32>
    %128 = arith.cmpf oge, %126, %127 : vector<128x256xf32>
    %cst_47 = arith.constant 2.000000e-01 : f32
    %129 = vector.broadcast %cst_47 : f32 to vector<128x256xf32>
    %130 = arith.mulf %129, %126 : vector<128x256xf32>
    %131 = arith.select %128, %126, %130 : vector<128x256xi1>, vector<128x256xf32>
    %132 = arith.addf %131, %15 : vector<128x256xf32>
    %cst_48 = arith.constant dense<0xFF800000> : vector<128xf32>
    %133 = vector.multi_reduction <maximumf>, %132, %cst_48 [1] : vector<128x256xf32> to vector<128xf32>
    %134 = vector.shape_cast %133 : vector<128xf32> to vector<128x1xf32>
    %135 = vector.broadcast %134 : vector<128x1xf32> to vector<128x256xf32>
    %136 = arith.subf %132, %135 : vector<128x256xf32>
    %137 = math.exp %136 : vector<128x256xf32>
    %cst_49 = arith.constant dense<0.000000e+00> : vector<128xf32>
    %138 = vector.multi_reduction <add>, %137, %cst_49 [1] : vector<128x256xf32> to vector<128xf32>
    %139 = vector.shape_cast %138 : vector<128xf32> to vector<128x1xf32>
    %140 = tpu.reciprocal %139 {approx = true} : vector<128x1xf32> -> vector<128x1xf32>
    %141 = vector.broadcast %140 : vector<128x1xf32> to vector<128x256xf32>
    %142 = arith.mulf %137, %141 : vector<128x256xf32>
    %c4_i32_50 = arith.constant 4 : i32
    %143 = arith.muli %c2_i32, %c4_i32_50 : i32
    %144 = vector.broadcast %143 : i32 to vector<1x128xi32>
    %145 = arith.cmpi sge, %18, %144 : vector<1x128xi32>
    %c4_i32_51 = arith.constant 4 : i32
    %146 = arith.addi %143, %c4_i32_51 : i32
    %147 = vector.broadcast %146 : i32 to vector<1x128xi32>
    %148 = arith.cmpi slt, %18, %147 : vector<1x128xi32>
    %149 = arith.andi %145, %148 : vector<1x128xi1>
    %cst_52 = arith.constant 0.000000e+00 : f32
    %150 = vector.shape_cast %149 : vector<1x128xi1> to vector<1x128xi1>
    %151 = vector.broadcast %150 : vector<1x128xi1> to vector<256x128xi1>
    %152 = vector.broadcast %cst_52 : f32 to vector<256x128xf32>
    %153 = arith.select %151, %2, %152 : vector<256x128xi1>, vector<256x128xf32>
    %154 = arith.truncf %153 : vector<256x128xf32> to vector<256x128xbf16>
    %155 = arith.truncf %142 : vector<128x256xf32> to vector<128x256xbf16>
    %cst_53 = arith.constant dense<0.000000e+00> : vector<128x128xf32>
    %156 = tpu.matmul %155, %154, %cst_53 {dimension_numbers = #tpu.dot_dimension_numbers<[1], [0], [0], [1], [0, 0, 1, 1], [], []>} : vector<128x256xbf16>, vector<256x128xbf16>, vector<128x128xf32> -> vector<128x128xf32>
    %157 = arith.addf %111, %156 : vector<128x128xf32>
    %c3_i32 = arith.constant 3 : i32
    %158 = vector.broadcast %c3_i32 : i32 to vector<128x8xi32>
    %159 = arith.cmpi eq, %16, %158 : vector<128x8xi32>
    %cst_54 = arith.constant 0.000000e+00 : f32
    %160 = vector.broadcast %cst_54 : f32 to vector<128x8xf32>
    %161 = arith.select %159, %8, %160 : vector<128x8xi1>, vector<128x8xf32>
    %cst_55 = arith.constant dense<0.000000e+00> : vector<128xf32>
    %162 = vector.multi_reduction <add>, %161, %cst_55 [1] : vector<128x8xf32> to vector<128xf32>
    %163 = vector.shape_cast %162 : vector<128xf32> to vector<128x1xf32>
    %164 = vector.broadcast %c3_i32 : i32 to vector<8x256xi32>
    %165 = arith.cmpi eq, %17, %164 : vector<8x256xi32>
    %cst_56 = arith.constant 0.000000e+00 : f32
    %166 = vector.broadcast %cst_56 : f32 to vector<8x256xf32>
    %167 = arith.select %165, %5, %166 : vector<8x256xi1>, vector<8x256xf32>
    %cst_57 = arith.constant dense<0.000000e+00> : vector<256xf32>
    %168 = vector.multi_reduction <add>, %167, %cst_57 [0] : vector<8x256xf32> to vector<256xf32>
    %169 = vector.shape_cast %168 : vector<256xf32> to vector<1x256xf32>
    %170 = vector.broadcast %163 : vector<128x1xf32> to vector<128x256xf32>
    %171 = vector.broadcast %169 : vector<1x256xf32> to vector<128x256xf32>
    %172 = arith.addf %170, %171 : vector<128x256xf32>
    %cst_58 = arith.constant 0.000000e+00 : f32
    %173 = vector.broadcast %cst_58 : f32 to vector<128x256xf32>
    %174 = arith.cmpf oge, %172, %173 : vector<128x256xf32>
    %cst_59 = arith.constant 2.000000e-01 : f32
    %175 = vector.broadcast %cst_59 : f32 to vector<128x256xf32>
    %176 = arith.mulf %175, %172 : vector<128x256xf32>
    %177 = arith.select %174, %172, %176 : vector<128x256xi1>, vector<128x256xf32>
    %178 = arith.addf %177, %15 : vector<128x256xf32>
    %cst_60 = arith.constant dense<0xFF800000> : vector<128xf32>
    %179 = vector.multi_reduction <maximumf>, %178, %cst_60 [1] : vector<128x256xf32> to vector<128xf32>
    %180 = vector.shape_cast %179 : vector<128xf32> to vector<128x1xf32>
    %181 = vector.broadcast %180 : vector<128x1xf32> to vector<128x256xf32>
    %182 = arith.subf %178, %181 : vector<128x256xf32>
    %183 = math.exp %182 : vector<128x256xf32>
    %cst_61 = arith.constant dense<0.000000e+00> : vector<128xf32>
    %184 = vector.multi_reduction <add>, %183, %cst_61 [1] : vector<128x256xf32> to vector<128xf32>
    %185 = vector.shape_cast %184 : vector<128xf32> to vector<128x1xf32>
    %186 = tpu.reciprocal %185 {approx = true} : vector<128x1xf32> -> vector<128x1xf32>
    %187 = vector.broadcast %186 : vector<128x1xf32> to vector<128x256xf32>
    %188 = arith.mulf %183, %187 : vector<128x256xf32>
    %c4_i32_62 = arith.constant 4 : i32
    %189 = arith.muli %c3_i32, %c4_i32_62 : i32
    %190 = vector.broadcast %189 : i32 to vector<1x128xi32>
    %191 = arith.cmpi sge, %18, %190 : vector<1x128xi32>
    %c4_i32_63 = arith.constant 4 : i32
    %192 = arith.addi %189, %c4_i32_63 : i32
    %193 = vector.broadcast %192 : i32 to vector<1x128xi32>
    %194 = arith.cmpi slt, %18, %193 : vector<1x128xi32>
    %195 = arith.andi %191, %194 : vector<1x128xi1>
    %cst_64 = arith.constant 0.000000e+00 : f32
    %196 = vector.shape_cast %195 : vector<1x128xi1> to vector<1x128xi1>
    %197 = vector.broadcast %196 : vector<1x128xi1> to vector<256x128xi1>
    %198 = vector.broadcast %cst_64 : f32 to vector<256x128xf32>
    %199 = arith.select %197, %2, %198 : vector<256x128xi1>, vector<256x128xf32>
    %200 = arith.truncf %199 : vector<256x128xf32> to vector<256x128xbf16>
    %201 = arith.truncf %188 : vector<128x256xf32> to vector<128x256xbf16>
    %cst_65 = arith.constant dense<0.000000e+00> : vector<128x128xf32>
    %202 = tpu.matmul %201, %200, %cst_65 {dimension_numbers = #tpu.dot_dimension_numbers<[1], [0], [0], [1], [0, 0, 1, 1], [], []>} : vector<128x256xbf16>, vector<256x128xbf16>, vector<128x128xf32> -> vector<128x128xf32>
    %203 = arith.addf %157, %202 : vector<128x128xf32>
    %c4_i32_66 = arith.constant 4 : i32
    %204 = vector.broadcast %c4_i32_66 : i32 to vector<128x8xi32>
    %205 = arith.cmpi eq, %16, %204 : vector<128x8xi32>
    %cst_67 = arith.constant 0.000000e+00 : f32
    %206 = vector.broadcast %cst_67 : f32 to vector<128x8xf32>
    %207 = arith.select %205, %8, %206 : vector<128x8xi1>, vector<128x8xf32>
    %cst_68 = arith.constant dense<0.000000e+00> : vector<128xf32>
    %208 = vector.multi_reduction <add>, %207, %cst_68 [1] : vector<128x8xf32> to vector<128xf32>
    %209 = vector.shape_cast %208 : vector<128xf32> to vector<128x1xf32>
    %210 = vector.broadcast %c4_i32_66 : i32 to vector<8x256xi32>
    %211 = arith.cmpi eq, %17, %210 : vector<8x256xi32>
    %cst_69 = arith.constant 0.000000e+00 : f32
    %212 = vector.broadcast %cst_69 : f32 to vector<8x256xf32>
    %213 = arith.select %211, %5, %212 : vector<8x256xi1>, vector<8x256xf32>
    %cst_70 = arith.constant dense<0.000000e+00> : vector<256xf32>
    %214 = vector.multi_reduction <add>, %213, %cst_70 [0] : vector<8x256xf32> to vector<256xf32>
    %215 = vector.shape_cast %214 : vector<256xf32> to vector<1x256xf32>
    %216 = vector.broadcast %209 : vector<128x1xf32> to vector<128x256xf32>
    %217 = vector.broadcast %215 : vector<1x256xf32> to vector<128x256xf32>
    %218 = arith.addf %216, %217 : vector<128x256xf32>
    %cst_71 = arith.constant 0.000000e+00 : f32
    %219 = vector.broadcast %cst_71 : f32 to vector<128x256xf32>
    %220 = arith.cmpf oge, %218, %219 : vector<128x256xf32>
    %cst_72 = arith.constant 2.000000e-01 : f32
    %221 = vector.broadcast %cst_72 : f32 to vector<128x256xf32>
    %222 = arith.mulf %221, %218 : vector<128x256xf32>
    %223 = arith.select %220, %218, %222 : vector<128x256xi1>, vector<128x256xf32>
    %224 = arith.addf %223, %15 : vector<128x256xf32>
    %cst_73 = arith.constant dense<0xFF800000> : vector<128xf32>
    %225 = vector.multi_reduction <maximumf>, %224, %cst_73 [1] : vector<128x256xf32> to vector<128xf32>
    %226 = vector.shape_cast %225 : vector<128xf32> to vector<128x1xf32>
    %227 = vector.broadcast %226 : vector<128x1xf32> to vector<128x256xf32>
    %228 = arith.subf %224, %227 : vector<128x256xf32>
    %229 = math.exp %228 : vector<128x256xf32>
    %cst_74 = arith.constant dense<0.000000e+00> : vector<128xf32>
    %230 = vector.multi_reduction <add>, %229, %cst_74 [1] : vector<128x256xf32> to vector<128xf32>
    %231 = vector.shape_cast %230 : vector<128xf32> to vector<128x1xf32>
    %232 = tpu.reciprocal %231 {approx = true} : vector<128x1xf32> -> vector<128x1xf32>
    %233 = vector.broadcast %232 : vector<128x1xf32> to vector<128x256xf32>
    %234 = arith.mulf %229, %233 : vector<128x256xf32>
    %c4_i32_75 = arith.constant 4 : i32
    %235 = arith.muli %c4_i32_66, %c4_i32_75 : i32
    %236 = vector.broadcast %235 : i32 to vector<1x128xi32>
    %237 = arith.cmpi sge, %18, %236 : vector<1x128xi32>
    %c4_i32_76 = arith.constant 4 : i32
    %238 = arith.addi %235, %c4_i32_76 : i32
    %239 = vector.broadcast %238 : i32 to vector<1x128xi32>
    %240 = arith.cmpi slt, %18, %239 : vector<1x128xi32>
    %241 = arith.andi %237, %240 : vector<1x128xi1>
    %cst_77 = arith.constant 0.000000e+00 : f32
    %242 = vector.shape_cast %241 : vector<1x128xi1> to vector<1x128xi1>
    %243 = vector.broadcast %242 : vector<1x128xi1> to vector<256x128xi1>
    %244 = vector.broadcast %cst_77 : f32 to vector<256x128xf32>
    %245 = arith.select %243, %2, %244 : vector<256x128xi1>, vector<256x128xf32>
    %246 = arith.truncf %245 : vector<256x128xf32> to vector<256x128xbf16>
    %247 = arith.truncf %234 : vector<128x256xf32> to vector<128x256xbf16>
    %cst_78 = arith.constant dense<0.000000e+00> : vector<128x128xf32>
    %248 = tpu.matmul %247, %246, %cst_78 {dimension_numbers = #tpu.dot_dimension_numbers<[1], [0], [0], [1], [0, 0, 1, 1], [], []>} : vector<128x256xbf16>, vector<256x128xbf16>, vector<128x128xf32> -> vector<128x128xf32>
    %249 = arith.addf %203, %248 : vector<128x128xf32>
    %c5_i32 = arith.constant 5 : i32
    %250 = vector.broadcast %c5_i32 : i32 to vector<128x8xi32>
    %251 = arith.cmpi eq, %16, %250 : vector<128x8xi32>
    %cst_79 = arith.constant 0.000000e+00 : f32
    %252 = vector.broadcast %cst_79 : f32 to vector<128x8xf32>
    %253 = arith.select %251, %8, %252 : vector<128x8xi1>, vector<128x8xf32>
    %cst_80 = arith.constant dense<0.000000e+00> : vector<128xf32>
    %254 = vector.multi_reduction <add>, %253, %cst_80 [1] : vector<128x8xf32> to vector<128xf32>
    %255 = vector.shape_cast %254 : vector<128xf32> to vector<128x1xf32>
    %256 = vector.broadcast %c5_i32 : i32 to vector<8x256xi32>
    %257 = arith.cmpi eq, %17, %256 : vector<8x256xi32>
    %cst_81 = arith.constant 0.000000e+00 : f32
    %258 = vector.broadcast %cst_81 : f32 to vector<8x256xf32>
    %259 = arith.select %257, %5, %258 : vector<8x256xi1>, vector<8x256xf32>
    %cst_82 = arith.constant dense<0.000000e+00> : vector<256xf32>
    %260 = vector.multi_reduction <add>, %259, %cst_82 [0] : vector<8x256xf32> to vector<256xf32>
    %261 = vector.shape_cast %260 : vector<256xf32> to vector<1x256xf32>
    %262 = vector.broadcast %255 : vector<128x1xf32> to vector<128x256xf32>
    %263 = vector.broadcast %261 : vector<1x256xf32> to vector<128x256xf32>
    %264 = arith.addf %262, %263 : vector<128x256xf32>
    %cst_83 = arith.constant 0.000000e+00 : f32
    %265 = vector.broadcast %cst_83 : f32 to vector<128x256xf32>
    %266 = arith.cmpf oge, %264, %265 : vector<128x256xf32>
    %cst_84 = arith.constant 2.000000e-01 : f32
    %267 = vector.broadcast %cst_84 : f32 to vector<128x256xf32>
    %268 = arith.mulf %267, %264 : vector<128x256xf32>
    %269 = arith.select %266, %264, %268 : vector<128x256xi1>, vector<128x256xf32>
    %270 = arith.addf %269, %15 : vector<128x256xf32>
    %cst_85 = arith.constant dense<0xFF800000> : vector<128xf32>
    %271 = vector.multi_reduction <maximumf>, %270, %cst_85 [1] : vector<128x256xf32> to vector<128xf32>
    %272 = vector.shape_cast %271 : vector<128xf32> to vector<128x1xf32>
    %273 = vector.broadcast %272 : vector<128x1xf32> to vector<128x256xf32>
    %274 = arith.subf %270, %273 : vector<128x256xf32>
    %275 = math.exp %274 : vector<128x256xf32>
    %cst_86 = arith.constant dense<0.000000e+00> : vector<128xf32>
    %276 = vector.multi_reduction <add>, %275, %cst_86 [1] : vector<128x256xf32> to vector<128xf32>
    %277 = vector.shape_cast %276 : vector<128xf32> to vector<128x1xf32>
    %278 = tpu.reciprocal %277 {approx = true} : vector<128x1xf32> -> vector<128x1xf32>
    %279 = vector.broadcast %278 : vector<128x1xf32> to vector<128x256xf32>
    %280 = arith.mulf %275, %279 : vector<128x256xf32>
    %c4_i32_87 = arith.constant 4 : i32
    %281 = arith.muli %c5_i32, %c4_i32_87 : i32
    %282 = vector.broadcast %281 : i32 to vector<1x128xi32>
    %283 = arith.cmpi sge, %18, %282 : vector<1x128xi32>
    %c4_i32_88 = arith.constant 4 : i32
    %284 = arith.addi %281, %c4_i32_88 : i32
    %285 = vector.broadcast %284 : i32 to vector<1x128xi32>
    %286 = arith.cmpi slt, %18, %285 : vector<1x128xi32>
    %287 = arith.andi %283, %286 : vector<1x128xi1>
    %cst_89 = arith.constant 0.000000e+00 : f32
    %288 = vector.shape_cast %287 : vector<1x128xi1> to vector<1x128xi1>
    %289 = vector.broadcast %288 : vector<1x128xi1> to vector<256x128xi1>
    %290 = vector.broadcast %cst_89 : f32 to vector<256x128xf32>
    %291 = arith.select %289, %2, %290 : vector<256x128xi1>, vector<256x128xf32>
    %292 = arith.truncf %291 : vector<256x128xf32> to vector<256x128xbf16>
    %293 = arith.truncf %280 : vector<128x256xf32> to vector<128x256xbf16>
    %cst_90 = arith.constant dense<0.000000e+00> : vector<128x128xf32>
    %294 = tpu.matmul %293, %292, %cst_90 {dimension_numbers = #tpu.dot_dimension_numbers<[1], [0], [0], [1], [0, 0, 1, 1], [], []>} : vector<128x256xbf16>, vector<256x128xbf16>, vector<128x128xf32> -> vector<128x128xf32>
    %295 = arith.addf %249, %294 : vector<128x128xf32>
    %c6_i32 = arith.constant 6 : i32
    %296 = vector.broadcast %c6_i32 : i32 to vector<128x8xi32>
    %297 = arith.cmpi eq, %16, %296 : vector<128x8xi32>
    %cst_91 = arith.constant 0.000000e+00 : f32
    %298 = vector.broadcast %cst_91 : f32 to vector<128x8xf32>
    %299 = arith.select %297, %8, %298 : vector<128x8xi1>, vector<128x8xf32>
    %cst_92 = arith.constant dense<0.000000e+00> : vector<128xf32>
    %300 = vector.multi_reduction <add>, %299, %cst_92 [1] : vector<128x8xf32> to vector<128xf32>
    %301 = vector.shape_cast %300 : vector<128xf32> to vector<128x1xf32>
    %302 = vector.broadcast %c6_i32 : i32 to vector<8x256xi32>
    %303 = arith.cmpi eq, %17, %302 : vector<8x256xi32>
    %cst_93 = arith.constant 0.000000e+00 : f32
    %304 = vector.broadcast %cst_93 : f32 to vector<8x256xf32>
    %305 = arith.select %303, %5, %304 : vector<8x256xi1>, vector<8x256xf32>
    %cst_94 = arith.constant dense<0.000000e+00> : vector<256xf32>
    %306 = vector.multi_reduction <add>, %305, %cst_94 [0] : vector<8x256xf32> to vector<256xf32>
    %307 = vector.shape_cast %306 : vector<256xf32> to vector<1x256xf32>
    %308 = vector.broadcast %301 : vector<128x1xf32> to vector<128x256xf32>
    %309 = vector.broadcast %307 : vector<1x256xf32> to vector<128x256xf32>
    %310 = arith.addf %308, %309 : vector<128x256xf32>
    %cst_95 = arith.constant 0.000000e+00 : f32
    %311 = vector.broadcast %cst_95 : f32 to vector<128x256xf32>
    %312 = arith.cmpf oge, %310, %311 : vector<128x256xf32>
    %cst_96 = arith.constant 2.000000e-01 : f32
    %313 = vector.broadcast %cst_96 : f32 to vector<128x256xf32>
    %314 = arith.mulf %313, %310 : vector<128x256xf32>
    %315 = arith.select %312, %310, %314 : vector<128x256xi1>, vector<128x256xf32>
    %316 = arith.addf %315, %15 : vector<128x256xf32>
    %cst_97 = arith.constant dense<0xFF800000> : vector<128xf32>
    %317 = vector.multi_reduction <maximumf>, %316, %cst_97 [1] : vector<128x256xf32> to vector<128xf32>
    %318 = vector.shape_cast %317 : vector<128xf32> to vector<128x1xf32>
    %319 = vector.broadcast %318 : vector<128x1xf32> to vector<128x256xf32>
    %320 = arith.subf %316, %319 : vector<128x256xf32>
    %321 = math.exp %320 : vector<128x256xf32>
    %cst_98 = arith.constant dense<0.000000e+00> : vector<128xf32>
    %322 = vector.multi_reduction <add>, %321, %cst_98 [1] : vector<128x256xf32> to vector<128xf32>
    %323 = vector.shape_cast %322 : vector<128xf32> to vector<128x1xf32>
    %324 = tpu.reciprocal %323 {approx = true} : vector<128x1xf32> -> vector<128x1xf32>
    %325 = vector.broadcast %324 : vector<128x1xf32> to vector<128x256xf32>
    %326 = arith.mulf %321, %325 : vector<128x256xf32>
    %c4_i32_99 = arith.constant 4 : i32
    %327 = arith.muli %c6_i32, %c4_i32_99 : i32
    %328 = vector.broadcast %327 : i32 to vector<1x128xi32>
    %329 = arith.cmpi sge, %18, %328 : vector<1x128xi32>
    %c4_i32_100 = arith.constant 4 : i32
    %330 = arith.addi %327, %c4_i32_100 : i32
    %331 = vector.broadcast %330 : i32 to vector<1x128xi32>
    %332 = arith.cmpi slt, %18, %331 : vector<1x128xi32>
    %333 = arith.andi %329, %332 : vector<1x128xi1>
    %cst_101 = arith.constant 0.000000e+00 : f32
    %334 = vector.shape_cast %333 : vector<1x128xi1> to vector<1x128xi1>
    %335 = vector.broadcast %334 : vector<1x128xi1> to vector<256x128xi1>
    %336 = vector.broadcast %cst_101 : f32 to vector<256x128xf32>
    %337 = arith.select %335, %2, %336 : vector<256x128xi1>, vector<256x128xf32>
    %338 = arith.truncf %337 : vector<256x128xf32> to vector<256x128xbf16>
    %339 = arith.truncf %326 : vector<128x256xf32> to vector<128x256xbf16>
    %cst_102 = arith.constant dense<0.000000e+00> : vector<128x128xf32>
    %340 = tpu.matmul %339, %338, %cst_102 {dimension_numbers = #tpu.dot_dimension_numbers<[1], [0], [0], [1], [0, 0, 1, 1], [], []>} : vector<128x256xbf16>, vector<256x128xbf16>, vector<128x128xf32> -> vector<128x128xf32>
    %341 = arith.addf %295, %340 : vector<128x128xf32>
    %c7_i32 = arith.constant 7 : i32
    %342 = vector.broadcast %c7_i32 : i32 to vector<128x8xi32>
    %343 = arith.cmpi eq, %16, %342 : vector<128x8xi32>
    %cst_103 = arith.constant 0.000000e+00 : f32
    %344 = vector.broadcast %cst_103 : f32 to vector<128x8xf32>
    %345 = arith.select %343, %8, %344 : vector<128x8xi1>, vector<128x8xf32>
    %cst_104 = arith.constant dense<0.000000e+00> : vector<128xf32>
    %346 = vector.multi_reduction <add>, %345, %cst_104 [1] : vector<128x8xf32> to vector<128xf32>
    %347 = vector.shape_cast %346 : vector<128xf32> to vector<128x1xf32>
    %348 = vector.broadcast %c7_i32 : i32 to vector<8x256xi32>
    %349 = arith.cmpi eq, %17, %348 : vector<8x256xi32>
    %cst_105 = arith.constant 0.000000e+00 : f32
    %350 = vector.broadcast %cst_105 : f32 to vector<8x256xf32>
    %351 = arith.select %349, %5, %350 : vector<8x256xi1>, vector<8x256xf32>
    %cst_106 = arith.constant dense<0.000000e+00> : vector<256xf32>
    %352 = vector.multi_reduction <add>, %351, %cst_106 [0] : vector<8x256xf32> to vector<256xf32>
    %353 = vector.shape_cast %352 : vector<256xf32> to vector<1x256xf32>
    %354 = vector.broadcast %347 : vector<128x1xf32> to vector<128x256xf32>
    %355 = vector.broadcast %353 : vector<1x256xf32> to vector<128x256xf32>
    %356 = arith.addf %354, %355 : vector<128x256xf32>
    %cst_107 = arith.constant 0.000000e+00 : f32
    %357 = vector.broadcast %cst_107 : f32 to vector<128x256xf32>
    %358 = arith.cmpf oge, %356, %357 : vector<128x256xf32>
    %cst_108 = arith.constant 2.000000e-01 : f32
    %359 = vector.broadcast %cst_108 : f32 to vector<128x256xf32>
    %360 = arith.mulf %359, %356 : vector<128x256xf32>
    %361 = arith.select %358, %356, %360 : vector<128x256xi1>, vector<128x256xf32>
    %362 = arith.addf %361, %15 : vector<128x256xf32>
    %cst_109 = arith.constant dense<0xFF800000> : vector<128xf32>
    %363 = vector.multi_reduction <maximumf>, %362, %cst_109 [1] : vector<128x256xf32> to vector<128xf32>
    %364 = vector.shape_cast %363 : vector<128xf32> to vector<128x1xf32>
    %365 = vector.broadcast %364 : vector<128x1xf32> to vector<128x256xf32>
    %366 = arith.subf %362, %365 : vector<128x256xf32>
    %367 = math.exp %366 : vector<128x256xf32>
    %cst_110 = arith.constant dense<0.000000e+00> : vector<128xf32>
    %368 = vector.multi_reduction <add>, %367, %cst_110 [1] : vector<128x256xf32> to vector<128xf32>
    %369 = vector.shape_cast %368 : vector<128xf32> to vector<128x1xf32>
    %370 = tpu.reciprocal %369 {approx = true} : vector<128x1xf32> -> vector<128x1xf32>
    %371 = vector.broadcast %370 : vector<128x1xf32> to vector<128x256xf32>
    %372 = arith.mulf %367, %371 : vector<128x256xf32>
    %c4_i32_111 = arith.constant 4 : i32
    %373 = arith.muli %c7_i32, %c4_i32_111 : i32
    %374 = vector.broadcast %373 : i32 to vector<1x128xi32>
    %375 = arith.cmpi sge, %18, %374 : vector<1x128xi32>
    %c4_i32_112 = arith.constant 4 : i32
    %376 = arith.addi %373, %c4_i32_112 : i32
    %377 = vector.broadcast %376 : i32 to vector<1x128xi32>
    %378 = arith.cmpi slt, %18, %377 : vector<1x128xi32>
    %379 = arith.andi %375, %378 : vector<1x128xi1>
    %cst_113 = arith.constant 0.000000e+00 : f32
    %380 = vector.shape_cast %379 : vector<1x128xi1> to vector<1x128xi1>
    %381 = vector.broadcast %380 : vector<1x128xi1> to vector<256x128xi1>
    %382 = vector.broadcast %cst_113 : f32 to vector<256x128xf32>
    %383 = arith.select %381, %2, %382 : vector<256x128xi1>, vector<256x128xf32>
    %384 = arith.truncf %383 : vector<256x128xf32> to vector<256x128xbf16>
    %385 = arith.truncf %372 : vector<128x256xf32> to vector<128x256xbf16>
    %cst_114 = arith.constant dense<0.000000e+00> : vector<128x128xf32>
    %386 = tpu.matmul %385, %384, %cst_114 {dimension_numbers = #tpu.dot_dimension_numbers<[1], [0], [0], [1], [0, 0, 1, 1], [], []>} : vector<128x256xbf16>, vector<256x128xbf16>, vector<128x128xf32> -> vector<128x128xf32>
    %387 = arith.addf %341, %386 : vector<128x128xf32>
    %c8_i32 = arith.constant 8 : i32
    %c0_115 = arith.constant 0 : index
    %c0_116 = arith.constant 0 : index
    %388 = vector.load %arg8[%c0_115, %c0_116] : memref<1x128xf32, #tpu.memory_space<vmem>>, vector<1x128xf32>
    %389 = vector.broadcast %388 : vector<1x128xf32> to vector<128x128xf32>
    %390 = arith.mulf %387, %389 : vector<128x128xf32>
    %c0_117 = arith.constant 0 : index
    %c0_118 = arith.constant 0 : index
    %391 = vector.load %arg9[%c0_117, %c0_118] : memref<1x128xf32, #tpu.memory_space<vmem>>, vector<1x128xf32>
    %392 = vector.broadcast %391 : vector<1x128xf32> to vector<128x128xf32>
    %393 = arith.addf %390, %392 : vector<128x128xf32>
    %394 = arith.addf %393, %6 : vector<128x128xf32>
    %c0_119 = arith.constant 0 : index
    %c0_120 = arith.constant 0 : index
    %395 = vector.load %arg10[%c0_119, %c0_120] : memref<128x128xf32, #tpu.memory_space<vmem>>, vector<128x128xf32>
    tpu.vector_store %arg10[%c0_119, %c0_120], %394 {strides = array<i32>} : memref<128x128xf32, #tpu.memory_space<vmem>>, vector<128x128xf32>,
    return
  }
  func.func @transform_0(%arg0: i32) -> (i32, i32) {
    %c0_i32 = arith.constant 0 : i32
    %c0_i32_0 = arith.constant 0 : i32
    %c0_i32_1 = arith.constant 0 : i32
    return %c0_i32, %c0_i32_0 : i32, i32
  }
  func.func @transform_1(%arg0: i32) -> (i32, i32) {
    %c0_i32 = arith.constant 0 : i32
    %c0_i32_0 = arith.constant 0 : i32
    %c0_i32_1 = arith.constant 0 : i32
    return %c0_i32, %c0_i32_0 : i32, i32
  }
  func.func @transform_2(%arg0: i32) -> (i32, i32) {
    %c0_i32 = arith.constant 0 : i32
    %c0_i32_0 = arith.constant 0 : i32
    return %arg0, %c0_i32 : i32, i32
  }
  func.func @transform_3(%arg0: i32) -> (i32, i32) {
    %c0_i32 = arith.constant 0 : i32
    %c0_i32_0 = arith.constant 0 : i32
    return %arg0, %c0_i32 : i32, i32
  }
  func.func @transform_4(%arg0: i32) -> (i32, i32) {
    %c0_i32 = arith.constant 0 : i32
    %c0_i32_0 = arith.constant 0 : i32
    %c0_i32_1 = arith.constant 0 : i32
    return %c0_i32, %c0_i32_0 : i32, i32
  }
  func.func @transform_5(%arg0: i32) -> (i32, i32) {
    %c0_i32 = arith.constant 0 : i32
    %c0_i32_0 = arith.constant 0 : i32
    %c0_i32_1 = arith.constant 0 : i32
    return %c0_i32, %c0_i32_0 : i32, i32
  }
  func.func @transform_6(%arg0: i32) -> (i32, i32) {
    %c0_i32 = arith.constant 0 : i32
    %c0_i32_0 = arith.constant 0 : i32
    %c0_i32_1 = arith.constant 0 : i32
    return %c0_i32, %c0_i32_0 : i32, i32
  }
  func.func @transform_7(%arg0: i32) -> (i32, i32) {
    %c0_i32 = arith.constant 0 : i32
    %c0_i32_0 = arith.constant 0 : i32
    %c0_i32_1 = arith.constant 0 : i32
    return %c0_i32, %c0_i32_0 : i32, i32
  }
  func.func @transform_8(%arg0: i32) -> (i32, i32) {
    %c0_i32 = arith.constant 0 : i32
    %c0_i32_0 = arith.constant 0 : i32
    %c0_i32_1 = arith.constant 0 : i32
    return %c0_i32, %c0_i32_0 : i32, i32
  }
  func.func @transform_9(%arg0: i32) -> (i32, i32) {
    %c0_i32 = arith.constant 0 : i32
    %c0_i32_0 = arith.constant 0 : i32
    return %arg0, %c0_i32 : i32, i32
  }
}

</mosaic_0001>

<llo_original>
// kernel: tpu_custom_call.1
$region0: #{tpu_custom_call.1}
  #allocation0 [shape = 'u32[]', space=smem, size = 0x4, offset = 0x4, fixed_abs, tag = 'smem constant byte address 0x4 - core index']
  #allocation1 [shape = 'u32[144,128]{1,0:T(1,128)}', space=vmem, size = 0x12000, scoped, tag = 'internal scratch']
  %s0 = inlined_call_operand.hbm [shape: f32[256,128], index: 0, kind: input, shape index: {}]
  %s1 = inlined_call_operand.hbm [shape: f32[128,256], index: 1, kind: input, shape index: {}]
  %s2 = inlined_call_operand.hbm [shape: f32[256,128], index: 2, kind: input, shape index: {}]
  %s3 = inlined_call_operand.hbm [shape: bf16[256,256], index: 3, kind: input, shape index: {}]
  %s4 = inlined_call_operand.vmem [shape: f32[128,128], index: 4, kind: input, shape index: {}]
  %s5 = inlined_call_operand.vmem [shape: f32[8,128], index: 5, kind: input, shape index: {}]
  %s6 = inlined_call_operand.vmem [shape: f32[128,8], index: 6, kind: input, shape index: {}]
  %s7 = inlined_call_operand.vmem [shape: f32[1,128], index: 7, kind: input, shape index: {}]
  %s8 = inlined_call_operand.vmem [shape: f32[1,128], index: 8, kind: input, shape index: {}]
  %s9 = inlined_call_operand.hbm [shape: f32[256,128], index: 9, kind: output, shape index: {}]
  %s10 = sld [smem:[#allocation0]]
  $region85: #{tpu_custom_call.1} parent=0
    _
  %s12 = ssub.s32 1, %s10
  %s13 = scalar_select 0, %s12, %s10
  $region1: #{tpu_custom_call.1} parent=0
    #allocation2 [shape = 'u8[131072]{0}', space=vmem, size = 0x20000, scoped, tag = 'input window, operand 0, single buffered']
    #allocation3 [shape = 's32[2]{0}', space=sflag, size = 0x8, scoped, tag = 'scoped memory for tpu_custom_call.1']
    #allocation4 [shape = 's32[2]{0}', space=sflag, size = 0x8, scoped, tag = 'scoped memory for tpu_custom_call.1']
    #allocation5 [shape = 'u8[131072]{0}', space=vmem, size = 0x20000, scoped, tag = 'input window, operand 1, single buffered']
    #allocation6 [shape = 's32[1]{0}', space=sflag, size = 0x4, scoped, tag = 'scoped memory for tpu_custom_call.1']
    #allocation7 [shape = 'u8[131072]{0}', space=vmem, size = 0x20000, scoped, tag = 'input window, operand 2']
    #allocation8 [shape = 'u8[131072]{0}', space=vmem, size = 0x20000, scoped, tag = 'input window, operand 3']
    #allocation9 [shape = 'u8[131072]{0}', space=vmem, size = 0x20000, scoped, tag = 'output window, operand 0']
    %14 = vsyncpa [#allocation3], 0
    %15 = vsyncpa [#allocation6], 0
    %16 = vsyncpa [#allocation4], 0
    %s17 = scalar_lea.sflag [#allocation4], 1
    %18 = vsyncpa %s17, 0
    loop: start=0, step=1, limit=4
    $region2: #{tpu_custom_call.1} parent=1 // loop_pre_header
      _
    $region3: #{tpu_custom_call.1} parent=1 // loop_header
      %s20 = sphi 0, %s24
      %p21 = scmp.ge.s32.totalorder %s20, 4
      %s28 = sphi 0, %s28
      %s30 = sphi 0, %s28
      %s31 = sphi 0, %s30
      %s45 = sphi 0, %s31
      %s49 = sphi 0, %s49
      %s51 = sphi 0, %s49
      %s52 = sphi 0, %s51
      %s66 = sphi 0, %s52
      %s72 = sphi 0, %s74
      %s75 = sphi 0, %s72
      %s76 = sphi 0, %s75
      %s92 = sphi 0, %s76
      %s98 = sphi 0, %s100
      %s101 = sphi 0, %s98
      %s102 = sphi 0, %s101
      %s118 = sphi 0, %s102
      %s122 = sphi 0, %s122
      %s124 = sphi 0, %s122
      %s125 = sphi 0, %s124
      %s139 = sphi 0, %s125
      %s143 = sphi 0, %s143
      %s145 = sphi 0, %s143
      %s146 = sphi 0, %s145
      %s160 = sphi 0, %s146
      %s164 = sphi 0, %s164
      %s166 = sphi 0, %s164
      %s167 = sphi 0, %s166
      %s181 = sphi 0, %s167
      %s185 = sphi 0, %s185
      %s187 = sphi 0, %s185
      %s188 = sphi 0, %s187
      %s202 = sphi 0, %s188
      %s206 = sphi 0, %s206
      %s208 = sphi 0, %s206
      %s209 = sphi 0, %s208
      %s223 = sphi 0, %s209
      %s229 = sphi 0, %s231
      %s232 = sphi 0, %s229
      %s233 = sphi 0, %s232
      %s249 = sphi 0, %s233
    $region4: #{tpu_custom_call.1} parent=1 // loop_header_branch
      %23 = sbr.rel (%p21) target = $region8
    $region5: #{tpu_custom_call.1} parent=1 // loop_body
      %s25 = ssub.s32 %s20, 1
      %s26 = ssub.s32 %s20, 2
      %s27 = sadd.s32 %s20, 1
      %s29 = sadd.s32 %s28, 1
      %p32 = scmp.eq.s32.totalorder %s20, 1
      %p33 = scmp.ne.s32.totalorder %s28, %s30
      %p34 = scmp.eq.s32.totalorder %s20, 0
      %p35 = por %p33, %p34
      %p36 = scmp.ne.s32.totalorder %s28, %s30
      %p37 = scmp.eq.s32.totalorder %s25, 1
      %p38 = por %p36, %p37
      %p39 = scmp.ne.s32.totalorder %s30, %s31
      %p40 = scmp.eq.s32.totalorder %s25, 0
      %p41 = por %p39, %p40
      %p42 = scmp.ne.s32.totalorder %s30, %s31
      %p43 = scmp.eq.s32.totalorder %s26, 1
      %p44 = por %p42, %p43
      %p46 = scmp.ne.s32.totalorder %s31, %s45
      %p47 = scmp.eq.s32.totalorder %s26, 0
      %p48 = por %p46, %p47
      %s50 = sadd.s32 %s49, 1
      %p53 = scmp.eq.s32.totalorder %s20, 1
      %p54 = scmp.ne.s32.totalorder %s49, %s51
      %p55 = scmp.eq.s32.totalorder %s20, 0
      %p56 = por %p54, %p55
      %p57 = scmp.ne.s32.totalorder %s49, %s51
      %p58 = scmp.eq.s32.totalorder %s25, 1
      %p59 = por %p57, %p58
      %p60 = scmp.ne.s32.totalorder %s51, %s52
      %p61 = scmp.eq.s32.totalorder %s25, 0
      %p62 = por %p60, %p61
      %p63 = scmp.ne.s32.totalorder %s51, %s52
      %p64 = scmp.eq.s32.totalorder %s26, 1
      %p65 = por %p63, %p64
      %p67 = scmp.ne.s32.totalorder %s52, %s66
      %p68 = scmp.eq.s32.totalorder %s26, 0
      %p69 = por %p67, %p68
      %s70 = ssub.s32 %s20, %s27
      %p71 = scmp.eq.s32.totalorder %s70, 0
      %s73 = sadd.s32 %s72, 1
      %s74 = scalar_select %p71, %s72, %s73
      %p77 = pneg %p71
      %p78 = scmp.eq.s32.totalorder %s20, 1
      %p79 = por %p77, %p78
      %p80 = scmp.ne.s32.totalorder %s72, %s75
      %p81 = scmp.eq.s32.totalorder %s20, 0
      %p82 = por %p80, %p81
      %p83 = scmp.ne.s32.totalorder %s72, %s75
      %p84 = scmp.eq.s32.totalorder %s25, 1
      %p85 = por %p83, %p84
      %p86 = scmp.ne.s32.totalorder %s75, %s76
      %p87 = scmp.eq.s32.totalorder %s25, 0
      %p88 = por %p86, %p87
      %p89 = scmp.ne.s32.totalorder %s75, %s76
      %p90 = scmp.eq.s32.totalorder %s26, 1
      %p91 = por %p89, %p90
      %p93 = scmp.ne.s32.totalorder %s76, %s92
      %p94 = scmp.eq.s32.totalorder %s26, 0
      %p95 = por %p93, %p94
      %s96 = ssub.s32 %s20, %s27
      %p97 = scmp.eq.s32.totalorder %s96, 0
      %s99 = sadd.s32 %s98, 1
      %s100 = scalar_select %p97, %s98, %s99
      %p103 = pneg %p97
      %p104 = scmp.eq.s32.totalorder %s20, 1
      %p105 = por %p103, %p104
      %p106 = scmp.ne.s32.totalorder %s98, %s101
      %p107 = scmp.eq.s32.totalorder %s20, 0
      %p108 = por %p106, %p107
      %p109 = scmp.ne.s32.totalorder %s98, %s101
      %p110 = scmp.eq.s32.totalorder %s25, 1
      %p111 = por %p109, %p110
      %p112 = scmp.ne.s32.totalorder %s101, %s102
      %p113 = scmp.eq.s32.totalorder %s25, 0
      %p114 = por %p112, %p113
      %p115 = scmp.ne.s32.totalorder %s101, %s102
      %p116 = scmp.eq.s32.totalorder %s26, 1
      %p117 = por %p115, %p116
      %p119 = scmp.ne.s32.totalorder %s102, %s118
      %p120 = scmp.eq.s32.totalorder %s26, 0
      %p121 = por %p119, %p120
      %s123 = sadd.s32 %s122, 1
      %p126 = scmp.eq.s32.totalorder %s20, 1
      %p127 = scmp.ne.s32.totalorder %s122, %s124
      %p128 = scmp.eq.s32.totalorder %s20, 0
      %p129 = por %p127, %p128
      %p130 = scmp.ne.s32.totalorder %s122, %s124
      %p131 = scmp.eq.s32.totalorder %s25, 1
      %p132 = por %p130, %p131
      %p133 = scmp.ne.s32.totalorder %s124, %s125
      %p134 = scmp.eq.s32.totalorder %s25, 0
      %p135 = por %p133, %p134
      %p136 = scmp.ne.s32.totalorder %s124, %s125
      %p137 = scmp.eq.s32.totalorder %s26, 1
      %p138 = por %p136, %p137
      %p140 = scmp.ne.s32.totalorder %s125, %s139
      %p141 = scmp.eq.s32.totalorder %s26, 0
      %p142 = por %p140, %p141
      %s144 = sadd.s32 %s143, 1
      %p147 = scmp.eq.s32.totalorder %s20, 1
      %p148 = scmp.ne.s32.totalorder %s143, %s145
      %p149 = scmp.eq.s32.totalorder %s20, 0
      %p150 = por %p148, %p149
      %p151 = scmp.ne.s32.totalorder %s143, %s145
      %p152 = scmp.eq.s32.totalorder %s25, 1
      %p153 = por %p151, %p152
      %p154 = scmp.ne.s32.totalorder %s145, %s146
      %p155 = scmp.eq.s32.totalorder %s25, 0
      %p156 = por %p154, %p155
      %p157 = scmp.ne.s32.totalorder %s145, %s146
      %p158 = scmp.eq.s32.totalorder %s26, 1
      %p159 = por %p157, %p158
      %p161 = scmp.ne.s32.totalorder %s146, %s160
      %p162 = scmp.eq.s32.totalorder %s26, 0
      %p163 = por %p161, %p162
      %s165 = sadd.s32 %s164, 1
      %p168 = scmp.eq.s32.totalorder %s20, 1
      %p169 = scmp.ne.s32.totalorder %s164, %s166
      %p170 = scmp.eq.s32.totalorder %s20, 0
      %p171 = por %p169, %p170
      %p172 = scmp.ne.s32.totalorder %s164, %s166
      %p173 = scmp.eq.s32.totalorder %s25, 1
      %p174 = por %p172, %p173
      %p175 = scmp.ne.s32.totalorder %s166, %s167
      %p176 = scmp.eq.s32.totalorder %s25, 0
      %p177 = por %p175, %p176
      %p178 = scmp.ne.s32.totalorder %s166, %s167
      %p179 = scmp.eq.s32.totalorder %s26, 1
      %p180 = por %p178, %p179
      %p182 = scmp.ne.s32.totalorder %s167, %s181
      %p183 = scmp.eq.s32.totalorder %s26, 0
      %p184 = por %p182, %p183
      %s186 = sadd.s32 %s185, 1
      %p189 = scmp.eq.s32.totalorder %s20, 1
      %p190 = scmp.ne.s32.totalorder %s185, %s187
      %p191 = scmp.eq.s32.totalorder %s20, 0
      %p192 = por %p190, %p191
      %p193 = scmp.ne.s32.totalorder %s185, %s187
      %p194 = scmp.eq.s32.totalorder %s25, 1
      %p195 = por %p193, %p194
      %p196 = scmp.ne.s32.totalorder %s187, %s188
      %p197 = scmp.eq.s32.totalorder %s25, 0
      %p198 = por %p196, %p197
      %p199 = scmp.ne.s32.totalorder %s187, %s188
      %p200 = scmp.eq.s32.totalorder %s26, 1
      %p201 = por %p199, %p200
      %p203 = scmp.ne.s32.totalorder %s188, %s202
      %p204 = scmp.eq.s32.totalorder %s26, 0
      %p205 = por %p203, %p204
      %s207 = sadd.s32 %s206, 1
      %p210 = scmp.eq.s32.totalorder %s20, 1
      %p211 = scmp.ne.s32.totalorder %s206, %s208
      %p212 = scmp.eq.s32.totalorder %s20, 0
      %p213 = por %p211, %p212
      %p214 = scmp.ne.s32.totalorder %s206, %s208
      %p215 = scmp.eq.s32.totalorder %s25, 1
      %p216 = por %p214, %p215
      %p217 = scmp.ne.s32.totalorder %s208, %s209
      %p218 = scmp.eq.s32.totalorder %s25, 0
      %p219 = por %p217, %p218
      %p220 = scmp.ne.s32.totalorder %s208, %s209
      %p221 = scmp.eq.s32.totalorder %s26, 1
      %p222 = por %p220, %p221
      %p224 = scmp.ne.s32.totalorder %s209, %s223
      %p225 = scmp.eq.s32.totalorder %s26, 0
      %p226 = por %p224, %p225
      %s227 = ssub.s32 %s20, %s27
      %p228 = scmp.eq.s32.totalorder %s227, 0
      %s230 = sadd.s32 %s229, 1
      %s231 = scalar_select %p228, %s229, %s230
      %p234 = pneg %p228
      %p235 = scmp.eq.s32.totalorder %s20, 1
      %p236 = por %p234, %p235
      %p237 = scmp.ne.s32.totalorder %s229, %s232
      %p238 = scmp.eq.s32.totalorder %s20, 0
      %p239 = por %p237, %p238
      %p240 = scmp.ne.s32.totalorder %s229, %s232
      %p241 = scmp.eq.s32.totalorder %s25, 1
      %p242 = por %p240, %p241
      %p243 = scmp.ne.s32.totalorder %s232, %s233
      %p244 = scmp.eq.s32.totalorder %s25, 0
      %p245 = por %p243, %p244
      %p246 = scmp.ne.s32.totalorder %s232, %s233
      %p247 = scmp.eq.s32.totalorder %s26, 1
      %p248 = por %p246, %p247
      %p250 = scmp.ne.s32.totalorder %s233, %s249
      %p251 = scmp.eq.s32.totalorder %s26, 0
      %p252 = por %p250, %p251
      %p253 = scmp.le.s32.totalorder 1, %s20
      %p254 = scmp.lt.s32.totalorder %s20, 3
      %p255 = pnand %p253, %p254
      %p256 = pneg %p255
      // Predicated region
      $region9: #{tpu_custom_call.1} parent=5 // pred_check
        _
      $region10: #{tpu_custom_call.1} parent=5 // pred_check_branch
        %258 = sbr.rel (%p255) target = $region12
      $region11: #{tpu_custom_call.1} parent=5 // pred_region
        %s259 = ssub.s32 %s20, 1
        // Predicated region
        $region13: #{tpu_custom_call.1} parent=11 // pred_check
          %p260 = pneg %p41
        $region14: #{tpu_custom_call.1} parent=11 // pred_check_branch
          %262 = sbr.rel (%p260) target = $region16
        $region15: #{tpu_custom_call.1} parent=11 // pred_region
          %s264 = ssub.s32 4096, 4096
          %265 = vsyncadd [#allocation3], %s264
          %s266 = sshll.u32 [#allocation2], 4
          %s267 = int_to_ptr.vmem [resolvable:$true] %s266
          %272 = dma.hbm_to_vmem [thread:$0]  %s0, 4096, %s267, [#allocation3], 128, 128, 8
        $region16: #{tpu_custom_call.1} parent=11 // pred_fallthru
          _
        // Predicated region
        $region17: #{tpu_custom_call.1} parent=11 // pred_check
          %p273 = pneg %p62
        $region18: #{tpu_custom_call.1} parent=11 // pred_check_branch
          %275 = sbr.rel (%p273) target = $region20
        $region19: #{tpu_custom_call.1} parent=11 // pred_region
          %s277 = ssub.s32 4096, 4096
          %278 = vsyncadd [#allocation6], %s277
          %s279 = sshll.u32 [#allocation5], 4
          %s280 = int_to_ptr.vmem [resolvable:$true] %s279
          %285 = dma.hbm_to_vmem [thread:$0]  %s1, 4096, %s280, [#allocation6], 256, 256, 16
        $region20: #{tpu_custom_call.1} parent=11 // pred_fallthru
          _
        // Predicated region
        $region21: #{tpu_custom_call.1} parent=11 // pred_check
          %p286 = pneg %p135
        $region22: #{tpu_custom_call.1} parent=11 // pred_check_branch
          %288 = sbr.rel (%p286) target = $region24
        $region23: #{tpu_custom_call.1} parent=11 // pred_region
          _
        $region24: #{tpu_custom_call.1} parent=11 // pred_fallthru
          _
        // Predicated region
        $region25: #{tpu_custom_call.1} parent=11 // pred_check
          %p289 = pneg %p156
        $region26: #{tpu_custom_call.1} parent=11 // pred_check_branch
          %291 = sbr.rel (%p289) target = $region28
        $region27: #{tpu_custom_call.1} parent=11 // pred_region
          _
        $region28: #{tpu_custom_call.1} parent=11 // pred_fallthru
          _
        // Predicated region
        $region29: #{tpu_custom_call.1} parent=11 // pred_check
          %p292 = pneg %p177
        $region30: #{tpu_custom_call.1} parent=11 // pred_check_branch
          %294 = sbr.rel (%p292) target = $region32
        $region31: #{tpu_custom_call.1} parent=11 // pred_region
          _
        $region32: #{tpu_custom_call.1} parent=11 // pred_fallthru
          _
        // Predicated region
        $region33: #{tpu_custom_call.1} parent=11 // pred_check
          %p295 = pneg %p198
        $region34: #{tpu_custom_call.1} parent=11 // pred_check_branch
          %297 = sbr.rel (%p295) target = $region36
        $region35: #{tpu_custom_call.1} parent=11 // pred_region
          _
        $region36: #{tpu_custom_call.1} parent=11 // pred_fallthru
          _
        // Predicated region
        $region37: #{tpu_custom_call.1} parent=11 // pred_check
          %p298 = pneg %p219
        $region38: #{tpu_custom_call.1} parent=11 // pred_check_branch
          %300 = sbr.rel (%p298) target = $region40
        $region39: #{tpu_custom_call.1} parent=11 // pred_region
          _
        $region40: #{tpu_custom_call.1} parent=11 // pred_fallthru
          _
      $region12: #{tpu_custom_call.1} parent=5 // pred_fallthru
        _
      %p301 = scmp.lt.s32.totalorder %s20, 2
      // Predicated region
      $region41: #{tpu_custom_call.1} parent=5 // pred_check
        %p302 = pneg %p301
      $region42: #{tpu_custom_call.1} parent=5 // pred_check_branch
        %304 = sbr.rel (%p302) target = $region44
      $region43: #{tpu_custom_call.1} parent=5 // pred_region
        // Predicated region
        $region45: #{tpu_custom_call.1} parent=43 // pred_check
          %p305 = pneg %p82
        $region46: #{tpu_custom_call.1} parent=43 // pred_check_branch
          %307 = sbr.rel (%p305) target = $region48
        $region47: #{tpu_custom_call.1} parent=43 // pred_region
          %s308 = sand.u32 %s20, 1
          %s309 = scalar_lea.sflag [#allocation3], %s308
          %s310 = sand.u32 %s72, 1
          %s311 = smul.addr %s310, 128
          %s312 = scalar_lea.vmem [#allocation7], %s311
          %s313 = smul.u32 16, %s20
          %s315 = ssub.s32 2048, 2048
          %316 = vsyncadd %s309, %s315
          %s317 = smul.addr %s313, 128
          %s318 = scalar_lea.hbm %s2, %s317
          %s319 = sshll.u32 %s312, 4
          %s320 = int_to_ptr.vmem [resolvable:$true] %s319
          %325 = dma.hbm_to_vmem [thread:$0]  %s318, 2048, %s320, %s309, 128, 128, 8
        $region48: #{tpu_custom_call.1} parent=43 // pred_fallthru
          _
        // Predicated region
        $region49: #{tpu_custom_call.1} parent=43 // pred_check
          %p326 = pneg %p108
        $region50: #{tpu_custom_call.1} parent=43 // pred_check_branch
          %328 = sbr.rel (%p326) target = $region52
        $region51: #{tpu_custom_call.1} parent=43 // pred_region
          %s329 = sand.u32 %s20, 1
          %s330 = scalar_lea.sflag [#allocation3], %s329
          %s331 = sand.u32 %s98, 1
          %s332 = smul.addr %s331, 128
          %s333 = scalar_lea.vmem [#allocation8], %s332
          %s334 = smul.u32 16, %s20
          %s336 = ssub.s32 2048, 2048
          %337 = vsyncadd %s330, %s336
          %s338 = smul.addr %s334, 2
          %s339 = smul.addr %s338, 64
          %s340 = scalar_lea.hbm %s3, %s339
          %s341 = sshll.u32 %s333, 4
          %s342 = int_to_ptr.vmem [resolvable:$true] %s341
          %347 = dma.hbm_to_vmem [thread:$0]  %s340, 2048, %s342, %s330, 128, 128, 8
        $region52: #{tpu_custom_call.1} parent=43 // pred_fallthru
          _
      $region44: #{tpu_custom_call.1} parent=5 // pred_fallthru
        _
      %p348 = scmp.le.s32.totalorder 1, %s20
      %p349 = scmp.lt.s32.totalorder %s20, 3
      %p350 = pnand %p348, %p349
      %p351 = pneg %p350
      // Predicated region
      $region53: #{tpu_custom_call.1} parent=5 // pred_check
        _
      $region54: #{tpu_custom_call.1} parent=5 // pred_check_branch
        %353 = sbr.rel (%p350) target = $region56
      $region55: #{tpu_custom_call.1} parent=5 // pred_region
        %s354 = ssub.s32 %s20, 1
        // Predicated region
        $region57: #{tpu_custom_call.1} parent=55 // pred_check
          %p355 = pneg %p41
        $region58: #{tpu_custom_call.1} parent=55 // pred_check_branch
          %357 = sbr.rel (%p355) target = $region60
        $region59: #{tpu_custom_call.1} parent=55 // pred_region
          %358 = dma.done [#allocation3], 4096
        $region60: #{tpu_custom_call.1} parent=55 // pred_fallthru
          _
        // Predicated region
        $region61: #{tpu_custom_call.1} parent=55 // pred_check
          %p359 = pneg %p62
        $region62: #{tpu_custom_call.1} parent=55 // pred_check_branch
          %361 = sbr.rel (%p359) target = $region64
        $region63: #{tpu_custom_call.1} parent=55 // pred_region
          %362 = dma.done [#allocation6], 4096
        $region64: #{tpu_custom_call.1} parent=55 // pred_fallthru
          _
        %s363 = sand.u32 %s25, 1
        %s364 = scalar_lea.sflag [#allocation3], %s363
        %s365 = sand.u32 %s75, 1
        %s366 = smul.addr %s365, 128
        %s367 = scalar_lea.vmem [#allocation7], %s366
        // Predicated region
        $region65: #{tpu_custom_call.1} parent=55 // pred_check
          %p368 = pneg %p88
        $region66: #{tpu_custom_call.1} parent=55 // pred_check_branch
          %370 = sbr.rel (%p368) target = $region68
        $region67: #{tpu_custom_call.1} parent=55 // pred_region
          %371 = dma.done %s364, 2048
        $region68: #{tpu_custom_call.1} parent=55 // pred_fallthru
          _
        %s372 = sand.u32 %s25, 1
        %s373 = scalar_lea.sflag [#allocation3], %s372
        %s374 = sand.u32 %s101, 1
        %s375 = smul.addr %s374, 128
        %s376 = scalar_lea.vmem [#allocation8], %s375
        // Predicated region
        $region69: #{tpu_custom_call.1} parent=55 // pred_check
          %p377 = pneg %p114
        $region70: #{tpu_custom_call.1} parent=55 // pred_check_branch
          %379 = sbr.rel (%p377) target = $region72
        $region71: #{tpu_custom_call.1} parent=55 // pred_region
          %380 = dma.done %s373, 2048
        $region72: #{tpu_custom_call.1} parent=55 // pred_fallthru
          _
        %p381 = pneg %p41
        %p382 = pneg %p38
        %p383 = pneg %p62
        %p384 = pneg %p59
        %s385 = sand.u32 %s25, 1
        %s386 = scalar_lea.sflag [#allocation3], %s385
        %s387 = sand.u32 %s75, 1
        %s388 = smul.addr %s387, 128
        %s389 = scalar_lea.vmem [#allocation7], %s388
        %p390 = pneg %p88
        %p391 = pneg %p85
        %s392 = sand.u32 %s25, 1
        %s393 = scalar_lea.sflag [#allocation3], %s392
        %s394 = sand.u32 %s101, 1
        %s395 = smul.addr %s394, 128
        %s396 = scalar_lea.vmem [#allocation8], %s395
        %p397 = pneg %p114
        %p398 = pneg %p111
        %p399 = pneg %p135
        %p400 = pneg %p132
        %p401 = pneg %p156
        %p402 = pneg %p153
        %p403 = pneg %p177
        %p404 = pneg %p174
        %p405 = pneg %p198
        %p406 = pneg %p195
        %p407 = pneg %p219
        %p408 = pneg %p216
        %p409 = pneg %p245
        %p410 = pneg %p242
        %s411 = sand.u32 %s232, 1
        %s412 = scalar_lea.sflag [#allocation4], %s411
        %s413 = sand.u32 %s232, 1
        %s414 = smul.addr %s413, 128
        %s415 = scalar_lea.vmem [#allocation9], %s414
        %s416 = smul.u32 16, %s25
        %s417 = smul.u32 16, %s25
        %s418 = smul.u32 16, %s25
        %v420 = vld [vmem:[#allocation2] sm:$0xff]
        %v421 = vld [vmem:[#allocation2 + $0x8] sm:$0xff]
        %v422 = vld [vmem:[#allocation2 + $0x10] sm:$0xff]
        %v423 = vld [vmem:[#allocation2 + $0x18] sm:$0xff]
        %v424 = vld [vmem:[#allocation2 + $0x20] sm:$0xff]
        %v425 = vld [vmem:[#allocation2 + $0x28] sm:$0xff]
        %v426 = vld [vmem:[#allocation2 + $0x30] sm:$0xff]
        %v427 = vld [vmem:[#allocation2 + $0x38] sm:$0xff]
        %v428 = vld [vmem:[#allocation2 + $0x40] sm:$0xff]
        %v429 = vld [vmem:[#allocation2 + $0x48] sm:$0xff]
        %v430 = vld [vmem:[#allocation2 + $0x50] sm:$0xff]
        %v431 = vld [vmem:[#allocation2 + $0x58] sm:$0xff]
        %v432 = vld [vmem:[#allocation2 + $0x60] sm:$0xff]
        %v433 = vld [vmem:[#allocation2 + $0x68] sm:$0xff]
        %v434 = vld [vmem:[#allocation2 + $0x70] sm:$0xff]
        %v435 = vld [vmem:[#allocation2 + $0x78] sm:$0xff]
        %v436 = vld [vmem:[#allocation2 + $0x80] sm:$0xff]
        %v437 = vld [vmem:[#allocation2 + $0x88] sm:$0xff]
        %v438 = vld [vmem:[#allocation2 + $0x90] sm:$0xff]
        %v439 = vld [vmem:[#allocation2 + $0x98] sm:$0xff]
        %v440 = vld [vmem:[#allocation2 + $0xa0] sm:$0xff]
        %v441 = vld [vmem:[#allocation2 + $0xa8] sm:$0xff]
        %v442 = vld [vmem:[#allocation2 + $0xb0] sm:$0xff]
        %v443 = vld [vmem:[#allocation2 + $0xb8] sm:$0xff]
        %v444 = vld [vmem:[#allocation2 + $0xc0] sm:$0xff]
        %v445 = vld [vmem:[#allocation2 + $0xc8] sm:$0xff]
        %v446 = vld [vmem:[#allocation2 + $0xd0] sm:$0xff]
        %v447 = vld [vmem:[#allocation2 + $0xd8] sm:$0xff]
        %v448 = vld [vmem:[#allocation2 + $0xe0] sm:$0xff]
        %v449 = vld [vmem:[#allocation2 + $0xe8] sm:$0xff]
        %v450 = vld [vmem:[#allocation2 + $0xf0] sm:$0xff]
        %v451 = vld [vmem:[#allocation2 + $0xf8] sm:$0xff]
        %v452 = vld [vmem:[%s4] sm:$0xff]
        %v453 = vld [vmem:[%s4 + $0x8] sm:$0xff]
        %v454 = vld [vmem:[%s4 + $0x10] sm:$0xff]
        %v455 = vld [vmem:[%s4 + $0x18] sm:$0xff]
        %v456 = vld [vmem:[%s4 + $0x20] sm:$0xff]
        %v457 = vld [vmem:[%s4 + $0x28] sm:$0xff]
        %v458 = vld [vmem:[%s4 + $0x30] sm:$0xff]
        %v459 = vld [vmem:[%s4 + $0x38] sm:$0xff]
        %v460 = vld [vmem:[%s4 + $0x40] sm:$0xff]
        %v461 = vld [vmem:[%s4 + $0x48] sm:$0xff]
        %v462 = vld [vmem:[%s4 + $0x50] sm:$0xff]
        %v463 = vld [vmem:[%s4 + $0x58] sm:$0xff]
        %v464 = vld [vmem:[%s4 + $0x60] sm:$0xff]
        %v465 = vld [vmem:[%s4 + $0x68] sm:$0xff]
        %v466 = vld [vmem:[%s4 + $0x70] sm:$0xff]
        %v467 = vld [vmem:[%s4 + $0x78] sm:$0xff]
        %468 = vmatprep.subr.mxu0 0.0
        %469 = vmatpush1.msra.mxu0 %v467
        %470 = vmatprep.subr.mxu0 0.0
        %471 = vmatpush1.msra.mxu0 %v466
        %472 = vmatprep.subr.mxu0 0.0
        %473 = vmatpush1.msra.mxu0 %v465
        %474 = vmatprep.subr.mxu0 0.0
        %475 = vmatpush1.msra.mxu0 %v464
        %476 = vmatprep.subr.mxu0 0.0
        %477 = vmatpush1.msra.mxu0 %v463
        %478 = vmatprep.subr.mxu0 0.0
        %479 = vmatpush1.msra.mxu0 %v462
        %480 = vmatprep.subr.mxu0 0.0
        %481 = vmatpush1.msra.mxu0 %v461
        %482 = vmatprep.subr.mxu0 0.0
        %483 = vmatpush1.msra.mxu0 %v460
        %484 = vmatprep.subr.mxu0 0.0
        %485 = vmatpush1.msra.mxu0 %v459
        %486 = vmatprep.subr.mxu0 0.0
        %487 = vmatpush1.msra.mxu0 %v458
        %488 = vmatprep.subr.mxu0 0.0
        %489 = vmatpush1.msra.mxu0 %v457
        %490 = vmatprep.subr.mxu0 0.0
        %491 = vmatpush1.msra.mxu0 %v456
        %492 = vmatprep.subr.mxu0 0.0
        %493 = vmatpush1.msra.mxu0 %v455
        %494 = vmatprep.subr.mxu0 0.0
        %495 = vmatpush1.msra.mxu0 %v454
        %496 = vmatprep.subr.mxu0 0.0
        %497 = vmatpush1.msra.mxu0 %v453
        %498 = vmatprep.subr.mxu0 0.0
        %499 = vmatpush1.msra.mxu0 %v452
        %500 = vmatprep.subr.mxu0 0.0
        %501 = vmatpush2.msra.mxu0 0.0
        %502 = vmatprep.subr.mxu0 0.0
        %503 = vmatpush2.msra.mxu0 0.0
        %504 = vmatprep.subr.mxu0 0.0
        %505 = vmatpush2.msra.mxu0 0.0
        %506 = vmatprep.subr.mxu0 0.0
        %507 = vmatpush2.msra.mxu0 0.0
        %508 = vmatprep.subr.mxu0 0.0
        %509 = vmatpush2.msra.mxu0 0.0
        %510 = vmatprep.subr.mxu0 0.0
        %511 = vmatpush2.msra.mxu0 0.0
        %512 = vmatprep.subr.mxu0 0.0
        %513 = vmatpush2.msra.mxu0 0.0
        %514 = vmatprep.subr.mxu0 0.0
        %515 = vmatpush2.msra.mxu0 0.0
        %516 = vmatprep.subr.mxu0 0.0
        %517 = vmatpush2.msra.mxu0 0.0
        %518 = vmatprep.subr.mxu0 0.0
        %519 = vmatpush2.msra.mxu0 0.0
        %520 = vmatprep.subr.mxu0 0.0
        %521 = vmatpush2.msra.mxu0 0.0
        %522 = vmatprep.subr.mxu0 0.0
        %523 = vmatpush2.msra.mxu0 0.0
        %524 = vmatprep.subr.mxu0 0.0
        %525 = vmatpush2.msra.mxu0 0.0
        %526 = vmatprep.subr.mxu0 0.0
        %527 = vmatpush2.msra.mxu0 0.0
        %528 = vmatprep.subr.mxu0 0.0
        %529 = vmatpush2.msra.mxu0 0.0
        %530 = vmatprep.subr.mxu0 0.0
        %531 = vmatpush2.msra.mxu0 0.0
        %532 = vmatprep.mubr.f32.mxu0 0.0
        %533 = vmatmul.mubr.f32.gmra.mxu0 %v420
        %v534 = vpop.f32.mrf.mxu0
        %v535 = vadd.f32 0.0, %v534
        %v536 = vpop.f32.mrf.mxu0
        %537 = vmatprep.mubr.f32.mxu0 0.0
        %538 = vmatmul.mubr.f32.gmra.mxu0 %v421
        %v539 = vpop.f32.mrf.mxu0
        %v540 = vadd.f32 0.0, %v539
        %v541 = vpop.f32.mrf.mxu0
        %542 = vmatprep.mubr.f32.mxu0 0.0
        %543 = vmatmul.mubr.f32.gmra.mxu0 %v422
        %v544 = vpop.f32.mrf.mxu0
        %v545 = vadd.f32 0.0, %v544
        %v546 = vpop.f32.mrf.mxu0
        %547 = vmatprep.mubr.f32.mxu0 0.0
        %548 = vmatmul.mubr.f32.gmra.mxu0 %v423
        %v549 = vpop.f32.mrf.mxu0
        %v550 = vadd.f32 0.0, %v549
        %v551 = vpop.f32.mrf.mxu0
        %552 = vmatprep.mubr.f32.mxu0 0.0
        %553 = vmatmul.mubr.f32.gmra.mxu0 %v424
        %v554 = vpop.f32.mrf.mxu0
        %v555 = vadd.f32 0.0, %v554
        %v556 = vpop.f32.mrf.mxu0
        %557 = vmatprep.mubr.f32.mxu0 0.0
        %558 = vmatmul.mubr.f32.gmra.mxu0 %v425
        %v559 = vpop.f32.mrf.mxu0
        %v560 = vadd.f32 0.0, %v559
        %v561 = vpop.f32.mrf.mxu0
        %562 = vmatprep.mubr.f32.mxu0 0.0
        %563 = vmatmul.mubr.f32.gmra.mxu0 %v426
        %v564 = vpop.f32.mrf.mxu0
        %v565 = vadd.f32 0.0, %v564
        %v566 = vpop.f32.mrf.mxu0
        %567 = vmatprep.mubr.f32.mxu0 0.0
        %568 = vmatmul.mubr.f32.gmra.mxu0 %v427
        %v569 = vpop.f32.mrf.mxu0
        %v570 = vadd.f32 0.0, %v569
        %v571 = vpop.f32.mrf.mxu0
        %572 = vmatprep.mubr.f32.mxu0 0.0
        %573 = vmatmul.mubr.f32.gmra.mxu0 %v428
        %v574 = vpop.f32.mrf.mxu0
        %v575 = vadd.f32 0.0, %v574
        %v576 = vpop.f32.mrf.mxu0
        %577 = vmatprep.mubr.f32.mxu0 0.0
        %578 = vmatmul.mubr.f32.gmra.mxu0 %v429
        %v579 = vpop.f32.mrf.mxu0
        %v580 = vadd.f32 0.0, %v579
        %v581 = vpop.f32.mrf.mxu0
        %582 = vmatprep.mubr.f32.mxu0 0.0
        %583 = vmatmul.mubr.f32.gmra.mxu0 %v430
        %v584 = vpop.f32.mrf.mxu0
        %v585 = vadd.f32 0.0, %v584
        %v586 = vpop.f32.mrf.mxu0
        %587 = vmatprep.mubr.f32.mxu0 0.0
        %588 = vmatmul.mubr.f32.gmra.mxu0 %v431
        %v589 = vpop.f32.mrf.mxu0
        %v590 = vadd.f32 0.0, %v589
        %v591 = vpop.f32.mrf.mxu0
        %592 = vmatprep.mubr.f32.mxu0 0.0
        %593 = vmatmul.mubr.f32.gmra.mxu0 %v432
        %v594 = vpop.f32.mrf.mxu0
        %v595 = vadd.f32 0.0, %v594
        %v596 = vpop.f32.mrf.mxu0
        %597 = vmatprep.mubr.f32.mxu0 0.0
        %598 = vmatmul.mubr.f32.gmra.mxu0 %v433
        %v599 = vpop.f32.mrf.mxu0
        %v600 = vadd.f32 0.0, %v599
        %v601 = vpop.f32.mrf.mxu0
        %602 = vmatprep.mubr.f32.mxu0 0.0
        %603 = vmatmul.mubr.f32.gmra.mxu0 %v434
        %v604 = vpop.f32.mrf.mxu0
        %v605 = vadd.f32 0.0, %v604
        %v606 = vpop.f32.mrf.mxu0
        %607 = vmatprep.mubr.f32.mxu0 0.0
        %608 = vmatmul.mubr.f32.gmra.mxu0 %v435
        %v609 = vpop.f32.mrf.mxu0
        %v610 = vadd.f32 0.0, %v609
        %v611 = vpop.f32.mrf.mxu0
        %612 = vmatprep.mubr.f32.mxu0 0.0
        %613 = vmatmul.mubr.f32.gmra.mxu0 %v436
        %v614 = vpop.f32.mrf.mxu0
        %v615 = vadd.f32 0.0, %v614
        %v616 = vpop.f32.mrf.mxu0
        %617 = vmatprep.mubr.f32.mxu0 0.0
        %618 = vmatmul.mubr.f32.gmra.mxu0 %v437
        %v619 = vpop.f32.mrf.mxu0
        %v620 = vadd.f32 0.0, %v619
        %v621 = vpop.f32.mrf.mxu0
        %622 = vmatprep.mubr.f32.mxu0 0.0
        %623 = vmatmul.mubr.f32.gmra.mxu0 %v438
        %v624 = vpop.f32.mrf.mxu0
        %v625 = vadd.f32 0.0, %v624
        %v626 = vpop.f32.mrf.mxu0
        %627 = vmatprep.mubr.f32.mxu0 0.0
        %628 = vmatmul.mubr.f32.gmra.mxu0 %v439
        %v629 = vpop.f32.mrf.mxu0
        %v630 = vadd.f32 0.0, %v629
        %v631 = vpop.f32.mrf.mxu0
        %632 = vmatprep.mubr.f32.mxu0 0.0
        %633 = vmatmul.mubr.f32.gmra.mxu0 %v440
        %v634 = vpop.f32.mrf.mxu0
        %v635 = vadd.f32 0.0, %v634
        %v636 = vpop.f32.mrf.mxu0
        %637 = vmatprep.mubr.f32.mxu0 0.0
        %638 = vmatmul.mubr.f32.gmra.mxu0 %v441
        %v639 = vpop.f32.mrf.mxu0
        %v640 = vadd.f32 0.0, %v639
        %v641 = vpop.f32.mrf.mxu0
        %642 = vmatprep.mubr.f32.mxu0 0.0
        %643 = vmatmul.mubr.f32.gmra.mxu0 %v442
        %v644 = vpop.f32.mrf.mxu0
        %v645 = vadd.f32 0.0, %v644
        %v646 = vpop.f32.mrf.mxu0
        %647 = vmatprep.mubr.f32.mxu0 0.0
        %648 = vmatmul.mubr.f32.gmra.mxu0 %v443
        %v649 = vpop.f32.mrf.mxu0
        %v650 = vadd.f32 0.0, %v649
        %v651 = vpop.f32.mrf.mxu0
        %652 = vmatprep.mubr.f32.mxu0 0.0
        %653 = vmatmul.mubr.f32.gmra.mxu0 %v444
        %v654 = vpop.f32.mrf.mxu0
        %v655 = vadd.f32 0.0, %v654
        %v656 = vpop.f32.mrf.mxu0
        %657 = vmatprep.mubr.f32.mxu0 0.0
        %658 = vmatmul.mubr.f32.gmra.mxu0 %v445
        %v659 = vpop.f32.mrf.mxu0
        %v660 = vadd.f32 0.0, %v659
        %v661 = vpop.f32.mrf.mxu0
        %662 = vmatprep.mubr.f32.mxu0 0.0
        %663 = vmatmul.mubr.f32.gmra.mxu0 %v446
        %v664 = vpop.f32.mrf.mxu0
        %v665 = vadd.f32 0.0, %v664
        %v666 = vpop.f32.mrf.mxu0
        %667 = vmatprep.mubr.f32.mxu0 0.0
        %668 = vmatmul.mubr.f32.gmra.mxu0 %v447
        %v669 = vpop.f32.mrf.mxu0
        %v670 = vadd.f32 0.0, %v669
        %v671 = vpop.f32.mrf.mxu0
        %672 = vmatprep.mubr.f32.mxu0 0.0
        %673 = vmatmul.mubr.f32.gmra.mxu0 %v448
        %v674 = vpop.f32.mrf.mxu0
        %v675 = vadd.f32 0.0, %v674
        %v676 = vpop.f32.mrf.mxu0
        %677 = vmatprep.mubr.f32.mxu0 0.0
        %678 = vmatmul.mubr.f32.gmra.mxu0 %v449
        %v679 = vpop.f32.mrf.mxu0
        %v680 = vadd.f32 0.0, %v679
        %v681 = vpop.f32.mrf.mxu0
        %682 = vmatprep.mubr.f32.mxu0 0.0
        %683 = vmatmul.mubr.f32.gmra.mxu0 %v450
        %v684 = vpop.f32.mrf.mxu0
        %v685 = vadd.f32 0.0, %v684
        %v686 = vpop.f32.mrf.mxu0
        %687 = vmatprep.mubr.f32.mxu0 0.0
        %688 = vmatmul.mubr.f32.gmra.mxu0 %v451
        %v689 = vpop.f32.mrf.mxu0
        %v690 = vadd.f32 0.0, %v689
        %v691 = vpop.f32.mrf.mxu0
        %692 = vdwg.mxu0
        %v693 = vld [vmem:[%s5] sm:$0xff]
        %v694 = vld [vmem:[#allocation5] sm:$0xff]
        %v695 = vld [vmem:[#allocation5 + $0x8] sm:$0xff]
        %v696 = vld [vmem:[#allocation5 + $0x10] sm:$0xff]
        %v697 = vld [vmem:[#allocation5 + $0x18] sm:$0xff]
        %v698 = vld [vmem:[#allocation5 + $0x20] sm:$0xff]
        %v699 = vld [vmem:[#allocation5 + $0x28] sm:$0xff]
        %v700 = vld [vmem:[#allocation5 + $0x30] sm:$0xff]
        %v701 = vld [vmem:[#allocation5 + $0x38] sm:$0xff]
        %v702 = vld [vmem:[#allocation5 + $0x40] sm:$0xff]
        %v703 = vld [vmem:[#allocation5 + $0x48] sm:$0xff]
        %v704 = vld [vmem:[#allocation5 + $0x50] sm:$0xff]
        %v705 = vld [vmem:[#allocation5 + $0x58] sm:$0xff]
        %v706 = vld [vmem:[#allocation5 + $0x60] sm:$0xff]
        %v707 = vld [vmem:[#allocation5 + $0x68] sm:$0xff]
        %v708 = vld [vmem:[#allocation5 + $0x70] sm:$0xff]
        %v709 = vld [vmem:[#allocation5 + $0x78] sm:$0xff]
        %v710 = vld [vmem:[#allocation5 + $0x80] sm:$0xff]
        %v711 = vld [vmem:[#allocation5 + $0x88] sm:$0xff]
        %v712 = vld [vmem:[#allocation5 + $0x90] sm:$0xff]
        %v713 = vld [vmem:[#allocation5 + $0x98] sm:$0xff]
        %v714 = vld [vmem:[#allocation5 + $0xa0] sm:$0xff]
        %v715 = vld [vmem:[#allocation5 + $0xa8] sm:$0xff]
        %v716 = vld [vmem:[#allocation5 + $0xb0] sm:$0xff]
        %v717 = vld [vmem:[#allocation5 + $0xb8] sm:$0xff]
        %v718 = vld [vmem:[#allocation5 + $0xc0] sm:$0xff]
        %v719 = vld [vmem:[#allocation5 + $0xc8] sm:$0xff]
        %v720 = vld [vmem:[#allocation5 + $0xd0] sm:$0xff]
        %v721 = vld [vmem:[#allocation5 + $0xd8] sm:$0xff]
        %v722 = vld [vmem:[#allocation5 + $0xe0] sm:$0xff]
        %v723 = vld [vmem:[#allocation5 + $0xe8] sm:$0xff]
        %v724 = vld [vmem:[#allocation5 + $0xf0] sm:$0xff]
        %v725 = vld [vmem:[#allocation5 + $0xf8] sm:$0xff]
        %726 = vmatprep.subr.mxu0 %v725
        %727 = vmatpush1.msra.mxu0 %v724
        %728 = vmatprep.subr.mxu0 %v723
        %729 = vmatpush1.msra.mxu0 %v722
        %730 = vmatprep.subr.mxu0 %v721
        %731 = vmatpush1.msra.mxu0 %v720
        %732 = vmatprep.subr.mxu0 %v719
        %733 = vmatpush1.msra.mxu0 %v718
        %734 = vmatprep.subr.mxu0 %v717
        %735 = vmatpush1.msra.mxu0 %v716
        %736 = vmatprep.subr.mxu0 %v715
        %737 = vmatpush1.msra.mxu0 %v714
        %738 = vmatprep.subr.mxu0 %v713
        %739 = vmatpush1.msra.mxu0 %v712
        %740 = vmatprep.subr.mxu0 %v711
        %741 = vmatpush1.msra.mxu0 %v710
        %742 = vmatprep.subr.mxu0 %v709
        %743 = vmatpush1.msra.mxu0 %v708
        %744 = vmatprep.subr.mxu0 %v707
        %745 = vmatpush1.msra.mxu0 %v706
        %746 = vmatprep.subr.mxu0 %v705
        %747 = vmatpush1.msra.mxu0 %v704
        %748 = vmatprep.subr.mxu0 %v703
        %749 = vmatpush1.msra.mxu0 %v702
        %750 = vmatprep.subr.mxu0 %v701
        %751 = vmatpush1.msra.mxu0 %v700
        %752 = vmatprep.subr.mxu0 %v699
        %753 = vmatpush1.msra.mxu0 %v698
        %754 = vmatprep.subr.mxu0 %v697
        %755 = vmatpush1.msra.mxu0 %v696
        %756 = vmatprep.subr.mxu0 %v695
        %757 = vmatpush1.msra.mxu0 %v694
        %758 = vmatprep.subr.mxu0 0.0
        %759 = vmatpush2.msra.mxu0 0.0
        %760 = vmatprep.subr.mxu0 0.0
        %761 = vmatpush2.msra.mxu0 0.0
        %762 = vmatprep.subr.mxu0 0.0
        %763 = vmatpush2.msra.mxu0 0.0
        %764 = vmatprep.subr.mxu0 0.0
        %765 = vmatpush2.msra.mxu0 0.0
        %766 = vmatprep.subr.mxu0 0.0
        %767 = vmatpush2.msra.mxu0 0.0
        %768 = vmatprep.subr.mxu0 0.0
        %769 = vmatpush2.msra.mxu0 0.0
        %770 = vmatprep.subr.mxu0 0.0
        %771 = vmatpush2.msra.mxu0 0.0
        %772 = vmatprep.subr.mxu0 0.0
        %773 = vmatpush2.msra.mxu0 0.0
        %774 = vmatprep.subr.mxu0 0.0
        %775 = vmatpush2.msra.mxu0 0.0
        %776 = vmatprep.subr.mxu0 0.0
        %777 = vmatpush2.msra.mxu0 0.0
        %778 = vmatprep.subr.mxu0 0.0
        %779 = vmatpush2.msra.mxu0 0.0
        %780 = vmatprep.subr.mxu0 0.0
        %781 = vmatpush2.msra.mxu0 0.0
        %782 = vmatprep.subr.mxu0 0.0
        %783 = vmatpush2.msra.mxu0 0.0
        %784 = vmatprep.subr.mxu0 0.0
        %785 = vmatpush2.msra.mxu0 0.0
        %786 = vmatprep.subr.mxu0 0.0
        %787 = vmatpush2.msra.mxu0 0.0
        %788 = vmatprep.subr.mxu0 0.0
        %789 = vmatpush2.msra.mxu0 0.0
        %790 = vmatprep.mubr.f32.mxu0 0.0
        %791 = vmatmul.mubr.f32.gmra.mxu0 %v693
        %v792 = vpop.f32.mrf.mxu0
        %v793 = vadd.f32 0.0, %v792
        %v794 = vpop.f32.mrf.mxu0
        %v795 = vadd.f32 0.0, %v794
        %796 = vdwg.mxu0
        %v797 = vld [vmem:[%s367] sm:$0xff]
        %v798 = vld [vmem:[%s367 + $0x8] sm:$0xff]
        %v799 = vld [vmem:[%s367 + $0x10] sm:$0xff]
        %v800 = vld [vmem:[%s367 + $0x18] sm:$0xff]
        %v801 = vld [vmem:[%s367 + $0x20] sm:$0xff]
        %v802 = vld [vmem:[%s367 + $0x28] sm:$0xff]
        %v803 = vld [vmem:[%s367 + $0x30] sm:$0xff]
        %v804 = vld [vmem:[%s367 + $0x38] sm:$0xff]
        %v805 = vld [vmem:[%s367 + $0x40] sm:$0xff]
        %v806 = vld [vmem:[%s367 + $0x48] sm:$0xff]
        %v807 = vld [vmem:[%s367 + $0x50] sm:$0xff]
        %v808 = vld [vmem:[%s367 + $0x58] sm:$0xff]
        %v809 = vld [vmem:[%s367 + $0x60] sm:$0xff]
        %v810 = vld [vmem:[%s367 + $0x68] sm:$0xff]
        %v811 = vld [vmem:[%s367 + $0x70] sm:$0xff]
        %v812 = vld [vmem:[%s367 + $0x78] sm:$0xff]
        %v813 = vld [vmem:[%s6] sm:$0xff]
        %v814 = vld [vmem:[%s6 + $0x8] sm:$0xff]
        %v815 = vld [vmem:[%s6 + $0x10] sm:$0xff]
        %v816 = vld [vmem:[%s6 + $0x18] sm:$0xff]
        %v817 = vld [vmem:[%s6 + $0x20] sm:$0xff]
        %v818 = vld [vmem:[%s6 + $0x28] sm:$0xff]
        %v819 = vld [vmem:[%s6 + $0x30] sm:$0xff]
        %v820 = vld [vmem:[%s6 + $0x38] sm:$0xff]
        %v821 = vld [vmem:[%s6 + $0x40] sm:$0xff]
        %v822 = vld [vmem:[%s6 + $0x48] sm:$0xff]
        %v823 = vld [vmem:[%s6 + $0x50] sm:$0xff]
        %v824 = vld [vmem:[%s6 + $0x58] sm:$0xff]
        %v825 = vld [vmem:[%s6 + $0x60] sm:$0xff]
        %v826 = vld [vmem:[%s6 + $0x68] sm:$0xff]
        %v827 = vld [vmem:[%s6 + $0x70] sm:$0xff]
        %v828 = vld [vmem:[%s6 + $0x78] sm:$0xff]
        %829 = vmatprep.subr.mxu0 0.0
        %830 = vmatpush1.msra.mxu0 %v828
        %831 = vmatprep.subr.mxu0 0.0
        %832 = vmatpush1.msra.mxu0 %v827
        %833 = vmatprep.subr.mxu0 0.0
        %834 = vmatpush1.msra.mxu0 %v826
        %835 = vmatprep.subr.mxu0 0.0
        %836 = vmatpush1.msra.mxu0 %v825
        %837 = vmatprep.subr.mxu0 0.0
        %838 = vmatpush1.msra.mxu0 %v824
        %839 = vmatprep.subr.mxu0 0.0
        %840 = vmatpush1.msra.mxu0 %v823
        %841 = vmatprep.subr.mxu0 0.0
        %842 = vmatpush1.msra.mxu0 %v822
        %843 = vmatprep.subr.mxu0 0.0
        %844 = vmatpush1.msra.mxu0 %v821
        %845 = vmatprep.subr.mxu0 0.0
        %846 = vmatpush1.msra.mxu0 %v820
        %847 = vmatprep.subr.mxu0 0.0
        %848 = vmatpush1.msra.mxu0 %v819
        %849 = vmatprep.subr.mxu0 0.0
        %850 = vmatpush1.msra.mxu0 %v818
        %851 = vmatprep.subr.mxu0 0.0
        %852 = vmatpush1.msra.mxu0 %v817
        %853 = vmatprep.subr.mxu0 0.0
        %854 = vmatpush1.msra.mxu0 %v816
        %855 = vmatprep.subr.mxu0 0.0
        %856 = vmatpush1.msra.mxu0 %v815
        %857 = vmatprep.subr.mxu0 0.0
        %858 = vmatpush1.msra.mxu0 %v814
        %859 = vmatprep.subr.mxu0 0.0
        %860 = vmatpush1.msra.mxu0 %v813
        %861 = vmatprep.subr.mxu0 0.0
        %862 = vmatpush2.msra.mxu0 0.0
        %863 = vmatprep.subr.mxu0 0.0
        %864 = vmatpush2.msra.mxu0 0.0
        %865 = vmatprep.subr.mxu0 0.0
        %866 = vmatpush2.msra.mxu0 0.0
        %867 = vmatprep.subr.mxu0 0.0
        %868 = vmatpush2.msra.mxu0 0.0
        %869 = vmatprep.subr.mxu0 0.0
        %870 = vmatpush2.msra.mxu0 0.0
        %871 = vmatprep.subr.mxu0 0.0
        %872 = vmatpush2.msra.mxu0 0.0
        %873 = vmatprep.subr.mxu0 0.0
        %874 = vmatpush2.msra.mxu0 0.0
        %875 = vmatprep.subr.mxu0 0.0
        %876 = vmatpush2.msra.mxu0 0.0
        %877 = vmatprep.subr.mxu0 0.0
        %878 = vmatpush2.msra.mxu0 0.0
        %879 = vmatprep.subr.mxu0 0.0
        %880 = vmatpush2.msra.mxu0 0.0
        %881 = vmatprep.subr.mxu0 0.0
        %882 = vmatpush2.msra.mxu0 0.0
        %883 = vmatprep.subr.mxu0 0.0
        %884 = vmatpush2.msra.mxu0 0.0
        %885 = vmatprep.subr.mxu0 0.0
        %886 = vmatpush2.msra.mxu0 0.0
        %887 = vmatprep.subr.mxu0 0.0
        %888 = vmatpush2.msra.mxu0 0.0
        %889 = vmatprep.subr.mxu0 0.0
        %890 = vmatpush2.msra.mxu0 0.0
        %891 = vmatprep.subr.mxu0 0.0
        %892 = vmatpush2.msra.mxu0 0.0
        %893 = vmatprep.mubr.f32.mxu0 0.0
        %894 = vmatmul.mubr.f32.gmra.mxu0 %v797
        %v895 = vpop.f32.mrf.mxu0
        %v896 = vadd.f32 0.0, %v895
        %v897 = vpop.f32.mrf.mxu0
        %898 = vmatprep.mubr.f32.mxu0 0.0
        %899 = vmatmul.mubr.f32.gmra.mxu0 %v798
        %v900 = vpop.f32.mrf.mxu0
        %v901 = vadd.f32 0.0, %v900
        %v902 = vpop.f32.mrf.mxu0
        %903 = vmatprep.mubr.f32.mxu0 0.0
        %904 = vmatmul.mubr.f32.gmra.mxu0 %v799
        %v905 = vpop.f32.mrf.mxu0
        %v906 = vadd.f32 0.0, %v905
        %v907 = vpop.f32.mrf.mxu0
        %908 = vmatprep.mubr.f32.mxu0 0.0
        %909 = vmatmul.mubr.f32.gmra.mxu0 %v800
        %v910 = vpop.f32.mrf.mxu0
        %v911 = vadd.f32 0.0, %v910
        %v912 = vpop.f32.mrf.mxu0
        %913 = vmatprep.mubr.f32.mxu0 0.0
        %914 = vmatmul.mubr.f32.gmra.mxu0 %v801
        %v915 = vpop.f32.mrf.mxu0
        %v916 = vadd.f32 0.0, %v915
        %v917 = vpop.f32.mrf.mxu0
        %918 = vmatprep.mubr.f32.mxu0 0.0
        %919 = vmatmul.mubr.f32.gmra.mxu0 %v802
        %v920 = vpop.f32.mrf.mxu0
        %v921 = vadd.f32 0.0, %v920
        %v922 = vpop.f32.mrf.mxu0
        %923 = vmatprep.mubr.f32.mxu0 0.0
        %924 = vmatmul.mubr.f32.gmra.mxu0 %v803
        %v925 = vpop.f32.mrf.mxu0
        %v926 = vadd.f32 0.0, %v925
        %v927 = vpop.f32.mrf.mxu0
        %928 = vmatprep.mubr.f32.mxu0 0.0
        %929 = vmatmul.mubr.f32.gmra.mxu0 %v804
        %v930 = vpop.f32.mrf.mxu0
        %v931 = vadd.f32 0.0, %v930
        %v932 = vpop.f32.mrf.mxu0
        %933 = vmatprep.mubr.f32.mxu0 0.0
        %934 = vmatmul.mubr.f32.gmra.mxu0 %v805
        %v935 = vpop.f32.mrf.mxu0
        %v936 = vadd.f32 0.0, %v935
        %v937 = vpop.f32.mrf.mxu0
        %938 = vmatprep.mubr.f32.mxu0 0.0
        %939 = vmatmul.mubr.f32.gmra.mxu0 %v806
        %v940 = vpop.f32.mrf.mxu0
        %v941 = vadd.f32 0.0, %v940
        %v942 = vpop.f32.mrf.mxu0
        %943 = vmatprep.mubr.f32.mxu0 0.0
        %944 = vmatmul.mubr.f32.gmra.mxu0 %v807
        %v945 = vpop.f32.mrf.mxu0
        %v946 = vadd.f32 0.0, %v945
        %v947 = vpop.f32.mrf.mxu0
        %948 = vmatprep.mubr.f32.mxu0 0.0
        %949 = vmatmul.mubr.f32.gmra.mxu0 %v808
        %v950 = vpop.f32.mrf.mxu0
        %v951 = vadd.f32 0.0, %v950
        %v952 = vpop.f32.mrf.mxu0
        %953 = vmatprep.mubr.f32.mxu0 0.0
        %954 = vmatmul.mubr.f32.gmra.mxu0 %v809
        %v955 = vpop.f32.mrf.mxu0
        %v956 = vadd.f32 0.0, %v955
        %v957 = vpop.f32.mrf.mxu0
        %958 = vmatprep.mubr.f32.mxu0 0.0
        %959 = vmatmul.mubr.f32.gmra.mxu0 %v810
        %v960 = vpop.f32.mrf.mxu0
        %v961 = vadd.f32 0.0, %v960
        %v962 = vpop.f32.mrf.mxu0
        %963 = vmatprep.mubr.f32.mxu0 0.0
        %964 = vmatmul.mubr.f32.gmra.mxu0 %v811
        %v965 = vpop.f32.mrf.mxu0
        %v966 = vadd.f32 0.0, %v965
        %v967 = vpop.f32.mrf.mxu0
        %968 = vmatprep.mubr.f32.mxu0 0.0
        %969 = vmatmul.mubr.f32.gmra.mxu0 %v812
        %v970 = vpop.f32.mrf.mxu0
        %v971 = vadd.f32 0.0, %v970
        %v972 = vpop.f32.mrf.mxu0
        %973 = vdwg.mxu0
        %v974 = vld [vmem:[%s376] sm:$0xff]
        %v975 = vld [vmem:[%s376 + $0x8] sm:$0xff]
        %v976 = vld [vmem:[%s376 + $0x10] sm:$0xff]
        %v977 = vld [vmem:[%s376 + $0x18] sm:$0xff]
        %v978 = vld [vmem:[%s376 + $0x20] sm:$0xff]
        %v979 = vld [vmem:[%s376 + $0x28] sm:$0xff]
        %v980 = vld [vmem:[%s376 + $0x30] sm:$0xff]
        %v981 = vld [vmem:[%s376 + $0x38] sm:$0xff]
        %v982 = vld [vmem:[%s376 + $0x40] sm:$0xff]
        %v983 = vld [vmem:[%s376 + $0x48] sm:$0xff]
        %v984 = vld [vmem:[%s376 + $0x50] sm:$0xff]
        %v985 = vld [vmem:[%s376 + $0x58] sm:$0xff]
        %v986 = vld [vmem:[%s376 + $0x60] sm:$0xff]
        %v987 = vld [vmem:[%s376 + $0x68] sm:$0xff]
        %v988 = vld [vmem:[%s376 + $0x70] sm:$0xff]
        %v989 = vld [vmem:[%s376 + $0x78] sm:$0xff]
        %v990 = vunpack.c.l.bf16 %v974
        %v991 = vunpack.c.h.bf16 %v974
        %v992 = vunpack.c.l.bf16 %v975
        %v993 = vunpack.c.h.bf16 %v975
        %v994 = vunpack.c.l.bf16 %v976
        %v995 = vunpack.c.h.bf16 %v976
        %v996 = vunpack.c.l.bf16 %v977
        %v997 = vunpack.c.h.bf16 %v977
        %v998 = vunpack.c.l.bf16 %v978
        %v999 = vunpack.c.h.bf16 %v978
        %v1000 = vunpack.c.l.bf16 %v979
        %v1001 = vunpack.c.h.bf16 %v979
        %v1002 = vunpack.c.l.bf16 %v980
        %v1003 = vunpack.c.h.bf16 %v980
        %v1004 = vunpack.c.l.bf16 %v981
        %v1005 = vunpack.c.h.bf16 %v981
        %v1006 = vunpack.c.l.bf16 %v982
        %v1007 = vunpack.c.h.bf16 %v982
        %v1008 = vunpack.c.l.bf16 %v983
        %v1009 = vunpack.c.h.bf16 %v983
        %v1010 = vunpack.c.l.bf16 %v984
        %v1011 = vunpack.c.h.bf16 %v984
        %v1012 = vunpack.c.l.bf16 %v985
        %v1013 = vunpack.c.h.bf16 %v985
        %v1014 = vunpack.c.l.bf16 %v986
        %v1015 = vunpack.c.h.bf16 %v986
        %v1016 = vunpack.c.l.bf16 %v987
        %v1017 = vunpack.c.h.bf16 %v987
        %v1018 = vunpack.c.l.bf16 %v988
        %v1019 = vunpack.c.h.bf16 %v988
        %v1020 = vunpack.c.l.bf16 %v989
        %v1021 = vunpack.c.h.bf16 %v989
        %vm1022 = vcmp.gt.f32.partialorder %v990, 0.0
        %vm1023 = vcmp.gt.f32.partialorder %v991, 0.0
        %vm1024 = vcmp.gt.f32.partialorder %v992, 0.0
        %vm1025 = vcmp.gt.f32.partialorder %v993, 0.0
        %vm1026 = vcmp.gt.f32.partialorder %v994, 0.0
        %vm1027 = vcmp.gt.f32.partialorder %v995, 0.0
        %vm1028 = vcmp.gt.f32.partialorder %v996, 0.0
        %vm1029 = vcmp.gt.f32.partialorder %v997, 0.0
        %vm1030 = vcmp.gt.f32.partialorder %v998, 0.0
        %vm1031 = vcmp.gt.f32.partialorder %v999, 0.0
        %vm1032 = vcmp.gt.f32.partialorder %v1000, 0.0
        %vm1033 = vcmp.gt.f32.partialorder %v1001, 0.0
        %vm1034 = vcmp.gt.f32.partialorder %v1002, 0.0
        %vm1035 = vcmp.gt.f32.partialorder %v1003, 0.0
        %vm1036 = vcmp.gt.f32.partialorder %v1004, 0.0
        %vm1037 = vcmp.gt.f32.partialorder %v1005, 0.0
        %vm1038 = vcmp.gt.f32.partialorder %v1006, 0.0
        %vm1039 = vcmp.gt.f32.partialorder %v1007, 0.0
        %vm1040 = vcmp.gt.f32.partialorder %v1008, 0.0
        %vm1041 = vcmp.gt.f32.partialorder %v1009, 0.0
        %vm1042 = vcmp.gt.f32.partialorder %v1010, 0.0
        %vm1043 = vcmp.gt.f32.partialorder %v1011, 0.0
        %vm1044 = vcmp.gt.f32.partialorder %v1012, 0.0
        %vm1045 = vcmp.gt.f32.partialorder %v1013, 0.0
        %vm1046 = vcmp.gt.f32.partialorder %v1014, 0.0
        %vm1047 = vcmp.gt.f32.partialorder %v1015, 0.0
        %vm1048 = vcmp.gt.f32.partialorder %v1016, 0.0
        %vm1049 = vcmp.gt.f32.partialorder %v1017, 0.0
        %vm1050 = vcmp.gt.f32.partialorder %v1018, 0.0
        %vm1051 = vcmp.gt.f32.partialorder %v1019, 0.0
        %vm1052 = vcmp.gt.f32.partialorder %v1020, 0.0
        %vm1053 = vcmp.gt.f32.partialorder %v1021, 0.0
        %v1054 = vsel %vm1022, 0.0, -1e+30
        %v1055 = vsel %vm1023, 0.0, -1e+30
        %v1056 = vsel %vm1024, 0.0, -1e+30
        %v1057 = vsel %vm1025, 0.0, -1e+30
        %v1058 = vsel %vm1026, 0.0, -1e+30
        %v1059 = vsel %vm1027, 0.0, -1e+30
        %v1060 = vsel %vm1028, 0.0, -1e+30
        %v1061 = vsel %vm1029, 0.0, -1e+30
        %v1062 = vsel %vm1030, 0.0, -1e+30
        %v1063 = vsel %vm1031, 0.0, -1e+30
        %v1064 = vsel %vm1032, 0.0, -1e+30
        %v1065 = vsel %vm1033, 0.0, -1e+30
        %v1066 = vsel %vm1034, 0.0, -1e+30
        %v1067 = vsel %vm1035, 0.0, -1e+30
        %v1068 = vsel %vm1036, 0.0, -1e+30
        %v1069 = vsel %vm1037, 0.0, -1e+30
        %v1070 = vsel %vm1038, 0.0, -1e+30
        %v1071 = vsel %vm1039, 0.0, -1e+30
        %v1072 = vsel %vm1040, 0.0, -1e+30
        %v1073 = vsel %vm1041, 0.0, -1e+30
        %v1074 = vsel %vm1042, 0.0, -1e+30
        %v1075 = vsel %vm1043, 0.0, -1e+30
        %v1076 = vsel %vm1044, 0.0, -1e+30
        %v1077 = vsel %vm1045, 0.0, -1e+30
        %v1078 = vsel %vm1046, 0.0, -1e+30
        %v1079 = vsel %vm1047, 0.0, -1e+30
        %v1080 = vsel %vm1048, 0.0, -1e+30
        %v1081 = vsel %vm1049, 0.0, -1e+30
        %v1082 = vsel %vm1050, 0.0, -1e+30
        %v1083 = vsel %vm1051, 0.0, -1e+30
        %v1084 = vsel %vm1052, 0.0, -1e+30
        %v1085 = vsel %vm1053, 0.0, -1e+30
        %v1086 = vlaneseq
        %v1087 = vand.u32 %v1086, 127
        %v1088 = vlaneseq
        %v1089 = vshrl.u32 %v1088, 7
        %vm1090 = vcmp.eq.s32.totalorder %v1087, 0
        %v1091 = vsel %vm1090, %v896, 0.0
        %v1092 = vsel %vm1090, %v901, 0.0
        %v1093 = vsel %vm1090, %v906, 0.0
        %v1094 = vsel %vm1090, %v911, 0.0
        %v1095 = vsel %vm1090, %v916, 0.0
        %v1096 = vsel %vm1090, %v921, 0.0
        %v1097 = vsel %vm1090, %v926, 0.0
        %v1098 = vsel %vm1090, %v931, 0.0
        %v1099 = vsel %vm1090, %v936, 0.0
        %v1100 = vsel %vm1090, %v941, 0.0
        %v1101 = vsel %vm1090, %v946, 0.0
        %v1102 = vsel %vm1090, %v951, 0.0
        %v1103 = vsel %vm1090, %v956, 0.0
        %v1104 = vsel %vm1090, %v961, 0.0
        %v1105 = vsel %vm1090, %v966, 0.0
        %v1106 = vsel %vm1090, %v971, 0.0
        %vm1107 = vcmask 64512
        %v1108 = vsel %vm1107, %v1091, 0.0
        %1109 = vadd.xlane.f32.xlu0 %v1108
        %v1110 = vpop.xlane.xlu0 %1109
        %v1111 = vsel %vm1107, %v1092, 0.0
        %1112 = vadd.xlane.f32.xlu0 %v1111
        %v1113 = vpop.xlane.xlu0 %1112
        %v1114 = vsel %vm1107, %v1093, 0.0
        %1115 = vadd.xlane.f32.xlu0 %v1114
        %v1116 = vpop.xlane.xlu0 %1115
        %v1117 = vsel %vm1107, %v1094, 0.0
        %1118 = vadd.xlane.f32.xlu0 %v1117
        %v1119 = vpop.xlane.xlu0 %1118
        %v1120 = vsel %vm1107, %v1095, 0.0
        %1121 = vadd.xlane.f32.xlu0 %v1120
        %v1122 = vpop.xlane.xlu0 %1121
        %v1123 = vsel %vm1107, %v1096, 0.0
        %1124 = vadd.xlane.f32.xlu0 %v1123
        %v1125 = vpop.xlane.xlu0 %1124
        %v1126 = vsel %vm1107, %v1097, 0.0
        %1127 = vadd.xlane.f32.xlu0 %v1126
        %v1128 = vpop.xlane.xlu0 %1127
        %v1129 = vsel %vm1107, %v1098, 0.0
        %1130 = vadd.xlane.f32.xlu0 %v1129
        %v1131 = vpop.xlane.xlu0 %1130
        %v1132 = vsel %vm1107, %v1099, 0.0
        %1133 = vadd.xlane.f32.xlu0 %v1132
        %v1134 = vpop.xlane.xlu0 %1133
        %v1135 = vsel %vm1107, %v1100, 0.0
        %1136 = vadd.xlane.f32.xlu0 %v1135
        %v1137 = vpop.xlane.xlu0 %1136
        %v1138 = vsel %vm1107, %v1101, 0.0
        %1139 = vadd.xlane.f32.xlu0 %v1138
        %v1140 = vpop.xlane.xlu0 %1139
        %v1141 = vsel %vm1107, %v1102, 0.0
        %1142 = vadd.xlane.f32.xlu0 %v1141
        %v1143 = vpop.xlane.xlu0 %1142
        %v1144 = vsel %vm1107, %v1103, 0.0
        %1145 = vadd.xlane.f32.xlu0 %v1144
        %v1146 = vpop.xlane.xlu0 %1145
        %v1147 = vsel %vm1107, %v1104, 0.0
        %1148 = vadd.xlane.f32.xlu0 %v1147
        %v1149 = vpop.xlane.xlu0 %1148
        %v1150 = vsel %vm1107, %v1105, 0.0
        %1151 = vadd.xlane.f32.xlu0 %v1150
        %v1152 = vpop.xlane.xlu0 %1151
        %v1153 = vsel %vm1107, %v1106, 0.0
        %1154 = vadd.xlane.f32.xlu0 %v1153
        %v1155 = vpop.xlane.xlu0 %1154
        %vm1156 = vcmp.eq.s32.totalorder %v1089, 0
        %v1157 = vsel %vm1156, %v793, 0.0
        %v1158 = vsel %vm1156, %v795, 0.0
        %v1159 = vrot.slane %v1157, 4
        %v1160 = vadd.f32 %v1157, %v1159
        %v1161 = vrot.slane %v1160, 2
        %v1162 = vadd.f32 %v1160, %v1161
        %v1163 = vrot.slane %v1162, 1
        %v1164 = vadd.f32 %v1162, %v1163
        %v1165 = vrot.slane %v1158, 4
        %v1166 = vadd.f32 %v1158, %v1165
        %v1167 = vrot.slane %v1166, 2
        %v1168 = vadd.f32 %v1166, %v1167
        %v1169 = vrot.slane %v1168, 1
        %v1170 = vadd.f32 %v1168, %v1169
        %v1171 = vadd.f32 %v1110, %v1164
        %v1172 = vadd.f32 %v1110, %v1170
        %v1173 = vadd.f32 %v1113, %v1164
        %v1174 = vadd.f32 %v1113, %v1170
        %v1175 = vadd.f32 %v1116, %v1164
        %v1176 = vadd.f32 %v1116, %v1170
        %v1177 = vadd.f32 %v1119, %v1164
        %v1178 = vadd.f32 %v1119, %v1170
        %v1179 = vadd.f32 %v1122, %v1164
        %v1180 = vadd.f32 %v1122, %v1170
        %v1181 = vadd.f32 %v1125, %v1164
        %v1182 = vadd.f32 %v1125, %v1170
        %v1183 = vadd.f32 %v1128, %v1164
        %v1184 = vadd.f32 %v1128, %v1170
        %v1185 = vadd.f32 %v1131, %v1164
        %v1186 = vadd.f32 %v1131, %v1170
        %v1187 = vadd.f32 %v1134, %v1164
        %v1188 = vadd.f32 %v1134, %v1170
        %v1189 = vadd.f32 %v1137, %v1164
        %v1190 = vadd.f32 %v1137, %v1170
        %v1191 = vadd.f32 %v1140, %v1164
        %v1192 = vadd.f32 %v1140, %v1170
        %v1193 = vadd.f32 %v1143, %v1164
        %v1194 = vadd.f32 %v1143, %v1170
        %v1195 = vadd.f32 %v1146, %v1164
        %v1196 = vadd.f32 %v1146, %v1170
        %v1197 = vadd.f32 %v1149, %v1164
        %v1198 = vadd.f32 %v1149, %v1170
        %v1199 = vadd.f32 %v1152, %v1164
        %v1200 = vadd.f32 %v1152, %v1170
        %v1201 = vadd.f32 %v1155, %v1164
        %v1202 = vadd.f32 %v1155, %v1170
        %vm1203 = vcmp.ge.f32.partialorder %v1171, 0.0
        %vm1204 = vcmp.ge.f32.partialorder %v1172, 0.0
        %vm1205 = vcmp.ge.f32.partialorder %v1173, 0.0
        %vm1206 = vcmp.ge.f32.partialorder %v1174, 0.0
        %vm1207 = vcmp.ge.f32.partialorder %v1175, 0.0
        %vm1208 = vcmp.ge.f32.partialorder %v1176, 0.0
        %vm1209 = vcmp.ge.f32.partialorder %v1177, 0.0
        %vm1210 = vcmp.ge.f32.partialorder %v1178, 0.0
        %vm1211 = vcmp.ge.f32.partialorder %v1179, 0.0
        %vm1212 = vcmp.ge.f32.partialorder %v1180, 0.0
        %vm1213 = vcmp.ge.f32.partialorder %v1181, 0.0
        %vm1214 = vcmp.ge.f32.partialorder %v1182, 0.0
        %vm1215 = vcmp.ge.f32.partialorder %v1183, 0.0
        %vm1216 = vcmp.ge.f32.partialorder %v1184, 0.0
        %vm1217 = vcmp.ge.f32.partialorder %v1185, 0.0
        %vm1218 = vcmp.ge.f32.partialorder %v1186, 0.0
        %vm1219 = vcmp.ge.f32.partialorder %v1187, 0.0
        %vm1220 = vcmp.ge.f32.partialorder %v1188, 0.0
        %vm1221 = vcmp.ge.f32.partialorder %v1189, 0.0
        %vm1222 = vcmp.ge.f32.partialorder %v1190, 0.0
        %vm1223 = vcmp.ge.f32.partialorder %v1191, 0.0
        %vm1224 = vcmp.ge.f32.partialorder %v1192, 0.0
        %vm1225 = vcmp.ge.f32.partialorder %v1193, 0.0
        %vm1226 = vcmp.ge.f32.partialorder %v1194, 0.0
        %vm1227 = vcmp.ge.f32.partialorder %v1195, 0.0
        %vm1228 = vcmp.ge.f32.partialorder %v1196, 0.0
        %vm1229 = vcmp.ge.f32.partialorder %v1197, 0.0
        %vm1230 = vcmp.ge.f32.partialorder %v1198, 0.0
        %vm1231 = vcmp.ge.f32.partialorder %v1199, 0.0
        %vm1232 = vcmp.ge.f32.partialorder %v1200, 0.0
        %vm1233 = vcmp.ge.f32.partialorder %v1201, 0.0
        %vm1234 = vcmp.ge.f32.partialorder %v1202, 0.0
        %v1235 = vmul.f32 %v1171, 0.2
        %v1236 = vmul.f32 %v1172, 0.2
        %v1237 = vmul.f32 %v1173, 0.2
        %v1238 = vmul.f32 %v1174, 0.2
        %v1239 = vmul.f32 %v1175, 0.2
        %v1240 = vmul.f32 %v1176, 0.2
        %v1241 = vmul.f32 %v1177, 0.2
        %v1242 = vmul.f32 %v1178, 0.2
        %v1243 = vmul.f32 %v1179, 0.2
        %v1244 = vmul.f32 %v1180, 0.2
        %v1245 = vmul.f32 %v1181, 0.2
        %v1246 = vmul.f32 %v1182, 0.2
        %v1247 = vmul.f32 %v1183, 0.2
        %v1248 = vmul.f32 %v1184, 0.2
        %v1249 = vmul.f32 %v1185, 0.2
        %v1250 = vmul.f32 %v1186, 0.2
        %v1251 = vmul.f32 %v1187, 0.2
        %v1252 = vmul.f32 %v1188, 0.2
        %v1253 = vmul.f32 %v1189, 0.2
        %v1254 = vmul.f32 %v1190, 0.2
        %v1255 = vmul.f32 %v1191, 0.2
        %v1256 = vmul.f32 %v1192, 0.2
        %v1257 = vmul.f32 %v1193, 0.2
        %v1258 = vmul.f32 %v1194, 0.2
        %v1259 = vmul.f32 %v1195, 0.2
        %v1260 = vmul.f32 %v1196, 0.2
        %v1261 = vmul.f32 %v1197, 0.2
        %v1262 = vmul.f32 %v1198, 0.2
        %v1263 = vmul.f32 %v1199, 0.2
        %v1264 = vmul.f32 %v1200, 0.2
        %v1265 = vmul.f32 %v1201, 0.2
        %v1266 = vmul.f32 %v1202, 0.2
        %v1267 = vsel %vm1203, %v1171, %v1235
        %v1268 = vsel %vm1204, %v1172, %v1236
        %v1269 = vsel %vm1205, %v1173, %v1237
        %v1270 = vsel %vm1206, %v1174, %v1238
        %v1271 = vsel %vm1207, %v1175, %v1239
        %v1272 = vsel %vm1208, %v1176, %v1240
        %v1273 = vsel %vm1209, %v1177, %v1241
        %v1274 = vsel %vm1210, %v1178, %v1242
        %v1275 = vsel %vm1211, %v1179, %v1243
        %v1276 = vsel %vm1212, %v1180, %v1244
        %v1277 = vsel %vm1213, %v1181, %v1245
        %v1278 = vsel %vm1214, %v1182, %v1246
        %v1279 = vsel %vm1215, %v1183, %v1247
        %v1280 = vsel %vm1216, %v1184, %v1248
        %v1281 = vsel %vm1217, %v1185, %v1249
        %v1282 = vsel %vm1218, %v1186, %v1250
        %v1283 = vsel %vm1219, %v1187, %v1251
        %v1284 = vsel %vm1220, %v1188, %v1252
        %v1285 = vsel %vm1221, %v1189, %v1253
        %v1286 = vsel %vm1222, %v1190, %v1254
        %v1287 = vsel %vm1223, %v1191, %v1255
        %v1288 = vsel %vm1224, %v1192, %v1256
        %v1289 = vsel %vm1225, %v1193, %v1257
        %v1290 = vsel %vm1226, %v1194, %v1258
        %v1291 = vsel %vm1227, %v1195, %v1259
        %v1292 = vsel %vm1228, %v1196, %v1260
        %v1293 = vsel %vm1229, %v1197, %v1261
        %v1294 = vsel %vm1230, %v1198, %v1262
        %v1295 = vsel %vm1231, %v1199, %v1263
        %v1296 = vsel %vm1232, %v1200, %v1264
        %v1297 = vsel %vm1233, %v1201, %v1265
        %v1298 = vsel %vm1234, %v1202, %v1266
        %v1299 = vadd.f32 %v1267, %v1054
        %v1300 = vadd.f32 %v1268, %v1055
        %v1301 = vadd.f32 %v1269, %v1056
        %v1302 = vadd.f32 %v1270, %v1057
        %v1303 = vadd.f32 %v1271, %v1058
        %v1304 = vadd.f32 %v1272, %v1059
        %v1305 = vadd.f32 %v1273, %v1060
        %v1306 = vadd.f32 %v1274, %v1061
        %v1307 = vadd.f32 %v1275, %v1062
        %v1308 = vadd.f32 %v1276, %v1063
        %v1309 = vadd.f32 %v1277, %v1064
        %v1310 = vadd.f32 %v1278, %v1065
        %v1311 = vadd.f32 %v1279, %v1066
        %v1312 = vadd.f32 %v1280, %v1067
        %v1313 = vadd.f32 %v1281, %v1068
        %v1314 = vadd.f32 %v1282, %v1069
        %v1315 = vadd.f32 %v1283, %v1070
        %v1316 = vadd.f32 %v1284, %v1071
        %v1317 = vadd.f32 %v1285, %v1072
        %v1318 = vadd.f32 %v1286, %v1073
        %v1319 = vadd.f32 %v1287, %v1074
        %v1320 = vadd.f32 %v1288, %v1075
        %v1321 = vadd.f32 %v1289, %v1076
        %v1322 = vadd.f32 %v1290, %v1077
        %v1323 = vadd.f32 %v1291, %v1078
        %v1324 = vadd.f32 %v1292, %v1079
        %v1325 = vadd.f32 %v1293, %v1080
        %v1326 = vadd.f32 %v1294, %v1081
        %v1327 = vadd.f32 %v1295, %v1082
        %v1328 = vadd.f32 %v1296, %v1083
        %v1329 = vadd.f32 %v1297, %v1084
        %v1330 = vadd.f32 %v1298, %v1085
        %v1331 = vmax.f32 %v1299, %v1300
        %1332 = vmax.xlane.f32.xlu0 %v1331
        %v1333 = vpop.xlane.xlu0 %1332
        %v1334 = vmax.f32 %v1301, %v1302
        %1335 = vmax.xlane.f32.xlu0 %v1334
        %v1336 = vpop.xlane.xlu0 %1335
        %v1337 = vmax.f32 %v1303, %v1304
        %1338 = vmax.xlane.f32.xlu0 %v1337
        %v1339 = vpop.xlane.xlu0 %1338
        %v1340 = vmax.f32 %v1305, %v1306
        %1341 = vmax.xlane.f32.xlu0 %v1340
        %v1342 = vpop.xlane.xlu0 %1341
        %v1343 = vmax.f32 %v1307, %v1308
        %1344 = vmax.xlane.f32.xlu0 %v1343
        %v1345 = vpop.xlane.xlu0 %1344
        %v1346 = vmax.f32 %v1309, %v1310
        %1347 = vmax.xlane.f32.xlu0 %v1346
        %v1348 = vpop.xlane.xlu0 %1347
        %v1349 = vmax.f32 %v1311, %v1312
        %1350 = vmax.xlane.f32.xlu0 %v1349
        %v1351 = vpop.xlane.xlu0 %1350
        %v1352 = vmax.f32 %v1313, %v1314
        %1353 = vmax.xlane.f32.xlu0 %v1352
        %v1354 = vpop.xlane.xlu0 %1353
        %v1355 = vmax.f32 %v1315, %v1316
        %1356 = vmax.xlane.f32.xlu0 %v1355
        %v1357 = vpop.xlane.xlu0 %1356
        %v1358 = vmax.f32 %v1317, %v1318
        %1359 = vmax.xlane.f32.xlu0 %v1358
        %v1360 = vpop.xlane.xlu0 %1359
        %v1361 = vmax.f32 %v1319, %v1320
        %1362 = vmax.xlane.f32.xlu0 %v1361
        %v1363 = vpop.xlane.xlu0 %1362
        %v1364 = vmax.f32 %v1321, %v1322
        %1365 = vmax.xlane.f32.xlu0 %v1364
        %v1366 = vpop.xlane.xlu0 %1365
        %v1367 = vmax.f32 %v1323, %v1324
        %1368 = vmax.xlane.f32.xlu0 %v1367
        %v1369 = vpop.xlane.xlu0 %1368
        %v1370 = vmax.f32 %v1325, %v1326
        %1371 = vmax.xlane.f32.xlu0 %v1370
        %v1372 = vpop.xlane.xlu0 %1371
        %v1373 = vmax.f32 %v1327, %v1328
        %1374 = vmax.xlane.f32.xlu0 %v1373
        %v1375 = vpop.xlane.xlu0 %1374
        %v1376 = vmax.f32 %v1329, %v1330
        %1377 = vmax.xlane.f32.xlu0 %v1376
        %v1378 = vpop.xlane.xlu0 %1377
        %v1379 = vsub.f32 %v1299, %v1333
        %v1380 = vsub.f32 %v1300, %v1333
        %v1381 = vsub.f32 %v1301, %v1336
        %v1382 = vsub.f32 %v1302, %v1336
        %v1383 = vsub.f32 %v1303, %v1339
        %v1384 = vsub.f32 %v1304, %v1339
        %v1385 = vsub.f32 %v1305, %v1342
        %v1386 = vsub.f32 %v1306, %v1342
        %v1387 = vsub.f32 %v1307, %v1345
        %v1388 = vsub.f32 %v1308, %v1345
        %v1389 = vsub.f32 %v1309, %v1348
        %v1390 = vsub.f32 %v1310, %v1348
        %v1391 = vsub.f32 %v1311, %v1351
        %v1392 = vsub.f32 %v1312, %v1351
        %v1393 = vsub.f32 %v1313, %v1354
        %v1394 = vsub.f32 %v1314, %v1354
        %v1395 = vsub.f32 %v1315, %v1357
        %v1396 = vsub.f32 %v1316, %v1357
        %v1397 = vsub.f32 %v1317, %v1360
        %v1398 = vsub.f32 %v1318, %v1360
        %v1399 = vsub.f32 %v1319, %v1363
        %v1400 = vsub.f32 %v1320, %v1363
        %v1401 = vsub.f32 %v1321, %v1366
        %v1402 = vsub.f32 %v1322, %v1366
        %v1403 = vsub.f32 %v1323, %v1369
        %v1404 = vsub.f32 %v1324, %v1369
        %v1405 = vsub.f32 %v1325, %v1372
        %v1406 = vsub.f32 %v1326, %v1372
        %v1407 = vsub.f32 %v1327, %v1375
        %v1408 = vsub.f32 %v1328, %v1375
        %v1409 = vsub.f32 %v1329, %v1378
        %v1410 = vsub.f32 %v1330, %v1378
        %v1411 = vmul.f32 %v1379, 1.442695
        %v1412 = vpow.pop %v1411
        %v1413 = vmul.f32 %v1380, 1.442695
        %v1414 = vpow.pop %v1413
        %v1415 = vmul.f32 %v1381, 1.442695
        %v1416 = vpow.pop %v1415
        %v1417 = vmul.f32 %v1382, 1.442695
        %v1418 = vpow.pop %v1417
        %v1419 = vmul.f32 %v1383, 1.442695
        %v1420 = vpow.pop %v1419
        %v1421 = vmul.f32 %v1384, 1.442695
        %v1422 = vpow.pop %v1421
        %v1423 = vmul.f32 %v1385, 1.442695
        %v1424 = vpow.pop %v1423
        %v1425 = vmul.f32 %v1386, 1.442695
        %v1426 = vpow.pop %v1425
        %v1427 = vmul.f32 %v1387, 1.442695
        %v1428 = vpow.pop %v1427
        %v1429 = vmul.f32 %v1388, 1.442695
        %v1430 = vpow.pop %v1429
        %v1431 = vmul.f32 %v1389, 1.442695
        %v1432 = vpow.pop %v1431
        %v1433 = vmul.f32 %v1390, 1.442695
        %v1434 = vpow.pop %v1433
        %v1435 = vmul.f32 %v1391, 1.442695
        %v1436 = vpow.pop %v1435
        %v1437 = vmul.f32 %v1392, 1.442695
        %v1438 = vpow.pop %v1437
        %v1439 = vmul.f32 %v1393, 1.442695
        %v1440 = vpow.pop %v1439
        %v1441 = vmul.f32 %v1394, 1.442695
        %v1442 = vpow.pop %v1441
        %v1443 = vmul.f32 %v1395, 1.442695
        %v1444 = vpow.pop %v1443
        %v1445 = vmul.f32 %v1396, 1.442695
        %v1446 = vpow.pop %v1445
        %v1447 = vmul.f32 %v1397, 1.442695
        %v1448 = vpow.pop %v1447
        %v1449 = vmul.f32 %v1398, 1.442695
        %v1450 = vpow.pop %v1449
        %v1451 = vmul.f32 %v1399, 1.442695
        %v1452 = vpow.pop %v1451
        %v1453 = vmul.f32 %v1400, 1.442695
        %v1454 = vpow.pop %v1453
        %v1455 = vmul.f32 %v1401, 1.442695
        %v1456 = vpow.pop %v1455
        %v1457 = vmul.f32 %v1402, 1.442695
        %v1458 = vpow.pop %v1457
        %v1459 = vmul.f32 %v1403, 1.442695
        %v1460 = vpow.pop %v1459
        %v1461 = vmul.f32 %v1404, 1.442695
        %v1462 = vpow.pop %v1461
        %v1463 = vmul.f32 %v1405, 1.442695
        %v1464 = vpow.pop %v1463
        %v1465 = vmul.f32 %v1406, 1.442695
        %v1466 = vpow.pop %v1465
        %v1467 = vmul.f32 %v1407, 1.442695
        %v1468 = vpow.pop %v1467
        %v1469 = vmul.f32 %v1408, 1.442695
        %v1470 = vpow.pop %v1469
        %v1471 = vmul.f32 %v1409, 1.442695
        %v1472 = vpow.pop %v1471
        %v1473 = vmul.f32 %v1410, 1.442695
        %v1474 = vpow.pop %v1473
        %v1475 = vadd.f32 %v1412, %v1414
        %1476 = vadd.xlane.f32.xlu0 %v1475
        %v1477 = vpop.xlane.xlu0 %1476
        %v1478 = vadd.f32 %v1416, %v1418
        %1479 = vadd.xlane.f32.xlu0 %v1478
        %v1480 = vpop.xlane.xlu0 %1479
        %v1481 = vadd.f32 %v1420, %v1422
        %1482 = vadd.xlane.f32.xlu0 %v1481
        %v1483 = vpop.xlane.xlu0 %1482
        %v1484 = vadd.f32 %v1424, %v1426
        %1485 = vadd.xlane.f32.xlu0 %v1484
        %v1486 = vpop.xlane.xlu0 %1485
        %v1487 = vadd.f32 %v1428, %v1430
        %1488 = vadd.xlane.f32.xlu0 %v1487
        %v1489 = vpop.xlane.xlu0 %1488
        %v1490 = vadd.f32 %v1432, %v1434
        %1491 = vadd.xlane.f32.xlu0 %v1490
        %v1492 = vpop.xlane.xlu0 %1491
        %v1493 = vadd.f32 %v1436, %v1438
        %1494 = vadd.xlane.f32.xlu0 %v1493
        %v1495 = vpop.xlane.xlu0 %1494
        %v1496 = vadd.f32 %v1440, %v1442
        %1497 = vadd.xlane.f32.xlu0 %v1496
        %v1498 = vpop.xlane.xlu0 %1497
        %v1499 = vadd.f32 %v1444, %v1446
        %1500 = vadd.xlane.f32.xlu0 %v1499
        %v1501 = vpop.xlane.xlu0 %1500
        %v1502 = vadd.f32 %v1448, %v1450
        %1503 = vadd.xlane.f32.xlu0 %v1502
        %v1504 = vpop.xlane.xlu0 %1503
        %v1505 = vadd.f32 %v1452, %v1454
        %1506 = vadd.xlane.f32.xlu0 %v1505
        %v1507 = vpop.xlane.xlu0 %1506
        %v1508 = vadd.f32 %v1456, %v1458
        %1509 = vadd.xlane.f32.xlu0 %v1508
        %v1510 = vpop.xlane.xlu0 %1509
        %v1511 = vadd.f32 %v1460, %v1462
        %1512 = vadd.xlane.f32.xlu0 %v1511
        %v1513 = vpop.xlane.xlu0 %1512
        %v1514 = vadd.f32 %v1464, %v1466
        %1515 = vadd.xlane.f32.xlu0 %v1514
        %v1516 = vpop.xlane.xlu0 %1515
        %v1517 = vadd.f32 %v1468, %v1470
        %1518 = vadd.xlane.f32.xlu0 %v1517
        %v1519 = vpop.xlane.xlu0 %1518
        %v1520 = vadd.f32 %v1472, %v1474
        %1521 = vadd.xlane.f32.xlu0 %v1520
        %v1522 = vpop.xlane.xlu0 %1521
        %v1523 = vrcp.pop %v1477
        %v1524 = vrcp.pop %v1480
        %v1525 = vrcp.pop %v1483
        %v1526 = vrcp.pop %v1486
        %v1527 = vrcp.pop %v1489
        %v1528 = vrcp.pop %v1492
        %v1529 = vrcp.pop %v1495
        %v1530 = vrcp.pop %v1498
        %v1531 = vrcp.pop %v1501
        %v1532 = vrcp.pop %v1504
        %v1533 = vrcp.pop %v1507
        %v1534 = vrcp.pop %v1510
        %v1535 = vrcp.pop %v1513
        %v1536 = vrcp.pop %v1516
        %v1537 = vrcp.pop %v1519
        %v1538 = vrcp.pop %v1522
        %v1539 = vmul.f32 %v1412, %v1523
        %v1540 = vmul.f32 %v1414, %v1523
        %v1541 = vmul.f32 %v1416, %v1524
        %v1542 = vmul.f32 %v1418, %v1524
        %v1543 = vmul.f32 %v1420, %v1525
        %v1544 = vmul.f32 %v1422, %v1525
        %v1545 = vmul.f32 %v1424, %v1526
        %v1546 = vmul.f32 %v1426, %v1526
        %v1547 = vmul.f32 %v1428, %v1527
        %v1548 = vmul.f32 %v1430, %v1527
        %v1549 = vmul.f32 %v1432, %v1528
        %v1550 = vmul.f32 %v1434, %v1528
        %v1551 = vmul.f32 %v1436, %v1529
        %v1552 = vmul.f32 %v1438, %v1529
        %v1553 = vmul.f32 %v1440, %v1530
        %v1554 = vmul.f32 %v1442, %v1530
        %v1555 = vmul.f32 %v1444, %v1531
        %v1556 = vmul.f32 %v1446, %v1531
        %v1557 = vmul.f32 %v1448, %v1532
        %v1558 = vmul.f32 %v1450, %v1532
        %v1559 = vmul.f32 %v1452, %v1533
        %v1560 = vmul.f32 %v1454, %v1533
        %v1561 = vmul.f32 %v1456, %v1534
        %v1562 = vmul.f32 %v1458, %v1534
        %v1563 = vmul.f32 %v1460, %v1535
        %v1564 = vmul.f32 %v1462, %v1535
        %v1565 = vmul.f32 %v1464, %v1536
        %v1566 = vmul.f32 %v1466, %v1536
        %v1567 = vmul.f32 %v1468, %v1537
        %v1568 = vmul.f32 %v1470, %v1537
        %v1569 = vmul.f32 %v1472, %v1538
        %v1570 = vmul.f32 %v1474, %v1538
        %vm1571 = vcmp.ge.s32.totalorder %v1087, 0
        %vm1572 = vcmp.lt.s32.totalorder %v1087, 4
        %vm1573 = vmand %vm1571, %vm1572
        %v1574 = vsel %vm1573, 1, 0
        %vm1575 = vcmp.eq.s32.totalorder %v1574, 1
        %v1576 = vsel %vm1575, %v535, 0.0
        %v1577 = vsel %vm1575, %v540, 0.0
        %v1578 = vsel %vm1575, %v545, 0.0
        %v1579 = vsel %vm1575, %v550, 0.0
        %v1580 = vsel %vm1575, %v555, 0.0
        %v1581 = vsel %vm1575, %v560, 0.0
        %v1582 = vsel %vm1575, %v565, 0.0
        %v1583 = vsel %vm1575, %v570, 0.0
        %v1584 = vsel %vm1575, %v575, 0.0
        %v1585 = vsel %vm1575, %v580, 0.0
        %v1586 = vsel %vm1575, %v585, 0.0
        %v1587 = vsel %vm1575, %v590, 0.0
        %v1588 = vsel %vm1575, %v595, 0.0
        %v1589 = vsel %vm1575, %v600, 0.0
        %v1590 = vsel %vm1575, %v605, 0.0
        %v1591 = vsel %vm1575, %v610, 0.0
        %v1592 = vsel %vm1575, %v615, 0.0
        %v1593 = vsel %vm1575, %v620, 0.0
        %v1594 = vsel %vm1575, %v625, 0.0
        %v1595 = vsel %vm1575, %v630, 0.0
        %v1596 = vsel %vm1575, %v635, 0.0
        %v1597 = vsel %vm1575, %v640, 0.0
        %v1598 = vsel %vm1575, %v645, 0.0
        %v1599 = vsel %vm1575, %v650, 0.0
        %v1600 = vsel %vm1575, %v655, 0.0
        %v1601 = vsel %vm1575, %v660, 0.0
        %v1602 = vsel %vm1575, %v665, 0.0
        %v1603 = vsel %vm1575, %v670, 0.0
        %v1604 = vsel %vm1575, %v675, 0.0
        %v1605 = vsel %vm1575, %v680, 0.0
        %v1606 = vsel %vm1575, %v685, 0.0
        %v1607 = vsel %vm1575, %v690, 0.0
        %v1608 = vpack.c.bf16 %v1577, %v1576
        %v1609 = vpack.c.bf16 %v1579, %v1578
        %v1610 = vpack.c.bf16 %v1581, %v1580
        %v1611 = vpack.c.bf16 %v1583, %v1582
        %v1612 = vpack.c.bf16 %v1585, %v1584
        %v1613 = vpack.c.bf16 %v1587, %v1586
        %v1614 = vpack.c.bf16 %v1589, %v1588
        %v1615 = vpack.c.bf16 %v1591, %v1590
        %v1616 = vpack.c.bf16 %v1593, %v1592
        %v1617 = vpack.c.bf16 %v1595, %v1594
        %v1618 = vpack.c.bf16 %v1597, %v1596
        %v1619 = vpack.c.bf16 %v1599, %v1598
        %v1620 = vpack.c.bf16 %v1601, %v1600
        %v1621 = vpack.c.bf16 %v1603, %v1602
        %v1622 = vpack.c.bf16 %v1605, %v1604
        %v1623 = vpack.c.bf16 %v1607, %v1606
        %v1624 = vpack.c.bf16 %v1541, %v1539
        %v1625 = vpack.c.bf16 %v1542, %v1540
        %v1626 = vpack.c.bf16 %v1545, %v1543
        %v1627 = vpack.c.bf16 %v1546, %v1544
        %v1628 = vpack.c.bf16 %v1549, %v1547
        %v1629 = vpack.c.bf16 %v1550, %v1548
        %v1630 = vpack.c.bf16 %v1553, %v1551
        %v1631 = vpack.c.bf16 %v1554, %v1552
        %v1632 = vpack.c.bf16 %v1557, %v1555
        %v1633 = vpack.c.bf16 %v1558, %v1556
        %v1634 = vpack.c.bf16 %v1561, %v1559
        %v1635 = vpack.c.bf16 %v1562, %v1560
        %v1636 = vpack.c.bf16 %v1565, %v1563
        %v1637 = vpack.c.bf16 %v1566, %v1564
        %v1638 = vpack.c.bf16 %v1569, %v1567
        %v1639 = vpack.c.bf16 %v1570, %v1568
        %vm1640 = vcmp.eq.s32.totalorder %v1087, 1
        %v1641 = vsel %vm1640, %v896, 0.0
        %v1642 = vsel %vm1640, %v901, 0.0
        %v1643 = vsel %vm1640, %v906, 0.0
        %v1644 = vsel %vm1640, %v911, 0.0
        %v1645 = vsel %vm1640, %v916, 0.0
        %v1646 = vsel %vm1640, %v921, 0.0
        %v1647 = vsel %vm1640, %v926, 0.0
        %v1648 = vsel %vm1640, %v931, 0.0
        %v1649 = vsel %vm1640, %v936, 0.0
        %v1650 = vsel %vm1640, %v941, 0.0
        %v1651 = vsel %vm1640, %v946, 0.0
        %v1652 = vsel %vm1640, %v951, 0.0
        %v1653 = vsel %vm1640, %v956, 0.0
        %v1654 = vsel %vm1640, %v961, 0.0
        %v1655 = vsel %vm1640, %v966, 0.0
        %v1656 = vsel %vm1640, %v971, 0.0
        %v1657 = vsel %vm1107, %v1641, 0.0
        %1658 = vadd.xlane.f32.xlu0 %v1657
        %v1659 = vpop.xlane.xlu0 %1658
        %v1660 = vsel %vm1107, %v1642, 0.0
        %1661 = vadd.xlane.f32.xlu0 %v1660
        %v1662 = vpop.xlane.xlu0 %1661
        %v1663 = vsel %vm1107, %v1643, 0.0
        %1664 = vadd.xlane.f32.xlu0 %v1663
        %v1665 = vpop.xlane.xlu0 %1664
        %v1666 = vsel %vm1107, %v1644, 0.0
        %1667 = vadd.xlane.f32.xlu0 %v1666
        %v1668 = vpop.xlane.xlu0 %1667
        %v1669 = vsel %vm1107, %v1645, 0.0
        %1670 = vadd.xlane.f32.xlu0 %v1669
        %v1671 = vpop.xlane.xlu0 %1670
        %v1672 = vsel %vm1107, %v1646, 0.0
        %1673 = vadd.xlane.f32.xlu0 %v1672
        %v1674 = vpop.xlane.xlu0 %1673
        %v1675 = vsel %vm1107, %v1647, 0.0
        %1676 = vadd.xlane.f32.xlu0 %v1675
        %v1677 = vpop.xlane.xlu0 %1676
        %v1678 = vsel %vm1107, %v1648, 0.0
        %1679 = vadd.xlane.f32.xlu0 %v1678
        %v1680 = vpop.xlane.xlu0 %1679
        %v1681 = vsel %vm1107, %v1649, 0.0
        %1682 = vadd.xlane.f32.xlu0 %v1681
        %v1683 = vpop.xlane.xlu0 %1682
        %v1684 = vsel %vm1107, %v1650, 0.0
        %1685 = vadd.xlane.f32.xlu0 %v1684
        %v1686 = vpop.xlane.xlu0 %1685
        %v1687 = vsel %vm1107, %v1651, 0.0
        %1688 = vadd.xlane.f32.xlu0 %v1687
        %v1689 = vpop.xlane.xlu0 %1688
        %v1690 = vsel %vm1107, %v1652, 0.0
        %1691 = vadd.xlane.f32.xlu0 %v1690
        %v1692 = vpop.xlane.xlu0 %1691
        %v1693 = vsel %vm1107, %v1653, 0.0
        %1694 = vadd.xlane.f32.xlu0 %v1693
        %v1695 = vpop.xlane.xlu0 %1694
        %v1696 = vsel %vm1107, %v1654, 0.0
        %1697 = vadd.xlane.f32.xlu0 %v1696
        %v1698 = vpop.xlane.xlu0 %1697
        %v1699 = vsel %vm1107, %v1655, 0.0
        %1700 = vadd.xlane.f32.xlu0 %v1699
        %v1701 = vpop.xlane.xlu0 %1700
        %v1702 = vsel %vm1107, %v1656, 0.0
        %1703 = vadd.xlane.f32.xlu0 %v1702
        %v1704 = vpop.xlane.xlu0 %1703
        %vm1705 = vcmp.eq.s32.totalorder %v1089, 1
        %v1706 = vsel %vm1705, %v793, 0.0
        %v1707 = vsel %vm1705, %v795, 0.0
        %v1708 = vrot.slane %v1706, 4
        %v1709 = vadd.f32 %v1706, %v1708
        %v1710 = vrot.slane %v1709, 2
        %v1711 = vadd.f32 %v1709, %v1710
        %v1712 = vrot.slane %v1711, 1
        %v1713 = vadd.f32 %v1711, %v1712
        %v1714 = vrot.slane %v1707, 4
        %v1715 = vadd.f32 %v1707, %v1714
        %v1716 = vrot.slane %v1715, 2
        %v1717 = vadd.f32 %v1715, %v1716
        %v1718 = vrot.slane %v1717, 1
        %v1719 = vadd.f32 %v1717, %v1718
        %v1720 = vadd.f32 %v1659, %v1713
        %v1721 = vadd.f32 %v1659, %v1719
        %v1722 = vadd.f32 %v1662, %v1713
        %v1723 = vadd.f32 %v1662, %v1719
        %v1724 = vadd.f32 %v1665, %v1713
        %v1725 = vadd.f32 %v1665, %v1719
        %v1726 = vadd.f32 %v1668, %v1713
        %v1727 = vadd.f32 %v1668, %v1719
        %v1728 = vadd.f32 %v1671, %v1713
        %v1729 = vadd.f32 %v1671, %v1719
        %v1730 = vadd.f32 %v1674, %v1713
        %v1731 = vadd.f32 %v1674, %v1719
        %v1732 = vadd.f32 %v1677, %v1713
        %v1733 = vadd.f32 %v1677, %v1719
        %v1734 = vadd.f32 %v1680, %v1713
        %v1735 = vadd.f32 %v1680, %v1719
        %v1736 = vadd.f32 %v1683, %v1713
        %v1737 = vadd.f32 %v1683, %v1719
        %v1738 = vadd.f32 %v1686, %v1713
        %v1739 = vadd.f32 %v1686, %v1719
        %v1740 = vadd.f32 %v1689, %v1713
        %v1741 = vadd.f32 %v1689, %v1719
        %v1742 = vadd.f32 %v1692, %v1713
        %v1743 = vadd.f32 %v1692, %v1719
        %v1744 = vadd.f32 %v1695, %v1713
        %v1745 = vadd.f32 %v1695, %v1719
        %v1746 = vadd.f32 %v1698, %v1713
        %v1747 = vadd.f32 %v1698, %v1719
        %v1748 = vadd.f32 %v1701, %v1713
        %v1749 = vadd.f32 %v1701, %v1719
        %v1750 = vadd.f32 %v1704, %v1713
        %v1751 = vadd.f32 %v1704, %v1719
        %vm1752 = vcmp.ge.f32.partialorder %v1720, 0.0
        %vm1753 = vcmp.ge.f32.partialorder %v1721, 0.0
        %vm1754 = vcmp.ge.f32.partialorder %v1722, 0.0
        %vm1755 = vcmp.ge.f32.partialorder %v1723, 0.0
        %vm1756 = vcmp.ge.f32.partialorder %v1724, 0.0
        %vm1757 = vcmp.ge.f32.partialorder %v1725, 0.0
        %vm1758 = vcmp.ge.f32.partialorder %v1726, 0.0
        %vm1759 = vcmp.ge.f32.partialorder %v1727, 0.0
        %vm1760 = vcmp.ge.f32.partialorder %v1728, 0.0
        %vm1761 = vcmp.ge.f32.partialorder %v1729, 0.0
        %vm1762 = vcmp.ge.f32.partialorder %v1730, 0.0
        %vm1763 = vcmp.ge.f32.partialorder %v1731, 0.0
        %vm1764 = vcmp.ge.f32.partialorder %v1732, 0.0
        %vm1765 = vcmp.ge.f32.partialorder %v1733, 0.0
        %vm1766 = vcmp.ge.f32.partialorder %v1734, 0.0
        %vm1767 = vcmp.ge.f32.partialorder %v1735, 0.0
        %vm1768 = vcmp.ge.f32.partialorder %v1736, 0.0
        %vm1769 = vcmp.ge.f32.partialorder %v1737, 0.0
        %vm1770 = vcmp.ge.f32.partialorder %v1738, 0.0
        %vm1771 = vcmp.ge.f32.partialorder %v1739, 0.0
        %vm1772 = vcmp.ge.f32.partialorder %v1740, 0.0
        %vm1773 = vcmp.ge.f32.partialorder %v1741, 0.0
        %vm1774 = vcmp.ge.f32.partialorder %v1742, 0.0
        %vm1775 = vcmp.ge.f32.partialorder %v1743, 0.0
        %vm1776 = vcmp.ge.f32.partialorder %v1744, 0.0
        %vm1777 = vcmp.ge.f32.partialorder %v1745, 0.0
        %vm1778 = vcmp.ge.f32.partialorder %v1746, 0.0
        %vm1779 = vcmp.ge.f32.partialorder %v1747, 0.0
        %vm1780 = vcmp.ge.f32.partialorder %v1748, 0.0
        %vm1781 = vcmp.ge.f32.partialorder %v1749, 0.0
        %vm1782 = vcmp.ge.f32.partialorder %v1750, 0.0
        %vm1783 = vcmp.ge.f32.partialorder %v1751, 0.0
        %v1784 = vmul.f32 %v1720, 0.2
        %v1785 = vmul.f32 %v1721, 0.2
        %v1786 = vmul.f32 %v1722, 0.2
        %v1787 = vmul.f32 %v1723, 0.2
        %v1788 = vmul.f32 %v1724, 0.2
        %v1789 = vmul.f32 %v1725, 0.2
        %v1790 = vmul.f32 %v1726, 0.2
        %v1791 = vmul.f32 %v1727, 0.2
        %v1792 = vmul.f32 %v1728, 0.2
        %v1793 = vmul.f32 %v1729, 0.2
        %v1794 = vmul.f32 %v1730, 0.2
        %v1795 = vmul.f32 %v1731, 0.2
        %v1796 = vmul.f32 %v1732, 0.2
        %v1797 = vmul.f32 %v1733, 0.2
        %v1798 = vmul.f32 %v1734, 0.2
        %v1799 = vmul.f32 %v1735, 0.2
        %v1800 = vmul.f32 %v1736, 0.2
        %v1801 = vmul.f32 %v1737, 0.2
        %v1802 = vmul.f32 %v1738, 0.2
        %v1803 = vmul.f32 %v1739, 0.2
        %v1804 = vmul.f32 %v1740, 0.2
        %v1805 = vmul.f32 %v1741, 0.2
        %v1806 = vmul.f32 %v1742, 0.2
        %v1807 = vmul.f32 %v1743, 0.2
        %v1808 = vmul.f32 %v1744, 0.2
        %v1809 = vmul.f32 %v1745, 0.2
        %v1810 = vmul.f32 %v1746, 0.2
        %v1811 = vmul.f32 %v1747, 0.2
        %v1812 = vmul.f32 %v1748, 0.2
        %v1813 = vmul.f32 %v1749, 0.2
        %v1814 = vmul.f32 %v1750, 0.2
        %v1815 = vmul.f32 %v1751, 0.2
        %v1816 = vsel %vm1752, %v1720, %v1784
        %v1817 = vsel %vm1753, %v1721, %v1785
        %v1818 = vsel %vm1754, %v1722, %v1786
        %v1819 = vsel %vm1755, %v1723, %v1787
        %v1820 = vsel %vm1756, %v1724, %v1788
        %v1821 = vsel %vm1757, %v1725, %v1789
        %v1822 = vsel %vm1758, %v1726, %v1790
        %v1823 = vsel %vm1759, %v1727, %v1791
        %v1824 = vsel %vm1760, %v1728, %v1792
        %v1825 = vsel %vm1761, %v1729, %v1793
        %v1826 = vsel %vm1762, %v1730, %v1794
        %v1827 = vsel %vm1763, %v1731, %v1795
        %v1828 = vsel %vm1764, %v1732, %v1796
        %v1829 = vsel %vm1765, %v1733, %v1797
        %v1830 = vsel %vm1766, %v1734, %v1798
        %v1831 = vsel %vm1767, %v1735, %v1799
        %v1832 = vsel %vm1768, %v1736, %v1800
        %v1833 = vsel %vm1769, %v1737, %v1801
        %v1834 = vsel %vm1770, %v1738, %v1802
        %v1835 = vsel %vm1771, %v1739, %v1803
        %v1836 = vsel %vm1772, %v1740, %v1804
        %v1837 = vsel %vm1773, %v1741, %v1805
        %v1838 = vsel %vm1774, %v1742, %v1806
        %v1839 = vsel %vm1775, %v1743, %v1807
        %v1840 = vsel %vm1776, %v1744, %v1808
        %v1841 = vsel %vm1777, %v1745, %v1809
        %v1842 = vsel %vm1778, %v1746, %v1810
        %v1843 = vsel %vm1779, %v1747, %v1811
        %v1844 = vsel %vm1780, %v1748, %v1812
        %v1845 = vsel %vm1781, %v1749, %v1813
        %v1846 = vsel %vm1782, %v1750, %v1814
        %v1847 = vsel %vm1783, %v1751, %v1815
        %v1848 = vadd.f32 %v1816, %v1054
        %v1849 = vadd.f32 %v1817, %v1055
        %v1850 = vadd.f32 %v1818, %v1056
        %v1851 = vadd.f32 %v1819, %v1057
        %v1852 = vadd.f32 %v1820, %v1058
        %v1853 = vadd.f32 %v1821, %v1059
        %v1854 = vadd.f32 %v1822, %v1060
        %v1855 = vadd.f32 %v1823, %v1061
        %v1856 = vadd.f32 %v1824, %v1062
        %v1857 = vadd.f32 %v1825, %v1063
        %v1858 = vadd.f32 %v1826, %v1064
        %v1859 = vadd.f32 %v1827, %v1065
        %v1860 = vadd.f32 %v1828, %v1066
        %v1861 = vadd.f32 %v1829, %v1067
        %v1862 = vadd.f32 %v1830, %v1068
        %v1863 = vadd.f32 %v1831, %v1069
        %v1864 = vadd.f32 %v1832, %v1070
        %v1865 = vadd.f32 %v1833, %v1071
        %v1866 = vadd.f32 %v1834, %v1072
        %v1867 = vadd.f32 %v1835, %v1073
        %v1868 = vadd.f32 %v1836, %v1074
        %v1869 = vadd.f32 %v1837, %v1075
        %v1870 = vadd.f32 %v1838, %v1076
        %v1871 = vadd.f32 %v1839, %v1077
        %v1872 = vadd.f32 %v1840, %v1078
        %v1873 = vadd.f32 %v1841, %v1079
        %v1874 = vadd.f32 %v1842, %v1080
        %v1875 = vadd.f32 %v1843, %v1081
        %v1876 = vadd.f32 %v1844, %v1082
        %v1877 = vadd.f32 %v1845, %v1083
        %v1878 = vadd.f32 %v1846, %v1084
        %v1879 = vadd.f32 %v1847, %v1085
        %v1880 = vmax.f32 %v1848, %v1849
        %1881 = vmax.xlane.f32.xlu0 %v1880
        %v1882 = vpop.xlane.xlu0 %1881
        %v1883 = vmax.f32 %v1850, %v1851
        %1884 = vmax.xlane.f32.xlu0 %v1883
        %v1885 = vpop.xlane.xlu0 %1884
        %v1886 = vmax.f32 %v1852, %v1853
        %1887 = vmax.xlane.f32.xlu0 %v1886
        %v1888 = vpop.xlane.xlu0 %1887
        %v1889 = vmax.f32 %v1854, %v1855
        %1890 = vmax.xlane.f32.xlu0 %v1889
        %v1891 = vpop.xlane.xlu0 %1890
        %v1892 = vmax.f32 %v1856, %v1857
        %1893 = vmax.xlane.f32.xlu0 %v1892
        %v1894 = vpop.xlane.xlu0 %1893
        %v1895 = vmax.f32 %v1858, %v1859
        %1896 = vmax.xlane.f32.xlu0 %v1895
        %v1897 = vpop.xlane.xlu0 %1896
        %v1898 = vmax.f32 %v1860, %v1861
        %1899 = vmax.xlane.f32.xlu0 %v1898
        %v1900 = vpop.xlane.xlu0 %1899
        %v1901 = vmax.f32 %v1862, %v1863
        %1902 = vmax.xlane.f32.xlu0 %v1901
        %v1903 = vpop.xlane.xlu0 %1902
        %v1904 = vmax.f32 %v1864, %v1865
        %1905 = vmax.xlane.f32.xlu0 %v1904
        %v1906 = vpop.xlane.xlu0 %1905
        %v1907 = vmax.f32 %v1866, %v1867
        %1908 = vmax.xlane.f32.xlu0 %v1907
        %v1909 = vpop.xlane.xlu0 %1908
        %v1910 = vmax.f32 %v1868, %v1869
        %1911 = vmax.xlane.f32.xlu0 %v1910
        %v1912 = vpop.xlane.xlu0 %1911
        %v1913 = vmax.f32 %v1870, %v1871
        %1914 = vmax.xlane.f32.xlu0 %v1913
        %v1915 = vpop.xlane.xlu0 %1914
        %v1916 = vmax.f32 %v1872, %v1873
        %1917 = vmax.xlane.f32.xlu0 %v1916
        %v1918 = vpop.xlane.xlu0 %1917
        %v1919 = vmax.f32 %v1874, %v1875
        %1920 = vmax.xlane.f32.xlu0 %v1919
        %v1921 = vpop.xlane.xlu0 %1920
        %v1922 = vmax.f32 %v1876, %v1877
        %1923 = vmax.xlane.f32.xlu0 %v1922
        %v1924 = vpop.xlane.xlu0 %1923
        %v1925 = vmax.f32 %v1878, %v1879
        %1926 = vmax.xlane.f32.xlu0 %v1925
        %v1927 = vpop.xlane.xlu0 %1926
        %v1928 = vsub.f32 %v1848, %v1882
        %v1929 = vsub.f32 %v1849, %v1882
        %v1930 = vsub.f32 %v1850, %v1885
        %v1931 = vsub.f32 %v1851, %v1885
        %v1932 = vsub.f32 %v1852, %v1888
        %v1933 = vsub.f32 %v1853, %v1888
        %v1934 = vsub.f32 %v1854, %v1891
        %v1935 = vsub.f32 %v1855, %v1891
        %v1936 = vsub.f32 %v1856, %v1894
        %v1937 = vsub.f32 %v1857, %v1894
        %v1938 = vsub.f32 %v1858, %v1897
        %v1939 = vsub.f32 %v1859, %v1897
        %v1940 = vsub.f32 %v1860, %v1900
        %v1941 = vsub.f32 %v1861, %v1900
        %v1942 = vsub.f32 %v1862, %v1903
        %v1943 = vsub.f32 %v1863, %v1903
        %v1944 = vsub.f32 %v1864, %v1906
        %v1945 = vsub.f32 %v1865, %v1906
        %v1946 = vsub.f32 %v1866, %v1909
        %v1947 = vsub.f32 %v1867, %v1909
        %v1948 = vsub.f32 %v1868, %v1912
        %v1949 = vsub.f32 %v1869, %v1912
        %v1950 = vsub.f32 %v1870, %v1915
        %v1951 = vsub.f32 %v1871, %v1915
        %v1952 = vsub.f32 %v1872, %v1918
        %v1953 = vsub.f32 %v1873, %v1918
        %v1954 = vsub.f32 %v1874, %v1921
        %v1955 = vsub.f32 %v1875, %v1921
        %v1956 = vsub.f32 %v1876, %v1924
        %v1957 = vsub.f32 %v1877, %v1924
        %v1958 = vsub.f32 %v1878, %v1927
        %v1959 = vsub.f32 %v1879, %v1927
        %v1960 = vmul.f32 %v1928, 1.442695
        %v1961 = vpow.pop %v1960
        %v1962 = vmul.f32 %v1929, 1.442695
        %v1963 = vpow.pop %v1962
        %v1964 = vmul.f32 %v1930, 1.442695
        %v1965 = vpow.pop %v1964
        %v1966 = vmul.f32 %v1931, 1.442695
        %v1967 = vpow.pop %v1966
        %v1968 = vmul.f32 %v1932, 1.442695
        %v1969 = vpow.pop %v1968
        %v1970 = vmul.f32 %v1933, 1.442695
        %v1971 = vpow.pop %v1970
        %v1972 = vmul.f32 %v1934, 1.442695
        %v1973 = vpow.pop %v1972
        %v1974 = vmul.f32 %v1935, 1.442695
        %v1975 = vpow.pop %v1974
        %v1976 = vmul.f32 %v1936, 1.442695
        %v1977 = vpow.pop %v1976
        %v1978 = vmul.f32 %v1937, 1.442695
        %v1979 = vpow.pop %v1978
        %v1980 = vmul.f32 %v1938, 1.442695
        %v1981 = vpow.pop %v1980
        %v1982 = vmul.f32 %v1939, 1.442695
        %v1983 = vpow.pop %v1982
        %v1984 = vmul.f32 %v1940, 1.442695
        %v1985 = vpow.pop %v1984
        %v1986 = vmul.f32 %v1941, 1.442695
        %v1987 = vpow.pop %v1986
        %v1988 = vmul.f32 %v1942, 1.442695
        %v1989 = vpow.pop %v1988
        %v1990 = vmul.f32 %v1943, 1.442695
        %v1991 = vpow.pop %v1990
        %v1992 = vmul.f32 %v1944, 1.442695
        %v1993 = vpow.pop %v1992
        %v1994 = vmul.f32 %v1945, 1.442695
        %v1995 = vpow.pop %v1994
        %v1996 = vmul.f32 %v1946, 1.442695
        %v1997 = vpow.pop %v1996
        %v1998 = vmul.f32 %v1947, 1.442695
        %v1999 = vpow.pop %v1998
        %v2000 = vmul.f32 %v1948, 1.442695
        %v2001 = vpow.pop %v2000
        %v2002 = vmul.f32 %v1949, 1.442695
        %v2003 = vpow.pop %v2002
        %v2004 = vmul.f32 %v1950, 1.442695
        %v2005 = vpow.pop %v2004
        %v2006 = vmul.f32 %v1951, 1.442695
        %v2007 = vpow.pop %v2006
        %v2008 = vmul.f32 %v1952, 1.442695
        %v2009 = vpow.pop %v2008
        %v2010 = vmul.f32 %v1953, 1.442695
        %v2011 = vpow.pop %v2010
        %v2012 = vmul.f32 %v1954, 1.442695
        %v2013 = vpow.pop %v2012
        %v2014 = vmul.f32 %v1955, 1.442695
        %v2015 = vpow.pop %v2014
        %v2016 = vmul.f32 %v1956, 1.442695
        %v2017 = vpow.pop %v2016
        %v2018 = vmul.f32 %v1957, 1.442695
        %v2019 = vpow.pop %v2018
        %v2020 = vmul.f32 %v1958, 1.442695
        %v2021 = vpow.pop %v2020
        %v2022 = vmul.f32 %v1959, 1.442695
        %v2023 = vpow.pop %v2022
        %v2024 = vadd.f32 %v1961, %v1963
        %2025 = vadd.xlane.f32.xlu0 %v2024
        %v2026 = vpop.xlane.xlu0 %2025
        %v2027 = vadd.f32 %v1965, %v1967
        %2028 = vadd.xlane.f32.xlu0 %v2027
        %v2029 = vpop.xlane.xlu0 %2028
        %v2030 = vadd.f32 %v1969, %v1971
        %2031 = vadd.xlane.f32.xlu0 %v2030
        %v2032 = vpop.xlane.xlu0 %2031
        %v2033 = vadd.f32 %v1973, %v1975
        %2034 = vadd.xlane.f32.xlu0 %v2033
        %v2035 = vpop.xlane.xlu0 %2034
        %v2036 = vadd.f32 %v1977, %v1979
        %2037 = vadd.xlane.f32.xlu0 %v2036
        %v2038 = vpop.xlane.xlu0 %2037
        %v2039 = vadd.f32 %v1981, %v1983
        %2040 = vadd.xlane.f32.xlu0 %v2039
        %v2041 = vpop.xlane.xlu0 %2040
        %v2042 = vadd.f32 %v1985, %v1987
        %2043 = vadd.xlane.f32.xlu0 %v2042
        %v2044 = vpop.xlane.xlu0 %2043
        %v2045 = vadd.f32 %v1989, %v1991
        %2046 = vadd.xlane.f32.xlu0 %v2045
        %v2047 = vpop.xlane.xlu0 %2046
        %v2048 = vadd.f32 %v1993, %v1995
        %2049 = vadd.xlane.f32.xlu0 %v2048
        %v2050 = vpop.xlane.xlu0 %2049
        %v2051 = vadd.f32 %v1997, %v1999
        %2052 = vadd.xlane.f32.xlu0 %v2051
        %v2053 = vpop.xlane.xlu0 %2052
        %v2054 = vadd.f32 %v2001, %v2003
        %2055 = vadd.xlane.f32.xlu0 %v2054
        %v2056 = vpop.xlane.xlu0 %2055
        %v2057 = vadd.f32 %v2005, %v2007
        %2058 = vadd.xlane.f32.xlu0 %v2057
        %v2059 = vpop.xlane.xlu0 %2058
        %v2060 = vadd.f32 %v2009, %v2011
        %2061 = vadd.xlane.f32.xlu0 %v2060
        %v2062 = vpop.xlane.xlu0 %2061
        %v2063 = vadd.f32 %v2013, %v2015
        %2064 = vadd.xlane.f32.xlu0 %v2063
        %v2065 = vpop.xlane.xlu0 %2064
        %v2066 = vadd.f32 %v2017, %v2019
        %2067 = vadd.xlane.f32.xlu0 %v2066
        %v2068 = vpop.xlane.xlu0 %2067
        %v2069 = vadd.f32 %v2021, %v2023
        %2070 = vadd.xlane.f32.xlu0 %v2069
        %v2071 = vpop.xlane.xlu0 %2070
        %v2072 = vrcp.pop %v2026
        %v2073 = vrcp.pop %v2029
        %v2074 = vrcp.pop %v2032
        %v2075 = vrcp.pop %v2035
        %v2076 = vrcp.pop %v2038
        %v2077 = vrcp.pop %v2041
        %v2078 = vrcp.pop %v2044
        %v2079 = vrcp.pop %v2047
        %v2080 = vrcp.pop %v2050
        %v2081 = vrcp.pop %v2053
        %v2082 = vrcp.pop %v2056
        %v2083 = vrcp.pop %v2059
        %v2084 = vrcp.pop %v2062
        %v2085 = vrcp.pop %v2065
        %v2086 = vrcp.pop %v2068
        %v2087 = vrcp.pop %v2071
        %v2088 = vmul.f32 %v1961, %v2072
        %v2089 = vmul.f32 %v1963, %v2072
        %v2090 = vmul.f32 %v1965, %v2073
        %v2091 = vmul.f32 %v1967, %v2073
        %v2092 = vmul.f32 %v1969, %v2074
        %v2093 = vmul.f32 %v1971, %v2074
        %v2094 = vmul.f32 %v1973, %v2075
        %v2095 = vmul.f32 %v1975, %v2075
        %v2096 = vmul.f32 %v1977, %v2076
        %v2097 = vmul.f32 %v1979, %v2076
        %v2098 = vmul.f32 %v1981, %v2077
        %v2099 = vmul.f32 %v1983, %v2077
        %v2100 = vmul.f32 %v1985, %v2078
        %v2101 = vmul.f32 %v1987, %v2078
        %v2102 = vmul.f32 %v1989, %v2079
        %v2103 = vmul.f32 %v1991, %v2079
        %v2104 = vmul.f32 %v1993, %v2080
        %v2105 = vmul.f32 %v1995, %v2080
        %v2106 = vmul.f32 %v1997, %v2081
        %v2107 = vmul.f32 %v1999, %v2081
        %v2108 = vmul.f32 %v2001, %v2082
        %v2109 = vmul.f32 %v2003, %v2082
        %v2110 = vmul.f32 %v2005, %v2083
        %v2111 = vmul.f32 %v2007, %v2083
        %v2112 = vmul.f32 %v2009, %v2084
        %v2113 = vmul.f32 %v2011, %v2084
        %v2114 = vmul.f32 %v2013, %v2085
        %v2115 = vmul.f32 %v2015, %v2085
        %v2116 = vmul.f32 %v2017, %v2086
        %v2117 = vmul.f32 %v2019, %v2086
        %v2118 = vmul.f32 %v2021, %v2087
        %v2119 = vmul.f32 %v2023, %v2087
        %vm2120 = vcmp.ge.s32.totalorder %v1087, 4
        %vm2121 = vcmp.lt.s32.totalorder %v1087, 8
        %vm2122 = vmand %vm2120, %vm2121
        %v2123 = vsel %vm2122, 1, 0
        %vm2124 = vcmp.eq.s32.totalorder %v2123, 1
        %v2125 = vsel %vm2124, %v535, 0.0
        %v2126 = vsel %vm2124, %v540, 0.0
        %v2127 = vsel %vm2124, %v545, 0.0
        %v2128 = vsel %vm2124, %v550, 0.0
        %v2129 = vsel %vm2124, %v555, 0.0
        %v2130 = vsel %vm2124, %v560, 0.0
        %v2131 = vsel %vm2124, %v565, 0.0
        %v2132 = vsel %vm2124, %v570, 0.0
        %v2133 = vsel %vm2124, %v575, 0.0
        %v2134 = vsel %vm2124, %v580, 0.0
        %v2135 = vsel %vm2124, %v585, 0.0
        %v2136 = vsel %vm2124, %v590, 0.0
        %v2137 = vsel %vm2124, %v595, 0.0
        %v2138 = vsel %vm2124, %v600, 0.0
        %v2139 = vsel %vm2124, %v605, 0.0
        %v2140 = vsel %vm2124, %v610, 0.0
        %v2141 = vsel %vm2124, %v615, 0.0
        %v2142 = vsel %vm2124, %v620, 0.0
        %v2143 = vsel %vm2124, %v625, 0.0
        %v2144 = vsel %vm2124, %v630, 0.0
        %v2145 = vsel %vm2124, %v635, 0.0
        %v2146 = vsel %vm2124, %v640, 0.0
        %v2147 = vsel %vm2124, %v645, 0.0
        %v2148 = vsel %vm2124, %v650, 0.0
        %v2149 = vsel %vm2124, %v655, 0.0
        %v2150 = vsel %vm2124, %v660, 0.0
        %v2151 = vsel %vm2124, %v665, 0.0
        %v2152 = vsel %vm2124, %v670, 0.0
        %v2153 = vsel %vm2124, %v675, 0.0
        %v2154 = vsel %vm2124, %v680, 0.0
        %v2155 = vsel %vm2124, %v685, 0.0
        %v2156 = vsel %vm2124, %v690, 0.0
        %v2157 = vpack.c.bf16 %v2126, %v2125
        %v2158 = vpack.c.bf16 %v2128, %v2127
        %v2159 = vpack.c.bf16 %v2130, %v2129
        %v2160 = vpack.c.bf16 %v2132, %v2131
        %v2161 = vpack.c.bf16 %v2134, %v2133
        %v2162 = vpack.c.bf16 %v2136, %v2135
        %v2163 = vpack.c.bf16 %v2138, %v2137
        %v2164 = vpack.c.bf16 %v2140, %v2139
        %v2165 = vpack.c.bf16 %v2142, %v2141
        %v2166 = vpack.c.bf16 %v2144, %v2143
        %v2167 = vpack.c.bf16 %v2146, %v2145
        %v2168 = vpack.c.bf16 %v2148, %v2147
        %v2169 = vpack.c.bf16 %v2150, %v2149
        %v2170 = vpack.c.bf16 %v2152, %v2151
        %v2171 = vpack.c.bf16 %v2154, %v2153
        %v2172 = vpack.c.bf16 %v2156, %v2155
        %v2173 = vpack.c.bf16 %v2090, %v2088
        %v2174 = vpack.c.bf16 %v2091, %v2089
        %v2175 = vpack.c.bf16 %v2094, %v2092
        %v2176 = vpack.c.bf16 %v2095, %v2093
        %v2177 = vpack.c.bf16 %v2098, %v2096
        %v2178 = vpack.c.bf16 %v2099, %v2097
        %v2179 = vpack.c.bf16 %v2102, %v2100
        %v2180 = vpack.c.bf16 %v2103, %v2101
        %v2181 = vpack.c.bf16 %v2106, %v2104
        %v2182 = vpack.c.bf16 %v2107, %v2105
        %v2183 = vpack.c.bf16 %v2110, %v2108
        %v2184 = vpack.c.bf16 %v2111, %v2109
        %v2185 = vpack.c.bf16 %v2114, %v2112
        %v2186 = vpack.c.bf16 %v2115, %v2113
        %v2187 = vpack.c.bf16 %v2118, %v2116
        %v2188 = vpack.c.bf16 %v2119, %v2117
        %2189 = vmatprep.subr.bf16.mxu0 0
        %2190 = vmatpush1.bf16.msra.mxu0 %v2164
        %2191 = vmatprep.subr.bf16.mxu0 0
        %2192 = vmatpush1.bf16.msra.mxu0 %v2163
        %2193 = vmatprep.subr.bf16.mxu0 0
        %2194 = vmatpush1.bf16.msra.mxu0 %v2162
        %2195 = vmatprep.subr.bf16.mxu0 0
        %2196 = vmatpush1.bf16.msra.mxu0 %v2161
        %2197 = vmatprep.subr.bf16.mxu0 0
        %2198 = vmatpush1.bf16.msra.mxu0 %v2160
        %2199 = vmatprep.subr.bf16.mxu0 0
        %2200 = vmatpush1.bf16.msra.mxu0 %v2159
        %2201 = vmatprep.subr.bf16.mxu0 0
        %2202 = vmatpush1.bf16.msra.mxu0 %v2158
        %2203 = vmatprep.subr.bf16.mxu0 0
        %2204 = vmatpush1.bf16.msra.mxu0 %v2157
        %2205 = vmatprep.subr.bf16.mxu0 0
        %2206 = vmatpush2.bf16.msra.mxu0 %v2172
        %2207 = vmatprep.subr.bf16.mxu0 0
        %2208 = vmatpush2.bf16.msra.mxu0 %v2171
        %2209 = vmatprep.subr.bf16.mxu0 0
        %2210 = vmatpush2.bf16.msra.mxu0 %v2170
        %2211 = vmatprep.subr.bf16.mxu0 0
        %2212 = vmatpush2.bf16.msra.mxu0 %v2169
        %2213 = vmatprep.subr.bf16.mxu0 0
        %2214 = vmatpush2.bf16.msra.mxu0 %v2168
        %2215 = vmatprep.subr.bf16.mxu0 0
        %2216 = vmatpush2.bf16.msra.mxu0 %v2167
        %2217 = vmatprep.subr.bf16.mxu0 0
        %2218 = vmatpush2.bf16.msra.mxu0 %v2166
        %2219 = vmatprep.subr.bf16.mxu0 0
        %2220 = vmatpush2.bf16.msra.mxu0 %v2165
        %2221 = vmatprep.mubr.bf16.mxu0 %v2174
        %2222 = vmatmul.mubr.bf16.gmra.mxu0 %v2173
        %v2223 = vpop.f32.mrf.mxu0
        %v2224 = vadd.f32 0.0, %v2223
        %v2225 = vpop.f32.mrf.mxu0
        %v2226 = vpop.f32.mrf.mxu0
        %v2227 = vadd.f32 0.0, %v2226
        %v2228 = vpop.f32.mrf.mxu0
        %2229 = vmatprep.mubr.bf16.mxu0 %v2176
        %2230 = vmatmul.mubr.bf16.gmra.mxu0 %v2175
        %v2231 = vpop.f32.mrf.mxu0
        %v2232 = vadd.f32 0.0, %v2231
        %v2233 = vpop.f32.mrf.mxu0
        %v2234 = vpop.f32.mrf.mxu0
        %v2235 = vadd.f32 0.0, %v2234
        %v2236 = vpop.f32.mrf.mxu0
        %2237 = vmatprep.mubr.bf16.mxu0 %v2178
        %2238 = vmatmul.mubr.bf16.gmra.mxu0 %v2177
        %v2239 = vpop.f32.mrf.mxu0
        %v2240 = vadd.f32 0.0, %v2239
        %v2241 = vpop.f32.mrf.mxu0
        %v2242 = vpop.f32.mrf.mxu0
        %v2243 = vadd.f32 0.0, %v2242
        %v2244 = vpop.f32.mrf.mxu0
        %2245 = vmatprep.mubr.bf16.mxu0 %v2180
        %2246 = vmatmul.mubr.bf16.gmra.mxu0 %v2179
        %v2247 = vpop.f32.mrf.mxu0
        %v2248 = vadd.f32 0.0, %v2247
        %v2249 = vpop.f32.mrf.mxu0
        %v2250 = vpop.f32.mrf.mxu0
        %v2251 = vadd.f32 0.0, %v2250
        %v2252 = vpop.f32.mrf.mxu0
        %2253 = vmatprep.mubr.bf16.mxu0 %v2182
        %2254 = vmatmul.mubr.bf16.gmra.mxu0 %v2181
        %v2255 = vpop.f32.mrf.mxu0
        %v2256 = vadd.f32 0.0, %v2255
        %v2257 = vpop.f32.mrf.mxu0
        %v2258 = vpop.f32.mrf.mxu0
        %v2259 = vadd.f32 0.0, %v2258
        %v2260 = vpop.f32.mrf.mxu0
        %2261 = vmatprep.mubr.bf16.mxu0 %v2184
        %2262 = vmatmul.mubr.bf16.gmra.mxu0 %v2183
        %v2263 = vpop.f32.mrf.mxu0
        %v2264 = vadd.f32 0.0, %v2263
        %v2265 = vpop.f32.mrf.mxu0
        %v2266 = vpop.f32.mrf.mxu0
        %v2267 = vadd.f32 0.0, %v2266
        %v2268 = vpop.f32.mrf.mxu0
        %2269 = vmatprep.mubr.bf16.mxu0 %v2186
        %2270 = vmatmul.mubr.bf16.gmra.mxu0 %v2185
        %v2271 = vpop.f32.mrf.mxu0
        %v2272 = vadd.f32 0.0, %v2271
        %v2273 = vpop.f32.mrf.mxu0
        %v2274 = vpop.f32.mrf.mxu0
        %v2275 = vadd.f32 0.0, %v2274
        %v2276 = vpop.f32.mrf.mxu0
        %2277 = vmatprep.mubr.bf16.mxu0 %v2188
        %2278 = vmatmul.mubr.bf16.gmra.mxu0 %v2187
        %v2279 = vpop.f32.mrf.mxu0
        %v2280 = vadd.f32 0.0, %v2279
        %v2281 = vpop.f32.mrf.mxu0
        %v2282 = vpop.f32.mrf.mxu0
        %v2283 = vadd.f32 0.0, %v2282
        %v2284 = vpop.f32.mrf.mxu0
        %2285 = vdwg.mxu0
        %2286 = vmatprep.subr.bf16.mxu0 0
        %2287 = vmatpush1.bf16.msra.mxu0 %v1615
        %2288 = vmatprep.subr.bf16.mxu0 0
        %2289 = vmatpush1.bf16.msra.mxu0 %v1614
        %2290 = vmatprep.subr.bf16.mxu0 0
        %2291 = vmatpush1.bf16.msra.mxu0 %v1613
        %2292 = vmatprep.subr.bf16.mxu0 0
        %2293 = vmatpush1.bf16.msra.mxu0 %v1612
        %2294 = vmatprep.subr.bf16.mxu0 0
        %2295 = vmatpush1.bf16.msra.mxu0 %v1611
        %2296 = vmatprep.subr.bf16.mxu0 0
        %2297 = vmatpush1.bf16.msra.mxu0 %v1610
        %2298 = vmatprep.subr.bf16.mxu0 0
        %2299 = vmatpush1.bf16.msra.mxu0 %v1609
        %2300 = vmatprep.subr.bf16.mxu0 0
        %2301 = vmatpush1.bf16.msra.mxu0 %v1608
        %2302 = vmatprep.subr.bf16.mxu0 0
        %2303 = vmatpush2.bf16.msra.mxu0 %v1623
        %2304 = vmatprep.subr.bf16.mxu0 0
        %2305 = vmatpush2.bf16.msra.mxu0 %v1622
        %2306 = vmatprep.subr.bf16.mxu0 0
        %2307 = vmatpush2.bf16.msra.mxu0 %v1621
        %2308 = vmatprep.subr.bf16.mxu0 0
        %2309 = vmatpush2.bf16.msra.mxu0 %v1620
        %2310 = vmatprep.subr.bf16.mxu0 0
        %2311 = vmatpush2.bf16.msra.mxu0 %v1619
        %2312 = vmatprep.subr.bf16.mxu0 0
        %2313 = vmatpush2.bf16.msra.mxu0 %v1618
        %2314 = vmatprep.subr.bf16.mxu0 0
        %2315 = vmatpush2.bf16.msra.mxu0 %v1617
        %2316 = vmatprep.subr.bf16.mxu0 0
        %2317 = vmatpush2.bf16.msra.mxu0 %v1616
        %2318 = vmatprep.mubr.bf16.mxu0 %v1625
        %2319 = vmatmul.mubr.bf16.gmra.mxu0 %v1624
        %v2320 = vpop.f32.mrf.mxu0
        %v2321 = vadd.f32 %v2224, %v2320
        %v2322 = vpop.f32.mrf.mxu0
        %v2323 = vpop.f32.mrf.mxu0
        %v2324 = vadd.f32 %v2227, %v2323
        %v2325 = vpop.f32.mrf.mxu0
        %2326 = vmatprep.mubr.bf16.mxu0 %v1627
        %2327 = vmatmul.mubr.bf16.gmra.mxu0 %v1626
        %v2328 = vpop.f32.mrf.mxu0
        %v2329 = vadd.f32 %v2232, %v2328
        %v2330 = vpop.f32.mrf.mxu0
        %v2331 = vpop.f32.mrf.mxu0
        %v2332 = vadd.f32 %v2235, %v2331
        %v2333 = vpop.f32.mrf.mxu0
        %2334 = vmatprep.mubr.bf16.mxu0 %v1629
        %2335 = vmatmul.mubr.bf16.gmra.mxu0 %v1628
        %v2336 = vpop.f32.mrf.mxu0
        %v2337 = vadd.f32 %v2240, %v2336
        %v2338 = vpop.f32.mrf.mxu0
        %v2339 = vpop.f32.mrf.mxu0
        %v2340 = vadd.f32 %v2243, %v2339
        %v2341 = vpop.f32.mrf.mxu0
        %2342 = vmatprep.mubr.bf16.mxu0 %v1631
        %2343 = vmatmul.mubr.bf16.gmra.mxu0 %v1630
        %v2344 = vpop.f32.mrf.mxu0
        %v2345 = vadd.f32 %v2248, %v2344
        %v2346 = vpop.f32.mrf.mxu0
        %v2347 = vpop.f32.mrf.mxu0
        %v2348 = vadd.f32 %v2251, %v2347
        %v2349 = vpop.f32.mrf.mxu0
        %2350 = vmatprep.mubr.bf16.mxu0 %v1633
        %2351 = vmatmul.mubr.bf16.gmra.mxu0 %v1632
        %v2352 = vpop.f32.mrf.mxu0
        %v2353 = vadd.f32 %v2256, %v2352
        %v2354 = vpop.f32.mrf.mxu0
        %v2355 = vpop.f32.mrf.mxu0
        %v2356 = vadd.f32 %v2259, %v2355
        %v2357 = vpop.f32.mrf.mxu0
        %2358 = vmatprep.mubr.bf16.mxu0 %v1635
        %2359 = vmatmul.mubr.bf16.gmra.mxu0 %v1634
        %v2360 = vpop.f32.mrf.mxu0
        %v2361 = vadd.f32 %v2264, %v2360
        %v2362 = vpop.f32.mrf.mxu0
        %v2363 = vpop.f32.mrf.mxu0
        %v2364 = vadd.f32 %v2267, %v2363
        %v2365 = vpop.f32.mrf.mxu0
        %2366 = vmatprep.mubr.bf16.mxu0 %v1637
        %2367 = vmatmul.mubr.bf16.gmra.mxu0 %v1636
        %v2368 = vpop.f32.mrf.mxu0
        %v2369 = vadd.f32 %v2272, %v2368
        %v2370 = vpop.f32.mrf.mxu0
        %v2371 = vpop.f32.mrf.mxu0
        %v2372 = vadd.f32 %v2275, %v2371
        %v2373 = vpop.f32.mrf.mxu0
        %2374 = vmatprep.mubr.bf16.mxu0 %v1639
        %2375 = vmatmul.mubr.bf16.gmra.mxu0 %v1638
        %v2376 = vpop.f32.mrf.mxu0
        %v2377 = vadd.f32 %v2280, %v2376
        %v2378 = vpop.f32.mrf.mxu0
        %v2379 = vpop.f32.mrf.mxu0
        %v2380 = vadd.f32 %v2283, %v2379
        %v2381 = vpop.f32.mrf.mxu0
        %2382 = vdwg.mxu0
        %vm2383 = vcmp.eq.s32.totalorder %v1087, 2
        %v2384 = vsel %vm2383, %v896, 0.0
        %v2385 = vsel %vm2383, %v901, 0.0
        %v2386 = vsel %vm2383, %v906, 0.0
        %v2387 = vsel %vm2383, %v911, 0.0
        %v2388 = vsel %vm2383, %v916, 0.0
        %v2389 = vsel %vm2383, %v921, 0.0
        %v2390 = vsel %vm2383, %v926, 0.0
        %v2391 = vsel %vm2383, %v931, 0.0
        %v2392 = vsel %vm2383, %v936, 0.0
        %v2393 = vsel %vm2383, %v941, 0.0
        %v2394 = vsel %vm2383, %v946, 0.0
        %v2395 = vsel %vm2383, %v951, 0.0
        %v2396 = vsel %vm2383, %v956, 0.0
        %v2397 = vsel %vm2383, %v961, 0.0
        %v2398 = vsel %vm2383, %v966, 0.0
        %v2399 = vsel %vm2383, %v971, 0.0
        %v2400 = vsel %vm1107, %v2384, 0.0
        %2401 = vadd.xlane.f32.xlu0 %v2400
        %v2402 = vpop.xlane.xlu0 %2401
        %v2403 = vsel %vm1107, %v2385, 0.0
        %2404 = vadd.xlane.f32.xlu0 %v2403
        %v2405 = vpop.xlane.xlu0 %2404
        %v2406 = vsel %vm1107, %v2386, 0.0
        %2407 = vadd.xlane.f32.xlu0 %v2406
        %v2408 = vpop.xlane.xlu0 %2407
        %v2409 = vsel %vm1107, %v2387, 0.0
        %2410 = vadd.xlane.f32.xlu0 %v2409
        %v2411 = vpop.xlane.xlu0 %2410
        %v2412 = vsel %vm1107, %v2388, 0.0
        %2413 = vadd.xlane.f32.xlu0 %v2412
        %v2414 = vpop.xlane.xlu0 %2413
        %v2415 = vsel %vm1107, %v2389, 0.0
        %2416 = vadd.xlane.f32.xlu0 %v2415
        %v2417 = vpop.xlane.xlu0 %2416
        %v2418 = vsel %vm1107, %v2390, 0.0
        %2419 = vadd.xlane.f32.xlu0 %v2418
        %v2420 = vpop.xlane.xlu0 %2419
        %v2421 = vsel %vm1107, %v2391, 0.0
        %2422 = vadd.xlane.f32.xlu0 %v2421
        %v2423 = vpop.xlane.xlu0 %2422
        %v2424 = vsel %vm1107, %v2392, 0.0
        %2425 = vadd.xlane.f32.xlu0 %v2424
        %v2426 = vpop.xlane.xlu0 %2425
        %v2427 = vsel %vm1107, %v2393, 0.0
        %2428 = vadd.xlane.f32.xlu0 %v2427
        %v2429 = vpop.xlane.xlu0 %2428
        %v2430 = vsel %vm1107, %v2394, 0.0
        %2431 = vadd.xlane.f32.xlu0 %v2430
        %v2432 = vpop.xlane.xlu0 %2431
        %v2433 = vsel %vm1107, %v2395, 0.0
        %2434 = vadd.xlane.f32.xlu0 %v2433
        %v2435 = vpop.xlane.xlu0 %2434
        %v2436 = vsel %vm1107, %v2396, 0.0
        %2437 = vadd.xlane.f32.xlu0 %v2436
        %v2438 = vpop.xlane.xlu0 %2437
        %v2439 = vsel %vm1107, %v2397, 0.0
        %2440 = vadd.xlane.f32.xlu0 %v2439
        %v2441 = vpop.xlane.xlu0 %2440
        %v2442 = vsel %vm1107, %v2398, 0.0
        %2443 = vadd.xlane.f32.xlu0 %v2442
        %v2444 = vpop.xlane.xlu0 %2443
        %v2445 = vsel %vm1107, %v2399, 0.0
        %2446 = vadd.xlane.f32.xlu0 %v2445
        %v2447 = vpop.xlane.xlu0 %2446
        %vm2448 = vcmp.eq.s32.totalorder %v1089, 2
        %v2449 = vsel %vm2448, %v793, 0.0
        %v2450 = vsel %vm2448, %v795, 0.0
        %v2451 = vrot.slane %v2449, 4
        %v2452 = vadd.f32 %v2449, %v2451
        %v2453 = vrot.slane %v2452, 2
        %v2454 = vadd.f32 %v2452, %v2453
        %v2455 = vrot.slane %v2454, 1
        %v2456 = vadd.f32 %v2454, %v2455
        %v2457 = vrot.slane %v2450, 4
        %v2458 = vadd.f32 %v2450, %v2457
        %v2459 = vrot.slane %v2458, 2
        %v2460 = vadd.f32 %v2458, %v2459
        %v2461 = vrot.slane %v2460, 1
        %v2462 = vadd.f32 %v2460, %v2461
        %v2463 = vadd.f32 %v2402, %v2456
        %v2464 = vadd.f32 %v2402, %v2462
        %v2465 = vadd.f32 %v2405, %v2456
        %v2466 = vadd.f32 %v2405, %v2462
        %v2467 = vadd.f32 %v2408, %v2456
        %v2468 = vadd.f32 %v2408, %v2462
        %v2469 = vadd.f32 %v2411, %v2456
        %v2470 = vadd.f32 %v2411, %v2462
        %v2471 = vadd.f32 %v2414, %v2456
        %v2472 = vadd.f32 %v2414, %v2462
        %v2473 = vadd.f32 %v2417, %v2456
        %v2474 = vadd.f32 %v2417, %v2462
        %v2475 = vadd.f32 %v2420, %v2456
        %v2476 = vadd.f32 %v2420, %v2462
        %v2477 = vadd.f32 %v2423, %v2456
        %v2478 = vadd.f32 %v2423, %v2462
        %v2479 = vadd.f32 %v2426, %v2456
        %v2480 = vadd.f32 %v2426, %v2462
        %v2481 = vadd.f32 %v2429, %v2456
        %v2482 = vadd.f32 %v2429, %v2462
        %v2483 = vadd.f32 %v2432, %v2456
        %v2484 = vadd.f32 %v2432, %v2462
        %v2485 = vadd.f32 %v2435, %v2456
        %v2486 = vadd.f32 %v2435, %v2462
        %v2487 = vadd.f32 %v2438, %v2456
        %v2488 = vadd.f32 %v2438, %v2462
        %v2489 = vadd.f32 %v2441, %v2456
        %v2490 = vadd.f32 %v2441, %v2462
        %v2491 = vadd.f32 %v2444, %v2456
        %v2492 = vadd.f32 %v2444, %v2462
        %v2493 = vadd.f32 %v2447, %v2456
        %v2494 = vadd.f32 %v2447, %v2462
        %vm2495 = vcmp.ge.f32.partialorder %v2463, 0.0
        %vm2496 = vcmp.ge.f32.partialorder %v2464, 0.0
        %vm2497 = vcmp.ge.f32.partialorder %v2465, 0.0
        %vm2498 = vcmp.ge.f32.partialorder %v2466, 0.0
        %vm2499 = vcmp.ge.f32.partialorder %v2467, 0.0
        %vm2500 = vcmp.ge.f32.partialorder %v2468, 0.0
        %vm2501 = vcmp.ge.f32.partialorder %v2469, 0.0
        %vm2502 = vcmp.ge.f32.partialorder %v2470, 0.0
        %vm2503 = vcmp.ge.f32.partialorder %v2471, 0.0
        %vm2504 = vcmp.ge.f32.partialorder %v2472, 0.0
        %vm2505 = vcmp.ge.f32.partialorder %v2473, 0.0
        %vm2506 = vcmp.ge.f32.partialorder %v2474, 0.0
        %vm2507 = vcmp.ge.f32.partialorder %v2475, 0.0
        %vm2508 = vcmp.ge.f32.partialorder %v2476, 0.0
        %vm2509 = vcmp.ge.f32.partialorder %v2477, 0.0
        %vm2510 = vcmp.ge.f32.partialorder %v2478, 0.0
        %vm2511 = vcmp.ge.f32.partialorder %v2479, 0.0
        %vm2512 = vcmp.ge.f32.partialorder %v2480, 0.0
        %vm2513 = vcmp.ge.f32.partialorder %v2481, 0.0
        %vm2514 = vcmp.ge.f32.partialorder %v2482, 0.0
        %vm2515 = vcmp.ge.f32.partialorder %v2483, 0.0
        %vm2516 = vcmp.ge.f32.partialorder %v2484, 0.0
        %vm2517 = vcmp.ge.f32.partialorder %v2485, 0.0
        %vm2518 = vcmp.ge.f32.partialorder %v2486, 0.0
        %vm2519 = vcmp.ge.f32.partialorder %v2487, 0.0
        %vm2520 = vcmp.ge.f32.partialorder %v2488, 0.0
        %vm2521 = vcmp.ge.f32.partialorder %v2489, 0.0
        %vm2522 = vcmp.ge.f32.partialorder %v2490, 0.0
        %vm2523 = vcmp.ge.f32.partialorder %v2491, 0.0
        %vm2524 = vcmp.ge.f32.partialorder %v2492, 0.0
        %vm2525 = vcmp.ge.f32.partialorder %v2493, 0.0
        %vm2526 = vcmp.ge.f32.partialorder %v2494, 0.0
        %v2527 = vmul.f32 %v2463, 0.2
        %v2528 = vmul.f32 %v2464, 0.2
        %v2529 = vmul.f32 %v2465, 0.2
        %v2530 = vmul.f32 %v2466, 0.2
        %v2531 = vmul.f32 %v2467, 0.2
        %v2532 = vmul.f32 %v2468, 0.2
        %v2533 = vmul.f32 %v2469, 0.2
        %v2534 = vmul.f32 %v2470, 0.2
        %v2535 = vmul.f32 %v2471, 0.2
        %v2536 = vmul.f32 %v2472, 0.2
        %v2537 = vmul.f32 %v2473, 0.2
        %v2538 = vmul.f32 %v2474, 0.2
        %v2539 = vmul.f32 %v2475, 0.2
        %v2540 = vmul.f32 %v2476, 0.2
        %v2541 = vmul.f32 %v2477, 0.2
        %v2542 = vmul.f32 %v2478, 0.2
        %v2543 = vmul.f32 %v2479, 0.2
        %v2544 = vmul.f32 %v2480, 0.2
        %v2545 = vmul.f32 %v2481, 0.2
        %v2546 = vmul.f32 %v2482, 0.2
        %v2547 = vmul.f32 %v2483, 0.2
        %v2548 = vmul.f32 %v2484, 0.2
        %v2549 = vmul.f32 %v2485, 0.2
        %v2550 = vmul.f32 %v2486, 0.2
        %v2551 = vmul.f32 %v2487, 0.2
        %v2552 = vmul.f32 %v2488, 0.2
        %v2553 = vmul.f32 %v2489, 0.2
        %v2554 = vmul.f32 %v2490, 0.2
        %v2555 = vmul.f32 %v2491, 0.2
        %v2556 = vmul.f32 %v2492, 0.2
        %v2557 = vmul.f32 %v2493, 0.2
        %v2558 = vmul.f32 %v2494, 0.2
        %v2559 = vsel %vm2495, %v2463, %v2527
        %v2560 = vsel %vm2496, %v2464, %v2528
        %v2561 = vsel %vm2497, %v2465, %v2529
        %v2562 = vsel %vm2498, %v2466, %v2530
        %v2563 = vsel %vm2499, %v2467, %v2531
        %v2564 = vsel %vm2500, %v2468, %v2532
        %v2565 = vsel %vm2501, %v2469, %v2533
        %v2566 = vsel %vm2502, %v2470, %v2534
        %v2567 = vsel %vm2503, %v2471, %v2535
        %v2568 = vsel %vm2504, %v2472, %v2536
        %v2569 = vsel %vm2505, %v2473, %v2537
        %v2570 = vsel %vm2506, %v2474, %v2538
        %v2571 = vsel %vm2507, %v2475, %v2539
        %v2572 = vsel %vm2508, %v2476, %v2540
        %v2573 = vsel %vm2509, %v2477, %v2541
        %v2574 = vsel %vm2510, %v2478, %v2542
        %v2575 = vsel %vm2511, %v2479, %v2543
        %v2576 = vsel %vm2512, %v2480, %v2544
        %v2577 = vsel %vm2513, %v2481, %v2545
        %v2578 = vsel %vm2514, %v2482, %v2546
        %v2579 = vsel %vm2515, %v2483, %v2547
        %v2580 = vsel %vm2516, %v2484, %v2548
        %v2581 = vsel %vm2517, %v2485, %v2549
        %v2582 = vsel %vm2518, %v2486, %v2550
        %v2583 = vsel %vm2519, %v2487, %v2551
        %v2584 = vsel %vm2520, %v2488, %v2552
        %v2585 = vsel %vm2521, %v2489, %v2553
        %v2586 = vsel %vm2522, %v2490, %v2554
        %v2587 = vsel %vm2523, %v2491, %v2555
        %v2588 = vsel %vm2524, %v2492, %v2556
        %v2589 = vsel %vm2525, %v2493, %v2557
        %v2590 = vsel %vm2526, %v2494, %v2558
        %v2591 = vadd.f32 %v2559, %v1054
        %v2592 = vadd.f32 %v2560, %v1055
        %v2593 = vadd.f32 %v2561, %v1056
        %v2594 = vadd.f32 %v2562, %v1057
        %v2595 = vadd.f32 %v2563, %v1058
        %v2596 = vadd.f32 %v2564, %v1059
        %v2597 = vadd.f32 %v2565, %v1060
        %v2598 = vadd.f32 %v2566, %v1061
        %v2599 = vadd.f32 %v2567, %v1062
        %v2600 = vadd.f32 %v2568, %v1063
        %v2601 = vadd.f32 %v2569, %v1064
        %v2602 = vadd.f32 %v2570, %v1065
        %v2603 = vadd.f32 %v2571, %v1066
        %v2604 = vadd.f32 %v2572, %v1067
        %v2605 = vadd.f32 %v2573, %v1068
        %v2606 = vadd.f32 %v2574, %v1069
        %v2607 = vadd.f32 %v2575, %v1070
        %v2608 = vadd.f32 %v2576, %v1071
        %v2609 = vadd.f32 %v2577, %v1072
        %v2610 = vadd.f32 %v2578, %v1073
        %v2611 = vadd.f32 %v2579, %v1074
        %v2612 = vadd.f32 %v2580, %v1075
        %v2613 = vadd.f32 %v2581, %v1076
        %v2614 = vadd.f32 %v2582, %v1077
        %v2615 = vadd.f32 %v2583, %v1078
        %v2616 = vadd.f32 %v2584, %v1079
        %v2617 = vadd.f32 %v2585, %v1080
        %v2618 = vadd.f32 %v2586, %v1081
        %v2619 = vadd.f32 %v2587, %v1082
        %v2620 = vadd.f32 %v2588, %v1083
        %v2621 = vadd.f32 %v2589, %v1084
        %v2622 = vadd.f32 %v2590, %v1085
        %v2623 = vmax.f32 %v2591, %v2592
        %2624 = vmax.xlane.f32.xlu0 %v2623
        %v2625 = vpop.xlane.xlu0 %2624
        %v2626 = vmax.f32 %v2593, %v2594
        %2627 = vmax.xlane.f32.xlu0 %v2626
        %v2628 = vpop.xlane.xlu0 %2627
        %v2629 = vmax.f32 %v2595, %v2596
        %2630 = vmax.xlane.f32.xlu0 %v2629
        %v2631 = vpop.xlane.xlu0 %2630
        %v2632 = vmax.f32 %v2597, %v2598
        %2633 = vmax.xlane.f32.xlu0 %v2632
        %v2634 = vpop.xlane.xlu0 %2633
        %v2635 = vmax.f32 %v2599, %v2600
        %2636 = vmax.xlane.f32.xlu0 %v2635
        %v2637 = vpop.xlane.xlu0 %2636
        %v2638 = vmax.f32 %v2601, %v2602
        %2639 = vmax.xlane.f32.xlu0 %v2638
        %v2640 = vpop.xlane.xlu0 %2639
        %v2641 = vmax.f32 %v2603, %v2604
        %2642 = vmax.xlane.f32.xlu0 %v2641
        %v2643 = vpop.xlane.xlu0 %2642
        %v2644 = vmax.f32 %v2605, %v2606
        %2645 = vmax.xlane.f32.xlu0 %v2644
        %v2646 = vpop.xlane.xlu0 %2645
        %v2647 = vmax.f32 %v2607, %v2608
        %2648 = vmax.xlane.f32.xlu0 %v2647
        %v2649 = vpop.xlane.xlu0 %2648
        %v2650 = vmax.f32 %v2609, %v2610
        %2651 = vmax.xlane.f32.xlu0 %v2650
        %v2652 = vpop.xlane.xlu0 %2651
        %v2653 = vmax.f32 %v2611, %v2612
        %2654 = vmax.xlane.f32.xlu0 %v2653
        %v2655 = vpop.xlane.xlu0 %2654
        %v2656 = vmax.f32 %v2613, %v2614
        %2657 = vmax.xlane.f32.xlu0 %v2656
        %v2658 = vpop.xlane.xlu0 %2657
        %v2659 = vmax.f32 %v2615, %v2616
        %2660 = vmax.xlane.f32.xlu0 %v2659
        %v2661 = vpop.xlane.xlu0 %2660
        %v2662 = vmax.f32 %v2617, %v2618
        %2663 = vmax.xlane.f32.xlu0 %v2662
        %v2664 = vpop.xlane.xlu0 %2663
        %v2665 = vmax.f32 %v2619, %v2620
        %2666 = vmax.xlane.f32.xlu0 %v2665
        %v2667 = vpop.xlane.xlu0 %2666
        %v2668 = vmax.f32 %v2621, %v2622
        %2669 = vmax.xlane.f32.xlu0 %v2668
        %v2670 = vpop.xlane.xlu0 %2669
        %v2671 = vsub.f32 %v2591, %v2625
        %v2672 = vsub.f32 %v2592, %v2625
        %v2673 = vsub.f32 %v2593, %v2628
        %v2674 = vsub.f32 %v2594, %v2628
        %v2675 = vsub.f32 %v2595, %v2631
        %v2676 = vsub.f32 %v2596, %v2631
        %v2677 = vsub.f32 %v2597, %v2634
        %v2678 = vsub.f32 %v2598, %v2634
        %v2679 = vsub.f32 %v2599, %v2637
        %v2680 = vsub.f32 %v2600, %v2637
        %v2681 = vsub.f32 %v2601, %v2640
        %v2682 = vsub.f32 %v2602, %v2640
        %v2683 = vsub.f32 %v2603, %v2643
        %v2684 = vsub.f32 %v2604, %v2643
        %v2685 = vsub.f32 %v2605, %v2646
        %v2686 = vsub.f32 %v2606, %v2646
        %v2687 = vsub.f32 %v2607, %v2649
        %v2688 = vsub.f32 %v2608, %v2649
        %v2689 = vsub.f32 %v2609, %v2652
        %v2690 = vsub.f32 %v2610, %v2652
        %v2691 = vsub.f32 %v2611, %v2655
        %v2692 = vsub.f32 %v2612, %v2655
        %v2693 = vsub.f32 %v2613, %v2658
        %v2694 = vsub.f32 %v2614, %v2658
        %v2695 = vsub.f32 %v2615, %v2661
        %v2696 = vsub.f32 %v2616, %v2661
        %v2697 = vsub.f32 %v2617, %v2664
        %v2698 = vsub.f32 %v2618, %v2664
        %v2699 = vsub.f32 %v2619, %v2667
        %v2700 = vsub.f32 %v2620, %v2667
        %v2701 = vsub.f32 %v2621, %v2670
        %v2702 = vsub.f32 %v2622, %v2670
        %v2703 = vmul.f32 %v2671, 1.442695
        %v2704 = vpow.pop %v2703
        %v2705 = vmul.f32 %v2672, 1.442695
        %v2706 = vpow.pop %v2705
        %v2707 = vmul.f32 %v2673, 1.442695
        %v2708 = vpow.pop %v2707
        %v2709 = vmul.f32 %v2674, 1.442695
        %v2710 = vpow.pop %v2709
        %v2711 = vmul.f32 %v2675, 1.442695
        %v2712 = vpow.pop %v2711
        %v2713 = vmul.f32 %v2676, 1.442695
        %v2714 = vpow.pop %v2713
        %v2715 = vmul.f32 %v2677, 1.442695
        %v2716 = vpow.pop %v2715
        %v2717 = vmul.f32 %v2678, 1.442695
        %v2718 = vpow.pop %v2717
        %v2719 = vmul.f32 %v2679, 1.442695
        %v2720 = vpow.pop %v2719
        %v2721 = vmul.f32 %v2680, 1.442695
        %v2722 = vpow.pop %v2721
        %v2723 = vmul.f32 %v2681, 1.442695
        %v2724 = vpow.pop %v2723
        %v2725 = vmul.f32 %v2682, 1.442695
        %v2726 = vpow.pop %v2725
        %v2727 = vmul.f32 %v2683, 1.442695
        %v2728 = vpow.pop %v2727
        %v2729 = vmul.f32 %v2684, 1.442695
        %v2730 = vpow.pop %v2729
        %v2731 = vmul.f32 %v2685, 1.442695
        %v2732 = vpow.pop %v2731
        %v2733 = vmul.f32 %v2686, 1.442695
        %v2734 = vpow.pop %v2733
        %v2735 = vmul.f32 %v2687, 1.442695
        %v2736 = vpow.pop %v2735
        %v2737 = vmul.f32 %v2688, 1.442695
        %v2738 = vpow.pop %v2737
        %v2739 = vmul.f32 %v2689, 1.442695
        %v2740 = vpow.pop %v2739
        %v2741 = vmul.f32 %v2690, 1.442695
        %v2742 = vpow.pop %v2741
        %v2743 = vmul.f32 %v2691, 1.442695
        %v2744 = vpow.pop %v2743
        %v2745 = vmul.f32 %v2692, 1.442695
        %v2746 = vpow.pop %v2745
        %v2747 = vmul.f32 %v2693, 1.442695
        %v2748 = vpow.pop %v2747
        %v2749 = vmul.f32 %v2694, 1.442695
        %v2750 = vpow.pop %v2749
        %v2751 = vmul.f32 %v2695, 1.442695
        %v2752 = vpow.pop %v2751
        %v2753 = vmul.f32 %v2696, 1.442695
        %v2754 = vpow.pop %v2753
        %v2755 = vmul.f32 %v2697, 1.442695
        %v2756 = vpow.pop %v2755
        %v2757 = vmul.f32 %v2698, 1.442695
        %v2758 = vpow.pop %v2757
        %v2759 = vmul.f32 %v2699, 1.442695
        %v2760 = vpow.pop %v2759
        %v2761 = vmul.f32 %v2700, 1.442695
        %v2762 = vpow.pop %v2761
        %v2763 = vmul.f32 %v2701, 1.442695
        %v2764 = vpow.pop %v2763
        %v2765 = vmul.f32 %v2702, 1.442695
        %v2766 = vpow.pop %v2765
        %v2767 = vadd.f32 %v2704, %v2706
        %2768 = vadd.xlane.f32.xlu0 %v2767
        %v2769 = vpop.xlane.xlu0 %2768
        %v2770 = vadd.f32 %v2708, %v2710
        %2771 = vadd.xlane.f32.xlu0 %v2770
        %v2772 = vpop.xlane.xlu0 %2771
        %v2773 = vadd.f32 %v2712, %v2714
        %2774 = vadd.xlane.f32.xlu0 %v2773
        %v2775 = vpop.xlane.xlu0 %2774
        %v2776 = vadd.f32 %v2716, %v2718
        %2777 = vadd.xlane.f32.xlu0 %v2776
        %v2778 = vpop.xlane.xlu0 %2777
        %v2779 = vadd.f32 %v2720, %v2722
        %2780 = vadd.xlane.f32.xlu0 %v2779
        %v2781 = vpop.xlane.xlu0 %2780
        %v2782 = vadd.f32 %v2724, %v2726
        %2783 = vadd.xlane.f32.xlu0 %v2782
        %v2784 = vpop.xlane.xlu0 %2783
        %v2785 = vadd.f32 %v2728, %v2730
        %2786 = vadd.xlane.f32.xlu0 %v2785
        %v2787 = vpop.xlane.xlu0 %2786
        %v2788 = vadd.f32 %v2732, %v2734
        %2789 = vadd.xlane.f32.xlu0 %v2788
        %v2790 = vpop.xlane.xlu0 %2789
        %v2791 = vadd.f32 %v2736, %v2738
        %2792 = vadd.xlane.f32.xlu0 %v2791
        %v2793 = vpop.xlane.xlu0 %2792
        %v2794 = vadd.f32 %v2740, %v2742
        %2795 = vadd.xlane.f32.xlu0 %v2794
        %v2796 = vpop.xlane.xlu0 %2795
        %v2797 = vadd.f32 %v2744, %v2746
        %2798 = vadd.xlane.f32.xlu0 %v2797
        %v2799 = vpop.xlane.xlu0 %2798
        %v2800 = vadd.f32 %v2748, %v2750
        %2801 = vadd.xlane.f32.xlu0 %v2800
        %v2802 = vpop.xlane.xlu0 %2801
        %v2803 = vadd.f32 %v2752, %v2754
        %2804 = vadd.xlane.f32.xlu0 %v2803
        %v2805 = vpop.xlane.xlu0 %2804
        %v2806 = vadd.f32 %v2756, %v2758
        %2807 = vadd.xlane.f32.xlu0 %v2806
        %v2808 = vpop.xlane.xlu0 %2807
        %v2809 = vadd.f32 %v2760, %v2762
        %2810 = vadd.xlane.f32.xlu0 %v2809
        %v2811 = vpop.xlane.xlu0 %2810
        %v2812 = vadd.f32 %v2764, %v2766
        %2813 = vadd.xlane.f32.xlu0 %v2812
        %v2814 = vpop.xlane.xlu0 %2813
        %v2815 = vrcp.pop %v2769
        %v2816 = vrcp.pop %v2772
        %v2817 = vrcp.pop %v2775
        %v2818 = vrcp.pop %v2778
        %v2819 = vrcp.pop %v2781
        %v2820 = vrcp.pop %v2784
        %v2821 = vrcp.pop %v2787
        %v2822 = vrcp.pop %v2790
        %v2823 = vrcp.pop %v2793
        %v2824 = vrcp.pop %v2796
        %v2825 = vrcp.pop %v2799
        %v2826 = vrcp.pop %v2802
        %v2827 = vrcp.pop %v2805
        %v2828 = vrcp.pop %v2808
        %v2829 = vrcp.pop %v2811
        %v2830 = vrcp.pop %v2814
        %v2831 = vmul.f32 %v2704, %v2815
        %v2832 = vmul.f32 %v2706, %v2815
        %v2833 = vmul.f32 %v2708, %v2816
        %v2834 = vmul.f32 %v2710, %v2816
        %v2835 = vmul.f32 %v2712, %v2817
        %v2836 = vmul.f32 %v2714, %v2817
        %v2837 = vmul.f32 %v2716, %v2818
        %v2838 = vmul.f32 %v2718, %v2818
        %v2839 = vmul.f32 %v2720, %v2819
        %v2840 = vmul.f32 %v2722, %v2819
        %v2841 = vmul.f32 %v2724, %v2820
        %v2842 = vmul.f32 %v2726, %v2820
        %v2843 = vmul.f32 %v2728, %v2821
        %v2844 = vmul.f32 %v2730, %v2821
        %v2845 = vmul.f32 %v2732, %v2822
        %v2846 = vmul.f32 %v2734, %v2822
        %v2847 = vmul.f32 %v2736, %v2823
        %v2848 = vmul.f32 %v2738, %v2823
        %v2849 = vmul.f32 %v2740, %v2824
        %v2850 = vmul.f32 %v2742, %v2824
        %v2851 = vmul.f32 %v2744, %v2825
        %v2852 = vmul.f32 %v2746, %v2825
        %v2853 = vmul.f32 %v2748, %v2826
        %v2854 = vmul.f32 %v2750, %v2826
        %v2855 = vmul.f32 %v2752, %v2827
        %v2856 = vmul.f32 %v2754, %v2827
        %v2857 = vmul.f32 %v2756, %v2828
        %v2858 = vmul.f32 %v2758, %v2828
        %v2859 = vmul.f32 %v2760, %v2829
        %v2860 = vmul.f32 %v2762, %v2829
        %v2861 = vmul.f32 %v2764, %v2830
        %v2862 = vmul.f32 %v2766, %v2830
        %vm2863 = vcmp.ge.s32.totalorder %v1087, 8
        %vm2864 = vcmp.lt.s32.totalorder %v1087, 12
        %vm2865 = vmand %vm2863, %vm2864
        %v2866 = vsel %vm2865, 1, 0
        %vm2867 = vcmp.eq.s32.totalorder %v2866, 1
        %v2868 = vsel %vm2867, %v535, 0.0
        %v2869 = vsel %vm2867, %v540, 0.0
        %v2870 = vsel %vm2867, %v545, 0.0
        %v2871 = vsel %vm2867, %v550, 0.0
        %v2872 = vsel %vm2867, %v555, 0.0
        %v2873 = vsel %vm2867, %v560, 0.0
        %v2874 = vsel %vm2867, %v565, 0.0
        %v2875 = vsel %vm2867, %v570, 0.0
        %v2876 = vsel %vm2867, %v575, 0.0
        %v2877 = vsel %vm2867, %v580, 0.0
        %v2878 = vsel %vm2867, %v585, 0.0
        %v2879 = vsel %vm2867, %v590, 0.0
        %v2880 = vsel %vm2867, %v595, 0.0
        %v2881 = vsel %vm2867, %v600, 0.0
        %v2882 = vsel %vm2867, %v605, 0.0
        %v2883 = vsel %vm2867, %v610, 0.0
        %v2884 = vsel %vm2867, %v615, 0.0
        %v2885 = vsel %vm2867, %v620, 0.0
        %v2886 = vsel %vm2867, %v625, 0.0
        %v2887 = vsel %vm2867, %v630, 0.0
        %v2888 = vsel %vm2867, %v635, 0.0
        %v2889 = vsel %vm2867, %v640, 0.0
        %v2890 = vsel %vm2867, %v645, 0.0
        %v2891 = vsel %vm2867, %v650, 0.0
        %v2892 = vsel %vm2867, %v655, 0.0
        %v2893 = vsel %vm2867, %v660, 0.0
        %v2894 = vsel %vm2867, %v665, 0.0
        %v2895 = vsel %vm2867, %v670, 0.0
        %v2896 = vsel %vm2867, %v675, 0.0
        %v2897 = vsel %vm2867, %v680, 0.0
        %v2898 = vsel %vm2867, %v685, 0.0
        %v2899 = vsel %vm2867, %v690, 0.0
        %v2900 = vpack.c.bf16 %v2869, %v2868
        %v2901 = vpack.c.bf16 %v2871, %v2870
        %v2902 = vpack.c.bf16 %v2873, %v2872
        %v2903 = vpack.c.bf16 %v2875, %v2874
        %v2904 = vpack.c.bf16 %v2877, %v2876
        %v2905 = vpack.c.bf16 %v2879, %v2878
        %v2906 = vpack.c.bf16 %v2881, %v2880
        %v2907 = vpack.c.bf16 %v2883, %v2882
        %v2908 = vpack.c.bf16 %v2885, %v2884
        %v2909 = vpack.c.bf16 %v2887, %v2886
        %v2910 = vpack.c.bf16 %v2889, %v2888
        %v2911 = vpack.c.bf16 %v2891, %v2890
        %v2912 = vpack.c.bf16 %v2893, %v2892
        %v2913 = vpack.c.bf16 %v2895, %v2894
        %v2914 = vpack.c.bf16 %v2897, %v2896
        %v2915 = vpack.c.bf16 %v2899, %v2898
        %v2916 = vpack.c.bf16 %v2833, %v2831
        %v2917 = vpack.c.bf16 %v2834, %v2832
        %v2918 = vpack.c.bf16 %v2837, %v2835
        %v2919 = vpack.c.bf16 %v2838, %v2836
        %v2920 = vpack.c.bf16 %v2841, %v2839
        %v2921 = vpack.c.bf16 %v2842, %v2840
        %v2922 = vpack.c.bf16 %v2845, %v2843
        %v2923 = vpack.c.bf16 %v2846, %v2844
        %v2924 = vpack.c.bf16 %v2849, %v2847
        %v2925 = vpack.c.bf16 %v2850, %v2848
        %v2926 = vpack.c.bf16 %v2853, %v2851
        %v2927 = vpack.c.bf16 %v2854, %v2852
        %v2928 = vpack.c.bf16 %v2857, %v2855
        %v2929 = vpack.c.bf16 %v2858, %v2856
        %v2930 = vpack.c.bf16 %v2861, %v2859
        %v2931 = vpack.c.bf16 %v2862, %v2860
        %2932 = vmatprep.subr.bf16.mxu0 0
        %2933 = vmatpush1.bf16.msra.mxu0 %v2907
        %2934 = vmatprep.subr.bf16.mxu0 0
        %2935 = vmatpush1.bf16.msra.mxu0 %v2906
        %2936 = vmatprep.subr.bf16.mxu0 0
        %2937 = vmatpush1.bf16.msra.mxu0 %v2905
        %2938 = vmatprep.subr.bf16.mxu0 0
        %2939 = vmatpush1.bf16.msra.mxu0 %v2904
        %2940 = vmatprep.subr.bf16.mxu0 0
        %2941 = vmatpush1.bf16.msra.mxu0 %v2903
        %2942 = vmatprep.subr.bf16.mxu0 0
        %2943 = vmatpush1.bf16.msra.mxu0 %v2902
        %2944 = vmatprep.subr.bf16.mxu0 0
        %2945 = vmatpush1.bf16.msra.mxu0 %v2901
        %2946 = vmatprep.subr.bf16.mxu0 0
        %2947 = vmatpush1.bf16.msra.mxu0 %v2900
        %2948 = vmatprep.subr.bf16.mxu0 0
        %2949 = vmatpush2.bf16.msra.mxu0 %v2915
        %2950 = vmatprep.subr.bf16.mxu0 0
        %2951 = vmatpush2.bf16.msra.mxu0 %v2914
        %2952 = vmatprep.subr.bf16.mxu0 0
        %2953 = vmatpush2.bf16.msra.mxu0 %v2913
        %2954 = vmatprep.subr.bf16.mxu0 0
        %2955 = vmatpush2.bf16.msra.mxu0 %v2912
        %2956 = vmatprep.subr.bf16.mxu0 0
        %2957 = vmatpush2.bf16.msra.mxu0 %v2911
        %2958 = vmatprep.subr.bf16.mxu0 0
        %2959 = vmatpush2.bf16.msra.mxu0 %v2910
        %2960 = vmatprep.subr.bf16.mxu0 0
        %2961 = vmatpush2.bf16.msra.mxu0 %v2909
        %2962 = vmatprep.subr.bf16.mxu0 0
        %2963 = vmatpush2.bf16.msra.mxu0 %v2908
        %2964 = vmatprep.mubr.bf16.mxu0 %v2917
        %2965 = vmatmul.mubr.bf16.gmra.mxu0 %v2916
        %v2966 = vpop.f32.mrf.mxu0
        %v2967 = vadd.f32 0.0, %v2966
        %v2968 = vpop.f32.mrf.mxu0
        %v2969 = vpop.f32.mrf.mxu0
        %v2970 = vadd.f32 0.0, %v2969
        %v2971 = vpop.f32.mrf.mxu0
        %2972 = vmatprep.mubr.bf16.mxu0 %v2919
        %2973 = vmatmul.mubr.bf16.gmra.mxu0 %v2918
        %v2974 = vpop.f32.mrf.mxu0
        %v2975 = vadd.f32 0.0, %v2974
        %v2976 = vpop.f32.mrf.mxu0
        %v2977 = vpop.f32.mrf.mxu0
        %v2978 = vadd.f32 0.0, %v2977
        %v2979 = vpop.f32.mrf.mxu0
        %2980 = vmatprep.mubr.bf16.mxu0 %v2921
        %2981 = vmatmul.mubr.bf16.gmra.mxu0 %v2920
        %v2982 = vpop.f32.mrf.mxu0
        %v2983 = vadd.f32 0.0, %v2982
        %v2984 = vpop.f32.mrf.mxu0
        %v2985 = vpop.f32.mrf.mxu0
        %v2986 = vadd.f32 0.0, %v2985
        %v2987 = vpop.f32.mrf.mxu0
        %2988 = vmatprep.mubr.bf16.mxu0 %v2923
        %2989 = vmatmul.mubr.bf16.gmra.mxu0 %v2922
        %v2990 = vpop.f32.mrf.mxu0
        %v2991 = vadd.f32 0.0, %v2990
        %v2992 = vpop.f32.mrf.mxu0
        %v2993 = vpop.f32.mrf.mxu0
        %v2994 = vadd.f32 0.0, %v2993
        %v2995 = vpop.f32.mrf.mxu0
        %2996 = vmatprep.mubr.bf16.mxu0 %v2925
        %2997 = vmatmul.mubr.bf16.gmra.mxu0 %v2924
        %v2998 = vpop.f32.mrf.mxu0
        %v2999 = vadd.f32 0.0, %v2998
        %v3000 = vpop.f32.mrf.mxu0
        %v3001 = vpop.f32.mrf.mxu0
        %v3002 = vadd.f32 0.0, %v3001
        %v3003 = vpop.f32.mrf.mxu0
        %3004 = vmatprep.mubr.bf16.mxu0 %v2927
        %3005 = vmatmul.mubr.bf16.gmra.mxu0 %v2926
        %v3006 = vpop.f32.mrf.mxu0
        %v3007 = vadd.f32 0.0, %v3006
        %v3008 = vpop.f32.mrf.mxu0
        %v3009 = vpop.f32.mrf.mxu0
        %v3010 = vadd.f32 0.0, %v3009
        %v3011 = vpop.f32.mrf.mxu0
        %3012 = vmatprep.mubr.bf16.mxu0 %v2929
        %3013 = vmatmul.mubr.bf16.gmra.mxu0 %v2928
        %v3014 = vpop.f32.mrf.mxu0
        %v3015 = vadd.f32 0.0, %v3014
        %v3016 = vpop.f32.mrf.mxu0
        %v3017 = vpop.f32.mrf.mxu0
        %v3018 = vadd.f32 0.0, %v3017
        %v3019 = vpop.f32.mrf.mxu0
        %3020 = vmatprep.mubr.bf16.mxu0 %v2931
        %3021 = vmatmul.mubr.bf16.gmra.mxu0 %v2930
        %v3022 = vpop.f32.mrf.mxu0
        %v3023 = vadd.f32 0.0, %v3022
        %v3024 = vpop.f32.mrf.mxu0
        %v3025 = vpop.f32.mrf.mxu0
        %v3026 = vadd.f32 0.0, %v3025
        %v3027 = vpop.f32.mrf.mxu0
        %3028 = vdwg.mxu0
        %v3029 = vadd.f32 %v2321, %v2967
        %v3030 = vadd.f32 %v2324, %v2970
        %v3031 = vadd.f32 %v2329, %v2975
        %v3032 = vadd.f32 %v2332, %v2978
        %v3033 = vadd.f32 %v2337, %v2983
        %v3034 = vadd.f32 %v2340, %v2986
        %v3035 = vadd.f32 %v2345, %v2991
        %v3036 = vadd.f32 %v2348, %v2994
        %v3037 = vadd.f32 %v2353, %v2999
        %v3038 = vadd.f32 %v2356, %v3002
        %v3039 = vadd.f32 %v2361, %v3007
        %v3040 = vadd.f32 %v2364, %v3010
        %v3041 = vadd.f32 %v2369, %v3015
        %v3042 = vadd.f32 %v2372, %v3018
        %v3043 = vadd.f32 %v2377, %v3023
        %v3044 = vadd.f32 %v2380, %v3026
        %vm3045 = vcmp.eq.s32.totalorder %v1087, 3
        %v3046 = vsel %vm3045, %v896, 0.0
        %v3047 = vsel %vm3045, %v901, 0.0
        %v3048 = vsel %vm3045, %v906, 0.0
        %v3049 = vsel %vm3045, %v911, 0.0
        %v3050 = vsel %vm3045, %v916, 0.0
        %v3051 = vsel %vm3045, %v921, 0.0
        %v3052 = vsel %vm3045, %v926, 0.0
        %v3053 = vsel %vm3045, %v931, 0.0
        %v3054 = vsel %vm3045, %v936, 0.0
        %v3055 = vsel %vm3045, %v941, 0.0
        %v3056 = vsel %vm3045, %v946, 0.0
        %v3057 = vsel %vm3045, %v951, 0.0
        %v3058 = vsel %vm3045, %v956, 0.0
        %v3059 = vsel %vm3045, %v961, 0.0
        %v3060 = vsel %vm3045, %v966, 0.0
        %v3061 = vsel %vm3045, %v971, 0.0
        %v3062 = vsel %vm1107, %v3046, 0.0
        %3063 = vadd.xlane.f32.xlu0 %v3062
        %v3064 = vpop.xlane.xlu0 %3063
        %v3065 = vsel %vm1107, %v3047, 0.0
        %3066 = vadd.xlane.f32.xlu0 %v3065
        %v3067 = vpop.xlane.xlu0 %3066
        %v3068 = vsel %vm1107, %v3048, 0.0
        %3069 = vadd.xlane.f32.xlu0 %v3068
        %v3070 = vpop.xlane.xlu0 %3069
        %v3071 = vsel %vm1107, %v3049, 0.0
        %3072 = vadd.xlane.f32.xlu0 %v3071
        %v3073 = vpop.xlane.xlu0 %3072
        %v3074 = vsel %vm1107, %v3050, 0.0
        %3075 = vadd.xlane.f32.xlu0 %v3074
        %v3076 = vpop.xlane.xlu0 %3075
        %v3077 = vsel %vm1107, %v3051, 0.0
        %3078 = vadd.xlane.f32.xlu0 %v3077
        %v3079 = vpop.xlane.xlu0 %3078
        %v3080 = vsel %vm1107, %v3052, 0.0
        %3081 = vadd.xlane.f32.xlu0 %v3080
        %v3082 = vpop.xlane.xlu0 %3081
        %v3083 = vsel %vm1107, %v3053, 0.0
        %3084 = vadd.xlane.f32.xlu0 %v3083
        %v3085 = vpop.xlane.xlu0 %3084
        %v3086 = vsel %vm1107, %v3054, 0.0
        %3087 = vadd.xlane.f32.xlu0 %v3086
        %v3088 = vpop.xlane.xlu0 %3087
        %v3089 = vsel %vm1107, %v3055, 0.0
        %3090 = vadd.xlane.f32.xlu0 %v3089
        %v3091 = vpop.xlane.xlu0 %3090
        %v3092 = vsel %vm1107, %v3056, 0.0
        %3093 = vadd.xlane.f32.xlu0 %v3092
        %v3094 = vpop.xlane.xlu0 %3093
        %v3095 = vsel %vm1107, %v3057, 0.0
        %3096 = vadd.xlane.f32.xlu0 %v3095
        %v3097 = vpop.xlane.xlu0 %3096
        %v3098 = vsel %vm1107, %v3058, 0.0
        %3099 = vadd.xlane.f32.xlu0 %v3098
        %v3100 = vpop.xlane.xlu0 %3099
        %v3101 = vsel %vm1107, %v3059, 0.0
        %3102 = vadd.xlane.f32.xlu0 %v3101
        %v3103 = vpop.xlane.xlu0 %3102
        %v3104 = vsel %vm1107, %v3060, 0.0
        %3105 = vadd.xlane.f32.xlu0 %v3104
        %v3106 = vpop.xlane.xlu0 %3105
        %v3107 = vsel %vm1107, %v3061, 0.0
        %3108 = vadd.xlane.f32.xlu0 %v3107
        %v3109 = vpop.xlane.xlu0 %3108
        %vm3110 = vcmp.eq.s32.totalorder %v1089, 3
        %v3111 = vsel %vm3110, %v793, 0.0
        %v3112 = vsel %vm3110, %v795, 0.0
        %v3113 = vrot.slane %v3111, 4
        %v3114 = vadd.f32 %v3111, %v3113
        %v3115 = vrot.slane %v3114, 2
        %v3116 = vadd.f32 %v3114, %v3115
        %v3117 = vrot.slane %v3116, 1
        %v3118 = vadd.f32 %v3116, %v3117
        %v3119 = vrot.slane %v3112, 4
        %v3120 = vadd.f32 %v3112, %v3119
        %v3121 = vrot.slane %v3120, 2
        %v3122 = vadd.f32 %v3120, %v3121
        %v3123 = vrot.slane %v3122, 1
        %v3124 = vadd.f32 %v3122, %v3123
        %v3125 = vadd.f32 %v3064, %v3118
        %v3126 = vadd.f32 %v3064, %v3124
        %v3127 = vadd.f32 %v3067, %v3118
        %v3128 = vadd.f32 %v3067, %v3124
        %v3129 = vadd.f32 %v3070, %v3118
        %v3130 = vadd.f32 %v3070, %v3124
        %v3131 = vadd.f32 %v3073, %v3118
        %v3132 = vadd.f32 %v3073, %v3124
        %v3133 = vadd.f32 %v3076, %v3118
        %v3134 = vadd.f32 %v3076, %v3124
        %v3135 = vadd.f32 %v3079, %v3118
        %v3136 = vadd.f32 %v3079, %v3124
        %v3137 = vadd.f32 %v3082, %v3118
        %v3138 = vadd.f32 %v3082, %v3124
        %v3139 = vadd.f32 %v3085, %v3118
        %v3140 = vadd.f32 %v3085, %v3124
        %v3141 = vadd.f32 %v3088, %v3118
        %v3142 = vadd.f32 %v3088, %v3124
        %v3143 = vadd.f32 %v3091, %v3118
        %v3144 = vadd.f32 %v3091, %v3124
        %v3145 = vadd.f32 %v3094, %v3118
        %v3146 = vadd.f32 %v3094, %v3124
        %v3147 = vadd.f32 %v3097, %v3118
        %v3148 = vadd.f32 %v3097, %v3124
        %v3149 = vadd.f32 %v3100, %v3118
        %v3150 = vadd.f32 %v3100, %v3124
        %v3151 = vadd.f32 %v3103, %v3118
        %v3152 = vadd.f32 %v3103, %v3124
        %v3153 = vadd.f32 %v3106, %v3118
        %v3154 = vadd.f32 %v3106, %v3124
        %v3155 = vadd.f32 %v3109, %v3118
        %v3156 = vadd.f32 %v3109, %v3124
        %vm3157 = vcmp.ge.f32.partialorder %v3125, 0.0
        %vm3158 = vcmp.ge.f32.partialorder %v3126, 0.0
        %vm3159 = vcmp.ge.f32.partialorder %v3127, 0.0
        %vm3160 = vcmp.ge.f32.partialorder %v3128, 0.0
        %vm3161 = vcmp.ge.f32.partialorder %v3129, 0.0
        %vm3162 = vcmp.ge.f32.partialorder %v3130, 0.0
        %vm3163 = vcmp.ge.f32.partialorder %v3131, 0.0
        %vm3164 = vcmp.ge.f32.partialorder %v3132, 0.0
        %vm3165 = vcmp.ge.f32.partialorder %v3133, 0.0
        %vm3166 = vcmp.ge.f32.partialorder %v3134, 0.0
        %vm3167 = vcmp.ge.f32.partialorder %v3135, 0.0
        %vm3168 = vcmp.ge.f32.partialorder %v3136, 0.0
        %vm3169 = vcmp.ge.f32.partialorder %v3137, 0.0
        %vm3170 = vcmp.ge.f32.partialorder %v3138, 0.0
        %vm3171 = vcmp.ge.f32.partialorder %v3139, 0.0
        %vm3172 = vcmp.ge.f32.partialorder %v3140, 0.0
        %vm3173 = vcmp.ge.f32.partialorder %v3141, 0.0
        %vm3174 = vcmp.ge.f32.partialorder %v3142, 0.0
        %vm3175 = vcmp.ge.f32.partialorder %v3143, 0.0
        %vm3176 = vcmp.ge.f32.partialorder %v3144, 0.0
        %vm3177 = vcmp.ge.f32.partialorder %v3145, 0.0
        %vm3178 = vcmp.ge.f32.partialorder %v3146, 0.0
        %vm3179 = vcmp.ge.f32.partialorder %v3147, 0.0
        %vm3180 = vcmp.ge.f32.partialorder %v3148, 0.0
        %vm3181 = vcmp.ge.f32.partialorder %v3149, 0.0
        %vm3182 = vcmp.ge.f32.partialorder %v3150, 0.0
        %vm3183 = vcmp.ge.f32.partialorder %v3151, 0.0
        %vm3184 = vcmp.ge.f32.partialorder %v3152, 0.0
        %vm3185 = vcmp.ge.f32.partialorder %v3153, 0.0
        %vm3186 = vcmp.ge.f32.partialorder %v3154, 0.0
        %vm3187 = vcmp.ge.f32.partialorder %v3155, 0.0
        %vm3188 = vcmp.ge.f32.partialorder %v3156, 0.0
        %v3189 = vmul.f32 %v3125, 0.2
        %v3190 = vmul.f32 %v3126, 0.2
        %v3191 = vmul.f32 %v3127, 0.2
        %v3192 = vmul.f32 %v3128, 0.2
        %v3193 = vmul.f32 %v3129, 0.2
        %v3194 = vmul.f32 %v3130, 0.2
        %v3195 = vmul.f32 %v3131, 0.2
        %v3196 = vmul.f32 %v3132, 0.2
        %v3197 = vmul.f32 %v3133, 0.2
        %v3198 = vmul.f32 %v3134, 0.2
        %v3199 = vmul.f32 %v3135, 0.2
        %v3200 = vmul.f32 %v3136, 0.2
        %v3201 = vmul.f32 %v3137, 0.2
        %v3202 = vmul.f32 %v3138, 0.2
        %v3203 = vmul.f32 %v3139, 0.2
        %v3204 = vmul.f32 %v3140, 0.2
        %v3205 = vmul.f32 %v3141, 0.2
        %v3206 = vmul.f32 %v3142, 0.2
        %v3207 = vmul.f32 %v3143, 0.2
        %v3208 = vmul.f32 %v3144, 0.2
        %v3209 = vmul.f32 %v3145, 0.2
        %v3210 = vmul.f32 %v3146, 0.2
        %v3211 = vmul.f32 %v3147, 0.2
        %v3212 = vmul.f32 %v3148, 0.2
        %v3213 = vmul.f32 %v3149, 0.2
        %v3214 = vmul.f32 %v3150, 0.2
        %v3215 = vmul.f32 %v3151, 0.2
        %v3216 = vmul.f32 %v3152, 0.2
        %v3217 = vmul.f32 %v3153, 0.2
        %v3218 = vmul.f32 %v3154, 0.2
        %v3219 = vmul.f32 %v3155, 0.2
        %v3220 = vmul.f32 %v3156, 0.2
        %v3221 = vsel %vm3157, %v3125, %v3189
        %v3222 = vsel %vm3158, %v3126, %v3190
        %v3223 = vsel %vm3159, %v3127, %v3191
        %v3224 = vsel %vm3160, %v3128, %v3192
        %v3225 = vsel %vm3161, %v3129, %v3193
        %v3226 = vsel %vm3162, %v3130, %v3194
        %v3227 = vsel %vm3163, %v3131, %v3195
        %v3228 = vsel %vm3164, %v3132, %v3196
        %v3229 = vsel %vm3165, %v3133, %v3197
        %v3230 = vsel %vm3166, %v3134, %v3198
        %v3231 = vsel %vm3167, %v3135, %v3199
        %v3232 = vsel %vm3168, %v3136, %v3200
        %v3233 = vsel %vm3169, %v3137, %v3201
        %v3234 = vsel %vm3170, %v3138, %v3202
        %v3235 = vsel %vm3171, %v3139, %v3203
        %v3236 = vsel %vm3172, %v3140, %v3204
        %v3237 = vsel %vm3173, %v3141, %v3205
        %v3238 = vsel %vm3174, %v3142, %v3206
        %v3239 = vsel %vm3175, %v3143, %v3207
        %v3240 = vsel %vm3176, %v3144, %v3208
        %v3241 = vsel %vm3177, %v3145, %v3209
        %v3242 = vsel %vm3178, %v3146, %v3210
        %v3243 = vsel %vm3179, %v3147, %v3211
        %v3244 = vsel %vm3180, %v3148, %v3212
        %v3245 = vsel %vm3181, %v3149, %v3213
        %v3246 = vsel %vm3182, %v3150, %v3214
        %v3247 = vsel %vm3183, %v3151, %v3215
        %v3248 = vsel %vm3184, %v3152, %v3216
        %v3249 = vsel %vm3185, %v3153, %v3217
        %v3250 = vsel %vm3186, %v3154, %v3218
        %v3251 = vsel %vm3187, %v3155, %v3219
        %v3252 = vsel %vm3188, %v3156, %v3220
        %v3253 = vadd.f32 %v3221, %v1054
        %v3254 = vadd.f32 %v3222, %v1055
        %v3255 = vadd.f32 %v3223, %v1056
        %v3256 = vadd.f32 %v3224, %v1057
        %v3257 = vadd.f32 %v3225, %v1058
        %v3258 = vadd.f32 %v3226, %v1059
        %v3259 = vadd.f32 %v3227, %v1060
        %v3260 = vadd.f32 %v3228, %v1061
        %v3261 = vadd.f32 %v3229, %v1062
        %v3262 = vadd.f32 %v3230, %v1063
        %v3263 = vadd.f32 %v3231, %v1064
        %v3264 = vadd.f32 %v3232, %v1065
        %v3265 = vadd.f32 %v3233, %v1066
        %v3266 = vadd.f32 %v3234, %v1067
        %v3267 = vadd.f32 %v3235, %v1068
        %v3268 = vadd.f32 %v3236, %v1069
        %v3269 = vadd.f32 %v3237, %v1070
        %v3270 = vadd.f32 %v3238, %v1071
        %v3271 = vadd.f32 %v3239, %v1072
        %v3272 = vadd.f32 %v3240, %v1073
        %v3273 = vadd.f32 %v3241, %v1074
        %v3274 = vadd.f32 %v3242, %v1075
        %v3275 = vadd.f32 %v3243, %v1076
        %v3276 = vadd.f32 %v3244, %v1077
        %v3277 = vadd.f32 %v3245, %v1078
        %v3278 = vadd.f32 %v3246, %v1079
        %v3279 = vadd.f32 %v3247, %v1080
        %v3280 = vadd.f32 %v3248, %v1081
        %v3281 = vadd.f32 %v3249, %v1082
        %v3282 = vadd.f32 %v3250, %v1083
        %v3283 = vadd.f32 %v3251, %v1084
        %v3284 = vadd.f32 %v3252, %v1085
        %v3285 = vmax.f32 %v3253, %v3254
        %3286 = vmax.xlane.f32.xlu0 %v3285
        %v3287 = vpop.xlane.xlu0 %3286
        %v3288 = vmax.f32 %v3255, %v3256
        %3289 = vmax.xlane.f32.xlu0 %v3288
        %v3290 = vpop.xlane.xlu0 %3289
        %v3291 = vmax.f32 %v3257, %v3258
        %3292 = vmax.xlane.f32.xlu0 %v3291
        %v3293 = vpop.xlane.xlu0 %3292
        %v3294 = vmax.f32 %v3259, %v3260
        %3295 = vmax.xlane.f32.xlu0 %v3294
        %v3296 = vpop.xlane.xlu0 %3295
        %v3297 = vmax.f32 %v3261, %v3262
        %3298 = vmax.xlane.f32.xlu0 %v3297
        %v3299 = vpop.xlane.xlu0 %3298
        %v3300 = vmax.f32 %v3263, %v3264
        %3301 = vmax.xlane.f32.xlu0 %v3300
        %v3302 = vpop.xlane.xlu0 %3301
        %v3303 = vmax.f32 %v3265, %v3266
        %3304 = vmax.xlane.f32.xlu0 %v3303
        %v3305 = vpop.xlane.xlu0 %3304
        %v3306 = vmax.f32 %v3267, %v3268
        %3307 = vmax.xlane.f32.xlu0 %v3306
        %v3308 = vpop.xlane.xlu0 %3307
        %v3309 = vmax.f32 %v3269, %v3270
        %3310 = vmax.xlane.f32.xlu0 %v3309
        %v3311 = vpop.xlane.xlu0 %3310
        %v3312 = vmax.f32 %v3271, %v3272
        %3313 = vmax.xlane.f32.xlu0 %v3312
        %v3314 = vpop.xlane.xlu0 %3313
        %v3315 = vmax.f32 %v3273, %v3274
        %3316 = vmax.xlane.f32.xlu0 %v3315
        %v3317 = vpop.xlane.xlu0 %3316
        %v3318 = vmax.f32 %v3275, %v3276
        %3319 = vmax.xlane.f32.xlu0 %v3318
        %v3320 = vpop.xlane.xlu0 %3319
        %v3321 = vmax.f32 %v3277, %v3278
        %3322 = vmax.xlane.f32.xlu0 %v3321
        %v3323 = vpop.xlane.xlu0 %3322
        %v3324 = vmax.f32 %v3279, %v3280
        %3325 = vmax.xlane.f32.xlu0 %v3324
        %v3326 = vpop.xlane.xlu0 %3325
        %v3327 = vmax.f32 %v3281, %v3282
        %3328 = vmax.xlane.f32.xlu0 %v3327
        %v3329 = vpop.xlane.xlu0 %3328
        %v3330 = vmax.f32 %v3283, %v3284
        %3331 = vmax.xlane.f32.xlu0 %v3330
        %v3332 = vpop.xlane.xlu0 %3331
        %v3333 = vsub.f32 %v3253, %v3287
        %v3334 = vsub.f32 %v3254, %v3287
        %v3335 = vsub.f32 %v3255, %v3290
        %v3336 = vsub.f32 %v3256, %v3290
        %v3337 = vsub.f32 %v3257, %v3293
        %v3338 = vsub.f32 %v3258, %v3293
        %v3339 = vsub.f32 %v3259, %v3296
        %v3340 = vsub.f32 %v3260, %v3296
        %v3341 = vsub.f32 %v3261, %v3299
        %v3342 = vsub.f32 %v3262, %v3299
        %v3343 = vsub.f32 %v3263, %v3302
        %v3344 = vsub.f32 %v3264, %v3302
        %v3345 = vsub.f32 %v3265, %v3305
        %v3346 = vsub.f32 %v3266, %v3305
        %v3347 = vsub.f32 %v3267, %v3308
        %v3348 = vsub.f32 %v3268, %v3308
        %v3349 = vsub.f32 %v3269, %v3311
        %v3350 = vsub.f32 %v3270, %v3311
        %v3351 = vsub.f32 %v3271, %v3314
        %v3352 = vsub.f32 %v3272, %v3314
        %v3353 = vsub.f32 %v3273, %v3317
        %v3354 = vsub.f32 %v3274, %v3317
        %v3355 = vsub.f32 %v3275, %v3320
        %v3356 = vsub.f32 %v3276, %v3320
        %v3357 = vsub.f32 %v3277, %v3323
        %v3358 = vsub.f32 %v3278, %v3323
        %v3359 = vsub.f32 %v3279, %v3326
        %v3360 = vsub.f32 %v3280, %v3326
        %v3361 = vsub.f32 %v3281, %v3329
        %v3362 = vsub.f32 %v3282, %v3329
        %v3363 = vsub.f32 %v3283, %v3332
        %v3364 = vsub.f32 %v3284, %v3332
        %v3365 = vmul.f32 %v3333, 1.442695
        %v3366 = vpow.pop %v3365
        %v3367 = vmul.f32 %v3334, 1.442695
        %v3368 = vpow.pop %v3367
        %v3369 = vmul.f32 %v3335, 1.442695
        %v3370 = vpow.pop %v3369
        %v3371 = vmul.f32 %v3336, 1.442695
        %v3372 = vpow.pop %v3371
        %v3373 = vmul.f32 %v3337, 1.442695
        %v3374 = vpow.pop %v3373
        %v3375 = vmul.f32 %v3338, 1.442695
        %v3376 = vpow.pop %v3375
        %v3377 = vmul.f32 %v3339, 1.442695
        %v3378 = vpow.pop %v3377
        %v3379 = vmul.f32 %v3340, 1.442695
        %v3380 = vpow.pop %v3379
        %v3381 = vmul.f32 %v3341, 1.442695
        %v3382 = vpow.pop %v3381
        %v3383 = vmul.f32 %v3342, 1.442695
        %v3384 = vpow.pop %v3383
        %v3385 = vmul.f32 %v3343, 1.442695
        %v3386 = vpow.pop %v3385
        %v3387 = vmul.f32 %v3344, 1.442695
        %v3388 = vpow.pop %v3387
        %v3389 = vmul.f32 %v3345, 1.442695
        %v3390 = vpow.pop %v3389
        %v3391 = vmul.f32 %v3346, 1.442695
        %v3392 = vpow.pop %v3391
        %v3393 = vmul.f32 %v3347, 1.442695
        %v3394 = vpow.pop %v3393
        %v3395 = vmul.f32 %v3348, 1.442695
        %v3396 = vpow.pop %v3395
        %v3397 = vmul.f32 %v3349, 1.442695
        %v3398 = vpow.pop %v3397
        %v3399 = vmul.f32 %v3350, 1.442695
        %v3400 = vpow.pop %v3399
        %v3401 = vmul.f32 %v3351, 1.442695
        %v3402 = vpow.pop %v3401
        %v3403 = vmul.f32 %v3352, 1.442695
        %v3404 = vpow.pop %v3403
        %v3405 = vmul.f32 %v3353, 1.442695
        %v3406 = vpow.pop %v3405
        %v3407 = vmul.f32 %v3354, 1.442695
        %v3408 = vpow.pop %v3407
        %v3409 = vmul.f32 %v3355, 1.442695
        %v3410 = vpow.pop %v3409
        %v3411 = vmul.f32 %v3356, 1.442695
        %v3412 = vpow.pop %v3411
        %v3413 = vmul.f32 %v3357, 1.442695
        %v3414 = vpow.pop %v3413
        %v3415 = vmul.f32 %v3358, 1.442695
        %v3416 = vpow.pop %v3415
        %v3417 = vmul.f32 %v3359, 1.442695
        %v3418 = vpow.pop %v3417
        %v3419 = vmul.f32 %v3360, 1.442695
        %v3420 = vpow.pop %v3419
        %v3421 = vmul.f32 %v3361, 1.442695
        %v3422 = vpow.pop %v3421
        %v3423 = vmul.f32 %v3362, 1.442695
        %v3424 = vpow.pop %v3423
        %v3425 = vmul.f32 %v3363, 1.442695
        %v3426 = vpow.pop %v3425
        %v3427 = vmul.f32 %v3364, 1.442695
        %v3428 = vpow.pop %v3427
        %v3429 = vadd.f32 %v3366, %v3368
        %3430 = vadd.xlane.f32.xlu0 %v3429
        %v3431 = vpop.xlane.xlu0 %3430
        %v3432 = vadd.f32 %v3370, %v3372
        %3433 = vadd.xlane.f32.xlu0 %v3432
        %v3434 = vpop.xlane.xlu0 %3433
        %v3435 = vadd.f32 %v3374, %v3376
        %3436 = vadd.xlane.f32.xlu0 %v3435
        %v3437 = vpop.xlane.xlu0 %3436
        %v3438 = vadd.f32 %v3378, %v3380
        %3439 = vadd.xlane.f32.xlu0 %v3438
        %v3440 = vpop.xlane.xlu0 %3439
        %v3441 = vadd.f32 %v3382, %v3384
        %3442 = vadd.xlane.f32.xlu0 %v3441
        %v3443 = vpop.xlane.xlu0 %3442
        %v3444 = vadd.f32 %v3386, %v3388
        %3445 = vadd.xlane.f32.xlu0 %v3444
        %v3446 = vpop.xlane.xlu0 %3445
        %v3447 = vadd.f32 %v3390, %v3392
        %3448 = vadd.xlane.f32.xlu0 %v3447
        %v3449 = vpop.xlane.xlu0 %3448
        %v3450 = vadd.f32 %v3394, %v3396
        %3451 = vadd.xlane.f32.xlu0 %v3450
        %v3452 = vpop.xlane.xlu0 %3451
        %v3453 = vadd.f32 %v3398, %v3400
        %3454 = vadd.xlane.f32.xlu0 %v3453
        %v3455 = vpop.xlane.xlu0 %3454
        %v3456 = vadd.f32 %v3402, %v3404
        %3457 = vadd.xlane.f32.xlu0 %v3456
        %v3458 = vpop.xlane.xlu0 %3457
        %v3459 = vadd.f32 %v3406, %v3408
        %3460 = vadd.xlane.f32.xlu0 %v3459
        %v3461 = vpop.xlane.xlu0 %3460
        %v3462 = vadd.f32 %v3410, %v3412
        %3463 = vadd.xlane.f32.xlu0 %v3462
        %v3464 = vpop.xlane.xlu0 %3463
        %v3465 = vadd.f32 %v3414, %v3416
        %3466 = vadd.xlane.f32.xlu0 %v3465
        %v3467 = vpop.xlane.xlu0 %3466
        %v3468 = vadd.f32 %v3418, %v3420
        %3469 = vadd.xlane.f32.xlu0 %v3468
        %v3470 = vpop.xlane.xlu0 %3469
        %v3471 = vadd.f32 %v3422, %v3424
        %3472 = vadd.xlane.f32.xlu0 %v3471
        %v3473 = vpop.xlane.xlu0 %3472
        %v3474 = vadd.f32 %v3426, %v3428
        %3475 = vadd.xlane.f32.xlu0 %v3474
        %v3476 = vpop.xlane.xlu0 %3475
        %v3477 = vrcp.pop %v3431
        %v3478 = vrcp.pop %v3434
        %v3479 = vrcp.pop %v3437
        %v3480 = vrcp.pop %v3440
        %v3481 = vrcp.pop %v3443
        %v3482 = vrcp.pop %v3446
        %v3483 = vrcp.pop %v3449
        %v3484 = vrcp.pop %v3452
        %v3485 = vrcp.pop %v3455
        %v3486 = vrcp.pop %v3458
        %v3487 = vrcp.pop %v3461
        %v3488 = vrcp.pop %v3464
        %v3489 = vrcp.pop %v3467
        %v3490 = vrcp.pop %v3470
        %v3491 = vrcp.pop %v3473
        %v3492 = vrcp.pop %v3476
        %v3493 = vmul.f32 %v3366, %v3477
        %v3494 = vmul.f32 %v3368, %v3477
        %v3495 = vmul.f32 %v3370, %v3478
        %v3496 = vmul.f32 %v3372, %v3478
        %v3497 = vmul.f32 %v3374, %v3479
        %v3498 = vmul.f32 %v3376, %v3479
        %v3499 = vmul.f32 %v3378, %v3480
        %v3500 = vmul.f32 %v3380, %v3480
        %v3501 = vmul.f32 %v3382, %v3481
        %v3502 = vmul.f32 %v3384, %v3481
        %v3503 = vmul.f32 %v3386, %v3482
        %v3504 = vmul.f32 %v3388, %v3482
        %v3505 = vmul.f32 %v3390, %v3483
        %v3506 = vmul.f32 %v3392, %v3483
        %v3507 = vmul.f32 %v3394, %v3484
        %v3508 = vmul.f32 %v3396, %v3484
        %v3509 = vmul.f32 %v3398, %v3485
        %v3510 = vmul.f32 %v3400, %v3485
        %v3511 = vmul.f32 %v3402, %v3486
        %v3512 = vmul.f32 %v3404, %v3486
        %v3513 = vmul.f32 %v3406, %v3487
        %v3514 = vmul.f32 %v3408, %v3487
        %v3515 = vmul.f32 %v3410, %v3488
        %v3516 = vmul.f32 %v3412, %v3488
        %v3517 = vmul.f32 %v3414, %v3489
        %v3518 = vmul.f32 %v3416, %v3489
        %v3519 = vmul.f32 %v3418, %v3490
        %v3520 = vmul.f32 %v3420, %v3490
        %v3521 = vmul.f32 %v3422, %v3491
        %v3522 = vmul.f32 %v3424, %v3491
        %v3523 = vmul.f32 %v3426, %v3492
        %v3524 = vmul.f32 %v3428, %v3492
        %vm3525 = vcmp.ge.s32.totalorder %v1087, 12
        %vm3526 = vcmp.lt.s32.totalorder %v1087, 16
        %vm3527 = vmand %vm3525, %vm3526
        %v3528 = vsel %vm3527, 1, 0
        %vm3529 = vcmp.eq.s32.totalorder %v3528, 1
        %v3530 = vsel %vm3529, %v535, 0.0
        %v3531 = vsel %vm3529, %v540, 0.0
        %v3532 = vsel %vm3529, %v545, 0.0
        %v3533 = vsel %vm3529, %v550, 0.0
        %v3534 = vsel %vm3529, %v555, 0.0
        %v3535 = vsel %vm3529, %v560, 0.0
        %v3536 = vsel %vm3529, %v565, 0.0
        %v3537 = vsel %vm3529, %v570, 0.0
        %v3538 = vsel %vm3529, %v575, 0.0
        %v3539 = vsel %vm3529, %v580, 0.0
        %v3540 = vsel %vm3529, %v585, 0.0
        %v3541 = vsel %vm3529, %v590, 0.0
        %v3542 = vsel %vm3529, %v595, 0.0
        %v3543 = vsel %vm3529, %v600, 0.0
        %v3544 = vsel %vm3529, %v605, 0.0
        %v3545 = vsel %vm3529, %v610, 0.0
        %v3546 = vsel %vm3529, %v615, 0.0
        %v3547 = vsel %vm3529, %v620, 0.0
        %v3548 = vsel %vm3529, %v625, 0.0
        %v3549 = vsel %vm3529, %v630, 0.0
        %v3550 = vsel %vm3529, %v635, 0.0
        %v3551 = vsel %vm3529, %v640, 0.0
        %v3552 = vsel %vm3529, %v645, 0.0
        %v3553 = vsel %vm3529, %v650, 0.0
        %v3554 = vsel %vm3529, %v655, 0.0
        %v3555 = vsel %vm3529, %v660, 0.0
        %v3556 = vsel %vm3529, %v665, 0.0
        %v3557 = vsel %vm3529, %v670, 0.0
        %v3558 = vsel %vm3529, %v675, 0.0
        %v3559 = vsel %vm3529, %v680, 0.0
        %v3560 = vsel %vm3529, %v685, 0.0
        %v3561 = vsel %vm3529, %v690, 0.0
        %v3562 = vpack.c.bf16 %v3531, %v3530
        %v3563 = vpack.c.bf16 %v3533, %v3532
        %v3564 = vpack.c.bf16 %v3535, %v3534
        %v3565 = vpack.c.bf16 %v3537, %v3536
        %v3566 = vpack.c.bf16 %v3539, %v3538
        %v3567 = vpack.c.bf16 %v3541, %v3540
        %v3568 = vpack.c.bf16 %v3543, %v3542
        %v3569 = vpack.c.bf16 %v3545, %v3544
        %v3570 = vpack.c.bf16 %v3547, %v3546
        %v3571 = vpack.c.bf16 %v3549, %v3548
        %v3572 = vpack.c.bf16 %v3551, %v3550
        %v3573 = vpack.c.bf16 %v3553, %v3552
        %v3574 = vpack.c.bf16 %v3555, %v3554
        %v3575 = vpack.c.bf16 %v3557, %v3556
        %v3576 = vpack.c.bf16 %v3559, %v3558
        %v3577 = vpack.c.bf16 %v3561, %v3560
        %v3578 = vpack.c.bf16 %v3495, %v3493
        %v3579 = vpack.c.bf16 %v3496, %v3494
        %v3580 = vpack.c.bf16 %v3499, %v3497
        %v3581 = vpack.c.bf16 %v3500, %v3498
        %v3582 = vpack.c.bf16 %v3503, %v3501
        %v3583 = vpack.c.bf16 %v3504, %v3502
        %v3584 = vpack.c.bf16 %v3507, %v3505
        %v3585 = vpack.c.bf16 %v3508, %v3506
        %v3586 = vpack.c.bf16 %v3511, %v3509
        %v3587 = vpack.c.bf16 %v3512, %v3510
        %v3588 = vpack.c.bf16 %v3515, %v3513
        %v3589 = vpack.c.bf16 %v3516, %v3514
        %v3590 = vpack.c.bf16 %v3519, %v3517
        %v3591 = vpack.c.bf16 %v3520, %v3518
        %v3592 = vpack.c.bf16 %v3523, %v3521
        %v3593 = vpack.c.bf16 %v3524, %v3522
        %3594 = vmatprep.subr.bf16.mxu0 0
        %3595 = vmatpush1.bf16.msra.mxu0 %v3569
        %3596 = vmatprep.subr.bf16.mxu0 0
        %3597 = vmatpush1.bf16.msra.mxu0 %v3568
        %3598 = vmatprep.subr.bf16.mxu0 0
        %3599 = vmatpush1.bf16.msra.mxu0 %v3567
        %3600 = vmatprep.subr.bf16.mxu0 0
        %3601 = vmatpush1.bf16.msra.mxu0 %v3566
        %3602 = vmatprep.subr.bf16.mxu0 0
        %3603 = vmatpush1.bf16.msra.mxu0 %v3565
        %3604 = vmatprep.subr.bf16.mxu0 0
        %3605 = vmatpush1.bf16.msra.mxu0 %v3564
        %3606 = vmatprep.subr.bf16.mxu0 0
        %3607 = vmatpush1.bf16.msra.mxu0 %v3563
        %3608 = vmatprep.subr.bf16.mxu0 0
        %3609 = vmatpush1.bf16.msra.mxu0 %v3562
        %3610 = vmatprep.subr.bf16.mxu0 0
        %3611 = vmatpush2.bf16.msra.mxu0 %v3577
        %3612 = vmatprep.subr.bf16.mxu0 0
        %3613 = vmatpush2.bf16.msra.mxu0 %v3576
        %3614 = vmatprep.subr.bf16.mxu0 0
        %3615 = vmatpush2.bf16.msra.mxu0 %v3575
        %3616 = vmatprep.subr.bf16.mxu0 0
        %3617 = vmatpush2.bf16.msra.mxu0 %v3574
        %3618 = vmatprep.subr.bf16.mxu0 0
        %3619 = vmatpush2.bf16.msra.mxu0 %v3573
        %3620 = vmatprep.subr.bf16.mxu0 0
        %3621 = vmatpush2.bf16.msra.mxu0 %v3572
        %3622 = vmatprep.subr.bf16.mxu0 0
        %3623 = vmatpush2.bf16.msra.mxu0 %v3571
        %3624 = vmatprep.subr.bf16.mxu0 0
        %3625 = vmatpush2.bf16.msra.mxu0 %v3570
        %3626 = vmatprep.mubr.bf16.mxu0 %v3579
        %3627 = vmatmul.mubr.bf16.gmra.mxu0 %v3578
        %v3628 = vpop.f32.mrf.mxu0
        %v3629 = vadd.f32 0.0, %v3628
        %v3630 = vpop.f32.mrf.mxu0
        %v3631 = vpop.f32.mrf.mxu0
        %v3632 = vadd.f32 0.0, %v3631
        %v3633 = vpop.f32.mrf.mxu0
        %3634 = vmatprep.mubr.bf16.mxu0 %v3581
        %3635 = vmatmul.mubr.bf16.gmra.mxu0 %v3580
        %v3636 = vpop.f32.mrf.mxu0
        %v3637 = vadd.f32 0.0, %v3636
        %v3638 = vpop.f32.mrf.mxu0
        %v3639 = vpop.f32.mrf.mxu0
        %v3640 = vadd.f32 0.0, %v3639
        %v3641 = vpop.f32.mrf.mxu0
        %3642 = vmatprep.mubr.bf16.mxu0 %v3583
        %3643 = vmatmul.mubr.bf16.gmra.mxu0 %v3582
        %v3644 = vpop.f32.mrf.mxu0
        %v3645 = vadd.f32 0.0, %v3644
        %v3646 = vpop.f32.mrf.mxu0
        %v3647 = vpop.f32.mrf.mxu0
        %v3648 = vadd.f32 0.0, %v3647
        %v3649 = vpop.f32.mrf.mxu0
        %3650 = vmatprep.mubr.bf16.mxu0 %v3585
        %3651 = vmatmul.mubr.bf16.gmra.mxu0 %v3584
        %v3652 = vpop.f32.mrf.mxu0
        %v3653 = vadd.f32 0.0, %v3652
        %v3654 = vpop.f32.mrf.mxu0
        %v3655 = vpop.f32.mrf.mxu0
        %v3656 = vadd.f32 0.0, %v3655
        %v3657 = vpop.f32.mrf.mxu0
        %3658 = vmatprep.mubr.bf16.mxu0 %v3587
        %3659 = vmatmul.mubr.bf16.gmra.mxu0 %v3586
        %v3660 = vpop.f32.mrf.mxu0
        %v3661 = vadd.f32 0.0, %v3660
        %v3662 = vpop.f32.mrf.mxu0
        %v3663 = vpop.f32.mrf.mxu0
        %v3664 = vadd.f32 0.0, %v3663
        %v3665 = vpop.f32.mrf.mxu0
        %3666 = vmatprep.mubr.bf16.mxu0 %v3589
        %3667 = vmatmul.mubr.bf16.gmra.mxu0 %v3588
        %v3668 = vpop.f32.mrf.mxu0
        %v3669 = vadd.f32 0.0, %v3668
        %v3670 = vpop.f32.mrf.mxu0
        %v3671 = vpop.f32.mrf.mxu0
        %v3672 = vadd.f32 0.0, %v3671
        %v3673 = vpop.f32.mrf.mxu0
        %3674 = vmatprep.mubr.bf16.mxu0 %v3591
        %3675 = vmatmul.mubr.bf16.gmra.mxu0 %v3590
        %v3676 = vpop.f32.mrf.mxu0
        %v3677 = vadd.f32 0.0, %v3676
        %v3678 = vpop.f32.mrf.mxu0
        %v3679 = vpop.f32.mrf.mxu0
        %v3680 = vadd.f32 0.0, %v3679
        %v3681 = vpop.f32.mrf.mxu0
        %3682 = vmatprep.mubr.bf16.mxu0 %v3593
        %3683 = vmatmul.mubr.bf16.gmra.mxu0 %v3592
        %v3684 = vpop.f32.mrf.mxu0
        %v3685 = vadd.f32 0.0, %v3684
        %v3686 = vpop.f32.mrf.mxu0
        %v3687 = vpop.f32.mrf.mxu0
        %v3688 = vadd.f32 0.0, %v3687
        %v3689 = vpop.f32.mrf.mxu0
        %3690 = vdwg.mxu0
        %v3691 = vadd.f32 %v3029, %v3629
        %v3692 = vadd.f32 %v3030, %v3632
        %v3693 = vadd.f32 %v3031, %v3637
        %v3694 = vadd.f32 %v3032, %v3640
        %v3695 = vadd.f32 %v3033, %v3645
        %v3696 = vadd.f32 %v3034, %v3648
        %v3697 = vadd.f32 %v3035, %v3653
        %v3698 = vadd.f32 %v3036, %v3656
        %v3699 = vadd.f32 %v3037, %v3661
        %v3700 = vadd.f32 %v3038, %v3664
        %v3701 = vadd.f32 %v3039, %v3669
        %v3702 = vadd.f32 %v3040, %v3672
        %v3703 = vadd.f32 %v3041, %v3677
        %v3704 = vadd.f32 %v3042, %v3680
        %v3705 = vadd.f32 %v3043, %v3685
        %v3706 = vadd.f32 %v3044, %v3688
        %vm3707 = vcmp.eq.s32.totalorder %v1087, 4
        %v3708 = vsel %vm3707, %v896, 0.0
        %v3709 = vsel %vm3707, %v901, 0.0
        %v3710 = vsel %vm3707, %v906, 0.0
        %v3711 = vsel %vm3707, %v911, 0.0
        %v3712 = vsel %vm3707, %v916, 0.0
        %v3713 = vsel %vm3707, %v921, 0.0
        %v3714 = vsel %vm3707, %v926, 0.0
        %v3715 = vsel %vm3707, %v931, 0.0
        %v3716 = vsel %vm3707, %v936, 0.0
        %v3717 = vsel %vm3707, %v941, 0.0
        %v3718 = vsel %vm3707, %v946, 0.0
        %v3719 = vsel %vm3707, %v951, 0.0
        %v3720 = vsel %vm3707, %v956, 0.0
        %v3721 = vsel %vm3707, %v961, 0.0
        %v3722 = vsel %vm3707, %v966, 0.0
        %v3723 = vsel %vm3707, %v971, 0.0
        %v3724 = vsel %vm1107, %v3708, 0.0
        %3725 = vadd.xlane.f32.xlu0 %v3724
        %v3726 = vpop.xlane.xlu0 %3725
        %v3727 = vsel %vm1107, %v3709, 0.0
        %3728 = vadd.xlane.f32.xlu0 %v3727
        %v3729 = vpop.xlane.xlu0 %3728
        %v3730 = vsel %vm1107, %v3710, 0.0
        %3731 = vadd.xlane.f32.xlu0 %v3730
        %v3732 = vpop.xlane.xlu0 %3731
        %v3733 = vsel %vm1107, %v3711, 0.0
        %3734 = vadd.xlane.f32.xlu0 %v3733
        %v3735 = vpop.xlane.xlu0 %3734
        %v3736 = vsel %vm1107, %v3712, 0.0
        %3737 = vadd.xlane.f32.xlu0 %v3736
        %v3738 = vpop.xlane.xlu0 %3737
        %v3739 = vsel %vm1107, %v3713, 0.0
        %3740 = vadd.xlane.f32.xlu0 %v3739
        %v3741 = vpop.xlane.xlu0 %3740
        %v3742 = vsel %vm1107, %v3714, 0.0
        %3743 = vadd.xlane.f32.xlu0 %v3742
        %v3744 = vpop.xlane.xlu0 %3743
        %v3745 = vsel %vm1107, %v3715, 0.0
        %3746 = vadd.xlane.f32.xlu0 %v3745
        %v3747 = vpop.xlane.xlu0 %3746
        %v3748 = vsel %vm1107, %v3716, 0.0
        %3749 = vadd.xlane.f32.xlu0 %v3748
        %v3750 = vpop.xlane.xlu0 %3749
        %v3751 = vsel %vm1107, %v3717, 0.0
        %3752 = vadd.xlane.f32.xlu0 %v3751
        %v3753 = vpop.xlane.xlu0 %3752
        %v3754 = vsel %vm1107, %v3718, 0.0
        %3755 = vadd.xlane.f32.xlu0 %v3754
        %v3756 = vpop.xlane.xlu0 %3755
        %v3757 = vsel %vm1107, %v3719, 0.0
        %3758 = vadd.xlane.f32.xlu0 %v3757
        %v3759 = vpop.xlane.xlu0 %3758
        %v3760 = vsel %vm1107, %v3720, 0.0
        %3761 = vadd.xlane.f32.xlu0 %v3760
        %v3762 = vpop.xlane.xlu0 %3761
        %v3763 = vsel %vm1107, %v3721, 0.0
        %3764 = vadd.xlane.f32.xlu0 %v3763
        %v3765 = vpop.xlane.xlu0 %3764
        %v3766 = vsel %vm1107, %v3722, 0.0
        %3767 = vadd.xlane.f32.xlu0 %v3766
        %v3768 = vpop.xlane.xlu0 %3767
        %v3769 = vsel %vm1107, %v3723, 0.0
        %3770 = vadd.xlane.f32.xlu0 %v3769
        %v3771 = vpop.xlane.xlu0 %3770
        %vm3772 = vcmp.eq.s32.totalorder %v1089, 4
        %v3773 = vsel %vm3772, %v793, 0.0
        %v3774 = vsel %vm3772, %v795, 0.0
        %v3775 = vrot.slane %v3773, 4
        %v3776 = vadd.f32 %v3773, %v3775
        %v3777 = vrot.slane %v3776, 2
        %v3778 = vadd.f32 %v3776, %v3777
        %v3779 = vrot.slane %v3778, 1
        %v3780 = vadd.f32 %v3778, %v3779
        %v3781 = vrot.slane %v3774, 4
        %v3782 = vadd.f32 %v3774, %v3781
        %v3783 = vrot.slane %v3782, 2
        %v3784 = vadd.f32 %v3782, %v3783
        %v3785 = vrot.slane %v3784, 1
        %v3786 = vadd.f32 %v3784, %v3785
        %v3787 = vadd.f32 %v3726, %v3780
        %v3788 = vadd.f32 %v3726, %v3786
        %v3789 = vadd.f32 %v3729, %v3780
        %v3790 = vadd.f32 %v3729, %v3786
        %v3791 = vadd.f32 %v3732, %v3780
        %v3792 = vadd.f32 %v3732, %v3786
        %v3793 = vadd.f32 %v3735, %v3780
        %v3794 = vadd.f32 %v3735, %v3786
        %v3795 = vadd.f32 %v3738, %v3780
        %v3796 = vadd.f32 %v3738, %v3786
        %v3797 = vadd.f32 %v3741, %v3780
        %v3798 = vadd.f32 %v3741, %v3786
        %v3799 = vadd.f32 %v3744, %v3780
        %v3800 = vadd.f32 %v3744, %v3786
        %v3801 = vadd.f32 %v3747, %v3780
        %v3802 = vadd.f32 %v3747, %v3786
        %v3803 = vadd.f32 %v3750, %v3780
        %v3804 = vadd.f32 %v3750, %v3786
        %v3805 = vadd.f32 %v3753, %v3780
        %v3806 = vadd.f32 %v3753, %v3786
        %v3807 = vadd.f32 %v3756, %v3780
        %v3808 = vadd.f32 %v3756, %v3786
        %v3809 = vadd.f32 %v3759, %v3780
        %v3810 = vadd.f32 %v3759, %v3786
        %v3811 = vadd.f32 %v3762, %v3780
        %v3812 = vadd.f32 %v3762, %v3786
        %v3813 = vadd.f32 %v3765, %v3780
        %v3814 = vadd.f32 %v3765, %v3786
        %v3815 = vadd.f32 %v3768, %v3780
        %v3816 = vadd.f32 %v3768, %v3786
        %v3817 = vadd.f32 %v3771, %v3780
        %v3818 = vadd.f32 %v3771, %v3786
        %vm3819 = vcmp.ge.f32.partialorder %v3787, 0.0
        %vm3820 = vcmp.ge.f32.partialorder %v3788, 0.0
        %vm3821 = vcmp.ge.f32.partialorder %v3789, 0.0
        %vm3822 = vcmp.ge.f32.partialorder %v3790, 0.0
        %vm3823 = vcmp.ge.f32.partialorder %v3791, 0.0
        %vm3824 = vcmp.ge.f32.partialorder %v3792, 0.0
        %vm3825 = vcmp.ge.f32.partialorder %v3793, 0.0
        %vm3826 = vcmp.ge.f32.partialorder %v3794, 0.0
        %vm3827 = vcmp.ge.f32.partialorder %v3795, 0.0
        %vm3828 = vcmp.ge.f32.partialorder %v3796, 0.0
        %vm3829 = vcmp.ge.f32.partialorder %v3797, 0.0
        %vm3830 = vcmp.ge.f32.partialorder %v3798, 0.0
        %vm3831 = vcmp.ge.f32.partialorder %v3799, 0.0
        %vm3832 = vcmp.ge.f32.partialorder %v3800, 0.0
        %vm3833 = vcmp.ge.f32.partialorder %v3801, 0.0
        %vm3834 = vcmp.ge.f32.partialorder %v3802, 0.0
        %vm3835 = vcmp.ge.f32.partialorder %v3803, 0.0
        %vm3836 = vcmp.ge.f32.partialorder %v3804, 0.0
        %vm3837 = vcmp.ge.f32.partialorder %v3805, 0.0
        %vm3838 = vcmp.ge.f32.partialorder %v3806, 0.0
        %vm3839 = vcmp.ge.f32.partialorder %v3807, 0.0
        %vm3840 = vcmp.ge.f32.partialorder %v3808, 0.0
        %vm3841 = vcmp.ge.f32.partialorder %v3809, 0.0
        %vm3842 = vcmp.ge.f32.partialorder %v3810, 0.0
        %vm3843 = vcmp.ge.f32.partialorder %v3811, 0.0
        %vm3844 = vcmp.ge.f32.partialorder %v3812, 0.0
        %vm3845 = vcmp.ge.f32.partialorder %v3813, 0.0
        %vm3846 = vcmp.ge.f32.partialorder %v3814, 0.0
        %vm3847 = vcmp.ge.f32.partialorder %v3815, 0.0
        %vm3848 = vcmp.ge.f32.partialorder %v3816, 0.0
        %vm3849 = vcmp.ge.f32.partialorder %v3817, 0.0
        %vm3850 = vcmp.ge.f32.partialorder %v3818, 0.0
        %v3851 = vmul.f32 %v3787, 0.2
        %v3852 = vmul.f32 %v3788, 0.2
        %v3853 = vmul.f32 %v3789, 0.2
        %v3854 = vmul.f32 %v3790, 0.2
        %v3855 = vmul.f32 %v3791, 0.2
        %v3856 = vmul.f32 %v3792, 0.2
        %v3857 = vmul.f32 %v3793, 0.2
        %v3858 = vmul.f32 %v3794, 0.2
        %v3859 = vmul.f32 %v3795, 0.2
        %v3860 = vmul.f32 %v3796, 0.2
        %v3861 = vmul.f32 %v3797, 0.2
        %v3862 = vmul.f32 %v3798, 0.2
        %v3863 = vmul.f32 %v3799, 0.2
        %v3864 = vmul.f32 %v3800, 0.2
        %v3865 = vmul.f32 %v3801, 0.2
        %v3866 = vmul.f32 %v3802, 0.2
        %v3867 = vmul.f32 %v3803, 0.2
        %v3868 = vmul.f32 %v3804, 0.2
        %v3869 = vmul.f32 %v3805, 0.2
        %v3870 = vmul.f32 %v3806, 0.2
        %v3871 = vmul.f32 %v3807, 0.2
        %v3872 = vmul.f32 %v3808, 0.2
        %v3873 = vmul.f32 %v3809, 0.2
        %v3874 = vmul.f32 %v3810, 0.2
        %v3875 = vmul.f32 %v3811, 0.2
        %v3876 = vmul.f32 %v3812, 0.2
        %v3877 = vmul.f32 %v3813, 0.2
        %v3878 = vmul.f32 %v3814, 0.2
        %v3879 = vmul.f32 %v3815, 0.2
        %v3880 = vmul.f32 %v3816, 0.2
        %v3881 = vmul.f32 %v3817, 0.2
        %v3882 = vmul.f32 %v3818, 0.2
        %v3883 = vsel %vm3819, %v3787, %v3851
        %v3884 = vsel %vm3820, %v3788, %v3852
        %v3885 = vsel %vm3821, %v3789, %v3853
        %v3886 = vsel %vm3822, %v3790, %v3854
        %v3887 = vsel %vm3823, %v3791, %v3855
        %v3888 = vsel %vm3824, %v3792, %v3856
        %v3889 = vsel %vm3825, %v3793, %v3857
        %v3890 = vsel %vm3826, %v3794, %v3858
        %v3891 = vsel %vm3827, %v3795, %v3859
        %v3892 = vsel %vm3828, %v3796, %v3860
        %v3893 = vsel %vm3829, %v3797, %v3861
        %v3894 = vsel %vm3830, %v3798, %v3862
        %v3895 = vsel %vm3831, %v3799, %v3863
        %v3896 = vsel %vm3832, %v3800, %v3864
        %v3897 = vsel %vm3833, %v3801, %v3865
        %v3898 = vsel %vm3834, %v3802, %v3866
        %v3899 = vsel %vm3835, %v3803, %v3867
        %v3900 = vsel %vm3836, %v3804, %v3868
        %v3901 = vsel %vm3837, %v3805, %v3869
        %v3902 = vsel %vm3838, %v3806, %v3870
        %v3903 = vsel %vm3839, %v3807, %v3871
        %v3904 = vsel %vm3840, %v3808, %v3872
        %v3905 = vsel %vm3841, %v3809, %v3873
        %v3906 = vsel %vm3842, %v3810, %v3874
        %v3907 = vsel %vm3843, %v3811, %v3875
        %v3908 = vsel %vm3844, %v3812, %v3876
        %v3909 = vsel %vm3845, %v3813, %v3877
        %v3910 = vsel %vm3846, %v3814, %v3878
        %v3911 = vsel %vm3847, %v3815, %v3879
        %v3912 = vsel %vm3848, %v3816, %v3880
        %v3913 = vsel %vm3849, %v3817, %v3881
        %v3914 = vsel %vm3850, %v3818, %v3882
        %v3915 = vadd.f32 %v3883, %v1054
        %v3916 = vadd.f32 %v3884, %v1055
        %v3917 = vadd.f32 %v3885, %v1056
        %v3918 = vadd.f32 %v3886, %v1057
        %v3919 = vadd.f32 %v3887, %v1058
        %v3920 = vadd.f32 %v3888, %v1059
        %v3921 = vadd.f32 %v3889, %v1060
        %v3922 = vadd.f32 %v3890, %v1061
        %v3923 = vadd.f32 %v3891, %v1062
        %v3924 = vadd.f32 %v3892, %v1063
        %v3925 = vadd.f32 %v3893, %v1064
        %v3926 = vadd.f32 %v3894, %v1065
        %v3927 = vadd.f32 %v3895, %v1066
        %v3928 = vadd.f32 %v3896, %v1067
        %v3929 = vadd.f32 %v3897, %v1068
        %v3930 = vadd.f32 %v3898, %v1069
        %v3931 = vadd.f32 %v3899, %v1070
        %v3932 = vadd.f32 %v3900, %v1071
        %v3933 = vadd.f32 %v3901, %v1072
        %v3934 = vadd.f32 %v3902, %v1073
        %v3935 = vadd.f32 %v3903, %v1074
        %v3936 = vadd.f32 %v3904, %v1075
        %v3937 = vadd.f32 %v3905, %v1076
        %v3938 = vadd.f32 %v3906, %v1077
        %v3939 = vadd.f32 %v3907, %v1078
        %v3940 = vadd.f32 %v3908, %v1079
        %v3941 = vadd.f32 %v3909, %v1080
        %v3942 = vadd.f32 %v3910, %v1081
        %v3943 = vadd.f32 %v3911, %v1082
        %v3944 = vadd.f32 %v3912, %v1083
        %v3945 = vadd.f32 %v3913, %v1084
        %v3946 = vadd.f32 %v3914, %v1085
        %v3947 = vmax.f32 %v3915, %v3916
        %3948 = vmax.xlane.f32.xlu0 %v3947
        %v3949 = vpop.xlane.xlu0 %3948
        %v3950 = vmax.f32 %v3917, %v3918
        %3951 = vmax.xlane.f32.xlu0 %v3950
        %v3952 = vpop.xlane.xlu0 %3951
        %v3953 = vmax.f32 %v3919, %v3920
        %3954 = vmax.xlane.f32.xlu0 %v3953
        %v3955 = vpop.xlane.xlu0 %3954
        %v3956 = vmax.f32 %v3921, %v3922
        %3957 = vmax.xlane.f32.xlu0 %v3956
        %v3958 = vpop.xlane.xlu0 %3957
        %v3959 = vmax.f32 %v3923, %v3924
        %3960 = vmax.xlane.f32.xlu0 %v3959
        %v3961 = vpop.xlane.xlu0 %3960
        %v3962 = vmax.f32 %v3925, %v3926
        %3963 = vmax.xlane.f32.xlu0 %v3962
        %v3964 = vpop.xlane.xlu0 %3963
        %v3965 = vmax.f32 %v3927, %v3928
        %3966 = vmax.xlane.f32.xlu0 %v3965
        %v3967 = vpop.xlane.xlu0 %3966
        %v3968 = vmax.f32 %v3929, %v3930
        %3969 = vmax.xlane.f32.xlu0 %v3968
        %v3970 = vpop.xlane.xlu0 %3969
        %v3971 = vmax.f32 %v3931, %v3932
        %3972 = vmax.xlane.f32.xlu0 %v3971
        %v3973 = vpop.xlane.xlu0 %3972
        %v3974 = vmax.f32 %v3933, %v3934
        %3975 = vmax.xlane.f32.xlu0 %v3974
        %v3976 = vpop.xlane.xlu0 %3975
        %v3977 = vmax.f32 %v3935, %v3936
        %3978 = vmax.xlane.f32.xlu0 %v3977
        %v3979 = vpop.xlane.xlu0 %3978
        %v3980 = vmax.f32 %v3937, %v3938
        %3981 = vmax.xlane.f32.xlu0 %v3980
        %v3982 = vpop.xlane.xlu0 %3981
        %v3983 = vmax.f32 %v3939, %v3940
        %3984 = vmax.xlane.f32.xlu0 %v3983
        %v3985 = vpop.xlane.xlu0 %3984
        %v3986 = vmax.f32 %v3941, %v3942
        %3987 = vmax.xlane.f32.xlu0 %v3986
        %v3988 = vpop.xlane.xlu0 %3987
        %v3989 = vmax.f32 %v3943, %v3944
        %3990 = vmax.xlane.f32.xlu0 %v3989
        %v3991 = vpop.xlane.xlu0 %3990
        %v3992 = vmax.f32 %v3945, %v3946
        %3993 = vmax.xlane.f32.xlu0 %v3992
        %v3994 = vpop.xlane.xlu0 %3993
        %v3995 = vsub.f32 %v3915, %v3949
        %v3996 = vsub.f32 %v3916, %v3949
        %v3997 = vsub.f32 %v3917, %v3952
        %v3998 = vsub.f32 %v3918, %v3952
        %v3999 = vsub.f32 %v3919, %v3955
        %v4000 = vsub.f32 %v3920, %v3955
        %v4001 = vsub.f32 %v3921, %v3958
        %v4002 = vsub.f32 %v3922, %v3958
        %v4003 = vsub.f32 %v3923, %v3961
        %v4004 = vsub.f32 %v3924, %v3961
        %v4005 = vsub.f32 %v3925, %v3964
        %v4006 = vsub.f32 %v3926, %v3964
        %v4007 = vsub.f32 %v3927, %v3967
        %v4008 = vsub.f32 %v3928, %v3967
        %v4009 = vsub.f32 %v3929, %v3970
        %v4010 = vsub.f32 %v3930, %v3970
        %v4011 = vsub.f32 %v3931, %v3973
        %v4012 = vsub.f32 %v3932, %v3973
        %v4013 = vsub.f32 %v3933, %v3976
        %v4014 = vsub.f32 %v3934, %v3976
        %v4015 = vsub.f32 %v3935, %v3979
        %v4016 = vsub.f32 %v3936, %v3979
        %v4017 = vsub.f32 %v3937, %v3982
        %v4018 = vsub.f32 %v3938, %v3982
        %v4019 = vsub.f32 %v3939, %v3985
        %v4020 = vsub.f32 %v3940, %v3985
        %v4021 = vsub.f32 %v3941, %v3988
        %v4022 = vsub.f32 %v3942, %v3988
        %v4023 = vsub.f32 %v3943, %v3991
        %v4024 = vsub.f32 %v3944, %v3991
        %v4025 = vsub.f32 %v3945, %v3994
        %v4026 = vsub.f32 %v3946, %v3994
        %v4027 = vmul.f32 %v3995, 1.442695
        %v4028 = vpow.pop %v4027
        %v4029 = vmul.f32 %v3996, 1.442695
        %v4030 = vpow.pop %v4029
        %v4031 = vmul.f32 %v3997, 1.442695
        %v4032 = vpow.pop %v4031
        %v4033 = vmul.f32 %v3998, 1.442695
        %v4034 = vpow.pop %v4033
        %v4035 = vmul.f32 %v3999, 1.442695
        %v4036 = vpow.pop %v4035
        %v4037 = vmul.f32 %v4000, 1.442695
        %v4038 = vpow.pop %v4037
        %v4039 = vmul.f32 %v4001, 1.442695
        %v4040 = vpow.pop %v4039
        %v4041 = vmul.f32 %v4002, 1.442695
        %v4042 = vpow.pop %v4041
        %v4043 = vmul.f32 %v4003, 1.442695
        %v4044 = vpow.pop %v4043
        %v4045 = vmul.f32 %v4004, 1.442695
        %v4046 = vpow.pop %v4045
        %v4047 = vmul.f32 %v4005, 1.442695
        %v4048 = vpow.pop %v4047
        %v4049 = vmul.f32 %v4006, 1.442695
        %v4050 = vpow.pop %v4049
        %v4051 = vmul.f32 %v4007, 1.442695
        %v4052 = vpow.pop %v4051
        %v4053 = vmul.f32 %v4008, 1.442695
        %v4054 = vpow.pop %v4053
        %v4055 = vmul.f32 %v4009, 1.442695
        %v4056 = vpow.pop %v4055
        %v4057 = vmul.f32 %v4010, 1.442695
        %v4058 = vpow.pop %v4057
        %v4059 = vmul.f32 %v4011, 1.442695
        %v4060 = vpow.pop %v4059
        %v4061 = vmul.f32 %v4012, 1.442695
        %v4062 = vpow.pop %v4061
        %v4063 = vmul.f32 %v4013, 1.442695
        %v4064 = vpow.pop %v4063
        %v4065 = vmul.f32 %v4014, 1.442695
        %v4066 = vpow.pop %v4065
        %v4067 = vmul.f32 %v4015, 1.442695
        %v4068 = vpow.pop %v4067
        %v4069 = vmul.f32 %v4016, 1.442695
        %v4070 = vpow.pop %v4069
        %v4071 = vmul.f32 %v4017, 1.442695
        %v4072 = vpow.pop %v4071
        %v4073 = vmul.f32 %v4018, 1.442695
        %v4074 = vpow.pop %v4073
        %v4075 = vmul.f32 %v4019, 1.442695
        %v4076 = vpow.pop %v4075
        %v4077 = vmul.f32 %v4020, 1.442695
        %v4078 = vpow.pop %v4077
        %v4079 = vmul.f32 %v4021, 1.442695
        %v4080 = vpow.pop %v4079
        %v4081 = vmul.f32 %v4022, 1.442695
        %v4082 = vpow.pop %v4081
        %v4083 = vmul.f32 %v4023, 1.442695
        %v4084 = vpow.pop %v4083
        %v4085 = vmul.f32 %v4024, 1.442695
        %v4086 = vpow.pop %v4085
        %v4087 = vmul.f32 %v4025, 1.442695
        %v4088 = vpow.pop %v4087
        %v4089 = vmul.f32 %v4026, 1.442695
        %v4090 = vpow.pop %v4089
        %v4091 = vadd.f32 %v4028, %v4030
        %4092 = vadd.xlane.f32.xlu0 %v4091
        %v4093 = vpop.xlane.xlu0 %4092
        %v4094 = vadd.f32 %v4032, %v4034
        %4095 = vadd.xlane.f32.xlu0 %v4094
        %v4096 = vpop.xlane.xlu0 %4095
        %v4097 = vadd.f32 %v4036, %v4038
        %4098 = vadd.xlane.f32.xlu0 %v4097
        %v4099 = vpop.xlane.xlu0 %4098
        %v4100 = vadd.f32 %v4040, %v4042
        %4101 = vadd.xlane.f32.xlu0 %v4100
        %v4102 = vpop.xlane.xlu0 %4101
        %v4103 = vadd.f32 %v4044, %v4046
        %4104 = vadd.xlane.f32.xlu0 %v4103
        %v4105 = vpop.xlane.xlu0 %4104
        %v4106 = vadd.f32 %v4048, %v4050
        %4107 = vadd.xlane.f32.xlu0 %v4106
        %v4108 = vpop.xlane.xlu0 %4107
        %v4109 = vadd.f32 %v4052, %v4054
        %4110 = vadd.xlane.f32.xlu0 %v4109
        %v4111 = vpop.xlane.xlu0 %4110
        %v4112 = vadd.f32 %v4056, %v4058
        %4113 = vadd.xlane.f32.xlu0 %v4112
        %v4114 = vpop.xlane.xlu0 %4113
        %v4115 = vadd.f32 %v4060, %v4062
        %4116 = vadd.xlane.f32.xlu0 %v4115
        %v4117 = vpop.xlane.xlu0 %4116
        %v4118 = vadd.f32 %v4064, %v4066
        %4119 = vadd.xlane.f32.xlu0 %v4118
        %v4120 = vpop.xlane.xlu0 %4119
        %v4121 = vadd.f32 %v4068, %v4070
        %4122 = vadd.xlane.f32.xlu0 %v4121
        %v4123 = vpop.xlane.xlu0 %4122
        %v4124 = vadd.f32 %v4072, %v4074
        %4125 = vadd.xlane.f32.xlu0 %v4124
        %v4126 = vpop.xlane.xlu0 %4125
        %v4127 = vadd.f32 %v4076, %v4078
        %4128 = vadd.xlane.f32.xlu0 %v4127
        %v4129 = vpop.xlane.xlu0 %4128
        %v4130 = vadd.f32 %v4080, %v4082
        %4131 = vadd.xlane.f32.xlu0 %v4130
        %v4132 = vpop.xlane.xlu0 %4131
        %v4133 = vadd.f32 %v4084, %v4086
        %4134 = vadd.xlane.f32.xlu0 %v4133
        %v4135 = vpop.xlane.xlu0 %4134
        %v4136 = vadd.f32 %v4088, %v4090
        %4137 = vadd.xlane.f32.xlu0 %v4136
        %v4138 = vpop.xlane.xlu0 %4137
        %v4139 = vrcp.pop %v4093
        %v4140 = vrcp.pop %v4096
        %v4141 = vrcp.pop %v4099
        %v4142 = vrcp.pop %v4102
        %v4143 = vrcp.pop %v4105
        %v4144 = vrcp.pop %v4108
        %v4145 = vrcp.pop %v4111
        %v4146 = vrcp.pop %v4114
        %v4147 = vrcp.pop %v4117
        %v4148 = vrcp.pop %v4120
        %v4149 = vrcp.pop %v4123
        %v4150 = vrcp.pop %v4126
        %v4151 = vrcp.pop %v4129
        %v4152 = vrcp.pop %v4132
        %v4153 = vrcp.pop %v4135
        %v4154 = vrcp.pop %v4138
        %v4155 = vmul.f32 %v4028, %v4139
        %v4156 = vmul.f32 %v4030, %v4139
        %v4157 = vmul.f32 %v4032, %v4140
        %v4158 = vmul.f32 %v4034, %v4140
        %v4159 = vmul.f32 %v4036, %v4141
        %v4160 = vmul.f32 %v4038, %v4141
        %v4161 = vmul.f32 %v4040, %v4142
        %v4162 = vmul.f32 %v4042, %v4142
        %v4163 = vmul.f32 %v4044, %v4143
        %v4164 = vmul.f32 %v4046, %v4143
        %v4165 = vmul.f32 %v4048, %v4144
        %v4166 = vmul.f32 %v4050, %v4144
        %v4167 = vmul.f32 %v4052, %v4145
        %v4168 = vmul.f32 %v4054, %v4145
        %v4169 = vmul.f32 %v4056, %v4146
        %v4170 = vmul.f32 %v4058, %v4146
        %v4171 = vmul.f32 %v4060, %v4147
        %v4172 = vmul.f32 %v4062, %v4147
        %v4173 = vmul.f32 %v4064, %v4148
        %v4174 = vmul.f32 %v4066, %v4148
        %v4175 = vmul.f32 %v4068, %v4149
        %v4176 = vmul.f32 %v4070, %v4149
        %v4177 = vmul.f32 %v4072, %v4150
        %v4178 = vmul.f32 %v4074, %v4150
        %v4179 = vmul.f32 %v4076, %v4151
        %v4180 = vmul.f32 %v4078, %v4151
        %v4181 = vmul.f32 %v4080, %v4152
        %v4182 = vmul.f32 %v4082, %v4152
        %v4183 = vmul.f32 %v4084, %v4153
        %v4184 = vmul.f32 %v4086, %v4153
        %v4185 = vmul.f32 %v4088, %v4154
        %v4186 = vmul.f32 %v4090, %v4154
        %vm4187 = vcmp.ge.s32.totalorder %v1087, 16
        %vm4188 = vcmp.lt.s32.totalorder %v1087, 20
        %vm4189 = vmand %vm4187, %vm4188
        %v4190 = vsel %vm4189, 1, 0
        %vm4191 = vcmp.eq.s32.totalorder %v4190, 1
        %v4192 = vsel %vm4191, %v535, 0.0
        %v4193 = vsel %vm4191, %v540, 0.0
        %v4194 = vsel %vm4191, %v545, 0.0
        %v4195 = vsel %vm4191, %v550, 0.0
        %v4196 = vsel %vm4191, %v555, 0.0
        %v4197 = vsel %vm4191, %v560, 0.0
        %v4198 = vsel %vm4191, %v565, 0.0
        %v4199 = vsel %vm4191, %v570, 0.0
        %v4200 = vsel %vm4191, %v575, 0.0
        %v4201 = vsel %vm4191, %v580, 0.0
        %v4202 = vsel %vm4191, %v585, 0.0
        %v4203 = vsel %vm4191, %v590, 0.0
        %v4204 = vsel %vm4191, %v595, 0.0
        %v4205 = vsel %vm4191, %v600, 0.0
        %v4206 = vsel %vm4191, %v605, 0.0
        %v4207 = vsel %vm4191, %v610, 0.0
        %v4208 = vsel %vm4191, %v615, 0.0
        %v4209 = vsel %vm4191, %v620, 0.0
        %v4210 = vsel %vm4191, %v625, 0.0
        %v4211 = vsel %vm4191, %v630, 0.0
        %v4212 = vsel %vm4191, %v635, 0.0
        %v4213 = vsel %vm4191, %v640, 0.0
        %v4214 = vsel %vm4191, %v645, 0.0
        %v4215 = vsel %vm4191, %v650, 0.0
        %v4216 = vsel %vm4191, %v655, 0.0
        %v4217 = vsel %vm4191, %v660, 0.0
        %v4218 = vsel %vm4191, %v665, 0.0
        %v4219 = vsel %vm4191, %v670, 0.0
        %v4220 = vsel %vm4191, %v675, 0.0
        %v4221 = vsel %vm4191, %v680, 0.0
        %v4222 = vsel %vm4191, %v685, 0.0
        %v4223 = vsel %vm4191, %v690, 0.0
        %v4224 = vpack.c.bf16 %v4193, %v4192
        %v4225 = vpack.c.bf16 %v4195, %v4194
        %v4226 = vpack.c.bf16 %v4197, %v4196
        %v4227 = vpack.c.bf16 %v4199, %v4198
        %v4228 = vpack.c.bf16 %v4201, %v4200
        %v4229 = vpack.c.bf16 %v4203, %v4202
        %v4230 = vpack.c.bf16 %v4205, %v4204
        %v4231 = vpack.c.bf16 %v4207, %v4206
        %v4232 = vpack.c.bf16 %v4209, %v4208
        %v4233 = vpack.c.bf16 %v4211, %v4210
        %v4234 = vpack.c.bf16 %v4213, %v4212
        %v4235 = vpack.c.bf16 %v4215, %v4214
        %v4236 = vpack.c.bf16 %v4217, %v4216
        %v4237 = vpack.c.bf16 %v4219, %v4218
        %v4238 = vpack.c.bf16 %v4221, %v4220
        %v4239 = vpack.c.bf16 %v4223, %v4222
        %v4240 = vpack.c.bf16 %v4157, %v4155
        %v4241 = vpack.c.bf16 %v4158, %v4156
        %v4242 = vpack.c.bf16 %v4161, %v4159
        %v4243 = vpack.c.bf16 %v4162, %v4160
        %v4244 = vpack.c.bf16 %v4165, %v4163
        %v4245 = vpack.c.bf16 %v4166, %v4164
        %v4246 = vpack.c.bf16 %v4169, %v4167
        %v4247 = vpack.c.bf16 %v4170, %v4168
        %v4248 = vpack.c.bf16 %v4173, %v4171
        %v4249 = vpack.c.bf16 %v4174, %v4172
        %v4250 = vpack.c.bf16 %v4177, %v4175
        %v4251 = vpack.c.bf16 %v4178, %v4176
        %v4252 = vpack.c.bf16 %v4181, %v4179
        %v4253 = vpack.c.bf16 %v4182, %v4180
        %v4254 = vpack.c.bf16 %v4185, %v4183
        %v4255 = vpack.c.bf16 %v4186, %v4184
        %4256 = vmatprep.subr.bf16.mxu0 0
        %4257 = vmatpush1.bf16.msra.mxu0 %v4231
        %4258 = vmatprep.subr.bf16.mxu0 0
        %4259 = vmatpush1.bf16.msra.mxu0 %v4230
        %4260 = vmatprep.subr.bf16.mxu0 0
        %4261 = vmatpush1.bf16.msra.mxu0 %v4229
        %4262 = vmatprep.subr.bf16.mxu0 0
        %4263 = vmatpush1.bf16.msra.mxu0 %v4228
        %4264 = vmatprep.subr.bf16.mxu0 0
        %4265 = vmatpush1.bf16.msra.mxu0 %v4227
        %4266 = vmatprep.subr.bf16.mxu0 0
        %4267 = vmatpush1.bf16.msra.mxu0 %v4226
        %4268 = vmatprep.subr.bf16.mxu0 0
        %4269 = vmatpush1.bf16.msra.mxu0 %v4225
        %4270 = vmatprep.subr.bf16.mxu0 0
        %4271 = vmatpush1.bf16.msra.mxu0 %v4224
        %4272 = vmatprep.subr.bf16.mxu0 0
        %4273 = vmatpush2.bf16.msra.mxu0 %v4239
        %4274 = vmatprep.subr.bf16.mxu0 0
        %4275 = vmatpush2.bf16.msra.mxu0 %v4238
        %4276 = vmatprep.subr.bf16.mxu0 0
        %4277 = vmatpush2.bf16.msra.mxu0 %v4237
        %4278 = vmatprep.subr.bf16.mxu0 0
        %4279 = vmatpush2.bf16.msra.mxu0 %v4236
        %4280 = vmatprep.subr.bf16.mxu0 0
        %4281 = vmatpush2.bf16.msra.mxu0 %v4235
        %4282 = vmatprep.subr.bf16.mxu0 0
        %4283 = vmatpush2.bf16.msra.mxu0 %v4234
        %4284 = vmatprep.subr.bf16.mxu0 0
        %4285 = vmatpush2.bf16.msra.mxu0 %v4233
        %4286 = vmatprep.subr.bf16.mxu0 0
        %4287 = vmatpush2.bf16.msra.mxu0 %v4232
        %4288 = vmatprep.mubr.bf16.mxu0 %v4241
        %4289 = vmatmul.mubr.bf16.gmra.mxu0 %v4240
        %v4290 = vpop.f32.mrf.mxu0
        %v4291 = vadd.f32 0.0, %v4290
        %v4292 = vpop.f32.mrf.mxu0
        %v4293 = vpop.f32.mrf.mxu0
        %v4294 = vadd.f32 0.0, %v4293
        %v4295 = vpop.f32.mrf.mxu0
        %4296 = vmatprep.mubr.bf16.mxu0 %v4243
        %4297 = vmatmul.mubr.bf16.gmra.mxu0 %v4242
        %v4298 = vpop.f32.mrf.mxu0
        %v4299 = vadd.f32 0.0, %v4298
        %v4300 = vpop.f32.mrf.mxu0
        %v4301 = vpop.f32.mrf.mxu0
        %v4302 = vadd.f32 0.0, %v4301
        %v4303 = vpop.f32.mrf.mxu0
        %4304 = vmatprep.mubr.bf16.mxu0 %v4245
        %4305 = vmatmul.mubr.bf16.gmra.mxu0 %v4244
        %v4306 = vpop.f32.mrf.mxu0
        %v4307 = vadd.f32 0.0, %v4306
        %v4308 = vpop.f32.mrf.mxu0
        %v4309 = vpop.f32.mrf.mxu0
        %v4310 = vadd.f32 0.0, %v4309
        %v4311 = vpop.f32.mrf.mxu0
        %4312 = vmatprep.mubr.bf16.mxu0 %v4247
        %4313 = vmatmul.mubr.bf16.gmra.mxu0 %v4246
        %v4314 = vpop.f32.mrf.mxu0
        %v4315 = vadd.f32 0.0, %v4314
        %v4316 = vpop.f32.mrf.mxu0
        %v4317 = vpop.f32.mrf.mxu0
        %v4318 = vadd.f32 0.0, %v4317
        %v4319 = vpop.f32.mrf.mxu0
        %4320 = vmatprep.mubr.bf16.mxu0 %v4249
        %4321 = vmatmul.mubr.bf16.gmra.mxu0 %v4248
        %v4322 = vpop.f32.mrf.mxu0
        %v4323 = vadd.f32 0.0, %v4322
        %v4324 = vpop.f32.mrf.mxu0
        %v4325 = vpop.f32.mrf.mxu0
        %v4326 = vadd.f32 0.0, %v4325
        %v4327 = vpop.f32.mrf.mxu0
        %4328 = vmatprep.mubr.bf16.mxu0 %v4251
        %4329 = vmatmul.mubr.bf16.gmra.mxu0 %v4250
        %v4330 = vpop.f32.mrf.mxu0
        %v4331 = vadd.f32 0.0, %v4330
        %v4332 = vpop.f32.mrf.mxu0
        %v4333 = vpop.f32.mrf.mxu0
        %v4334 = vadd.f32 0.0, %v4333
        %v4335 = vpop.f32.mrf.mxu0
        %4336 = vmatprep.mubr.bf16.mxu0 %v4253
        %4337 = vmatmul.mubr.bf16.gmra.mxu0 %v4252
        %v4338 = vpop.f32.mrf.mxu0
        %v4339 = vadd.f32 0.0, %v4338
        %v4340 = vpop.f32.mrf.mxu0
        %v4341 = vpop.f32.mrf.mxu0
        %v4342 = vadd.f32 0.0, %v4341
        %v4343 = vpop.f32.mrf.mxu0
        %4344 = vmatprep.mubr.bf16.mxu0 %v4255
        %4345 = vmatmul.mubr.bf16.gmra.mxu0 %v4254
        %v4346 = vpop.f32.mrf.mxu0
        %v4347 = vadd.f32 0.0, %v4346
        %v4348 = vpop.f32.mrf.mxu0
        %v4349 = vpop.f32.mrf.mxu0
        %v4350 = vadd.f32 0.0, %v4349
        %v4351 = vpop.f32.mrf.mxu0
        %4352 = vdwg.mxu0
        %v4353 = vadd.f32 %v3691, %v4291
        %v4354 = vadd.f32 %v3692, %v4294
        %v4355 = vadd.f32 %v3693, %v4299
        %v4356 = vadd.f32 %v3694, %v4302
        %v4357 = vadd.f32 %v3695, %v4307
        %v4358 = vadd.f32 %v3696, %v4310
        %v4359 = vadd.f32 %v3697, %v4315
        %v4360 = vadd.f32 %v3698, %v4318
        %v4361 = vadd.f32 %v3699, %v4323
        %v4362 = vadd.f32 %v3700, %v4326
        %v4363 = vadd.f32 %v3701, %v4331
        %v4364 = vadd.f32 %v3702, %v4334
        %v4365 = vadd.f32 %v3703, %v4339
        %v4366 = vadd.f32 %v3704, %v4342
        %v4367 = vadd.f32 %v3705, %v4347
        %v4368 = vadd.f32 %v3706, %v4350
        %vm4369 = vcmp.eq.s32.totalorder %v1087, 5
        %v4370 = vsel %vm4369, %v896, 0.0
        %v4371 = vsel %vm4369, %v901, 0.0
        %v4372 = vsel %vm4369, %v906, 0.0
        %v4373 = vsel %vm4369, %v911, 0.0
        %v4374 = vsel %vm4369, %v916, 0.0
        %v4375 = vsel %vm4369, %v921, 0.0
        %v4376 = vsel %vm4369, %v926, 0.0
        %v4377 = vsel %vm4369, %v931, 0.0
        %v4378 = vsel %vm4369, %v936, 0.0
        %v4379 = vsel %vm4369, %v941, 0.0
        %v4380 = vsel %vm4369, %v946, 0.0
        %v4381 = vsel %vm4369, %v951, 0.0
        %v4382 = vsel %vm4369, %v956, 0.0
        %v4383 = vsel %vm4369, %v961, 0.0
        %v4384 = vsel %vm4369, %v966, 0.0
        %v4385 = vsel %vm4369, %v971, 0.0
        %v4386 = vsel %vm1107, %v4370, 0.0
        %4387 = vadd.xlane.f32.xlu0 %v4386
        %v4388 = vpop.xlane.xlu0 %4387
        %v4389 = vsel %vm1107, %v4371, 0.0
        %4390 = vadd.xlane.f32.xlu0 %v4389
        %v4391 = vpop.xlane.xlu0 %4390
        %v4392 = vsel %vm1107, %v4372, 0.0
        %4393 = vadd.xlane.f32.xlu0 %v4392
        %v4394 = vpop.xlane.xlu0 %4393
        %v4395 = vsel %vm1107, %v4373, 0.0
        %4396 = vadd.xlane.f32.xlu0 %v4395
        %v4397 = vpop.xlane.xlu0 %4396
        %v4398 = vsel %vm1107, %v4374, 0.0
        %4399 = vadd.xlane.f32.xlu0 %v4398
        %v4400 = vpop.xlane.xlu0 %4399
        %v4401 = vsel %vm1107, %v4375, 0.0
        %4402 = vadd.xlane.f32.xlu0 %v4401
        %v4403 = vpop.xlane.xlu0 %4402
        %v4404 = vsel %vm1107, %v4376, 0.0
        %4405 = vadd.xlane.f32.xlu0 %v4404
        %v4406 = vpop.xlane.xlu0 %4405
        %v4407 = vsel %vm1107, %v4377, 0.0
        %4408 = vadd.xlane.f32.xlu0 %v4407
        %v4409 = vpop.xlane.xlu0 %4408
        %v4410 = vsel %vm1107, %v4378, 0.0
        %4411 = vadd.xlane.f32.xlu0 %v4410
        %v4412 = vpop.xlane.xlu0 %4411
        %v4413 = vsel %vm1107, %v4379, 0.0
        %4414 = vadd.xlane.f32.xlu0 %v4413
        %v4415 = vpop.xlane.xlu0 %4414
        %v4416 = vsel %vm1107, %v4380, 0.0
        %4417 = vadd.xlane.f32.xlu0 %v4416
        %v4418 = vpop.xlane.xlu0 %4417
        %v4419 = vsel %vm1107, %v4381, 0.0
        %4420 = vadd.xlane.f32.xlu0 %v4419
        %v4421 = vpop.xlane.xlu0 %4420
        %v4422 = vsel %vm1107, %v4382, 0.0
        %4423 = vadd.xlane.f32.xlu0 %v4422
        %v4424 = vpop.xlane.xlu0 %4423
        %v4425 = vsel %vm1107, %v4383, 0.0
        %4426 = vadd.xlane.f32.xlu0 %v4425
        %v4427 = vpop.xlane.xlu0 %4426
        %v4428 = vsel %vm1107, %v4384, 0.0
        %4429 = vadd.xlane.f32.xlu0 %v4428
        %v4430 = vpop.xlane.xlu0 %4429
        %v4431 = vsel %vm1107, %v4385, 0.0
        %4432 = vadd.xlane.f32.xlu0 %v4431
        %v4433 = vpop.xlane.xlu0 %4432
        %vm4434 = vcmp.eq.s32.totalorder %v1089, 5
        %v4435 = vsel %vm4434, %v793, 0.0
        %v4436 = vsel %vm4434, %v795, 0.0
        %v4437 = vrot.slane %v4435, 4
        %v4438 = vadd.f32 %v4435, %v4437
        %v4439 = vrot.slane %v4438, 2
        %v4440 = vadd.f32 %v4438, %v4439
        %v4441 = vrot.slane %v4440, 1
        %v4442 = vadd.f32 %v4440, %v4441
        %v4443 = vrot.slane %v4436, 4
        %v4444 = vadd.f32 %v4436, %v4443
        %v4445 = vrot.slane %v4444, 2
        %v4446 = vadd.f32 %v4444, %v4445
        %v4447 = vrot.slane %v4446, 1
        %v4448 = vadd.f32 %v4446, %v4447
        %v4449 = vadd.f32 %v4388, %v4442
        %v4450 = vadd.f32 %v4388, %v4448
        %v4451 = vadd.f32 %v4391, %v4442
        %v4452 = vadd.f32 %v4391, %v4448
        %v4453 = vadd.f32 %v4394, %v4442
        %v4454 = vadd.f32 %v4394, %v4448
        %v4455 = vadd.f32 %v4397, %v4442
        %v4456 = vadd.f32 %v4397, %v4448
        %v4457 = vadd.f32 %v4400, %v4442
        %v4458 = vadd.f32 %v4400, %v4448
        %v4459 = vadd.f32 %v4403, %v4442
        %v4460 = vadd.f32 %v4403, %v4448
        %v4461 = vadd.f32 %v4406, %v4442
        %v4462 = vadd.f32 %v4406, %v4448
        %v4463 = vadd.f32 %v4409, %v4442
        %v4464 = vadd.f32 %v4409, %v4448
        %v4465 = vadd.f32 %v4412, %v4442
        %v4466 = vadd.f32 %v4412, %v4448
        %v4467 = vadd.f32 %v4415, %v4442
        %v4468 = vadd.f32 %v4415, %v4448
        %v4469 = vadd.f32 %v4418, %v4442
        %v4470 = vadd.f32 %v4418, %v4448
        %v4471 = vadd.f32 %v4421, %v4442
        %v4472 = vadd.f32 %v4421, %v4448
        %v4473 = vadd.f32 %v4424, %v4442
        %v4474 = vadd.f32 %v4424, %v4448
        %v4475 = vadd.f32 %v4427, %v4442
        %v4476 = vadd.f32 %v4427, %v4448
        %v4477 = vadd.f32 %v4430, %v4442
        %v4478 = vadd.f32 %v4430, %v4448
        %v4479 = vadd.f32 %v4433, %v4442
        %v4480 = vadd.f32 %v4433, %v4448
        %vm4481 = vcmp.ge.f32.partialorder %v4449, 0.0
        %vm4482 = vcmp.ge.f32.partialorder %v4450, 0.0
        %vm4483 = vcmp.ge.f32.partialorder %v4451, 0.0
        %vm4484 = vcmp.ge.f32.partialorder %v4452, 0.0
        %vm4485 = vcmp.ge.f32.partialorder %v4453, 0.0
        %vm4486 = vcmp.ge.f32.partialorder %v4454, 0.0
        %vm4487 = vcmp.ge.f32.partialorder %v4455, 0.0
        %vm4488 = vcmp.ge.f32.partialorder %v4456, 0.0
        %vm4489 = vcmp.ge.f32.partialorder %v4457, 0.0
        %vm4490 = vcmp.ge.f32.partialorder %v4458, 0.0
        %vm4491 = vcmp.ge.f32.partialorder %v4459, 0.0
        %vm4492 = vcmp.ge.f32.partialorder %v4460, 0.0
        %vm4493 = vcmp.ge.f32.partialorder %v4461, 0.0
        %vm4494 = vcmp.ge.f32.partialorder %v4462, 0.0
        %vm4495 = vcmp.ge.f32.partialorder %v4463, 0.0
        %vm4496 = vcmp.ge.f32.partialorder %v4464, 0.0
        %vm4497 = vcmp.ge.f32.partialorder %v4465, 0.0
        %vm4498 = vcmp.ge.f32.partialorder %v4466, 0.0
        %vm4499 = vcmp.ge.f32.partialorder %v4467, 0.0
        %vm4500 = vcmp.ge.f32.partialorder %v4468, 0.0
        %vm4501 = vcmp.ge.f32.partialorder %v4469, 0.0
        %vm4502 = vcmp.ge.f32.partialorder %v4470, 0.0
        %vm4503 = vcmp.ge.f32.partialorder %v4471, 0.0
        %vm4504 = vcmp.ge.f32.partialorder %v4472, 0.0
        %vm4505 = vcmp.ge.f32.partialorder %v4473, 0.0
        %vm4506 = vcmp.ge.f32.partialorder %v4474, 0.0
        %vm4507 = vcmp.ge.f32.partialorder %v4475, 0.0
        %vm4508 = vcmp.ge.f32.partialorder %v4476, 0.0
        %vm4509 = vcmp.ge.f32.partialorder %v4477, 0.0
        %vm4510 = vcmp.ge.f32.partialorder %v4478, 0.0
        %vm4511 = vcmp.ge.f32.partialorder %v4479, 0.0
        %vm4512 = vcmp.ge.f32.partialorder %v4480, 0.0
        %v4513 = vmul.f32 %v4449, 0.2
        %v4514 = vmul.f32 %v4450, 0.2
        %v4515 = vmul.f32 %v4451, 0.2
        %v4516 = vmul.f32 %v4452, 0.2
        %v4517 = vmul.f32 %v4453, 0.2
        %v4518 = vmul.f32 %v4454, 0.2
        %v4519 = vmul.f32 %v4455, 0.2
        %v4520 = vmul.f32 %v4456, 0.2
        %v4521 = vmul.f32 %v4457, 0.2
        %v4522 = vmul.f32 %v4458, 0.2
        %v4523 = vmul.f32 %v4459, 0.2
        %v4524 = vmul.f32 %v4460, 0.2
        %v4525 = vmul.f32 %v4461, 0.2
        %v4526 = vmul.f32 %v4462, 0.2
        %v4527 = vmul.f32 %v4463, 0.2
        %v4528 = vmul.f32 %v4464, 0.2
        %v4529 = vmul.f32 %v4465, 0.2
        %v4530 = vmul.f32 %v4466, 0.2
        %v4531 = vmul.f32 %v4467, 0.2
        %v4532 = vmul.f32 %v4468, 0.2
        %v4533 = vmul.f32 %v4469, 0.2
        %v4534 = vmul.f32 %v4470, 0.2
        %v4535 = vmul.f32 %v4471, 0.2
        %v4536 = vmul.f32 %v4472, 0.2
        %v4537 = vmul.f32 %v4473, 0.2
        %v4538 = vmul.f32 %v4474, 0.2
        %v4539 = vmul.f32 %v4475, 0.2
        %v4540 = vmul.f32 %v4476, 0.2
        %v4541 = vmul.f32 %v4477, 0.2
        %v4542 = vmul.f32 %v4478, 0.2
        %v4543 = vmul.f32 %v4479, 0.2
        %v4544 = vmul.f32 %v4480, 0.2
        %v4545 = vsel %vm4481, %v4449, %v4513
        %v4546 = vsel %vm4482, %v4450, %v4514
        %v4547 = vsel %vm4483, %v4451, %v4515
        %v4548 = vsel %vm4484, %v4452, %v4516
        %v4549 = vsel %vm4485, %v4453, %v4517
        %v4550 = vsel %vm4486, %v4454, %v4518
        %v4551 = vsel %vm4487, %v4455, %v4519
        %v4552 = vsel %vm4488, %v4456, %v4520
        %v4553 = vsel %vm4489, %v4457, %v4521
        %v4554 = vsel %vm4490, %v4458, %v4522
        %v4555 = vsel %vm4491, %v4459, %v4523
        %v4556 = vsel %vm4492, %v4460, %v4524
        %v4557 = vsel %vm4493, %v4461, %v4525
        %v4558 = vsel %vm4494, %v4462, %v4526
        %v4559 = vsel %vm4495, %v4463, %v4527
        %v4560 = vsel %vm4496, %v4464, %v4528
        %v4561 = vsel %vm4497, %v4465, %v4529
        %v4562 = vsel %vm4498, %v4466, %v4530
        %v4563 = vsel %vm4499, %v4467, %v4531
        %v4564 = vsel %vm4500, %v4468, %v4532
        %v4565 = vsel %vm4501, %v4469, %v4533
        %v4566 = vsel %vm4502, %v4470, %v4534
        %v4567 = vsel %vm4503, %v4471, %v4535
        %v4568 = vsel %vm4504, %v4472, %v4536
        %v4569 = vsel %vm4505, %v4473, %v4537
        %v4570 = vsel %vm4506, %v4474, %v4538
        %v4571 = vsel %vm4507, %v4475, %v4539
        %v4572 = vsel %vm4508, %v4476, %v4540
        %v4573 = vsel %vm4509, %v4477, %v4541
        %v4574 = vsel %vm4510, %v4478, %v4542
        %v4575 = vsel %vm4511, %v4479, %v4543
        %v4576 = vsel %vm4512, %v4480, %v4544
        %v4577 = vadd.f32 %v4545, %v1054
        %v4578 = vadd.f32 %v4546, %v1055
        %v4579 = vadd.f32 %v4547, %v1056
        %v4580 = vadd.f32 %v4548, %v1057
        %v4581 = vadd.f32 %v4549, %v1058
        %v4582 = vadd.f32 %v4550, %v1059
        %v4583 = vadd.f32 %v4551, %v1060
        %v4584 = vadd.f32 %v4552, %v1061
        %v4585 = vadd.f32 %v4553, %v1062
        %v4586 = vadd.f32 %v4554, %v1063
        %v4587 = vadd.f32 %v4555, %v1064
        %v4588 = vadd.f32 %v4556, %v1065
        %v4589 = vadd.f32 %v4557, %v1066
        %v4590 = vadd.f32 %v4558, %v1067
        %v4591 = vadd.f32 %v4559, %v1068
        %v4592 = vadd.f32 %v4560, %v1069
        %v4593 = vadd.f32 %v4561, %v1070
        %v4594 = vadd.f32 %v4562, %v1071
        %v4595 = vadd.f32 %v4563, %v1072
        %v4596 = vadd.f32 %v4564, %v1073
        %v4597 = vadd.f32 %v4565, %v1074
        %v4598 = vadd.f32 %v4566, %v1075
        %v4599 = vadd.f32 %v4567, %v1076
        %v4600 = vadd.f32 %v4568, %v1077
        %v4601 = vadd.f32 %v4569, %v1078
        %v4602 = vadd.f32 %v4570, %v1079
        %v4603 = vadd.f32 %v4571, %v1080
        %v4604 = vadd.f32 %v4572, %v1081
        %v4605 = vadd.f32 %v4573, %v1082
        %v4606 = vadd.f32 %v4574, %v1083
        %v4607 = vadd.f32 %v4575, %v1084
        %v4608 = vadd.f32 %v4576, %v1085
        %v4609 = vmax.f32 %v4577, %v4578
        %4610 = vmax.xlane.f32.xlu0 %v4609
        %v4611 = vpop.xlane.xlu0 %4610
        %v4612 = vmax.f32 %v4579, %v4580
        %4613 = vmax.xlane.f32.xlu0 %v4612
        %v4614 = vpop.xlane.xlu0 %4613
        %v4615 = vmax.f32 %v4581, %v4582
        %4616 = vmax.xlane.f32.xlu0 %v4615
        %v4617 = vpop.xlane.xlu0 %4616
        %v4618 = vmax.f32 %v4583, %v4584
        %4619 = vmax.xlane.f32.xlu0 %v4618
        %v4620 = vpop.xlane.xlu0 %4619
        %v4621 = vmax.f32 %v4585, %v4586
        %4622 = vmax.xlane.f32.xlu0 %v4621
        %v4623 = vpop.xlane.xlu0 %4622
        %v4624 = vmax.f32 %v4587, %v4588
        %4625 = vmax.xlane.f32.xlu0 %v4624
        %v4626 = vpop.xlane.xlu0 %4625
        %v4627 = vmax.f32 %v4589, %v4590
        %4628 = vmax.xlane.f32.xlu0 %v4627
        %v4629 = vpop.xlane.xlu0 %4628
        %v4630 = vmax.f32 %v4591, %v4592
        %4631 = vmax.xlane.f32.xlu0 %v4630
        %v4632 = vpop.xlane.xlu0 %4631
        %v4633 = vmax.f32 %v4593, %v4594
        %4634 = vmax.xlane.f32.xlu0 %v4633
        %v4635 = vpop.xlane.xlu0 %4634
        %v4636 = vmax.f32 %v4595, %v4596
        %4637 = vmax.xlane.f32.xlu0 %v4636
        %v4638 = vpop.xlane.xlu0 %4637
        %v4639 = vmax.f32 %v4597, %v4598
        %4640 = vmax.xlane.f32.xlu0 %v4639
        %v4641 = vpop.xlane.xlu0 %4640
        %v4642 = vmax.f32 %v4599, %v4600
        %4643 = vmax.xlane.f32.xlu0 %v4642
        %v4644 = vpop.xlane.xlu0 %4643
        %v4645 = vmax.f32 %v4601, %v4602
        %4646 = vmax.xlane.f32.xlu0 %v4645
        %v4647 = vpop.xlane.xlu0 %4646
        %v4648 = vmax.f32 %v4603, %v4604
        %4649 = vmax.xlane.f32.xlu0 %v4648
        %v4650 = vpop.xlane.xlu0 %4649
        %v4651 = vmax.f32 %v4605, %v4606
        %4652 = vmax.xlane.f32.xlu0 %v4651
        %v4653 = vpop.xlane.xlu0 %4652
        %v4654 = vmax.f32 %v4607, %v4608
        %4655 = vmax.xlane.f32.xlu0 %v4654
        %v4656 = vpop.xlane.xlu0 %4655
        %v4657 = vsub.f32 %v4577, %v4611
        %v4658 = vsub.f32 %v4578, %v4611
        %v4659 = vsub.f32 %v4579, %v4614
        %v4660 = vsub.f32 %v4580, %v4614
        %v4661 = vsub.f32 %v4581, %v4617
        %v4662 = vsub.f32 %v4582, %v4617
        %v4663 = vsub.f32 %v4583, %v4620
        %v4664 = vsub.f32 %v4584, %v4620
        %v4665 = vsub.f32 %v4585, %v4623
        %v4666 = vsub.f32 %v4586, %v4623
        %v4667 = vsub.f32 %v4587, %v4626
        %v4668 = vsub.f32 %v4588, %v4626
        %v4669 = vsub.f32 %v4589, %v4629
        %v4670 = vsub.f32 %v4590, %v4629
        %v4671 = vsub.f32 %v4591, %v4632
        %v4672 = vsub.f32 %v4592, %v4632
        %v4673 = vsub.f32 %v4593, %v4635
        %v4674 = vsub.f32 %v4594, %v4635
        %v4675 = vsub.f32 %v4595, %v4638
        %v4676 = vsub.f32 %v4596, %v4638
        %v4677 = vsub.f32 %v4597, %v4641
        %v4678 = vsub.f32 %v4598, %v4641
        %v4679 = vsub.f32 %v4599, %v4644
        %v4680 = vsub.f32 %v4600, %v4644
        %v4681 = vsub.f32 %v4601, %v4647
        %v4682 = vsub.f32 %v4602, %v4647
        %v4683 = vsub.f32 %v4603, %v4650
        %v4684 = vsub.f32 %v4604, %v4650
        %v4685 = vsub.f32 %v4605, %v4653
        %v4686 = vsub.f32 %v4606, %v4653
        %v4687 = vsub.f32 %v4607, %v4656
        %v4688 = vsub.f32 %v4608, %v4656
        %v4689 = vmul.f32 %v4657, 1.442695
        %v4690 = vpow.pop %v4689
        %v4691 = vmul.f32 %v4658, 1.442695
        %v4692 = vpow.pop %v4691
        %v4693 = vmul.f32 %v4659, 1.442695
        %v4694 = vpow.pop %v4693
        %v4695 = vmul.f32 %v4660, 1.442695
        %v4696 = vpow.pop %v4695
        %v4697 = vmul.f32 %v4661, 1.442695
        %v4698 = vpow.pop %v4697
        %v4699 = vmul.f32 %v4662, 1.442695
        %v4700 = vpow.pop %v4699
        %v4701 = vmul.f32 %v4663, 1.442695
        %v4702 = vpow.pop %v4701
        %v4703 = vmul.f32 %v4664, 1.442695
        %v4704 = vpow.pop %v4703
        %v4705 = vmul.f32 %v4665, 1.442695
        %v4706 = vpow.pop %v4705
        %v4707 = vmul.f32 %v4666, 1.442695
        %v4708 = vpow.pop %v4707
        %v4709 = vmul.f32 %v4667, 1.442695
        %v4710 = vpow.pop %v4709
        %v4711 = vmul.f32 %v4668, 1.442695
        %v4712 = vpow.pop %v4711
        %v4713 = vmul.f32 %v4669, 1.442695
        %v4714 = vpow.pop %v4713
        %v4715 = vmul.f32 %v4670, 1.442695
        %v4716 = vpow.pop %v4715
        %v4717 = vmul.f32 %v4671, 1.442695
        %v4718 = vpow.pop %v4717
        %v4719 = vmul.f32 %v4672, 1.442695
        %v4720 = vpow.pop %v4719
        %v4721 = vmul.f32 %v4673, 1.442695
        %v4722 = vpow.pop %v4721
        %v4723 = vmul.f32 %v4674, 1.442695
        %v4724 = vpow.pop %v4723
        %v4725 = vmul.f32 %v4675, 1.442695
        %v4726 = vpow.pop %v4725
        %v4727 = vmul.f32 %v4676, 1.442695
        %v4728 = vpow.pop %v4727
        %v4729 = vmul.f32 %v4677, 1.442695
        %v4730 = vpow.pop %v4729
        %v4731 = vmul.f32 %v4678, 1.442695
        %v4732 = vpow.pop %v4731
        %v4733 = vmul.f32 %v4679, 1.442695
        %v4734 = vpow.pop %v4733
        %v4735 = vmul.f32 %v4680, 1.442695
        %v4736 = vpow.pop %v4735
        %v4737 = vmul.f32 %v4681, 1.442695
        %v4738 = vpow.pop %v4737
        %v4739 = vmul.f32 %v4682, 1.442695
        %v4740 = vpow.pop %v4739
        %v4741 = vmul.f32 %v4683, 1.442695
        %v4742 = vpow.pop %v4741
        %v4743 = vmul.f32 %v4684, 1.442695
        %v4744 = vpow.pop %v4743
        %v4745 = vmul.f32 %v4685, 1.442695
        %v4746 = vpow.pop %v4745
        %v4747 = vmul.f32 %v4686, 1.442695
        %v4748 = vpow.pop %v4747
        %v4749 = vmul.f32 %v4687, 1.442695
        %v4750 = vpow.pop %v4749
        %v4751 = vmul.f32 %v4688, 1.442695
        %v4752 = vpow.pop %v4751
        %v4753 = vadd.f32 %v4690, %v4692
        %4754 = vadd.xlane.f32.xlu0 %v4753
        %v4755 = vpop.xlane.xlu0 %4754
        %v4756 = vadd.f32 %v4694, %v4696
        %4757 = vadd.xlane.f32.xlu0 %v4756
        %v4758 = vpop.xlane.xlu0 %4757
        %v4759 = vadd.f32 %v4698, %v4700
        %4760 = vadd.xlane.f32.xlu0 %v4759
        %v4761 = vpop.xlane.xlu0 %4760
        %v4762 = vadd.f32 %v4702, %v4704
        %4763 = vadd.xlane.f32.xlu0 %v4762
        %v4764 = vpop.xlane.xlu0 %4763
        %v4765 = vadd.f32 %v4706, %v4708
        %4766 = vadd.xlane.f32.xlu0 %v4765
        %v4767 = vpop.xlane.xlu0 %4766
        %v4768 = vadd.f32 %v4710, %v4712
        %4769 = vadd.xlane.f32.xlu0 %v4768
        %v4770 = vpop.xlane.xlu0 %4769
        %v4771 = vadd.f32 %v4714, %v4716
        %4772 = vadd.xlane.f32.xlu0 %v4771
        %v4773 = vpop.xlane.xlu0 %4772
        %v4774 = vadd.f32 %v4718, %v4720
        %4775 = vadd.xlane.f32.xlu0 %v4774
        %v4776 = vpop.xlane.xlu0 %4775
        %v4777 = vadd.f32 %v4722, %v4724
        %4778 = vadd.xlane.f32.xlu0 %v4777
        %v4779 = vpop.xlane.xlu0 %4778
        %v4780 = vadd.f32 %v4726, %v4728
        %4781 = vadd.xlane.f32.xlu0 %v4780
        %v4782 = vpop.xlane.xlu0 %4781
        %v4783 = vadd.f32 %v4730, %v4732
        %4784 = vadd.xlane.f32.xlu0 %v4783
        %v4785 = vpop.xlane.xlu0 %4784
        %v4786 = vadd.f32 %v4734, %v4736
        %4787 = vadd.xlane.f32.xlu0 %v4786
        %v4788 = vpop.xlane.xlu0 %4787
        %v4789 = vadd.f32 %v4738, %v4740
        %4790 = vadd.xlane.f32.xlu0 %v4789
        %v4791 = vpop.xlane.xlu0 %4790
        %v4792 = vadd.f32 %v4742, %v4744
        %4793 = vadd.xlane.f32.xlu0 %v4792
        %v4794 = vpop.xlane.xlu0 %4793
        %v4795 = vadd.f32 %v4746, %v4748
        %4796 = vadd.xlane.f32.xlu0 %v4795
        %v4797 = vpop.xlane.xlu0 %4796
        %v4798 = vadd.f32 %v4750, %v4752
        %4799 = vadd.xlane.f32.xlu0 %v4798
        %v4800 = vpop.xlane.xlu0 %4799
        %v4801 = vrcp.pop %v4755
        %v4802 = vrcp.pop %v4758
        %v4803 = vrcp.pop %v4761
        %v4804 = vrcp.pop %v4764
        %v4805 = vrcp.pop %v4767
        %v4806 = vrcp.pop %v4770
        %v4807 = vrcp.pop %v4773
        %v4808 = vrcp.pop %v4776
        %v4809 = vrcp.pop %v4779
        %v4810 = vrcp.pop %v4782
        %v4811 = vrcp.pop %v4785
        %v4812 = vrcp.pop %v4788
        %v4813 = vrcp.pop %v4791
        %v4814 = vrcp.pop %v4794
        %v4815 = vrcp.pop %v4797
        %v4816 = vrcp.pop %v4800
        %v4817 = vmul.f32 %v4690, %v4801
        %v4818 = vmul.f32 %v4692, %v4801
        %v4819 = vmul.f32 %v4694, %v4802
        %v4820 = vmul.f32 %v4696, %v4802
        %v4821 = vmul.f32 %v4698, %v4803
        %v4822 = vmul.f32 %v4700, %v4803
        %v4823 = vmul.f32 %v4702, %v4804
        %v4824 = vmul.f32 %v4704, %v4804
        %v4825 = vmul.f32 %v4706, %v4805
        %v4826 = vmul.f32 %v4708, %v4805
        %v4827 = vmul.f32 %v4710, %v4806
        %v4828 = vmul.f32 %v4712, %v4806
        %v4829 = vmul.f32 %v4714, %v4807
        %v4830 = vmul.f32 %v4716, %v4807
        %v4831 = vmul.f32 %v4718, %v4808
        %v4832 = vmul.f32 %v4720, %v4808
        %v4833 = vmul.f32 %v4722, %v4809
        %v4834 = vmul.f32 %v4724, %v4809
        %v4835 = vmul.f32 %v4726, %v4810
        %v4836 = vmul.f32 %v4728, %v4810
        %v4837 = vmul.f32 %v4730, %v4811
        %v4838 = vmul.f32 %v4732, %v4811
        %v4839 = vmul.f32 %v4734, %v4812
        %v4840 = vmul.f32 %v4736, %v4812
        %v4841 = vmul.f32 %v4738, %v4813
        %v4842 = vmul.f32 %v4740, %v4813
        %v4843 = vmul.f32 %v4742, %v4814
        %v4844 = vmul.f32 %v4744, %v4814
        %v4845 = vmul.f32 %v4746, %v4815
        %v4846 = vmul.f32 %v4748, %v4815
        %v4847 = vmul.f32 %v4750, %v4816
        %v4848 = vmul.f32 %v4752, %v4816
        %vm4849 = vcmp.ge.s32.totalorder %v1087, 20
        %vm4850 = vcmp.lt.s32.totalorder %v1087, 24
        %vm4851 = vmand %vm4849, %vm4850
        %v4852 = vsel %vm4851, 1, 0
        %vm4853 = vcmp.eq.s32.totalorder %v4852, 1
        %v4854 = vsel %vm4853, %v535, 0.0
        %v4855 = vsel %vm4853, %v540, 0.0
        %v4856 = vsel %vm4853, %v545, 0.0
        %v4857 = vsel %vm4853, %v550, 0.0
        %v4858 = vsel %vm4853, %v555, 0.0
        %v4859 = vsel %vm4853, %v560, 0.0
        %v4860 = vsel %vm4853, %v565, 0.0
        %v4861 = vsel %vm4853, %v570, 0.0
        %v4862 = vsel %vm4853, %v575, 0.0
        %v4863 = vsel %vm4853, %v580, 0.0
        %v4864 = vsel %vm4853, %v585, 0.0
        %v4865 = vsel %vm4853, %v590, 0.0
        %v4866 = vsel %vm4853, %v595, 0.0
        %v4867 = vsel %vm4853, %v600, 0.0
        %v4868 = vsel %vm4853, %v605, 0.0
        %v4869 = vsel %vm4853, %v610, 0.0
        %v4870 = vsel %vm4853, %v615, 0.0
        %v4871 = vsel %vm4853, %v620, 0.0
        %v4872 = vsel %vm4853, %v625, 0.0
        %v4873 = vsel %vm4853, %v630, 0.0
        %v4874 = vsel %vm4853, %v635, 0.0
        %v4875 = vsel %vm4853, %v640, 0.0
        %v4876 = vsel %vm4853, %v645, 0.0
        %v4877 = vsel %vm4853, %v650, 0.0
        %v4878 = vsel %vm4853, %v655, 0.0
        %v4879 = vsel %vm4853, %v660, 0.0
        %v4880 = vsel %vm4853, %v665, 0.0
        %v4881 = vsel %vm4853, %v670, 0.0
        %v4882 = vsel %vm4853, %v675, 0.0
        %v4883 = vsel %vm4853, %v680, 0.0
        %v4884 = vsel %vm4853, %v685, 0.0
        %v4885 = vsel %vm4853, %v690, 0.0
        %v4886 = vpack.c.bf16 %v4855, %v4854
        %v4887 = vpack.c.bf16 %v4857, %v4856
        %v4888 = vpack.c.bf16 %v4859, %v4858
        %v4889 = vpack.c.bf16 %v4861, %v4860
        %v4890 = vpack.c.bf16 %v4863, %v4862
        %v4891 = vpack.c.bf16 %v4865, %v4864
        %v4892 = vpack.c.bf16 %v4867, %v4866
        %v4893 = vpack.c.bf16 %v4869, %v4868
        %v4894 = vpack.c.bf16 %v4871, %v4870
        %v4895 = vpack.c.bf16 %v4873, %v4872
        %v4896 = vpack.c.bf16 %v4875, %v4874
        %v4897 = vpack.c.bf16 %v4877, %v4876
        %v4898 = vpack.c.bf16 %v4879, %v4878
        %v4899 = vpack.c.bf16 %v4881, %v4880
        %v4900 = vpack.c.bf16 %v4883, %v4882
        %v4901 = vpack.c.bf16 %v4885, %v4884
        %v4902 = vpack.c.bf16 %v4819, %v4817
        %v4903 = vpack.c.bf16 %v4820, %v4818
        %v4904 = vpack.c.bf16 %v4823, %v4821
        %v4905 = vpack.c.bf16 %v4824, %v4822
        %v4906 = vpack.c.bf16 %v4827, %v4825
        %v4907 = vpack.c.bf16 %v4828, %v4826
        %v4908 = vpack.c.bf16 %v4831, %v4829
        %v4909 = vpack.c.bf16 %v4832, %v4830
        %v4910 = vpack.c.bf16 %v4835, %v4833
        %v4911 = vpack.c.bf16 %v4836, %v4834
        %v4912 = vpack.c.bf16 %v4839, %v4837
        %v4913 = vpack.c.bf16 %v4840, %v4838
        %v4914 = vpack.c.bf16 %v4843, %v4841
        %v4915 = vpack.c.bf16 %v4844, %v4842
        %v4916 = vpack.c.bf16 %v4847, %v4845
        %v4917 = vpack.c.bf16 %v4848, %v4846
        %4918 = vmatprep.subr.bf16.mxu0 0
        %4919 = vmatpush1.bf16.msra.mxu0 %v4893
        %4920 = vmatprep.subr.bf16.mxu0 0
        %4921 = vmatpush1.bf16.msra.mxu0 %v4892
        %4922 = vmatprep.subr.bf16.mxu0 0
        %4923 = vmatpush1.bf16.msra.mxu0 %v4891
        %4924 = vmatprep.subr.bf16.mxu0 0
        %4925 = vmatpush1.bf16.msra.mxu0 %v4890
        %4926 = vmatprep.subr.bf16.mxu0 0
        %4927 = vmatpush1.bf16.msra.mxu0 %v4889
        %4928 = vmatprep.subr.bf16.mxu0 0
        %4929 = vmatpush1.bf16.msra.mxu0 %v4888
        %4930 = vmatprep.subr.bf16.mxu0 0
        %4931 = vmatpush1.bf16.msra.mxu0 %v4887
        %4932 = vmatprep.subr.bf16.mxu0 0
        %4933 = vmatpush1.bf16.msra.mxu0 %v4886
        %4934 = vmatprep.subr.bf16.mxu0 0
        %4935 = vmatpush2.bf16.msra.mxu0 %v4901
        %4936 = vmatprep.subr.bf16.mxu0 0
        %4937 = vmatpush2.bf16.msra.mxu0 %v4900
        %4938 = vmatprep.subr.bf16.mxu0 0
        %4939 = vmatpush2.bf16.msra.mxu0 %v4899
        %4940 = vmatprep.subr.bf16.mxu0 0
        %4941 = vmatpush2.bf16.msra.mxu0 %v4898
        %4942 = vmatprep.subr.bf16.mxu0 0
        %4943 = vmatpush2.bf16.msra.mxu0 %v4897
        %4944 = vmatprep.subr.bf16.mxu0 0
        %4945 = vmatpush2.bf16.msra.mxu0 %v4896
        %4946 = vmatprep.subr.bf16.mxu0 0
        %4947 = vmatpush2.bf16.msra.mxu0 %v4895
        %4948 = vmatprep.subr.bf16.mxu0 0
        %4949 = vmatpush2.bf16.msra.mxu0 %v4894
        %4950 = vmatprep.mubr.bf16.mxu0 %v4903
        %4951 = vmatmul.mubr.bf16.gmra.mxu0 %v4902
        %v4952 = vpop.f32.mrf.mxu0
        %v4953 = vadd.f32 0.0, %v4952
        %v4954 = vpop.f32.mrf.mxu0
        %v4955 = vpop.f32.mrf.mxu0
        %v4956 = vadd.f32 0.0, %v4955
        %v4957 = vpop.f32.mrf.mxu0
        %4958 = vmatprep.mubr.bf16.mxu0 %v4905
        %4959 = vmatmul.mubr.bf16.gmra.mxu0 %v4904
        %v4960 = vpop.f32.mrf.mxu0
        %v4961 = vadd.f32 0.0, %v4960
        %v4962 = vpop.f32.mrf.mxu0
        %v4963 = vpop.f32.mrf.mxu0
        %v4964 = vadd.f32 0.0, %v4963
        %v4965 = vpop.f32.mrf.mxu0
        %4966 = vmatprep.mubr.bf16.mxu0 %v4907
        %4967 = vmatmul.mubr.bf16.gmra.mxu0 %v4906
        %v4968 = vpop.f32.mrf.mxu0
        %v4969 = vadd.f32 0.0, %v4968
        %v4970 = vpop.f32.mrf.mxu0
        %v4971 = vpop.f32.mrf.mxu0
        %v4972 = vadd.f32 0.0, %v4971
        %v4973 = vpop.f32.mrf.mxu0
        %4974 = vmatprep.mubr.bf16.mxu0 %v4909
        %4975 = vmatmul.mubr.bf16.gmra.mxu0 %v4908
        %v4976 = vpop.f32.mrf.mxu0
        %v4977 = vadd.f32 0.0, %v4976
        %v4978 = vpop.f32.mrf.mxu0
        %v4979 = vpop.f32.mrf.mxu0
        %v4980 = vadd.f32 0.0, %v4979
        %v4981 = vpop.f32.mrf.mxu0
        %4982 = vmatprep.mubr.bf16.mxu0 %v4911
        %4983 = vmatmul.mubr.bf16.gmra.mxu0 %v4910
        %v4984 = vpop.f32.mrf.mxu0
        %v4985 = vadd.f32 0.0, %v4984
        %v4986 = vpop.f32.mrf.mxu0
        %v4987 = vpop.f32.mrf.mxu0
        %v4988 = vadd.f32 0.0, %v4987
        %v4989 = vpop.f32.mrf.mxu0
        %4990 = vmatprep.mubr.bf16.mxu0 %v4913
        %4991 = vmatmul.mubr.bf16.gmra.mxu0 %v4912
        %v4992 = vpop.f32.mrf.mxu0
        %v4993 = vadd.f32 0.0, %v4992
        %v4994 = vpop.f32.mrf.mxu0
        %v4995 = vpop.f32.mrf.mxu0
        %v4996 = vadd.f32 0.0, %v4995
        %v4997 = vpop.f32.mrf.mxu0
        %4998 = vmatprep.mubr.bf16.mxu0 %v4915
        %4999 = vmatmul.mubr.bf16.gmra.mxu0 %v4914
        %v5000 = vpop.f32.mrf.mxu0
        %v5001 = vadd.f32 0.0, %v5000
        %v5002 = vpop.f32.mrf.mxu0
        %v5003 = vpop.f32.mrf.mxu0
        %v5004 = vadd.f32 0.0, %v5003
        %v5005 = vpop.f32.mrf.mxu0
        %5006 = vmatprep.mubr.bf16.mxu0 %v4917
        %5007 = vmatmul.mubr.bf16.gmra.mxu0 %v4916
        %v5008 = vpop.f32.mrf.mxu0
        %v5009 = vadd.f32 0.0, %v5008
        %v5010 = vpop.f32.mrf.mxu0
        %v5011 = vpop.f32.mrf.mxu0
        %v5012 = vadd.f32 0.0, %v5011
        %v5013 = vpop.f32.mrf.mxu0
        %5014 = vdwg.mxu0
        %v5015 = vadd.f32 %v4353, %v4953
        %v5016 = vadd.f32 %v4354, %v4956
        %v5017 = vadd.f32 %v4355, %v4961
        %v5018 = vadd.f32 %v4356, %v4964
        %v5019 = vadd.f32 %v4357, %v4969
        %v5020 = vadd.f32 %v4358, %v4972
        %v5021 = vadd.f32 %v4359, %v4977
        %v5022 = vadd.f32 %v4360, %v4980
        %v5023 = vadd.f32 %v4361, %v4985
        %v5024 = vadd.f32 %v4362, %v4988
        %v5025 = vadd.f32 %v4363, %v4993
        %v5026 = vadd.f32 %v4364, %v4996
        %v5027 = vadd.f32 %v4365, %v5001
        %v5028 = vadd.f32 %v4366, %v5004
        %v5029 = vadd.f32 %v4367, %v5009
        %v5030 = vadd.f32 %v4368, %v5012
        %vm5031 = vcmp.eq.s32.totalorder %v1087, 6
        %v5032 = vsel %vm5031, %v896, 0.0
        %v5033 = vsel %vm5031, %v901, 0.0
        %v5034 = vsel %vm5031, %v906, 0.0
        %v5035 = vsel %vm5031, %v911, 0.0
        %v5036 = vsel %vm5031, %v916, 0.0
        %v5037 = vsel %vm5031, %v921, 0.0
        %v5038 = vsel %vm5031, %v926, 0.0
        %v5039 = vsel %vm5031, %v931, 0.0
        %v5040 = vsel %vm5031, %v936, 0.0
        %v5041 = vsel %vm5031, %v941, 0.0
        %v5042 = vsel %vm5031, %v946, 0.0
        %v5043 = vsel %vm5031, %v951, 0.0
        %v5044 = vsel %vm5031, %v956, 0.0
        %v5045 = vsel %vm5031, %v961, 0.0
        %v5046 = vsel %vm5031, %v966, 0.0
        %v5047 = vsel %vm5031, %v971, 0.0
        %v5048 = vsel %vm1107, %v5032, 0.0
        %5049 = vadd.xlane.f32.xlu0 %v5048
        %v5050 = vpop.xlane.xlu0 %5049
        %v5051 = vsel %vm1107, %v5033, 0.0
        %5052 = vadd.xlane.f32.xlu0 %v5051
        %v5053 = vpop.xlane.xlu0 %5052
        %v5054 = vsel %vm1107, %v5034, 0.0
        %5055 = vadd.xlane.f32.xlu0 %v5054
        %v5056 = vpop.xlane.xlu0 %5055
        %v5057 = vsel %vm1107, %v5035, 0.0
        %5058 = vadd.xlane.f32.xlu0 %v5057
        %v5059 = vpop.xlane.xlu0 %5058
        %v5060 = vsel %vm1107, %v5036, 0.0
        %5061 = vadd.xlane.f32.xlu0 %v5060
        %v5062 = vpop.xlane.xlu0 %5061
        %v5063 = vsel %vm1107, %v5037, 0.0
        %5064 = vadd.xlane.f32.xlu0 %v5063
        %v5065 = vpop.xlane.xlu0 %5064
        %v5066 = vsel %vm1107, %v5038, 0.0
        %5067 = vadd.xlane.f32.xlu0 %v5066
        %v5068 = vpop.xlane.xlu0 %5067
        %v5069 = vsel %vm1107, %v5039, 0.0
        %5070 = vadd.xlane.f32.xlu0 %v5069
        %v5071 = vpop.xlane.xlu0 %5070
        %v5072 = vsel %vm1107, %v5040, 0.0
        %5073 = vadd.xlane.f32.xlu0 %v5072
        %v5074 = vpop.xlane.xlu0 %5073
        %v5075 = vsel %vm1107, %v5041, 0.0
        %5076 = vadd.xlane.f32.xlu0 %v5075
        %v5077 = vpop.xlane.xlu0 %5076
        %v5078 = vsel %vm1107, %v5042, 0.0
        %5079 = vadd.xlane.f32.xlu0 %v5078
        %v5080 = vpop.xlane.xlu0 %5079
        %v5081 = vsel %vm1107, %v5043, 0.0
        %5082 = vadd.xlane.f32.xlu0 %v5081
        %v5083 = vpop.xlane.xlu0 %5082
        %v5084 = vsel %vm1107, %v5044, 0.0
        %5085 = vadd.xlane.f32.xlu0 %v5084
        %v5086 = vpop.xlane.xlu0 %5085
        %v5087 = vsel %vm1107, %v5045, 0.0
        %5088 = vadd.xlane.f32.xlu0 %v5087
        %v5089 = vpop.xlane.xlu0 %5088
        %v5090 = vsel %vm1107, %v5046, 0.0
        %5091 = vadd.xlane.f32.xlu0 %v5090
        %v5092 = vpop.xlane.xlu0 %5091
        %v5093 = vsel %vm1107, %v5047, 0.0
        %5094 = vadd.xlane.f32.xlu0 %v5093
        %v5095 = vpop.xlane.xlu0 %5094
        %vm5096 = vcmp.eq.s32.totalorder %v1089, 6
        %v5097 = vsel %vm5096, %v793, 0.0
        %v5098 = vsel %vm5096, %v795, 0.0
        %v5099 = vrot.slane %v5097, 4
        %v5100 = vadd.f32 %v5097, %v5099
        %v5101 = vrot.slane %v5100, 2
        %v5102 = vadd.f32 %v5100, %v5101
        %v5103 = vrot.slane %v5102, 1
        %v5104 = vadd.f32 %v5102, %v5103
        %v5105 = vrot.slane %v5098, 4
        %v5106 = vadd.f32 %v5098, %v5105
        %v5107 = vrot.slane %v5106, 2
        %v5108 = vadd.f32 %v5106, %v5107
        %v5109 = vrot.slane %v5108, 1
        %v5110 = vadd.f32 %v5108, %v5109
        %v5111 = vadd.f32 %v5050, %v5104
        %v5112 = vadd.f32 %v5050, %v5110
        %v5113 = vadd.f32 %v5053, %v5104
        %v5114 = vadd.f32 %v5053, %v5110
        %v5115 = vadd.f32 %v5056, %v5104
        %v5116 = vadd.f32 %v5056, %v5110
        %v5117 = vadd.f32 %v5059, %v5104
        %v5118 = vadd.f32 %v5059, %v5110
        %v5119 = vadd.f32 %v5062, %v5104
        %v5120 = vadd.f32 %v5062, %v5110
        %v5121 = vadd.f32 %v5065, %v5104
        %v5122 = vadd.f32 %v5065, %v5110
        %v5123 = vadd.f32 %v5068, %v5104
        %v5124 = vadd.f32 %v5068, %v5110
        %v5125 = vadd.f32 %v5071, %v5104
        %v5126 = vadd.f32 %v5071, %v5110
        %v5127 = vadd.f32 %v5074, %v5104
        %v5128 = vadd.f32 %v5074, %v5110
        %v5129 = vadd.f32 %v5077, %v5104
        %v5130 = vadd.f32 %v5077, %v5110
        %v5131 = vadd.f32 %v5080, %v5104
        %v5132 = vadd.f32 %v5080, %v5110
        %v5133 = vadd.f32 %v5083, %v5104
        %v5134 = vadd.f32 %v5083, %v5110
        %v5135 = vadd.f32 %v5086, %v5104
        %v5136 = vadd.f32 %v5086, %v5110
        %v5137 = vadd.f32 %v5089, %v5104
        %v5138 = vadd.f32 %v5089, %v5110
        %v5139 = vadd.f32 %v5092, %v5104
        %v5140 = vadd.f32 %v5092, %v5110
        %v5141 = vadd.f32 %v5095, %v5104
        %v5142 = vadd.f32 %v5095, %v5110
        %vm5143 = vcmp.ge.f32.partialorder %v5111, 0.0
        %vm5144 = vcmp.ge.f32.partialorder %v5112, 0.0
        %vm5145 = vcmp.ge.f32.partialorder %v5113, 0.0
        %vm5146 = vcmp.ge.f32.partialorder %v5114, 0.0
        %vm5147 = vcmp.ge.f32.partialorder %v5115, 0.0
        %vm5148 = vcmp.ge.f32.partialorder %v5116, 0.0
        %vm5149 = vcmp.ge.f32.partialorder %v5117, 0.0
        %vm5150 = vcmp.ge.f32.partialorder %v5118, 0.0
        %vm5151 = vcmp.ge.f32.partialorder %v5119, 0.0
        %vm5152 = vcmp.ge.f32.partialorder %v5120, 0.0
        %vm5153 = vcmp.ge.f32.partialorder %v5121, 0.0
        %vm5154 = vcmp.ge.f32.partialorder %v5122, 0.0
        %vm5155 = vcmp.ge.f32.partialorder %v5123, 0.0
        %vm5156 = vcmp.ge.f32.partialorder %v5124, 0.0
        %vm5157 = vcmp.ge.f32.partialorder %v5125, 0.0
        %vm5158 = vcmp.ge.f32.partialorder %v5126, 0.0
        %vm5159 = vcmp.ge.f32.partialorder %v5127, 0.0
        %vm5160 = vcmp.ge.f32.partialorder %v5128, 0.0
        %vm5161 = vcmp.ge.f32.partialorder %v5129, 0.0
        %vm5162 = vcmp.ge.f32.partialorder %v5130, 0.0
        %vm5163 = vcmp.ge.f32.partialorder %v5131, 0.0
        %vm5164 = vcmp.ge.f32.partialorder %v5132, 0.0
        %vm5165 = vcmp.ge.f32.partialorder %v5133, 0.0
        %vm5166 = vcmp.ge.f32.partialorder %v5134, 0.0
        %vm5167 = vcmp.ge.f32.partialorder %v5135, 0.0
        %vm5168 = vcmp.ge.f32.partialorder %v5136, 0.0
        %vm5169 = vcmp.ge.f32.partialorder %v5137, 0.0
        %vm5170 = vcmp.ge.f32.partialorder %v5138, 0.0
        %vm5171 = vcmp.ge.f32.partialorder %v5139, 0.0
        %vm5172 = vcmp.ge.f32.partialorder %v5140, 0.0
        %vm5173 = vcmp.ge.f32.partialorder %v5141, 0.0
        %vm5174 = vcmp.ge.f32.partialorder %v5142, 0.0
        %v5175 = vmul.f32 %v5111, 0.2
        %v5176 = vmul.f32 %v5112, 0.2
        %v5177 = vmul.f32 %v5113, 0.2
        %v5178 = vmul.f32 %v5114, 0.2
        %v5179 = vmul.f32 %v5115, 0.2
        %v5180 = vmul.f32 %v5116, 0.2
        %v5181 = vmul.f32 %v5117, 0.2
        %v5182 = vmul.f32 %v5118, 0.2
        %v5183 = vmul.f32 %v5119, 0.2
        %v5184 = vmul.f32 %v5120, 0.2
        %v5185 = vmul.f32 %v5121, 0.2
        %v5186 = vmul.f32 %v5122, 0.2
        %v5187 = vmul.f32 %v5123, 0.2
        %v5188 = vmul.f32 %v5124, 0.2
        %v5189 = vmul.f32 %v5125, 0.2
        %v5190 = vmul.f32 %v5126, 0.2
        %v5191 = vmul.f32 %v5127, 0.2
        %v5192 = vmul.f32 %v5128, 0.2
        %v5193 = vmul.f32 %v5129, 0.2
        %v5194 = vmul.f32 %v5130, 0.2
        %v5195 = vmul.f32 %v5131, 0.2
        %v5196 = vmul.f32 %v5132, 0.2
        %v5197 = vmul.f32 %v5133, 0.2
        %v5198 = vmul.f32 %v5134, 0.2
        %v5199 = vmul.f32 %v5135, 0.2
        %v5200 = vmul.f32 %v5136, 0.2
        %v5201 = vmul.f32 %v5137, 0.2
        %v5202 = vmul.f32 %v5138, 0.2
        %v5203 = vmul.f32 %v5139, 0.2
        %v5204 = vmul.f32 %v5140, 0.2
        %v5205 = vmul.f32 %v5141, 0.2
        %v5206 = vmul.f32 %v5142, 0.2
        %v5207 = vsel %vm5143, %v5111, %v5175
        %v5208 = vsel %vm5144, %v5112, %v5176
        %v5209 = vsel %vm5145, %v5113, %v5177
        %v5210 = vsel %vm5146, %v5114, %v5178
        %v5211 = vsel %vm5147, %v5115, %v5179
        %v5212 = vsel %vm5148, %v5116, %v5180
        %v5213 = vsel %vm5149, %v5117, %v5181
        %v5214 = vsel %vm5150, %v5118, %v5182
        %v5215 = vsel %vm5151, %v5119, %v5183
        %v5216 = vsel %vm5152, %v5120, %v5184
        %v5217 = vsel %vm5153, %v5121, %v5185
        %v5218 = vsel %vm5154, %v5122, %v5186
        %v5219 = vsel %vm5155, %v5123, %v5187
        %v5220 = vsel %vm5156, %v5124, %v5188
        %v5221 = vsel %vm5157, %v5125, %v5189
        %v5222 = vsel %vm5158, %v5126, %v5190
        %v5223 = vsel %vm5159, %v5127, %v5191
        %v5224 = vsel %vm5160, %v5128, %v5192
        %v5225 = vsel %vm5161, %v5129, %v5193
        %v5226 = vsel %vm5162, %v5130, %v5194
        %v5227 = vsel %vm5163, %v5131, %v5195
        %v5228 = vsel %vm5164, %v5132, %v5196
        %v5229 = vsel %vm5165, %v5133, %v5197
        %v5230 = vsel %vm5166, %v5134, %v5198
        %v5231 = vsel %vm5167, %v5135, %v5199
        %v5232 = vsel %vm5168, %v5136, %v5200
        %v5233 = vsel %vm5169, %v5137, %v5201
        %v5234 = vsel %vm5170, %v5138, %v5202
        %v5235 = vsel %vm5171, %v5139, %v5203
        %v5236 = vsel %vm5172, %v5140, %v5204
        %v5237 = vsel %vm5173, %v5141, %v5205
        %v5238 = vsel %vm5174, %v5142, %v5206
        %v5239 = vadd.f32 %v5207, %v1054
        %v5240 = vadd.f32 %v5208, %v1055
        %v5241 = vadd.f32 %v5209, %v1056
        %v5242 = vadd.f32 %v5210, %v1057
        %v5243 = vadd.f32 %v5211, %v1058
        %v5244 = vadd.f32 %v5212, %v1059
        %v5245 = vadd.f32 %v5213, %v1060
        %v5246 = vadd.f32 %v5214, %v1061
        %v5247 = vadd.f32 %v5215, %v1062
        %v5248 = vadd.f32 %v5216, %v1063
        %v5249 = vadd.f32 %v5217, %v1064
        %v5250 = vadd.f32 %v5218, %v1065
        %v5251 = vadd.f32 %v5219, %v1066
        %v5252 = vadd.f32 %v5220, %v1067
        %v5253 = vadd.f32 %v5221, %v1068
        %v5254 = vadd.f32 %v5222, %v1069
        %v5255 = vadd.f32 %v5223, %v1070
        %v5256 = vadd.f32 %v5224, %v1071
        %v5257 = vadd.f32 %v5225, %v1072
        %v5258 = vadd.f32 %v5226, %v1073
        %v5259 = vadd.f32 %v5227, %v1074
        %v5260 = vadd.f32 %v5228, %v1075
        %v5261 = vadd.f32 %v5229, %v1076
        %v5262 = vadd.f32 %v5230, %v1077
        %v5263 = vadd.f32 %v5231, %v1078
        %v5264 = vadd.f32 %v5232, %v1079
        %v5265 = vadd.f32 %v5233, %v1080
        %v5266 = vadd.f32 %v5234, %v1081
        %v5267 = vadd.f32 %v5235, %v1082
        %v5268 = vadd.f32 %v5236, %v1083
        %v5269 = vadd.f32 %v5237, %v1084
        %v5270 = vadd.f32 %v5238, %v1085
        %v5271 = vmax.f32 %v5239, %v5240
        %5272 = vmax.xlane.f32.xlu0 %v5271
        %v5273 = vpop.xlane.xlu0 %5272
        %v5274 = vmax.f32 %v5241, %v5242
        %5275 = vmax.xlane.f32.xlu0 %v5274
        %v5276 = vpop.xlane.xlu0 %5275
        %v5277 = vmax.f32 %v5243, %v5244
        %5278 = vmax.xlane.f32.xlu0 %v5277
        %v5279 = vpop.xlane.xlu0 %5278
        %v5280 = vmax.f32 %v5245, %v5246
        %5281 = vmax.xlane.f32.xlu0 %v5280
        %v5282 = vpop.xlane.xlu0 %5281
        %v5283 = vmax.f32 %v5247, %v5248
        %5284 = vmax.xlane.f32.xlu0 %v5283
        %v5285 = vpop.xlane.xlu0 %5284
        %v5286 = vmax.f32 %v5249, %v5250
        %5287 = vmax.xlane.f32.xlu0 %v5286
        %v5288 = vpop.xlane.xlu0 %5287
        %v5289 = vmax.f32 %v5251, %v5252
        %5290 = vmax.xlane.f32.xlu0 %v5289
        %v5291 = vpop.xlane.xlu0 %5290
        %v5292 = vmax.f32 %v5253, %v5254
        %5293 = vmax.xlane.f32.xlu0 %v5292
        %v5294 = vpop.xlane.xlu0 %5293
        %v5295 = vmax.f32 %v5255, %v5256
        %5296 = vmax.xlane.f32.xlu0 %v5295
        %v5297 = vpop.xlane.xlu0 %5296
        %v5298 = vmax.f32 %v5257, %v5258
        %5299 = vmax.xlane.f32.xlu0 %v5298
        %v5300 = vpop.xlane.xlu0 %5299
        %v5301 = vmax.f32 %v5259, %v5260
        %5302 = vmax.xlane.f32.xlu0 %v5301
        %v5303 = vpop.xlane.xlu0 %5302
        %v5304 = vmax.f32 %v5261, %v5262
        %5305 = vmax.xlane.f32.xlu0 %v5304
        %v5306 = vpop.xlane.xlu0 %5305
        %v5307 = vmax.f32 %v5263, %v5264
        %5308 = vmax.xlane.f32.xlu0 %v5307
        %v5309 = vpop.xlane.xlu0 %5308
        %v5310 = vmax.f32 %v5265, %v5266
        %5311 = vmax.xlane.f32.xlu0 %v5310
        %v5312 = vpop.xlane.xlu0 %5311
        %v5313 = vmax.f32 %v5267, %v5268
        %5314 = vmax.xlane.f32.xlu0 %v5313
        %v5315 = vpop.xlane.xlu0 %5314
        %v5316 = vmax.f32 %v5269, %v5270
        %5317 = vmax.xlane.f32.xlu0 %v5316
        %v5318 = vpop.xlane.xlu0 %5317
        %v5319 = vsub.f32 %v5239, %v5273
        %v5320 = vsub.f32 %v5240, %v5273
        %v5321 = vsub.f32 %v5241, %v5276
        %v5322 = vsub.f32 %v5242, %v5276
        %v5323 = vsub.f32 %v5243, %v5279
        %v5324 = vsub.f32 %v5244, %v5279
        %v5325 = vsub.f32 %v5245, %v5282
        %v5326 = vsub.f32 %v5246, %v5282
        %v5327 = vsub.f32 %v5247, %v5285
        %v5328 = vsub.f32 %v5248, %v5285
        %v5329 = vsub.f32 %v5249, %v5288
        %v5330 = vsub.f32 %v5250, %v5288
        %v5331 = vsub.f32 %v5251, %v5291
        %v5332 = vsub.f32 %v5252, %v5291
        %v5333 = vsub.f32 %v5253, %v5294
        %v5334 = vsub.f32 %v5254, %v5294
        %v5335 = vsub.f32 %v5255, %v5297
        %v5336 = vsub.f32 %v5256, %v5297
        %v5337 = vsub.f32 %v5257, %v5300
        %v5338 = vsub.f32 %v5258, %v5300
        %v5339 = vsub.f32 %v5259, %v5303
        %v5340 = vsub.f32 %v5260, %v5303
        %v5341 = vsub.f32 %v5261, %v5306
        %v5342 = vsub.f32 %v5262, %v5306
        %v5343 = vsub.f32 %v5263, %v5309
        %v5344 = vsub.f32 %v5264, %v5309
        %v5345 = vsub.f32 %v5265, %v5312
        %v5346 = vsub.f32 %v5266, %v5312
        %v5347 = vsub.f32 %v5267, %v5315
        %v5348 = vsub.f32 %v5268, %v5315
        %v5349 = vsub.f32 %v5269, %v5318
        %v5350 = vsub.f32 %v5270, %v5318
        %v5351 = vmul.f32 %v5319, 1.442695
        %v5352 = vpow.pop %v5351
        %v5353 = vmul.f32 %v5320, 1.442695
        %v5354 = vpow.pop %v5353
        %v5355 = vmul.f32 %v5321, 1.442695
        %v5356 = vpow.pop %v5355
        %v5357 = vmul.f32 %v5322, 1.442695
        %v5358 = vpow.pop %v5357
        %v5359 = vmul.f32 %v5323, 1.442695
        %v5360 = vpow.pop %v5359
        %v5361 = vmul.f32 %v5324, 1.442695
        %v5362 = vpow.pop %v5361
        %v5363 = vmul.f32 %v5325, 1.442695
        %v5364 = vpow.pop %v5363
        %v5365 = vmul.f32 %v5326, 1.442695
        %v5366 = vpow.pop %v5365
        %v5367 = vmul.f32 %v5327, 1.442695
        %v5368 = vpow.pop %v5367
        %v5369 = vmul.f32 %v5328, 1.442695
        %v5370 = vpow.pop %v5369
        %v5371 = vmul.f32 %v5329, 1.442695
        %v5372 = vpow.pop %v5371
        %v5373 = vmul.f32 %v5330, 1.442695
        %v5374 = vpow.pop %v5373
        %v5375 = vmul.f32 %v5331, 1.442695
        %v5376 = vpow.pop %v5375
        %v5377 = vmul.f32 %v5332, 1.442695
        %v5378 = vpow.pop %v5377
        %v5379 = vmul.f32 %v5333, 1.442695
        %v5380 = vpow.pop %v5379
        %v5381 = vmul.f32 %v5334, 1.442695
        %v5382 = vpow.pop %v5381
        %v5383 = vmul.f32 %v5335, 1.442695
        %v5384 = vpow.pop %v5383
        %v5385 = vmul.f32 %v5336, 1.442695
        %v5386 = vpow.pop %v5385
        %v5387 = vmul.f32 %v5337, 1.442695
        %v5388 = vpow.pop %v5387
        %v5389 = vmul.f32 %v5338, 1.442695
        %v5390 = vpow.pop %v5389
        %v5391 = vmul.f32 %v5339, 1.442695
        %v5392 = vpow.pop %v5391
        %v5393 = vmul.f32 %v5340, 1.442695
        %v5394 = vpow.pop %v5393
        %v5395 = vmul.f32 %v5341, 1.442695
        %v5396 = vpow.pop %v5395
        %v5397 = vmul.f32 %v5342, 1.442695
        %v5398 = vpow.pop %v5397
        %v5399 = vmul.f32 %v5343, 1.442695
        %v5400 = vpow.pop %v5399
        %v5401 = vmul.f32 %v5344, 1.442695
        %v5402 = vpow.pop %v5401
        %v5403 = vmul.f32 %v5345, 1.442695
        %v5404 = vpow.pop %v5403
        %v5405 = vmul.f32 %v5346, 1.442695
        %v5406 = vpow.pop %v5405
        %v5407 = vmul.f32 %v5347, 1.442695
        %v5408 = vpow.pop %v5407
        %v5409 = vmul.f32 %v5348, 1.442695
        %v5410 = vpow.pop %v5409
        %v5411 = vmul.f32 %v5349, 1.442695
        %v5412 = vpow.pop %v5411
        %v5413 = vmul.f32 %v5350, 1.442695
        %v5414 = vpow.pop %v5413
        %v5415 = vadd.f32 %v5352, %v5354
        %5416 = vadd.xlane.f32.xlu0 %v5415
        %v5417 = vpop.xlane.xlu0 %5416
        %v5418 = vadd.f32 %v5356, %v5358
        %5419 = vadd.xlane.f32.xlu0 %v5418
        %v5420 = vpop.xlane.xlu0 %5419
        %v5421 = vadd.f32 %v5360, %v5362
        %5422 = vadd.xlane.f32.xlu0 %v5421
        %v5423 = vpop.xlane.xlu0 %5422
        %v5424 = vadd.f32 %v5364, %v5366
        %5425 = vadd.xlane.f32.xlu0 %v5424
        %v5426 = vpop.xlane.xlu0 %5425
        %v5427 = vadd.f32 %v5368, %v5370
        %5428 = vadd.xlane.f32.xlu0 %v5427
        %v5429 = vpop.xlane.xlu0 %5428
        %v5430 = vadd.f32 %v5372, %v5374
        %5431 = vadd.xlane.f32.xlu0 %v5430
        %v5432 = vpop.xlane.xlu0 %5431
        %v5433 = vadd.f32 %v5376, %v5378
        %5434 = vadd.xlane.f32.xlu0 %v5433
        %v5435 = vpop.xlane.xlu0 %5434
        %v5436 = vadd.f32 %v5380, %v5382
        %5437 = vadd.xlane.f32.xlu0 %v5436
        %v5438 = vpop.xlane.xlu0 %5437
        %v5439 = vadd.f32 %v5384, %v5386
        %5440 = vadd.xlane.f32.xlu0 %v5439
        %v5441 = vpop.xlane.xlu0 %5440
        %v5442 = vadd.f32 %v5388, %v5390
        %5443 = vadd.xlane.f32.xlu0 %v5442
        %v5444 = vpop.xlane.xlu0 %5443
        %v5445 = vadd.f32 %v5392, %v5394
        %5446 = vadd.xlane.f32.xlu0 %v5445
        %v5447 = vpop.xlane.xlu0 %5446
        %v5448 = vadd.f32 %v5396, %v5398
        %5449 = vadd.xlane.f32.xlu0 %v5448
        %v5450 = vpop.xlane.xlu0 %5449
        %v5451 = vadd.f32 %v5400, %v5402
        %5452 = vadd.xlane.f32.xlu0 %v5451
        %v5453 = vpop.xlane.xlu0 %5452
        %v5454 = vadd.f32 %v5404, %v5406
        %5455 = vadd.xlane.f32.xlu0 %v5454
        %v5456 = vpop.xlane.xlu0 %5455
        %v5457 = vadd.f32 %v5408, %v5410
        %5458 = vadd.xlane.f32.xlu0 %v5457
        %v5459 = vpop.xlane.xlu0 %5458
        %v5460 = vadd.f32 %v5412, %v5414
        %5461 = vadd.xlane.f32.xlu0 %v5460
        %v5462 = vpop.xlane.xlu0 %5461
        %v5463 = vrcp.pop %v5417
        %v5464 = vrcp.pop %v5420
        %v5465 = vrcp.pop %v5423
        %v5466 = vrcp.pop %v5426
        %v5467 = vrcp.pop %v5429
        %v5468 = vrcp.pop %v5432
        %v5469 = vrcp.pop %v5435
        %v5470 = vrcp.pop %v5438
        %v5471 = vrcp.pop %v5441
        %v5472 = vrcp.pop %v5444
        %v5473 = vrcp.pop %v5447
        %v5474 = vrcp.pop %v5450
        %v5475 = vrcp.pop %v5453
        %v5476 = vrcp.pop %v5456
        %v5477 = vrcp.pop %v5459
        %v5478 = vrcp.pop %v5462
        %v5479 = vmul.f32 %v5352, %v5463
        %v5480 = vmul.f32 %v5354, %v5463
        %v5481 = vmul.f32 %v5356, %v5464
        %v5482 = vmul.f32 %v5358, %v5464
        %v5483 = vmul.f32 %v5360, %v5465
        %v5484 = vmul.f32 %v5362, %v5465
        %v5485 = vmul.f32 %v5364, %v5466
        %v5486 = vmul.f32 %v5366, %v5466
        %v5487 = vmul.f32 %v5368, %v5467
        %v5488 = vmul.f32 %v5370, %v5467
        %v5489 = vmul.f32 %v5372, %v5468
        %v5490 = vmul.f32 %v5374, %v5468
        %v5491 = vmul.f32 %v5376, %v5469
        %v5492 = vmul.f32 %v5378, %v5469
        %v5493 = vmul.f32 %v5380, %v5470
        %v5494 = vmul.f32 %v5382, %v5470
        %v5495 = vmul.f32 %v5384, %v5471
        %v5496 = vmul.f32 %v5386, %v5471
        %v5497 = vmul.f32 %v5388, %v5472
        %v5498 = vmul.f32 %v5390, %v5472
        %v5499 = vmul.f32 %v5392, %v5473
        %v5500 = vmul.f32 %v5394, %v5473
        %v5501 = vmul.f32 %v5396, %v5474
        %v5502 = vmul.f32 %v5398, %v5474
        %v5503 = vmul.f32 %v5400, %v5475
        %v5504 = vmul.f32 %v5402, %v5475
        %v5505 = vmul.f32 %v5404, %v5476
        %v5506 = vmul.f32 %v5406, %v5476
        %v5507 = vmul.f32 %v5408, %v5477
        %v5508 = vmul.f32 %v5410, %v5477
        %v5509 = vmul.f32 %v5412, %v5478
        %v5510 = vmul.f32 %v5414, %v5478
        %vm5511 = vcmp.ge.s32.totalorder %v1087, 24
        %vm5512 = vcmp.lt.s32.totalorder %v1087, 28
        %vm5513 = vmand %vm5511, %vm5512
        %v5514 = vsel %vm5513, 1, 0
        %vm5515 = vcmp.eq.s32.totalorder %v5514, 1
        %v5516 = vsel %vm5515, %v535, 0.0
        %v5517 = vsel %vm5515, %v540, 0.0
        %v5518 = vsel %vm5515, %v545, 0.0
        %v5519 = vsel %vm5515, %v550, 0.0
        %v5520 = vsel %vm5515, %v555, 0.0
        %v5521 = vsel %vm5515, %v560, 0.0
        %v5522 = vsel %vm5515, %v565, 0.0
        %v5523 = vsel %vm5515, %v570, 0.0
        %v5524 = vsel %vm5515, %v575, 0.0
        %v5525 = vsel %vm5515, %v580, 0.0
        %v5526 = vsel %vm5515, %v585, 0.0
        %v5527 = vsel %vm5515, %v590, 0.0
        %v5528 = vsel %vm5515, %v595, 0.0
        %v5529 = vsel %vm5515, %v600, 0.0
        %v5530 = vsel %vm5515, %v605, 0.0
        %v5531 = vsel %vm5515, %v610, 0.0
        %v5532 = vsel %vm5515, %v615, 0.0
        %v5533 = vsel %vm5515, %v620, 0.0
        %v5534 = vsel %vm5515, %v625, 0.0
        %v5535 = vsel %vm5515, %v630, 0.0
        %v5536 = vsel %vm5515, %v635, 0.0
        %v5537 = vsel %vm5515, %v640, 0.0
        %v5538 = vsel %vm5515, %v645, 0.0
        %v5539 = vsel %vm5515, %v650, 0.0
        %v5540 = vsel %vm5515, %v655, 0.0
        %v5541 = vsel %vm5515, %v660, 0.0
        %v5542 = vsel %vm5515, %v665, 0.0
        %v5543 = vsel %vm5515, %v670, 0.0
        %v5544 = vsel %vm5515, %v675, 0.0
        %v5545 = vsel %vm5515, %v680, 0.0
        %v5546 = vsel %vm5515, %v685, 0.0
        %v5547 = vsel %vm5515, %v690, 0.0
        %v5548 = vpack.c.bf16 %v5517, %v5516
        %v5549 = vpack.c.bf16 %v5519, %v5518
        %v5550 = vpack.c.bf16 %v5521, %v5520
        %v5551 = vpack.c.bf16 %v5523, %v5522
        %v5552 = vpack.c.bf16 %v5525, %v5524
        %v5553 = vpack.c.bf16 %v5527, %v5526
        %v5554 = vpack.c.bf16 %v5529, %v5528
        %v5555 = vpack.c.bf16 %v5531, %v5530
        %v5556 = vpack.c.bf16 %v5533, %v5532
        %v5557 = vpack.c.bf16 %v5535, %v5534
        %v5558 = vpack.c.bf16 %v5537, %v5536
        %v5559 = vpack.c.bf16 %v5539, %v5538
        %v5560 = vpack.c.bf16 %v5541, %v5540
        %v5561 = vpack.c.bf16 %v5543, %v5542
        %v5562 = vpack.c.bf16 %v5545, %v5544
        %v5563 = vpack.c.bf16 %v5547, %v5546
        %v5564 = vpack.c.bf16 %v5481, %v5479
        %v5565 = vpack.c.bf16 %v5482, %v5480
        %v5566 = vpack.c.bf16 %v5485, %v5483
        %v5567 = vpack.c.bf16 %v5486, %v5484
        %v5568 = vpack.c.bf16 %v5489, %v5487
        %v5569 = vpack.c.bf16 %v5490, %v5488
        %v5570 = vpack.c.bf16 %v5493, %v5491
        %v5571 = vpack.c.bf16 %v5494, %v5492
        %v5572 = vpack.c.bf16 %v5497, %v5495
        %v5573 = vpack.c.bf16 %v5498, %v5496
        %v5574 = vpack.c.bf16 %v5501, %v5499
        %v5575 = vpack.c.bf16 %v5502, %v5500
        %v5576 = vpack.c.bf16 %v5505, %v5503
        %v5577 = vpack.c.bf16 %v5506, %v5504
        %v5578 = vpack.c.bf16 %v5509, %v5507
        %v5579 = vpack.c.bf16 %v5510, %v5508
        %5580 = vmatprep.subr.bf16.mxu0 0
        %5581 = vmatpush1.bf16.msra.mxu0 %v5555
        %5582 = vmatprep.subr.bf16.mxu0 0
        %5583 = vmatpush1.bf16.msra.mxu0 %v5554
        %5584 = vmatprep.subr.bf16.mxu0 0
        %5585 = vmatpush1.bf16.msra.mxu0 %v5553
        %5586 = vmatprep.subr.bf16.mxu0 0
        %5587 = vmatpush1.bf16.msra.mxu0 %v5552
        %5588 = vmatprep.subr.bf16.mxu0 0
        %5589 = vmatpush1.bf16.msra.mxu0 %v5551
        %5590 = vmatprep.subr.bf16.mxu0 0
        %5591 = vmatpush1.bf16.msra.mxu0 %v5550
        %5592 = vmatprep.subr.bf16.mxu0 0
        %5593 = vmatpush1.bf16.msra.mxu0 %v5549
        %5594 = vmatprep.subr.bf16.mxu0 0
        %5595 = vmatpush1.bf16.msra.mxu0 %v5548
        %5596 = vmatprep.subr.bf16.mxu0 0
        %5597 = vmatpush2.bf16.msra.mxu0 %v5563
        %5598 = vmatprep.subr.bf16.mxu0 0
        %5599 = vmatpush2.bf16.msra.mxu0 %v5562
        %5600 = vmatprep.subr.bf16.mxu0 0
        %5601 = vmatpush2.bf16.msra.mxu0 %v5561
        %5602 = vmatprep.subr.bf16.mxu0 0
        %5603 = vmatpush2.bf16.msra.mxu0 %v5560
        %5604 = vmatprep.subr.bf16.mxu0 0
        %5605 = vmatpush2.bf16.msra.mxu0 %v5559
        %5606 = vmatprep.subr.bf16.mxu0 0
        %5607 = vmatpush2.bf16.msra.mxu0 %v5558
        %5608 = vmatprep.subr.bf16.mxu0 0
        %5609 = vmatpush2.bf16.msra.mxu0 %v5557
        %5610 = vmatprep.subr.bf16.mxu0 0
        %5611 = vmatpush2.bf16.msra.mxu0 %v5556
        %5612 = vmatprep.mubr.bf16.mxu0 %v5565
        %5613 = vmatmul.mubr.bf16.gmra.mxu0 %v5564
        %v5614 = vpop.f32.mrf.mxu0
        %v5615 = vadd.f32 0.0, %v5614
        %v5616 = vpop.f32.mrf.mxu0
        %v5617 = vpop.f32.mrf.mxu0
        %v5618 = vadd.f32 0.0, %v5617
        %v5619 = vpop.f32.mrf.mxu0
        %5620 = vmatprep.mubr.bf16.mxu0 %v5567
        %5621 = vmatmul.mubr.bf16.gmra.mxu0 %v5566
        %v5622 = vpop.f32.mrf.mxu0
        %v5623 = vadd.f32 0.0, %v5622
        %v5624 = vpop.f32.mrf.mxu0
        %v5625 = vpop.f32.mrf.mxu0
        %v5626 = vadd.f32 0.0, %v5625
        %v5627 = vpop.f32.mrf.mxu0
        %5628 = vmatprep.mubr.bf16.mxu0 %v5569
        %5629 = vmatmul.mubr.bf16.gmra.mxu0 %v5568
        %v5630 = vpop.f32.mrf.mxu0
        %v5631 = vadd.f32 0.0, %v5630
        %v5632 = vpop.f32.mrf.mxu0
        %v5633 = vpop.f32.mrf.mxu0
        %v5634 = vadd.f32 0.0, %v5633
        %v5635 = vpop.f32.mrf.mxu0
        %5636 = vmatprep.mubr.bf16.mxu0 %v5571
        %5637 = vmatmul.mubr.bf16.gmra.mxu0 %v5570
        %v5638 = vpop.f32.mrf.mxu0
        %v5639 = vadd.f32 0.0, %v5638
        %v5640 = vpop.f32.mrf.mxu0
        %v5641 = vpop.f32.mrf.mxu0
        %v5642 = vadd.f32 0.0, %v5641
        %v5643 = vpop.f32.mrf.mxu0
        %5644 = vmatprep.mubr.bf16.mxu0 %v5573
        %5645 = vmatmul.mubr.bf16.gmra.mxu0 %v5572
        %v5646 = vpop.f32.mrf.mxu0
        %v5647 = vadd.f32 0.0, %v5646
        %v5648 = vpop.f32.mrf.mxu0
        %v5649 = vpop.f32.mrf.mxu0
        %v5650 = vadd.f32 0.0, %v5649
        %v5651 = vpop.f32.mrf.mxu0
        %5652 = vmatprep.mubr.bf16.mxu0 %v5575
        %5653 = vmatmul.mubr.bf16.gmra.mxu0 %v5574
        %v5654 = vpop.f32.mrf.mxu0
        %v5655 = vadd.f32 0.0, %v5654
        %v5656 = vpop.f32.mrf.mxu0
        %v5657 = vpop.f32.mrf.mxu0
        %v5658 = vadd.f32 0.0, %v5657
        %v5659 = vpop.f32.mrf.mxu0
        %5660 = vmatprep.mubr.bf16.mxu0 %v5577
        %5661 = vmatmul.mubr.bf16.gmra.mxu0 %v5576
        %v5662 = vpop.f32.mrf.mxu0
        %v5663 = vadd.f32 0.0, %v5662
        %v5664 = vpop.f32.mrf.mxu0
        %v5665 = vpop.f32.mrf.mxu0
        %v5666 = vadd.f32 0.0, %v5665
        %v5667 = vpop.f32.mrf.mxu0
        %5668 = vmatprep.mubr.bf16.mxu0 %v5579
        %5669 = vmatmul.mubr.bf16.gmra.mxu0 %v5578
        %v5670 = vpop.f32.mrf.mxu0
        %v5671 = vadd.f32 0.0, %v5670
        %v5672 = vpop.f32.mrf.mxu0
        %v5673 = vpop.f32.mrf.mxu0
        %v5674 = vadd.f32 0.0, %v5673
        %v5675 = vpop.f32.mrf.mxu0
        %5676 = vdwg.mxu0
        %v5677 = vadd.f32 %v5015, %v5615
        %v5678 = vadd.f32 %v5016, %v5618
        %v5679 = vadd.f32 %v5017, %v5623
        %v5680 = vadd.f32 %v5018, %v5626
        %v5681 = vadd.f32 %v5019, %v5631
        %v5682 = vadd.f32 %v5020, %v5634
        %v5683 = vadd.f32 %v5021, %v5639
        %v5684 = vadd.f32 %v5022, %v5642
        %v5685 = vadd.f32 %v5023, %v5647
        %v5686 = vadd.f32 %v5024, %v5650
        %v5687 = vadd.f32 %v5025, %v5655
        %v5688 = vadd.f32 %v5026, %v5658
        %v5689 = vadd.f32 %v5027, %v5663
        %v5690 = vadd.f32 %v5028, %v5666
        %v5691 = vadd.f32 %v5029, %v5671
        %v5692 = vadd.f32 %v5030, %v5674
        %vm5693 = vcmp.eq.s32.totalorder %v1087, 7
        %v5694 = vsel %vm5693, %v896, 0.0
        %v5695 = vsel %vm5693, %v901, 0.0
        %v5696 = vsel %vm5693, %v906, 0.0
        %v5697 = vsel %vm5693, %v911, 0.0
        %v5698 = vsel %vm5693, %v916, 0.0
        %v5699 = vsel %vm5693, %v921, 0.0
        %v5700 = vsel %vm5693, %v926, 0.0
        %v5701 = vsel %vm5693, %v931, 0.0
        %v5702 = vsel %vm5693, %v936, 0.0
        %v5703 = vsel %vm5693, %v941, 0.0
        %v5704 = vsel %vm5693, %v946, 0.0
        %v5705 = vsel %vm5693, %v951, 0.0
        %v5706 = vsel %vm5693, %v956, 0.0
        %v5707 = vsel %vm5693, %v961, 0.0
        %v5708 = vsel %vm5693, %v966, 0.0
        %v5709 = vsel %vm5693, %v971, 0.0
        %v5710 = vsel %vm1107, %v5694, 0.0
        %5711 = vadd.xlane.f32.xlu0 %v5710
        %v5712 = vpop.xlane.xlu0 %5711
        %v5713 = vsel %vm1107, %v5695, 0.0
        %5714 = vadd.xlane.f32.xlu0 %v5713
        %v5715 = vpop.xlane.xlu0 %5714
        %v5716 = vsel %vm1107, %v5696, 0.0
        %5717 = vadd.xlane.f32.xlu0 %v5716
        %v5718 = vpop.xlane.xlu0 %5717
        %v5719 = vsel %vm1107, %v5697, 0.0
        %5720 = vadd.xlane.f32.xlu0 %v5719
        %v5721 = vpop.xlane.xlu0 %5720
        %v5722 = vsel %vm1107, %v5698, 0.0
        %5723 = vadd.xlane.f32.xlu0 %v5722
        %v5724 = vpop.xlane.xlu0 %5723
        %v5725 = vsel %vm1107, %v5699, 0.0
        %5726 = vadd.xlane.f32.xlu0 %v5725
        %v5727 = vpop.xlane.xlu0 %5726
        %v5728 = vsel %vm1107, %v5700, 0.0
        %5729 = vadd.xlane.f32.xlu0 %v5728
        %v5730 = vpop.xlane.xlu0 %5729
        %v5731 = vsel %vm1107, %v5701, 0.0
        %5732 = vadd.xlane.f32.xlu0 %v5731
        %v5733 = vpop.xlane.xlu0 %5732
        %v5734 = vsel %vm1107, %v5702, 0.0
        %5735 = vadd.xlane.f32.xlu0 %v5734
        %v5736 = vpop.xlane.xlu0 %5735
        %v5737 = vsel %vm1107, %v5703, 0.0
        %5738 = vadd.xlane.f32.xlu0 %v5737
        %v5739 = vpop.xlane.xlu0 %5738
        %v5740 = vsel %vm1107, %v5704, 0.0
        %5741 = vadd.xlane.f32.xlu0 %v5740
        %v5742 = vpop.xlane.xlu0 %5741
        %v5743 = vsel %vm1107, %v5705, 0.0
        %5744 = vadd.xlane.f32.xlu0 %v5743
        %v5745 = vpop.xlane.xlu0 %5744
        %v5746 = vsel %vm1107, %v5706, 0.0
        %5747 = vadd.xlane.f32.xlu0 %v5746
        %v5748 = vpop.xlane.xlu0 %5747
        %v5749 = vsel %vm1107, %v5707, 0.0
        %5750 = vadd.xlane.f32.xlu0 %v5749
        %v5751 = vpop.xlane.xlu0 %5750
        %v5752 = vsel %vm1107, %v5708, 0.0
        %5753 = vadd.xlane.f32.xlu0 %v5752
        %v5754 = vpop.xlane.xlu0 %5753
        %v5755 = vsel %vm1107, %v5709, 0.0
        %5756 = vadd.xlane.f32.xlu0 %v5755
        %v5757 = vpop.xlane.xlu0 %5756
        %vm5758 = vcmp.eq.s32.totalorder %v1089, 7
        %v5759 = vsel %vm5758, %v793, 0.0
        %v5760 = vsel %vm5758, %v795, 0.0
        %v5761 = vrot.slane %v5759, 4
        %v5762 = vadd.f32 %v5759, %v5761
        %v5763 = vrot.slane %v5762, 2
        %v5764 = vadd.f32 %v5762, %v5763
        %v5765 = vrot.slane %v5764, 1
        %v5766 = vadd.f32 %v5764, %v5765
        %v5767 = vrot.slane %v5760, 4
        %v5768 = vadd.f32 %v5760, %v5767
        %v5769 = vrot.slane %v5768, 2
        %v5770 = vadd.f32 %v5768, %v5769
        %v5771 = vrot.slane %v5770, 1
        %v5772 = vadd.f32 %v5770, %v5771
        %v5773 = vadd.f32 %v5712, %v5766
        %v5774 = vadd.f32 %v5712, %v5772
        %v5775 = vadd.f32 %v5715, %v5766
        %v5776 = vadd.f32 %v5715, %v5772
        %v5777 = vadd.f32 %v5718, %v5766
        %v5778 = vadd.f32 %v5718, %v5772
        %v5779 = vadd.f32 %v5721, %v5766
        %v5780 = vadd.f32 %v5721, %v5772
        %v5781 = vadd.f32 %v5724, %v5766
        %v5782 = vadd.f32 %v5724, %v5772
        %v5783 = vadd.f32 %v5727, %v5766
        %v5784 = vadd.f32 %v5727, %v5772
        %v5785 = vadd.f32 %v5730, %v5766
        %v5786 = vadd.f32 %v5730, %v5772
        %v5787 = vadd.f32 %v5733, %v5766
        %v5788 = vadd.f32 %v5733, %v5772
        %v5789 = vadd.f32 %v5736, %v5766
        %v5790 = vadd.f32 %v5736, %v5772
        %v5791 = vadd.f32 %v5739, %v5766
        %v5792 = vadd.f32 %v5739, %v5772
        %v5793 = vadd.f32 %v5742, %v5766
        %v5794 = vadd.f32 %v5742, %v5772
        %v5795 = vadd.f32 %v5745, %v5766
        %v5796 = vadd.f32 %v5745, %v5772
        %v5797 = vadd.f32 %v5748, %v5766
        %v5798 = vadd.f32 %v5748, %v5772
        %v5799 = vadd.f32 %v5751, %v5766
        %v5800 = vadd.f32 %v5751, %v5772
        %v5801 = vadd.f32 %v5754, %v5766
        %v5802 = vadd.f32 %v5754, %v5772
        %v5803 = vadd.f32 %v5757, %v5766
        %v5804 = vadd.f32 %v5757, %v5772
        %vm5805 = vcmp.ge.f32.partialorder %v5773, 0.0
        %vm5806 = vcmp.ge.f32.partialorder %v5774, 0.0
        %vm5807 = vcmp.ge.f32.partialorder %v5775, 0.0
        %vm5808 = vcmp.ge.f32.partialorder %v5776, 0.0
        %vm5809 = vcmp.ge.f32.partialorder %v5777, 0.0
        %vm5810 = vcmp.ge.f32.partialorder %v5778, 0.0
        %vm5811 = vcmp.ge.f32.partialorder %v5779, 0.0
        %vm5812 = vcmp.ge.f32.partialorder %v5780, 0.0
        %vm5813 = vcmp.ge.f32.partialorder %v5781, 0.0
        %vm5814 = vcmp.ge.f32.partialorder %v5782, 0.0
        %vm5815 = vcmp.ge.f32.partialorder %v5783, 0.0
        %vm5816 = vcmp.ge.f32.partialorder %v5784, 0.0
        %vm5817 = vcmp.ge.f32.partialorder %v5785, 0.0
        %vm5818 = vcmp.ge.f32.partialorder %v5786, 0.0
        %vm5819 = vcmp.ge.f32.partialorder %v5787, 0.0
        %vm5820 = vcmp.ge.f32.partialorder %v5788, 0.0
        %vm5821 = vcmp.ge.f32.partialorder %v5789, 0.0
        %vm5822 = vcmp.ge.f32.partialorder %v5790, 0.0
        %vm5823 = vcmp.ge.f32.partialorder %v5791, 0.0
        %vm5824 = vcmp.ge.f32.partialorder %v5792, 0.0
        %vm5825 = vcmp.ge.f32.partialorder %v5793, 0.0
        %vm5826 = vcmp.ge.f32.partialorder %v5794, 0.0
        %vm5827 = vcmp.ge.f32.partialorder %v5795, 0.0
        %vm5828 = vcmp.ge.f32.partialorder %v5796, 0.0
        %vm5829 = vcmp.ge.f32.partialorder %v5797, 0.0
        %vm5830 = vcmp.ge.f32.partialorder %v5798, 0.0
        %vm5831 = vcmp.ge.f32.partialorder %v5799, 0.0
        %vm5832 = vcmp.ge.f32.partialorder %v5800, 0.0
        %vm5833 = vcmp.ge.f32.partialorder %v5801, 0.0
        %vm5834 = vcmp.ge.f32.partialorder %v5802, 0.0
        %vm5835 = vcmp.ge.f32.partialorder %v5803, 0.0
        %vm5836 = vcmp.ge.f32.partialorder %v5804, 0.0
        %v5837 = vmul.f32 %v5773, 0.2
        %v5838 = vmul.f32 %v5774, 0.2
        %v5839 = vmul.f32 %v5775, 0.2
        %v5840 = vmul.f32 %v5776, 0.2
        %v5841 = vmul.f32 %v5777, 0.2
        %v5842 = vmul.f32 %v5778, 0.2
        %v5843 = vmul.f32 %v5779, 0.2
        %v5844 = vmul.f32 %v5780, 0.2
        %v5845 = vmul.f32 %v5781, 0.2
        %v5846 = vmul.f32 %v5782, 0.2
        %v5847 = vmul.f32 %v5783, 0.2
        %v5848 = vmul.f32 %v5784, 0.2
        %v5849 = vmul.f32 %v5785, 0.2
        %v5850 = vmul.f32 %v5786, 0.2
        %v5851 = vmul.f32 %v5787, 0.2
        %v5852 = vmul.f32 %v5788, 0.2
        %v5853 = vmul.f32 %v5789, 0.2
        %v5854 = vmul.f32 %v5790, 0.2
        %v5855 = vmul.f32 %v5791, 0.2
        %v5856 = vmul.f32 %v5792, 0.2
        %v5857 = vmul.f32 %v5793, 0.2
        %v5858 = vmul.f32 %v5794, 0.2
        %v5859 = vmul.f32 %v5795, 0.2
        %v5860 = vmul.f32 %v5796, 0.2
        %v5861 = vmul.f32 %v5797, 0.2
        %v5862 = vmul.f32 %v5798, 0.2
        %v5863 = vmul.f32 %v5799, 0.2
        %v5864 = vmul.f32 %v5800, 0.2
        %v5865 = vmul.f32 %v5801, 0.2
        %v5866 = vmul.f32 %v5802, 0.2
        %v5867 = vmul.f32 %v5803, 0.2
        %v5868 = vmul.f32 %v5804, 0.2
        %v5869 = vsel %vm5805, %v5773, %v5837
        %v5870 = vsel %vm5806, %v5774, %v5838
        %v5871 = vsel %vm5807, %v5775, %v5839
        %v5872 = vsel %vm5808, %v5776, %v5840
        %v5873 = vsel %vm5809, %v5777, %v5841
        %v5874 = vsel %vm5810, %v5778, %v5842
        %v5875 = vsel %vm5811, %v5779, %v5843
        %v5876 = vsel %vm5812, %v5780, %v5844
        %v5877 = vsel %vm5813, %v5781, %v5845
        %v5878 = vsel %vm5814, %v5782, %v5846
        %v5879 = vsel %vm5815, %v5783, %v5847
        %v5880 = vsel %vm5816, %v5784, %v5848
        %v5881 = vsel %vm5817, %v5785, %v5849
        %v5882 = vsel %vm5818, %v5786, %v5850
        %v5883 = vsel %vm5819, %v5787, %v5851
        %v5884 = vsel %vm5820, %v5788, %v5852
        %v5885 = vsel %vm5821, %v5789, %v5853
        %v5886 = vsel %vm5822, %v5790, %v5854
        %v5887 = vsel %vm5823, %v5791, %v5855
        %v5888 = vsel %vm5824, %v5792, %v5856
        %v5889 = vsel %vm5825, %v5793, %v5857
        %v5890 = vsel %vm5826, %v5794, %v5858
        %v5891 = vsel %vm5827, %v5795, %v5859
        %v5892 = vsel %vm5828, %v5796, %v5860
        %v5893 = vsel %vm5829, %v5797, %v5861
        %v5894 = vsel %vm5830, %v5798, %v5862
        %v5895 = vsel %vm5831, %v5799, %v5863
        %v5896 = vsel %vm5832, %v5800, %v5864
        %v5897 = vsel %vm5833, %v5801, %v5865
        %v5898 = vsel %vm5834, %v5802, %v5866
        %v5899 = vsel %vm5835, %v5803, %v5867
        %v5900 = vsel %vm5836, %v5804, %v5868
        %v5901 = vadd.f32 %v5869, %v1054
        %v5902 = vadd.f32 %v5870, %v1055
        %v5903 = vadd.f32 %v5871, %v1056
        %v5904 = vadd.f32 %v5872, %v1057
        %v5905 = vadd.f32 %v5873, %v1058
        %v5906 = vadd.f32 %v5874, %v1059
        %v5907 = vadd.f32 %v5875, %v1060
        %v5908 = vadd.f32 %v5876, %v1061
        %v5909 = vadd.f32 %v5877, %v1062
        %v5910 = vadd.f32 %v5878, %v1063
        %v5911 = vadd.f32 %v5879, %v1064
        %v5912 = vadd.f32 %v5880, %v1065
        %v5913 = vadd.f32 %v5881, %v1066
        %v5914 = vadd.f32 %v5882, %v1067
        %v5915 = vadd.f32 %v5883, %v1068
        %v5916 = vadd.f32 %v5884, %v1069
        %v5917 = vadd.f32 %v5885, %v1070
        %v5918 = vadd.f32 %v5886, %v1071
        %v5919 = vadd.f32 %v5887, %v1072
        %v5920 = vadd.f32 %v5888, %v1073
        %v5921 = vadd.f32 %v5889, %v1074
        %v5922 = vadd.f32 %v5890, %v1075
        %v5923 = vadd.f32 %v5891, %v1076
        %v5924 = vadd.f32 %v5892, %v1077
        %v5925 = vadd.f32 %v5893, %v1078
        %v5926 = vadd.f32 %v5894, %v1079
        %v5927 = vadd.f32 %v5895, %v1080
        %v5928 = vadd.f32 %v5896, %v1081
        %v5929 = vadd.f32 %v5897, %v1082
        %v5930 = vadd.f32 %v5898, %v1083
        %v5931 = vadd.f32 %v5899, %v1084
        %v5932 = vadd.f32 %v5900, %v1085
        %v5933 = vmax.f32 %v5901, %v5902
        %5934 = vmax.xlane.f32.xlu0 %v5933
        %v5935 = vpop.xlane.xlu0 %5934
        %v5936 = vmax.f32 %v5903, %v5904
        %5937 = vmax.xlane.f32.xlu0 %v5936
        %v5938 = vpop.xlane.xlu0 %5937
        %v5939 = vmax.f32 %v5905, %v5906
        %5940 = vmax.xlane.f32.xlu0 %v5939
        %v5941 = vpop.xlane.xlu0 %5940
        %v5942 = vmax.f32 %v5907, %v5908
        %5943 = vmax.xlane.f32.xlu0 %v5942
        %v5944 = vpop.xlane.xlu0 %5943
        %v5945 = vmax.f32 %v5909, %v5910
        %5946 = vmax.xlane.f32.xlu0 %v5945
        %v5947 = vpop.xlane.xlu0 %5946
        %v5948 = vmax.f32 %v5911, %v5912
        %5949 = vmax.xlane.f32.xlu0 %v5948
        %v5950 = vpop.xlane.xlu0 %5949
        %v5951 = vmax.f32 %v5913, %v5914
        %5952 = vmax.xlane.f32.xlu0 %v5951
        %v5953 = vpop.xlane.xlu0 %5952
        %v5954 = vmax.f32 %v5915, %v5916
        %5955 = vmax.xlane.f32.xlu0 %v5954
        %v5956 = vpop.xlane.xlu0 %5955
        %v5957 = vmax.f32 %v5917, %v5918
        %5958 = vmax.xlane.f32.xlu0 %v5957
        %v5959 = vpop.xlane.xlu0 %5958
        %v5960 = vmax.f32 %v5919, %v5920
        %5961 = vmax.xlane.f32.xlu0 %v5960
        %v5962 = vpop.xlane.xlu0 %5961
        %v5963 = vmax.f32 %v5921, %v5922
        %5964 = vmax.xlane.f32.xlu0 %v5963
        %v5965 = vpop.xlane.xlu0 %5964
        %v5966 = vmax.f32 %v5923, %v5924
        %5967 = vmax.xlane.f32.xlu0 %v5966
        %v5968 = vpop.xlane.xlu0 %5967
        %v5969 = vmax.f32 %v5925, %v5926
        %5970 = vmax.xlane.f32.xlu0 %v5969
        %v5971 = vpop.xlane.xlu0 %5970
        %v5972 = vmax.f32 %v5927, %v5928
        %5973 = vmax.xlane.f32.xlu0 %v5972
        %v5974 = vpop.xlane.xlu0 %5973
        %v5975 = vmax.f32 %v5929, %v5930
        %5976 = vmax.xlane.f32.xlu0 %v5975
        %v5977 = vpop.xlane.xlu0 %5976
        %v5978 = vmax.f32 %v5931, %v5932
        %5979 = vmax.xlane.f32.xlu0 %v5978
        %v5980 = vpop.xlane.xlu0 %5979
        %v5981 = vsub.f32 %v5901, %v5935
        %v5982 = vsub.f32 %v5902, %v5935
        %v5983 = vsub.f32 %v5903, %v5938
        %v5984 = vsub.f32 %v5904, %v5938
        %v5985 = vsub.f32 %v5905, %v5941
        %v5986 = vsub.f32 %v5906, %v5941
        %v5987 = vsub.f32 %v5907, %v5944
        %v5988 = vsub.f32 %v5908, %v5944
        %v5989 = vsub.f32 %v5909, %v5947
        %v5990 = vsub.f32 %v5910, %v5947
        %v5991 = vsub.f32 %v5911, %v5950
        %v5992 = vsub.f32 %v5912, %v5950
        %v5993 = vsub.f32 %v5913, %v5953
        %v5994 = vsub.f32 %v5914, %v5953
        %v5995 = vsub.f32 %v5915, %v5956
        %v5996 = vsub.f32 %v5916, %v5956
        %v5997 = vsub.f32 %v5917, %v5959
        %v5998 = vsub.f32 %v5918, %v5959
        %v5999 = vsub.f32 %v5919, %v5962
        %v6000 = vsub.f32 %v5920, %v5962
        %v6001 = vsub.f32 %v5921, %v5965
        %v6002 = vsub.f32 %v5922, %v5965
        %v6003 = vsub.f32 %v5923, %v5968
        %v6004 = vsub.f32 %v5924, %v5968
        %v6005 = vsub.f32 %v5925, %v5971
        %v6006 = vsub.f32 %v5926, %v5971
        %v6007 = vsub.f32 %v5927, %v5974
        %v6008 = vsub.f32 %v5928, %v5974
        %v6009 = vsub.f32 %v5929, %v5977
        %v6010 = vsub.f32 %v5930, %v5977
        %v6011 = vsub.f32 %v5931, %v5980
        %v6012 = vsub.f32 %v5932, %v5980
        %v6013 = vmul.f32 %v5981, 1.442695
        %v6014 = vpow.pop %v6013
        %v6015 = vmul.f32 %v5982, 1.442695
        %v6016 = vpow.pop %v6015
        %v6017 = vmul.f32 %v5983, 1.442695
        %v6018 = vpow.pop %v6017
        %v6019 = vmul.f32 %v5984, 1.442695
        %v6020 = vpow.pop %v6019
        %v6021 = vmul.f32 %v5985, 1.442695
        %v6022 = vpow.pop %v6021
        %v6023 = vmul.f32 %v5986, 1.442695
        %v6024 = vpow.pop %v6023
        %v6025 = vmul.f32 %v5987, 1.442695
        %v6026 = vpow.pop %v6025
        %v6027 = vmul.f32 %v5988, 1.442695
        %v6028 = vpow.pop %v6027
        %v6029 = vmul.f32 %v5989, 1.442695
        %v6030 = vpow.pop %v6029
        %v6031 = vmul.f32 %v5990, 1.442695
        %v6032 = vpow.pop %v6031
        %v6033 = vmul.f32 %v5991, 1.442695
        %v6034 = vpow.pop %v6033
        %v6035 = vmul.f32 %v5992, 1.442695
        %v6036 = vpow.pop %v6035
        %v6037 = vmul.f32 %v5993, 1.442695
        %v6038 = vpow.pop %v6037
        %v6039 = vmul.f32 %v5994, 1.442695
        %v6040 = vpow.pop %v6039
        %v6041 = vmul.f32 %v5995, 1.442695
        %v6042 = vpow.pop %v6041
        %v6043 = vmul.f32 %v5996, 1.442695
        %v6044 = vpow.pop %v6043
        %v6045 = vmul.f32 %v5997, 1.442695
        %v6046 = vpow.pop %v6045
        %v6047 = vmul.f32 %v5998, 1.442695
        %v6048 = vpow.pop %v6047
        %v6049 = vmul.f32 %v5999, 1.442695
        %v6050 = vpow.pop %v6049
        %v6051 = vmul.f32 %v6000, 1.442695
        %v6052 = vpow.pop %v6051
        %v6053 = vmul.f32 %v6001, 1.442695
        %v6054 = vpow.pop %v6053
        %v6055 = vmul.f32 %v6002, 1.442695
        %v6056 = vpow.pop %v6055
        %v6057 = vmul.f32 %v6003, 1.442695
        %v6058 = vpow.pop %v6057
        %v6059 = vmul.f32 %v6004, 1.442695
        %v6060 = vpow.pop %v6059
        %v6061 = vmul.f32 %v6005, 1.442695
        %v6062 = vpow.pop %v6061
        %v6063 = vmul.f32 %v6006, 1.442695
        %v6064 = vpow.pop %v6063
        %v6065 = vmul.f32 %v6007, 1.442695
        %v6066 = vpow.pop %v6065
        %v6067 = vmul.f32 %v6008, 1.442695
        %v6068 = vpow.pop %v6067
        %v6069 = vmul.f32 %v6009, 1.442695
        %v6070 = vpow.pop %v6069
        %v6071 = vmul.f32 %v6010, 1.442695
        %v6072 = vpow.pop %v6071
        %v6073 = vmul.f32 %v6011, 1.442695
        %v6074 = vpow.pop %v6073
        %v6075 = vmul.f32 %v6012, 1.442695
        %v6076 = vpow.pop %v6075
        %v6077 = vadd.f32 %v6014, %v6016
        %6078 = vadd.xlane.f32.xlu0 %v6077
        %v6079 = vpop.xlane.xlu0 %6078
        %v6080 = vadd.f32 %v6018, %v6020
        %6081 = vadd.xlane.f32.xlu0 %v6080
        %v6082 = vpop.xlane.xlu0 %6081
        %v6083 = vadd.f32 %v6022, %v6024
        %6084 = vadd.xlane.f32.xlu0 %v6083
        %v6085 = vpop.xlane.xlu0 %6084
        %v6086 = vadd.f32 %v6026, %v6028
        %6087 = vadd.xlane.f32.xlu0 %v6086
        %v6088 = vpop.xlane.xlu0 %6087
        %v6089 = vadd.f32 %v6030, %v6032
        %6090 = vadd.xlane.f32.xlu0 %v6089
        %v6091 = vpop.xlane.xlu0 %6090
        %v6092 = vadd.f32 %v6034, %v6036
        %6093 = vadd.xlane.f32.xlu0 %v6092
        %v6094 = vpop.xlane.xlu0 %6093
        %v6095 = vadd.f32 %v6038, %v6040
        %6096 = vadd.xlane.f32.xlu0 %v6095
        %v6097 = vpop.xlane.xlu0 %6096
        %v6098 = vadd.f32 %v6042, %v6044
        %6099 = vadd.xlane.f32.xlu0 %v6098
        %v6100 = vpop.xlane.xlu0 %6099
        %v6101 = vadd.f32 %v6046, %v6048
        %6102 = vadd.xlane.f32.xlu0 %v6101
        %v6103 = vpop.xlane.xlu0 %6102
        %v6104 = vadd.f32 %v6050, %v6052
        %6105 = vadd.xlane.f32.xlu0 %v6104
        %v6106 = vpop.xlane.xlu0 %6105
        %v6107 = vadd.f32 %v6054, %v6056
        %6108 = vadd.xlane.f32.xlu0 %v6107
        %v6109 = vpop.xlane.xlu0 %6108
        %v6110 = vadd.f32 %v6058, %v6060
        %6111 = vadd.xlane.f32.xlu0 %v6110
        %v6112 = vpop.xlane.xlu0 %6111
        %v6113 = vadd.f32 %v6062, %v6064
        %6114 = vadd.xlane.f32.xlu0 %v6113
        %v6115 = vpop.xlane.xlu0 %6114
        %v6116 = vadd.f32 %v6066, %v6068
        %6117 = vadd.xlane.f32.xlu0 %v6116
        %v6118 = vpop.xlane.xlu0 %6117
        %v6119 = vadd.f32 %v6070, %v6072
        %6120 = vadd.xlane.f32.xlu0 %v6119
        %v6121 = vpop.xlane.xlu0 %6120
        %v6122 = vadd.f32 %v6074, %v6076
        %6123 = vadd.xlane.f32.xlu0 %v6122
        %v6124 = vpop.xlane.xlu0 %6123
        %v6125 = vrcp.pop %v6079
        %v6126 = vrcp.pop %v6082
        %v6127 = vrcp.pop %v6085
        %v6128 = vrcp.pop %v6088
        %v6129 = vrcp.pop %v6091
        %v6130 = vrcp.pop %v6094
        %v6131 = vrcp.pop %v6097
        %v6132 = vrcp.pop %v6100
        %v6133 = vrcp.pop %v6103
        %v6134 = vrcp.pop %v6106
        %v6135 = vrcp.pop %v6109
        %v6136 = vrcp.pop %v6112
        %v6137 = vrcp.pop %v6115
        %v6138 = vrcp.pop %v6118
        %v6139 = vrcp.pop %v6121
        %v6140 = vrcp.pop %v6124
        %v6141 = vmul.f32 %v6014, %v6125
        %v6142 = vmul.f32 %v6016, %v6125
        %v6143 = vmul.f32 %v6018, %v6126
        %v6144 = vmul.f32 %v6020, %v6126
        %v6145 = vmul.f32 %v6022, %v6127
        %v6146 = vmul.f32 %v6024, %v6127
        %v6147 = vmul.f32 %v6026, %v6128
        %v6148 = vmul.f32 %v6028, %v6128
        %v6149 = vmul.f32 %v6030, %v6129
        %v6150 = vmul.f32 %v6032, %v6129
        %v6151 = vmul.f32 %v6034, %v6130
        %v6152 = vmul.f32 %v6036, %v6130
        %v6153 = vmul.f32 %v6038, %v6131
        %v6154 = vmul.f32 %v6040, %v6131
        %v6155 = vmul.f32 %v6042, %v6132
        %v6156 = vmul.f32 %v6044, %v6132
        %v6157 = vmul.f32 %v6046, %v6133
        %v6158 = vmul.f32 %v6048, %v6133
        %v6159 = vmul.f32 %v6050, %v6134
        %v6160 = vmul.f32 %v6052, %v6134
        %v6161 = vmul.f32 %v6054, %v6135
        %v6162 = vmul.f32 %v6056, %v6135
        %v6163 = vmul.f32 %v6058, %v6136
        %v6164 = vmul.f32 %v6060, %v6136
        %v6165 = vmul.f32 %v6062, %v6137
        %v6166 = vmul.f32 %v6064, %v6137
        %v6167 = vmul.f32 %v6066, %v6138
        %v6168 = vmul.f32 %v6068, %v6138
        %v6169 = vmul.f32 %v6070, %v6139
        %v6170 = vmul.f32 %v6072, %v6139
        %v6171 = vmul.f32 %v6074, %v6140
        %v6172 = vmul.f32 %v6076, %v6140
        %vm6173 = vcmp.ge.s32.totalorder %v1087, 28
        %vm6174 = vcmp.lt.s32.totalorder %v1087, 32
        %vm6175 = vmand %vm6173, %vm6174
        %v6176 = vsel %vm6175, 1, 0
        %vm6177 = vcmp.eq.s32.totalorder %v6176, 1
        %v6178 = vsel %vm6177, %v535, 0.0
        %v6179 = vsel %vm6177, %v540, 0.0
        %v6180 = vsel %vm6177, %v545, 0.0
        %v6181 = vsel %vm6177, %v550, 0.0
        %v6182 = vsel %vm6177, %v555, 0.0
        %v6183 = vsel %vm6177, %v560, 0.0
        %v6184 = vsel %vm6177, %v565, 0.0
        %v6185 = vsel %vm6177, %v570, 0.0
        %v6186 = vsel %vm6177, %v575, 0.0
        %v6187 = vsel %vm6177, %v580, 0.0
        %v6188 = vsel %vm6177, %v585, 0.0
        %v6189 = vsel %vm6177, %v590, 0.0
        %v6190 = vsel %vm6177, %v595, 0.0
        %v6191 = vsel %vm6177, %v600, 0.0
        %v6192 = vsel %vm6177, %v605, 0.0
        %v6193 = vsel %vm6177, %v610, 0.0
        %v6194 = vsel %vm6177, %v615, 0.0
        %v6195 = vsel %vm6177, %v620, 0.0
        %v6196 = vsel %vm6177, %v625, 0.0
        %v6197 = vsel %vm6177, %v630, 0.0
        %v6198 = vsel %vm6177, %v635, 0.0
        %v6199 = vsel %vm6177, %v640, 0.0
        %v6200 = vsel %vm6177, %v645, 0.0
        %v6201 = vsel %vm6177, %v650, 0.0
        %v6202 = vsel %vm6177, %v655, 0.0
        %v6203 = vsel %vm6177, %v660, 0.0
        %v6204 = vsel %vm6177, %v665, 0.0
        %v6205 = vsel %vm6177, %v670, 0.0
        %v6206 = vsel %vm6177, %v675, 0.0
        %v6207 = vsel %vm6177, %v680, 0.0
        %v6208 = vsel %vm6177, %v685, 0.0
        %v6209 = vsel %vm6177, %v690, 0.0
        %v6210 = vpack.c.bf16 %v6179, %v6178
        %v6211 = vpack.c.bf16 %v6181, %v6180
        %v6212 = vpack.c.bf16 %v6183, %v6182
        %v6213 = vpack.c.bf16 %v6185, %v6184
        %v6214 = vpack.c.bf16 %v6187, %v6186
        %v6215 = vpack.c.bf16 %v6189, %v6188
        %v6216 = vpack.c.bf16 %v6191, %v6190
        %v6217 = vpack.c.bf16 %v6193, %v6192
        %v6218 = vpack.c.bf16 %v6195, %v6194
        %v6219 = vpack.c.bf16 %v6197, %v6196
        %v6220 = vpack.c.bf16 %v6199, %v6198
        %v6221 = vpack.c.bf16 %v6201, %v6200
        %v6222 = vpack.c.bf16 %v6203, %v6202
        %v6223 = vpack.c.bf16 %v6205, %v6204
        %v6224 = vpack.c.bf16 %v6207, %v6206
        %v6225 = vpack.c.bf16 %v6209, %v6208
        %v6226 = vpack.c.bf16 %v6143, %v6141
        %v6227 = vpack.c.bf16 %v6144, %v6142
        %v6228 = vpack.c.bf16 %v6147, %v6145
        %v6229 = vpack.c.bf16 %v6148, %v6146
        %v6230 = vpack.c.bf16 %v6151, %v6149
        %v6231 = vpack.c.bf16 %v6152, %v6150
        %v6232 = vpack.c.bf16 %v6155, %v6153
        %v6233 = vpack.c.bf16 %v6156, %v6154
        %v6234 = vpack.c.bf16 %v6159, %v6157
        %v6235 = vpack.c.bf16 %v6160, %v6158
        %v6236 = vpack.c.bf16 %v6163, %v6161
        %v6237 = vpack.c.bf16 %v6164, %v6162
        %v6238 = vpack.c.bf16 %v6167, %v6165
        %v6239 = vpack.c.bf16 %v6168, %v6166
        %v6240 = vpack.c.bf16 %v6171, %v6169
        %v6241 = vpack.c.bf16 %v6172, %v6170
        %6242 = vmatprep.subr.bf16.mxu0 0
        %6243 = vmatpush1.bf16.msra.mxu0 %v6217
        %6244 = vmatprep.subr.bf16.mxu0 0
        %6245 = vmatpush1.bf16.msra.mxu0 %v6216
        %6246 = vmatprep.subr.bf16.mxu0 0
        %6247 = vmatpush1.bf16.msra.mxu0 %v6215
        %6248 = vmatprep.subr.bf16.mxu0 0
        %6249 = vmatpush1.bf16.msra.mxu0 %v6214
        %6250 = vmatprep.subr.bf16.mxu0 0
        %6251 = vmatpush1.bf16.msra.mxu0 %v6213
        %6252 = vmatprep.subr.bf16.mxu0 0
        %6253 = vmatpush1.bf16.msra.mxu0 %v6212
        %6254 = vmatprep.subr.bf16.mxu0 0
        %6255 = vmatpush1.bf16.msra.mxu0 %v6211
        %6256 = vmatprep.subr.bf16.mxu0 0
        %6257 = vmatpush1.bf16.msra.mxu0 %v6210
        %6258 = vmatprep.subr.bf16.mxu0 0
        %6259 = vmatpush2.bf16.msra.mxu0 %v6225
        %6260 = vmatprep.subr.bf16.mxu0 0
        %6261 = vmatpush2.bf16.msra.mxu0 %v6224
        %6262 = vmatprep.subr.bf16.mxu0 0
        %6263 = vmatpush2.bf16.msra.mxu0 %v6223
        %6264 = vmatprep.subr.bf16.mxu0 0
        %6265 = vmatpush2.bf16.msra.mxu0 %v6222
        %6266 = vmatprep.subr.bf16.mxu0 0
        %6267 = vmatpush2.bf16.msra.mxu0 %v6221
        %6268 = vmatprep.subr.bf16.mxu0 0
        %6269 = vmatpush2.bf16.msra.mxu0 %v6220
        %6270 = vmatprep.subr.bf16.mxu0 0
        %6271 = vmatpush2.bf16.msra.mxu0 %v6219
        %6272 = vmatprep.subr.bf16.mxu0 0
        %6273 = vmatpush2.bf16.msra.mxu0 %v6218
        %6274 = vmatprep.mubr.bf16.mxu0 %v6227
        %6275 = vmatmul.mubr.bf16.gmra.mxu0 %v6226
        %v6276 = vpop.f32.mrf.mxu0
        %v6277 = vadd.f32 0.0, %v6276
        %v6278 = vpop.f32.mrf.mxu0
        %v6279 = vpop.f32.mrf.mxu0
        %v6280 = vadd.f32 0.0, %v6279
        %v6281 = vpop.f32.mrf.mxu0
        %6282 = vmatprep.mubr.bf16.mxu0 %v6229
        %6283 = vmatmul.mubr.bf16.gmra.mxu0 %v6228
        %v6284 = vpop.f32.mrf.mxu0
        %v6285 = vadd.f32 0.0, %v6284
        %v6286 = vpop.f32.mrf.mxu0
        %v6287 = vpop.f32.mrf.mxu0
        %v6288 = vadd.f32 0.0, %v6287
        %v6289 = vpop.f32.mrf.mxu0
        %6290 = vmatprep.mubr.bf16.mxu0 %v6231
        %6291 = vmatmul.mubr.bf16.gmra.mxu0 %v6230
        %v6292 = vpop.f32.mrf.mxu0
        %v6293 = vadd.f32 0.0, %v6292
        %v6294 = vpop.f32.mrf.mxu0
        %v6295 = vpop.f32.mrf.mxu0
        %v6296 = vadd.f32 0.0, %v6295
        %v6297 = vpop.f32.mrf.mxu0
        %6298 = vmatprep.mubr.bf16.mxu0 %v6233
        %6299 = vmatmul.mubr.bf16.gmra.mxu0 %v6232
        %v6300 = vpop.f32.mrf.mxu0
        %v6301 = vadd.f32 0.0, %v6300
        %v6302 = vpop.f32.mrf.mxu0
        %v6303 = vpop.f32.mrf.mxu0
        %v6304 = vadd.f32 0.0, %v6303
        %v6305 = vpop.f32.mrf.mxu0
        %6306 = vmatprep.mubr.bf16.mxu0 %v6235
        %6307 = vmatmul.mubr.bf16.gmra.mxu0 %v6234
        %v6308 = vpop.f32.mrf.mxu0
        %v6309 = vadd.f32 0.0, %v6308
        %v6310 = vpop.f32.mrf.mxu0
        %v6311 = vpop.f32.mrf.mxu0
        %v6312 = vadd.f32 0.0, %v6311
        %v6313 = vpop.f32.mrf.mxu0
        %6314 = vmatprep.mubr.bf16.mxu0 %v6237
        %6315 = vmatmul.mubr.bf16.gmra.mxu0 %v6236
        %v6316 = vpop.f32.mrf.mxu0
        %v6317 = vadd.f32 0.0, %v6316
        %v6318 = vpop.f32.mrf.mxu0
        %v6319 = vpop.f32.mrf.mxu0
        %v6320 = vadd.f32 0.0, %v6319
        %v6321 = vpop.f32.mrf.mxu0
        %6322 = vmatprep.mubr.bf16.mxu0 %v6239
        %6323 = vmatmul.mubr.bf16.gmra.mxu0 %v6238
        %v6324 = vpop.f32.mrf.mxu0
        %v6325 = vadd.f32 0.0, %v6324
        %v6326 = vpop.f32.mrf.mxu0
        %v6327 = vpop.f32.mrf.mxu0
        %v6328 = vadd.f32 0.0, %v6327
        %v6329 = vpop.f32.mrf.mxu0
        %6330 = vmatprep.mubr.bf16.mxu0 %v6241
        %6331 = vmatmul.mubr.bf16.gmra.mxu0 %v6240
        %v6332 = vpop.f32.mrf.mxu0
        %v6333 = vadd.f32 0.0, %v6332
        %v6334 = vpop.f32.mrf.mxu0
        %v6335 = vpop.f32.mrf.mxu0
        %v6336 = vadd.f32 0.0, %v6335
        %v6337 = vpop.f32.mrf.mxu0
        %6338 = vdwg.mxu0
        %v6339 = vadd.f32 %v5677, %v6277
        %v6340 = vadd.f32 %v5678, %v6280
        %v6341 = vadd.f32 %v5679, %v6285
        %v6342 = vadd.f32 %v5680, %v6288
        %v6343 = vadd.f32 %v5681, %v6293
        %v6344 = vadd.f32 %v5682, %v6296
        %v6345 = vadd.f32 %v5683, %v6301
        %v6346 = vadd.f32 %v5684, %v6304
        %v6347 = vadd.f32 %v5685, %v6309
        %v6348 = vadd.f32 %v5686, %v6312
        %v6349 = vadd.f32 %v5687, %v6317
        %v6350 = vadd.f32 %v5688, %v6320
        %v6351 = vadd.f32 %v5689, %v6325
        %v6352 = vadd.f32 %v5690, %v6328
        %v6353 = vadd.f32 %v5691, %v6333
        %v6354 = vadd.f32 %v5692, %v6336
        %v6355 = vld [vmem:[%s7] sm:$0x1]
        %v6357 = vlaneseq
        %v6358 = vshrl.u32 %v6357, 7
        %v6359 = vsub.s32 0, %v6358
        %v6360 = vrot.slane %v6355, %v6359
        %v6362 = vmul.f32 %v6339, %v6360
        %v6363 = vmul.f32 %v6340, %v6360
        %v6364 = vmul.f32 %v6341, %v6360
        %v6365 = vmul.f32 %v6342, %v6360
        %v6366 = vmul.f32 %v6343, %v6360
        %v6367 = vmul.f32 %v6344, %v6360
        %v6368 = vmul.f32 %v6345, %v6360
        %v6369 = vmul.f32 %v6346, %v6360
        %v6370 = vmul.f32 %v6347, %v6360
        %v6371 = vmul.f32 %v6348, %v6360
        %v6372 = vmul.f32 %v6349, %v6360
        %v6373 = vmul.f32 %v6350, %v6360
        %v6374 = vmul.f32 %v6351, %v6360
        %v6375 = vmul.f32 %v6352, %v6360
        %v6376 = vmul.f32 %v6353, %v6360
        %v6377 = vmul.f32 %v6354, %v6360
        %v6378 = vld [vmem:[%s8] sm:$0x1]
        %v6380 = vlaneseq
        %v6381 = vshrl.u32 %v6380, 7
        %v6382 = vsub.s32 0, %v6381
        %v6383 = vrot.slane %v6378, %v6382
        %v6385 = vadd.f32 %v6362, %v6383
        %v6386 = vadd.f32 %v6363, %v6383
        %v6387 = vadd.f32 %v6364, %v6383
        %v6388 = vadd.f32 %v6365, %v6383
        %v6389 = vadd.f32 %v6366, %v6383
        %v6390 = vadd.f32 %v6367, %v6383
        %v6391 = vadd.f32 %v6368, %v6383
        %v6392 = vadd.f32 %v6369, %v6383
        %v6393 = vadd.f32 %v6370, %v6383
        %v6394 = vadd.f32 %v6371, %v6383
        %v6395 = vadd.f32 %v6372, %v6383
        %v6396 = vadd.f32 %v6373, %v6383
        %v6397 = vadd.f32 %v6374, %v6383
        %v6398 = vadd.f32 %v6375, %v6383
        %v6399 = vadd.f32 %v6376, %v6383
        %v6400 = vadd.f32 %v6377, %v6383
        %v6401 = vadd.f32 %v6385, %v797
        %v6402 = vadd.f32 %v6386, %v798
        %v6403 = vadd.f32 %v6387, %v799
        %v6404 = vadd.f32 %v6388, %v800
        %v6405 = vadd.f32 %v6389, %v801
        %v6406 = vadd.f32 %v6390, %v802
        %v6407 = vadd.f32 %v6391, %v803
        %v6408 = vadd.f32 %v6392, %v804
        %v6409 = vadd.f32 %v6393, %v805
        %v6410 = vadd.f32 %v6394, %v806
        %v6411 = vadd.f32 %v6395, %v807
        %v6412 = vadd.f32 %v6396, %v808
        %v6413 = vadd.f32 %v6397, %v809
        %v6414 = vadd.f32 %v6398, %v810
        %v6415 = vadd.f32 %v6399, %v811
        %v6416 = vadd.f32 %v6400, %v812
        %6417 = vst [vmem:[%s415] sm:$0xff] %v6401
        %6418 = vst [vmem:[%s415 + $0x8] sm:$0xff] %v6402
        %6419 = vst [vmem:[%s415 + $0x10] sm:$0xff] %v6403
        %6420 = vst [vmem:[%s415 + $0x18] sm:$0xff] %v6404
        %6421 = vst [vmem:[%s415 + $0x20] sm:$0xff] %v6405
        %6422 = vst [vmem:[%s415 + $0x28] sm:$0xff] %v6406
        %6423 = vst [vmem:[%s415 + $0x30] sm:$0xff] %v6407
        %6424 = vst [vmem:[%s415 + $0x38] sm:$0xff] %v6408
        %6425 = vst [vmem:[%s415 + $0x40] sm:$0xff] %v6409
        %6426 = vst [vmem:[%s415 + $0x48] sm:$0xff] %v6410
        %6427 = vst [vmem:[%s415 + $0x50] sm:$0xff] %v6411
        %6428 = vst [vmem:[%s415 + $0x58] sm:$0xff] %v6412
        %6429 = vst [vmem:[%s415 + $0x60] sm:$0xff] %v6413
        %6430 = vst [vmem:[%s415 + $0x68] sm:$0xff] %v6414
        %6431 = vst [vmem:[%s415 + $0x70] sm:$0xff] %v6415
        %6432 = vst [vmem:[%s415 + $0x78] sm:$0xff] %v6416
        %s6433 = sand.u32 %s232, 1
        %s6434 = scalar_lea.sflag [#allocation4], %s6433
        %s6435 = sand.u32 %s232, 1
        %s6436 = smul.addr %s6435, 128
        %s6437 = scalar_lea.vmem [#allocation9], %s6436
        // Predicated region
        $region73: #{tpu_custom_call.1} parent=55 // pred_check
          %p6438 = pneg %p242
        $region74: #{tpu_custom_call.1} parent=55 // pred_check_branch
          %6440 = sbr.rel (%p6438) target = $region76
        $region75: #{tpu_custom_call.1} parent=55 // pred_region
          %s6441 = smul.u32 16, %s25
          %s6443 = ssub.s32 2048, 2048
          %6444 = vsyncadd %s6434, %s6443
          %s6445 = smul.addr %s6441, 128
          %s6446 = scalar_lea.hbm %s9, %s6445
          %s6447 = sshll.u32 %s6437, 4
          %s6448 = int_to_ptr.vmem [resolvable:$true] %s6447
          %6453 = dma.vmem_to_hbm [thread:$0]  %s6448, 2048, %s6446, %s6434, 128, 128, 8
        $region76: #{tpu_custom_call.1} parent=55 // pred_fallthru
          _
      $region56: #{tpu_custom_call.1} parent=5 // pred_fallthru
        _
      %p6454 = scmp.le.s32.totalorder 2, %s20
      // Predicated region
      $region77: #{tpu_custom_call.1} parent=5 // pred_check
        %p6455 = pneg %p6454
      $region78: #{tpu_custom_call.1} parent=5 // pred_check_branch
        %6457 = sbr.rel (%p6455) target = $region80
      $region79: #{tpu_custom_call.1} parent=5 // pred_region
        %s6458 = ssub.s32 %s20, 2
        // Predicated region
        $region81: #{tpu_custom_call.1} parent=79 // pred_check
          %p6459 = pneg %p248
        $region82: #{tpu_custom_call.1} parent=79 // pred_check_branch
          %6461 = sbr.rel (%p6459) target = $region84
        $region83: #{tpu_custom_call.1} parent=79 // pred_region
          %s6462 = sand.u32 %s233, 1
          %s6463 = scalar_lea.sflag [#allocation4], %s6462
          %s6464 = sand.u32 %s233, 1
          %s6465 = smul.addr %s6464, 128
          %s6466 = scalar_lea.vmem [#allocation9], %s6465
          %6467 = dma.done %s6463, 2048
        $region84: #{tpu_custom_call.1} parent=79 // pred_fallthru
          _
      $region80: #{tpu_custom_call.1} parent=5 // pred_fallthru
        _
    $region6: #{tpu_custom_call.1} parent=1 // loop_footer
      %s24 = sadd.s32 1, %s20
    $region7: #{tpu_custom_call.1} parent=1 // loop_footer_branch
      %19 = sbr.rel target = $region3
    $region8: #{tpu_custom_call.1} parent=1 // loop_exit
      _
    %6468 = vsyncpa [#allocation3], 1
    %s6469 = scalar_lea.sflag [#allocation3], 1
    %6470 = vsyncpa %s6469, 1
    %6471 = vsyncpa [#allocation6], 1
    %6472 = vsyncpa [#allocation4], 1
    %s6473 = scalar_lea.sflag [#allocation4], 1
    %6474 = vsyncpa %s6473, 1

</llo_original>
